<compile_context>
chip_gen: v7x
topology: tpu7x:2x2x1
jax: 0.10.0
libtpu: 0.0.40
codegen_flags: <defaults>
</compile_context>

<pallas_src>
import jax
import jax.numpy as jnp
from jax import lax
from jax.experimental import pallas as pl
from jax.experimental.pallas import tpu as pltpu

EPS = 1e-5


def _conv3x3_taps(src_ref, w_ref, h, w, c):
    """3x3 conv as the sum of 9 shifted matmuls -> (H*W, C) f32.

    src_ref: (H+2, W+2, C) bf16 zero-padded VMEM tile.
    w_ref:   (9, Cin, Cout) bf16 weights, tap-major (kh, kw).
    """
    hw = h * w
    acc = None
    for kh in range(3):
        for kw in range(3):
            xs = src_ref[kh:kh + h, kw:kw + w, :].reshape(hw, c)   # bf16
            d = jnp.dot(xs, w_ref[kh * 3 + kw],
                        preferred_element_type=jnp.float32)
            acc = d if acc is None else acc + d
    return acc


def _instance_norm_relu(acc, hw):
    """Affine-free InstanceNorm (biased var, single-pass stats) + ReLU."""
    inv_hw = 1.0 / hw
    s = jnp.sum(acc, axis=0, keepdims=True)            # (1, C)
    ss = jnp.sum(acc * acc, axis=0, keepdims=True)     # (1, C)
    mean = s * inv_hw
    var = jnp.maximum(ss * inv_hw - mean * mean, 0.0)
    scale = lax.rsqrt(var + EPS)                        # EUP
    return jnp.maximum((acc - mean) * scale, 0.0)


def resnet_block_kernel(x_ref, w1_ref, w2_ref, o_ref, pad_ref):
    # x_ref:   (1, H+2, W+2, C) f32  zero-padded input (one sample)
    # w*_ref:  (9, C, C) bf16        conv weights, tap-major (kh, kw)
    # o_ref:   (1, H, W, C) f32      block output
    # pad_ref: (H+2, W+2, C) bf16    reused scratch: cast x, then padded y1
    _, hp, wp, c = x_ref.shape
    h, w = hp - 2, wp - 2
    hw = h * w

    # ---- stage 1: relu(IN1(conv1(x)))
    # Single cast pass; the zero halo comes from the wrapper's jnp.pad.
    pad_ref[...] = x_ref[0].astype(jnp.bfloat16)
    acc1 = _conv3x3_taps(pad_ref, w1_ref, h, w, c)      # (HW, C) f32
    y1 = _instance_norm_relu(acc1, hw)

    # ---- re-pad y1 in registers and overwrite the scratch with one aligned
    # full store (x windows are no longer needed at this point).
    y1_3d = y1.reshape(h, w, c)
    zrow = jnp.zeros((1, w, c), jnp.float32)
    zcol = jnp.zeros((h + 2, 1, c), jnp.float32)
    y1_p = jnp.concatenate([zrow, y1_3d, zrow], axis=0)          # (H+2, W,   C)
    y1_p = jnp.concatenate([zcol, y1_p, zcol], axis=1)           # (H+2, W+2, C)
    pad_ref[...] = y1_p.astype(jnp.bfloat16)

    # ---- stage 2: relu(IN2(conv2(y1)))
    acc2 = _conv3x3_taps(pad_ref, w2_ref, h, w, c)      # (HW, C) f32
    y2 = _instance_norm_relu(acc2, hw)

    # ---- residual add with the (f32) centre of the original input
    x_center = x_ref[0, 1:h + 1, 1:w + 1, :].reshape(hw, c)
    o_ref[0] = (y2 + x_center).reshape(h, w, c).astype(o_ref.dtype)


def _weights_to_taps(w_oihw, c):
    """PyTorch conv weight (Cout, Cin, 3, 3) -> (9, Cin, Cout) bf16, tap-major."""
    return jnp.transpose(w_oihw, (2, 3, 1, 0)).reshape(9, c, c).astype(jnp.bfloat16)


@jax.jit
def resnet_block(x_nchw, w1, b1, w2, b2):
    """Pallas implementation of Resnet_Block.forward.  x_nchw: (N, C, H, W).

    b1/b2 are accepted for interface parity but unused: a per-channel conv
    bias is exactly cancelled by the affine-free InstanceNorm that follows.
    """
    del b1, b2
    n, c, h, w = x_nchw.shape

    x_nhwc = jnp.transpose(x_nchw, (0, 2, 3, 1)).astype(jnp.float32)
    x_pad = jnp.pad(x_nhwc, ((0, 0), (1, 1), (1, 1), (0, 0)))   # (N, H+2, W+2, C)

    w1t = _weights_to_taps(w1, c)
    w2t = _weights_to_taps(w2, c)

    flops = 2 * (2 * n * h * w * 9 * c * c)             # two 3x3 convs
    bytes_accessed = (x_pad.size + n * h * w * c) * 4 + (w1t.size + w2t.size) * 2

    out_nhwc = pl.pallas_call(
        resnet_block_kernel,
        out_shape=jax.ShapeDtypeStruct((n, h, w, c), jnp.float32),
        grid_spec=pltpu.PrefetchScalarGridSpec(
            num_scalar_prefetch=0,
            grid=(n,),
            in_specs=[
                pl.BlockSpec((1, h + 2, w + 2, c), lambda i: (i, 0, 0, 0)),  # x_pad
                pl.BlockSpec((9, c, c), lambda i: (0, 0, 0)),                # w1 taps
                pl.BlockSpec((9, c, c), lambda i: (0, 0, 0)),                # w2 taps
            ],
            out_specs=pl.BlockSpec((1, h, w, c), lambda i: (i, 0, 0, 0)),
            scratch_shapes=[pltpu.VMEM((h + 2, w + 2, c), jnp.bfloat16)],
        ),
        compiler_params=pltpu.CompilerParams(
            dimension_semantics=("parallel",)),
        cost_estimate=pl.CostEstimate(
            flops=flops, transcendentals=2 * n * c,
            bytes_accessed=bytes_accessed),
    )(x_pad, w1t, w2t)

    return jnp.transpose(out_nhwc, (0, 3, 1, 2))


def _reference(x, w1, b1, w2, b2):
    """Pure-JAX f32 reference (conv biases included, for verification)."""
    def conv(z, wt, bias):
        y = lax.conv_general_dilated(
            z, wt, window_strides=(1, 1), padding=((1, 1), (1, 1)),
            dimension_numbers=("NCHW", "OIHW", "NCHW"))
        return y + bias.reshape(1, -1, 1, 1)

    def inorm(y):
        m = jnp.mean(y, axis=(2, 3), keepdims=True)
        v = jnp.mean(jnp.square(y - m), axis=(2, 3), keepdims=True)
        return (y - m) * lax.rsqrt(v + EPS)

    y = jnp.maximum(inorm(conv(x, w1, b1)), 0.0)
    y = jnp.maximum(inorm(conv(y, w2, b2)), 0.0)
    return y + x


if __name__ == "__main__":
    N, C, H, W = 2, 4, 16, 16   # n_filters = 4
    key = jax.random.PRNGKey(0)
    kx, kw1, kb1, kw2, kb2 = jax.random.split(key, 5)

    x = jax.random.normal(kx, (N, C, H, W), dtype=jnp.float32)
    # Deterministic synthetic parameters (same shapes as nn.Conv2d(C, C, 3)).
    w1 = 0.1 * jax.random.normal(kw1, (C, C, 3, 3), dtype=jnp.float32)
    b1 = 0.1 * jax.random.normal(kb1, (C,), dtype=jnp.float32)
    w2 = 0.1 * jax.random.normal(kw2, (C, C, 3, 3), dtype=jnp.float32)
    b2 = 0.1 * jax.random.normal(kb2, (C,), dtype=jnp.float32)

    out = resnet_block(x, w1, b1, w2, b2)
    out = jax.block_until_ready(out)

    assert out.shape == (N, C, H, W)
    assert bool(jnp.all(jnp.isfinite(out)))

    # Correctness vs. f32 reference (bias included there; the kernel drops it
    # because IN cancels it exactly).  Tolerance covers the bf16 MXU path.
    ref = _reference(x, w1, b1, w2, b2)
    max_err = float(jnp.max(jnp.abs(out - ref)))
    assert max_err < 1e-1, f"max abs err {max_err}"

    print("KERNEL_OK")
</pallas_src>

<mosaic_0001>
module attributes {stable_mosaic.version = 11 : i64} {
  func.func @resnet_block_kernel(%arg0: i32, %arg1: memref<1x18x18x4xf32, #tpu.memory_space<vmem>>, %arg2: memref<9x4x4xbf16, #tpu.memory_space<vmem>>, %arg3: memref<9x4x4xbf16, #tpu.memory_space<vmem>>, %arg4: memref<1x16x16x4xf32, #tpu.memory_space<vmem>>, %arg5: memref<18x18x4xbf16, #tpu.memory_space<vmem>>) attributes {dimension_semantics = [#tpu.dimension_semantics<parallel>], iteration_bounds = array<i64: 2>, scalar_prefetch = 0 : i64, scratch_operands = 1 : i64, tpu.core_type = #tpu.core_type<tc>, window_params = [{transform_indices = @transform_0, window_bounds = array<i64: 1, 18, 18, 4>}, {pipeline_mode = #tpu.pipeline_mode<synchronous>, transform_indices = @transform_1, window_bounds = array<i64: 9, 4, 4>}, {pipeline_mode = #tpu.pipeline_mode<synchronous>, transform_indices = @transform_2, window_bounds = array<i64: 9, 4, 4>}, {transform_indices = @transform_3, window_bounds = array<i64: 1, 16, 16, 4>}]} {
    %c0 = arith.constant 0 : index
    %c0_0 = arith.constant 0 : index
    %c0_1 = arith.constant 0 : index
    %c0_2 = arith.constant 0 : index
    %0 = vector.load %arg1[%c0, %c0_0, %c0_1, %c0_2] : memref<1x18x18x4xf32, #tpu.memory_space<vmem>>, vector<1x18x18x4xf32>
    %1 = vector.shape_cast %0 : vector<1x18x18x4xf32> to vector<18x18x4xf32>
    %2 = arith.truncf %1 : vector<18x18x4xf32> to vector<18x18x4xbf16>
    %c0_3 = arith.constant 0 : index
    %c0_4 = arith.constant 0 : index
    %c0_5 = arith.constant 0 : index
    %3 = vector.load %arg5[%c0_3, %c0_4, %c0_5] : memref<18x18x4xbf16, #tpu.memory_space<vmem>>, vector<18x18x4xbf16>
    tpu.vector_store %arg5[%c0_3, %c0_4, %c0_5], %2 {strides = array<i32>} : memref<18x18x4xbf16, #tpu.memory_space<vmem>>, vector<18x18x4xbf16>,
    %c0_6 = arith.constant 0 : index
    %c0_7 = arith.constant 0 : index
    %c0_8 = arith.constant 0 : index
    %4 = vector.load %arg5[%c0_6, %c0_7, %c0_8] : memref<18x18x4xbf16, #tpu.memory_space<vmem>>, vector<16x16x4xbf16>
    %5 = vector.shape_cast %4 : vector<16x16x4xbf16> to vector<256x4xbf16>
    %c0_9 = arith.constant 0 : index
    %c0_10 = arith.constant 0 : index
    %c0_11 = arith.constant 0 : index
    %6 = vector.load %arg2[%c0_9, %c0_10, %c0_11] : memref<9x4x4xbf16, #tpu.memory_space<vmem>>, vector<1x4x4xbf16>
    %7 = vector.shape_cast %6 : vector<1x4x4xbf16> to vector<4x4xbf16>
    %cst = arith.constant dense<0.000000e+00> : vector<256x4xf32>
    %8 = tpu.matmul %5, %7, %cst {dimension_numbers = #tpu.dot_dimension_numbers<[1], [0], [0], [1], [0, 0, 1, 1], [], []>} : vector<256x4xbf16>, vector<4x4xbf16>, vector<256x4xf32> -> vector<256x4xf32>
    %c0_12 = arith.constant 0 : index
    %c1 = arith.constant 1 : index
    %c0_13 = arith.constant 0 : index
    %9 = vector.load %arg5[%c0_12, %c1, %c0_13] : memref<18x18x4xbf16, #tpu.memory_space<vmem>>, vector<16x16x4xbf16>
    %10 = vector.shape_cast %9 : vector<16x16x4xbf16> to vector<256x4xbf16>
    %c1_14 = arith.constant 1 : index
    %c0_15 = arith.constant 0 : index
    %c0_16 = arith.constant 0 : index
    %11 = vector.load %arg2[%c1_14, %c0_15, %c0_16] : memref<9x4x4xbf16, #tpu.memory_space<vmem>>, vector<1x4x4xbf16>
    %12 = vector.shape_cast %11 : vector<1x4x4xbf16> to vector<4x4xbf16>
    %cst_17 = arith.constant dense<0.000000e+00> : vector<256x4xf32>
    %13 = tpu.matmul %10, %12, %cst_17 {dimension_numbers = #tpu.dot_dimension_numbers<[1], [0], [0], [1], [0, 0, 1, 1], [], []>} : vector<256x4xbf16>, vector<4x4xbf16>, vector<256x4xf32> -> vector<256x4xf32>
    %14 = arith.addf %8, %13 : vector<256x4xf32>
    %c0_18 = arith.constant 0 : index
    %c2 = arith.constant 2 : index
    %c0_19 = arith.constant 0 : index
    %15 = vector.load %arg5[%c0_18, %c2, %c0_19] : memref<18x18x4xbf16, #tpu.memory_space<vmem>>, vector<16x16x4xbf16>
    %16 = vector.shape_cast %15 : vector<16x16x4xbf16> to vector<256x4xbf16>
    %c2_20 = arith.constant 2 : index
    %c0_21 = arith.constant 0 : index
    %c0_22 = arith.constant 0 : index
    %17 = vector.load %arg2[%c2_20, %c0_21, %c0_22] : memref<9x4x4xbf16, #tpu.memory_space<vmem>>, vector<1x4x4xbf16>
    %18 = vector.shape_cast %17 : vector<1x4x4xbf16> to vector<4x4xbf16>
    %cst_23 = arith.constant dense<0.000000e+00> : vector<256x4xf32>
    %19 = tpu.matmul %16, %18, %cst_23 {dimension_numbers = #tpu.dot_dimension_numbers<[1], [0], [0], [1], [0, 0, 1, 1], [], []>} : vector<256x4xbf16>, vector<4x4xbf16>, vector<256x4xf32> -> vector<256x4xf32>
    %20 = arith.addf %14, %19 : vector<256x4xf32>
    %c1_24 = arith.constant 1 : index
    %c0_25 = arith.constant 0 : index
    %c0_26 = arith.constant 0 : index
    %21 = vector.load %arg5[%c1_24, %c0_25, %c0_26] : memref<18x18x4xbf16, #tpu.memory_space<vmem>>, vector<16x16x4xbf16>
    %22 = vector.shape_cast %21 : vector<16x16x4xbf16> to vector<256x4xbf16>
    %c3 = arith.constant 3 : index
    %c0_27 = arith.constant 0 : index
    %c0_28 = arith.constant 0 : index
    %23 = vector.load %arg2[%c3, %c0_27, %c0_28] : memref<9x4x4xbf16, #tpu.memory_space<vmem>>, vector<1x4x4xbf16>
    %24 = vector.shape_cast %23 : vector<1x4x4xbf16> to vector<4x4xbf16>
    %cst_29 = arith.constant dense<0.000000e+00> : vector<256x4xf32>
    %25 = tpu.matmul %22, %24, %cst_29 {dimension_numbers = #tpu.dot_dimension_numbers<[1], [0], [0], [1], [0, 0, 1, 1], [], []>} : vector<256x4xbf16>, vector<4x4xbf16>, vector<256x4xf32> -> vector<256x4xf32>
    %26 = arith.addf %20, %25 : vector<256x4xf32>
    %c1_30 = arith.constant 1 : index
    %c1_31 = arith.constant 1 : index
    %c0_32 = arith.constant 0 : index
    %27 = vector.load %arg5[%c1_30, %c1_31, %c0_32] : memref<18x18x4xbf16, #tpu.memory_space<vmem>>, vector<16x16x4xbf16>
    %28 = vector.shape_cast %27 : vector<16x16x4xbf16> to vector<256x4xbf16>
    %c4 = arith.constant 4 : index
    %c0_33 = arith.constant 0 : index
    %c0_34 = arith.constant 0 : index
    %29 = vector.load %arg2[%c4, %c0_33, %c0_34] : memref<9x4x4xbf16, #tpu.memory_space<vmem>>, vector<1x4x4xbf16>
    %30 = vector.shape_cast %29 : vector<1x4x4xbf16> to vector<4x4xbf16>
    %cst_35 = arith.constant dense<0.000000e+00> : vector<256x4xf32>
    %31 = tpu.matmul %28, %30, %cst_35 {dimension_numbers = #tpu.dot_dimension_numbers<[1], [0], [0], [1], [0, 0, 1, 1], [], []>} : vector<256x4xbf16>, vector<4x4xbf16>, vector<256x4xf32> -> vector<256x4xf32>
    %32 = arith.addf %26, %31 : vector<256x4xf32>
    %c1_36 = arith.constant 1 : index
    %c2_37 = arith.constant 2 : index
    %c0_38 = arith.constant 0 : index
    %33 = vector.load %arg5[%c1_36, %c2_37, %c0_38] : memref<18x18x4xbf16, #tpu.memory_space<vmem>>, vector<16x16x4xbf16>
    %34 = vector.shape_cast %33 : vector<16x16x4xbf16> to vector<256x4xbf16>
    %c5 = arith.constant 5 : index
    %c0_39 = arith.constant 0 : index
    %c0_40 = arith.constant 0 : index
    %35 = vector.load %arg2[%c5, %c0_39, %c0_40] : memref<9x4x4xbf16, #tpu.memory_space<vmem>>, vector<1x4x4xbf16>
    %36 = vector.shape_cast %35 : vector<1x4x4xbf16> to vector<4x4xbf16>
    %cst_41 = arith.constant dense<0.000000e+00> : vector<256x4xf32>
    %37 = tpu.matmul %34, %36, %cst_41 {dimension_numbers = #tpu.dot_dimension_numbers<[1], [0], [0], [1], [0, 0, 1, 1], [], []>} : vector<256x4xbf16>, vector<4x4xbf16>, vector<256x4xf32> -> vector<256x4xf32>
    %38 = arith.addf %32, %37 : vector<256x4xf32>
    %c2_42 = arith.constant 2 : index
    %c0_43 = arith.constant 0 : index
    %c0_44 = arith.constant 0 : index
    %39 = vector.load %arg5[%c2_42, %c0_43, %c0_44] : memref<18x18x4xbf16, #tpu.memory_space<vmem>>, vector<16x16x4xbf16>
    %40 = vector.shape_cast %39 : vector<16x16x4xbf16> to vector<256x4xbf16>
    %c6 = arith.constant 6 : index
    %c0_45 = arith.constant 0 : index
    %c0_46 = arith.constant 0 : index
    %41 = vector.load %arg2[%c6, %c0_45, %c0_46] : memref<9x4x4xbf16, #tpu.memory_space<vmem>>, vector<1x4x4xbf16>
    %42 = vector.shape_cast %41 : vector<1x4x4xbf16> to vector<4x4xbf16>
    %cst_47 = arith.constant dense<0.000000e+00> : vector<256x4xf32>
    %43 = tpu.matmul %40, %42, %cst_47 {dimension_numbers = #tpu.dot_dimension_numbers<[1], [0], [0], [1], [0, 0, 1, 1], [], []>} : vector<256x4xbf16>, vector<4x4xbf16>, vector<256x4xf32> -> vector<256x4xf32>
    %44 = arith.addf %38, %43 : vector<256x4xf32>
    %c2_48 = arith.constant 2 : index
    %c1_49 = arith.constant 1 : index
    %c0_50 = arith.constant 0 : index
    %45 = vector.load %arg5[%c2_48, %c1_49, %c0_50] : memref<18x18x4xbf16, #tpu.memory_space<vmem>>, vector<16x16x4xbf16>
    %46 = vector.shape_cast %45 : vector<16x16x4xbf16> to vector<256x4xbf16>
    %c7 = arith.constant 7 : index
    %c0_51 = arith.constant 0 : index
    %c0_52 = arith.constant 0 : index
    %47 = vector.load %arg2[%c7, %c0_51, %c0_52] : memref<9x4x4xbf16, #tpu.memory_space<vmem>>, vector<1x4x4xbf16>
    %48 = vector.shape_cast %47 : vector<1x4x4xbf16> to vector<4x4xbf16>
    %cst_53 = arith.constant dense<0.000000e+00> : vector<256x4xf32>
    %49 = tpu.matmul %46, %48, %cst_53 {dimension_numbers = #tpu.dot_dimension_numbers<[1], [0], [0], [1], [0, 0, 1, 1], [], []>} : vector<256x4xbf16>, vector<4x4xbf16>, vector<256x4xf32> -> vector<256x4xf32>
    %50 = arith.addf %44, %49 : vector<256x4xf32>
    %c2_54 = arith.constant 2 : index
    %c2_55 = arith.constant 2 : index
    %c0_56 = arith.constant 0 : index
    %51 = vector.load %arg5[%c2_54, %c2_55, %c0_56] : memref<18x18x4xbf16, #tpu.memory_space<vmem>>, vector<16x16x4xbf16>
    %52 = vector.shape_cast %51 : vector<16x16x4xbf16> to vector<256x4xbf16>
    %c8 = arith.constant 8 : index
    %c0_57 = arith.constant 0 : index
    %c0_58 = arith.constant 0 : index
    %53 = vector.load %arg2[%c8, %c0_57, %c0_58] : memref<9x4x4xbf16, #tpu.memory_space<vmem>>, vector<1x4x4xbf16>
    %54 = vector.shape_cast %53 : vector<1x4x4xbf16> to vector<4x4xbf16>
    %cst_59 = arith.constant dense<0.000000e+00> : vector<256x4xf32>
    %55 = tpu.matmul %52, %54, %cst_59 {dimension_numbers = #tpu.dot_dimension_numbers<[1], [0], [0], [1], [0, 0, 1, 1], [], []>} : vector<256x4xbf16>, vector<4x4xbf16>, vector<256x4xf32> -> vector<256x4xf32>
    %56 = arith.addf %50, %55 : vector<256x4xf32>
    %cst_60 = arith.constant dense<0.000000e+00> : vector<4xf32>
    %57 = vector.multi_reduction <add>, %56, %cst_60 [0] : vector<256x4xf32> to vector<4xf32>
    %58 = vector.shape_cast %57 : vector<4xf32> to vector<1x4xf32>
    %59 = arith.mulf %56, %56 : vector<256x4xf32>
    %cst_61 = arith.constant dense<0.000000e+00> : vector<4xf32>
    %60 = vector.multi_reduction <add>, %59, %cst_61 [0] : vector<256x4xf32> to vector<4xf32>
    %61 = vector.shape_cast %60 : vector<4xf32> to vector<1x4xf32>
    %cst_62 = arith.constant 3.906250e-03 : f32
    %62 = vector.broadcast %cst_62 : f32 to vector<1x4xf32>
    %63 = arith.mulf %58, %62 : vector<1x4xf32>
    %cst_63 = arith.constant 3.906250e-03 : f32
    %64 = vector.broadcast %cst_63 : f32 to vector<1x4xf32>
    %65 = arith.mulf %61, %64 : vector<1x4xf32>
    %66 = arith.mulf %63, %63 : vector<1x4xf32>
    %67 = arith.subf %65, %66 : vector<1x4xf32>
    %cst_64 = arith.constant 0.000000e+00 : f32
    %68 = vector.broadcast %cst_64 : f32 to vector<1x4xf32>
    %69 = arith.maximumf %67, %68 : vector<1x4xf32>
    %cst_65 = arith.constant 9.99999974E-6 : f32
    %70 = vector.broadcast %cst_65 : f32 to vector<1x4xf32>
    %71 = arith.addf %69, %70 : vector<1x4xf32>
    %72 = math.rsqrt %71 : vector<1x4xf32>
    %73 = vector.broadcast %63 : vector<1x4xf32> to vector<256x4xf32>
    %74 = arith.subf %56, %73 : vector<256x4xf32>
    %75 = vector.broadcast %72 : vector<1x4xf32> to vector<256x4xf32>
    %76 = arith.mulf %74, %75 : vector<256x4xf32>
    %cst_66 = arith.constant 0.000000e+00 : f32
    %77 = vector.broadcast %cst_66 : f32 to vector<256x4xf32>
    %78 = arith.maximumf %76, %77 : vector<256x4xf32>
    %79 = vector.shape_cast %78 : vector<256x4xf32> to vector<16x16x4xf32>
    %cst_67 = arith.constant 0.000000e+00 : f32
    %80 = vector.broadcast %cst_67 : f32 to vector<1x16x4xf32>
    %cst_68 = arith.constant 0.000000e+00 : f32
    %81 = vector.broadcast %cst_68 : f32 to vector<18x1x4xf32>
    %82 = tpu.concatenate %80, %79, %80 in 0 : vector<1x16x4xf32>, vector<16x16x4xf32>, vector<1x16x4xf32> -> vector<18x16x4xf32>
    %83 = tpu.concatenate %81, %82, %81 in 1 : vector<18x1x4xf32>, vector<18x16x4xf32>, vector<18x1x4xf32> -> vector<18x18x4xf32>
    %84 = arith.truncf %83 : vector<18x18x4xf32> to vector<18x18x4xbf16>
    %c0_69 = arith.constant 0 : index
    %c0_70 = arith.constant 0 : index
    %c0_71 = arith.constant 0 : index
    %85 = vector.load %arg5[%c0_69, %c0_70, %c0_71] : memref<18x18x4xbf16, #tpu.memory_space<vmem>>, vector<18x18x4xbf16>
    tpu.vector_store %arg5[%c0_69, %c0_70, %c0_71], %84 {strides = array<i32>} : memref<18x18x4xbf16, #tpu.memory_space<vmem>>, vector<18x18x4xbf16>,
    %c0_72 = arith.constant 0 : index
    %c0_73 = arith.constant 0 : index
    %c0_74 = arith.constant 0 : index
    %86 = vector.load %arg5[%c0_72, %c0_73, %c0_74] : memref<18x18x4xbf16, #tpu.memory_space<vmem>>, vector<16x16x4xbf16>
    %87 = vector.shape_cast %86 : vector<16x16x4xbf16> to vector<256x4xbf16>
    %c0_75 = arith.constant 0 : index
    %c0_76 = arith.constant 0 : index
    %c0_77 = arith.constant 0 : index
    %88 = vector.load %arg3[%c0_75, %c0_76, %c0_77] : memref<9x4x4xbf16, #tpu.memory_space<vmem>>, vector<1x4x4xbf16>
    %89 = vector.shape_cast %88 : vector<1x4x4xbf16> to vector<4x4xbf16>
    %cst_78 = arith.constant dense<0.000000e+00> : vector<256x4xf32>
    %90 = tpu.matmul %87, %89, %cst_78 {dimension_numbers = #tpu.dot_dimension_numbers<[1], [0], [0], [1], [0, 0, 1, 1], [], []>} : vector<256x4xbf16>, vector<4x4xbf16>, vector<256x4xf32> -> vector<256x4xf32>
    %c0_79 = arith.constant 0 : index
    %c1_80 = arith.constant 1 : index
    %c0_81 = arith.constant 0 : index
    %91 = vector.load %arg5[%c0_79, %c1_80, %c0_81] : memref<18x18x4xbf16, #tpu.memory_space<vmem>>, vector<16x16x4xbf16>
    %92 = vector.shape_cast %91 : vector<16x16x4xbf16> to vector<256x4xbf16>
    %c1_82 = arith.constant 1 : index
    %c0_83 = arith.constant 0 : index
    %c0_84 = arith.constant 0 : index
    %93 = vector.load %arg3[%c1_82, %c0_83, %c0_84] : memref<9x4x4xbf16, #tpu.memory_space<vmem>>, vector<1x4x4xbf16>
    %94 = vector.shape_cast %93 : vector<1x4x4xbf16> to vector<4x4xbf16>
    %cst_85 = arith.constant dense<0.000000e+00> : vector<256x4xf32>
    %95 = tpu.matmul %92, %94, %cst_85 {dimension_numbers = #tpu.dot_dimension_numbers<[1], [0], [0], [1], [0, 0, 1, 1], [], []>} : vector<256x4xbf16>, vector<4x4xbf16>, vector<256x4xf32> -> vector<256x4xf32>
    %96 = arith.addf %90, %95 : vector<256x4xf32>
    %c0_86 = arith.constant 0 : index
    %c2_87 = arith.constant 2 : index
    %c0_88 = arith.constant 0 : index
    %97 = vector.load %arg5[%c0_86, %c2_87, %c0_88] : memref<18x18x4xbf16, #tpu.memory_space<vmem>>, vector<16x16x4xbf16>
    %98 = vector.shape_cast %97 : vector<16x16x4xbf16> to vector<256x4xbf16>
    %c2_89 = arith.constant 2 : index
    %c0_90 = arith.constant 0 : index
    %c0_91 = arith.constant 0 : index
    %99 = vector.load %arg3[%c2_89, %c0_90, %c0_91] : memref<9x4x4xbf16, #tpu.memory_space<vmem>>, vector<1x4x4xbf16>
    %100 = vector.shape_cast %99 : vector<1x4x4xbf16> to vector<4x4xbf16>
    %cst_92 = arith.constant dense<0.000000e+00> : vector<256x4xf32>
    %101 = tpu.matmul %98, %100, %cst_92 {dimension_numbers = #tpu.dot_dimension_numbers<[1], [0], [0], [1], [0, 0, 1, 1], [], []>} : vector<256x4xbf16>, vector<4x4xbf16>, vector<256x4xf32> -> vector<256x4xf32>
    %102 = arith.addf %96, %101 : vector<256x4xf32>
    %c1_93 = arith.constant 1 : index
    %c0_94 = arith.constant 0 : index
    %c0_95 = arith.constant 0 : index
    %103 = vector.load %arg5[%c1_93, %c0_94, %c0_95] : memref<18x18x4xbf16, #tpu.memory_space<vmem>>, vector<16x16x4xbf16>
    %104 = vector.shape_cast %103 : vector<16x16x4xbf16> to vector<256x4xbf16>
    %c3_96 = arith.constant 3 : index
    %c0_97 = arith.constant 0 : index
    %c0_98 = arith.constant 0 : index
    %105 = vector.load %arg3[%c3_96, %c0_97, %c0_98] : memref<9x4x4xbf16, #tpu.memory_space<vmem>>, vector<1x4x4xbf16>
    %106 = vector.shape_cast %105 : vector<1x4x4xbf16> to vector<4x4xbf16>
    %cst_99 = arith.constant dense<0.000000e+00> : vector<256x4xf32>
    %107 = tpu.matmul %104, %106, %cst_99 {dimension_numbers = #tpu.dot_dimension_numbers<[1], [0], [0], [1], [0, 0, 1, 1], [], []>} : vector<256x4xbf16>, vector<4x4xbf16>, vector<256x4xf32> -> vector<256x4xf32>
    %108 = arith.addf %102, %107 : vector<256x4xf32>
    %c1_100 = arith.constant 1 : index
    %c1_101 = arith.constant 1 : index
    %c0_102 = arith.constant 0 : index
    %109 = vector.load %arg5[%c1_100, %c1_101, %c0_102] : memref<18x18x4xbf16, #tpu.memory_space<vmem>>, vector<16x16x4xbf16>
    %110 = vector.shape_cast %109 : vector<16x16x4xbf16> to vector<256x4xbf16>
    %c4_103 = arith.constant 4 : index
    %c0_104 = arith.constant 0 : index
    %c0_105 = arith.constant 0 : index
    %111 = vector.load %arg3[%c4_103, %c0_104, %c0_105] : memref<9x4x4xbf16, #tpu.memory_space<vmem>>, vector<1x4x4xbf16>
    %112 = vector.shape_cast %111 : vector<1x4x4xbf16> to vector<4x4xbf16>
    %cst_106 = arith.constant dense<0.000000e+00> : vector<256x4xf32>
    %113 = tpu.matmul %110, %112, %cst_106 {dimension_numbers = #tpu.dot_dimension_numbers<[1], [0], [0], [1], [0, 0, 1, 1], [], []>} : vector<256x4xbf16>, vector<4x4xbf16>, vector<256x4xf32> -> vector<256x4xf32>
    %114 = arith.addf %108, %113 : vector<256x4xf32>
    %c1_107 = arith.constant 1 : index
    %c2_108 = arith.constant 2 : index
    %c0_109 = arith.constant 0 : index
    %115 = vector.load %arg5[%c1_107, %c2_108, %c0_109] : memref<18x18x4xbf16, #tpu.memory_space<vmem>>, vector<16x16x4xbf16>
    %116 = vector.shape_cast %115 : vector<16x16x4xbf16> to vector<256x4xbf16>
    %c5_110 = arith.constant 5 : index
    %c0_111 = arith.constant 0 : index
    %c0_112 = arith.constant 0 : index
    %117 = vector.load %arg3[%c5_110, %c0_111, %c0_112] : memref<9x4x4xbf16, #tpu.memory_space<vmem>>, vector<1x4x4xbf16>
    %118 = vector.shape_cast %117 : vector<1x4x4xbf16> to vector<4x4xbf16>
    %cst_113 = arith.constant dense<0.000000e+00> : vector<256x4xf32>
    %119 = tpu.matmul %116, %118, %cst_113 {dimension_numbers = #tpu.dot_dimension_numbers<[1], [0], [0], [1], [0, 0, 1, 1], [], []>} : vector<256x4xbf16>, vector<4x4xbf16>, vector<256x4xf32> -> vector<256x4xf32>
    %120 = arith.addf %114, %119 : vector<256x4xf32>
    %c2_114 = arith.constant 2 : index
    %c0_115 = arith.constant 0 : index
    %c0_116 = arith.constant 0 : index
    %121 = vector.load %arg5[%c2_114, %c0_115, %c0_116] : memref<18x18x4xbf16, #tpu.memory_space<vmem>>, vector<16x16x4xbf16>
    %122 = vector.shape_cast %121 : vector<16x16x4xbf16> to vector<256x4xbf16>
    %c6_117 = arith.constant 6 : index
    %c0_118 = arith.constant 0 : index
    %c0_119 = arith.constant 0 : index
    %123 = vector.load %arg3[%c6_117, %c0_118, %c0_119] : memref<9x4x4xbf16, #tpu.memory_space<vmem>>, vector<1x4x4xbf16>
    %124 = vector.shape_cast %123 : vector<1x4x4xbf16> to vector<4x4xbf16>
    %cst_120 = arith.constant dense<0.000000e+00> : vector<256x4xf32>
    %125 = tpu.matmul %122, %124, %cst_120 {dimension_numbers = #tpu.dot_dimension_numbers<[1], [0], [0], [1], [0, 0, 1, 1], [], []>} : vector<256x4xbf16>, vector<4x4xbf16>, vector<256x4xf32> -> vector<256x4xf32>
    %126 = arith.addf %120, %125 : vector<256x4xf32>
    %c2_121 = arith.constant 2 : index
    %c1_122 = arith.constant 1 : index
    %c0_123 = arith.constant 0 : index
    %127 = vector.load %arg5[%c2_121, %c1_122, %c0_123] : memref<18x18x4xbf16, #tpu.memory_space<vmem>>, vector<16x16x4xbf16>
    %128 = vector.shape_cast %127 : vector<16x16x4xbf16> to vector<256x4xbf16>
    %c7_124 = arith.constant 7 : index
    %c0_125 = arith.constant 0 : index
    %c0_126 = arith.constant 0 : index
    %129 = vector.load %arg3[%c7_124, %c0_125, %c0_126] : memref<9x4x4xbf16, #tpu.memory_space<vmem>>, vector<1x4x4xbf16>
    %130 = vector.shape_cast %129 : vector<1x4x4xbf16> to vector<4x4xbf16>
    %cst_127 = arith.constant dense<0.000000e+00> : vector<256x4xf32>
    %131 = tpu.matmul %128, %130, %cst_127 {dimension_numbers = #tpu.dot_dimension_numbers<[1], [0], [0], [1], [0, 0, 1, 1], [], []>} : vector<256x4xbf16>, vector<4x4xbf16>, vector<256x4xf32> -> vector<256x4xf32>
    %132 = arith.addf %126, %131 : vector<256x4xf32>
    %c2_128 = arith.constant 2 : index
    %c2_129 = arith.constant 2 : index
    %c0_130 = arith.constant 0 : index
    %133 = vector.load %arg5[%c2_128, %c2_129, %c0_130] : memref<18x18x4xbf16, #tpu.memory_space<vmem>>, vector<16x16x4xbf16>
    %134 = vector.shape_cast %133 : vector<16x16x4xbf16> to vector<256x4xbf16>
    %c8_131 = arith.constant 8 : index
    %c0_132 = arith.constant 0 : index
    %c0_133 = arith.constant 0 : index
    %135 = vector.load %arg3[%c8_131, %c0_132, %c0_133] : memref<9x4x4xbf16, #tpu.memory_space<vmem>>, vector<1x4x4xbf16>
    %136 = vector.shape_cast %135 : vector<1x4x4xbf16> to vector<4x4xbf16>
    %cst_134 = arith.constant dense<0.000000e+00> : vector<256x4xf32>
    %137 = tpu.matmul %134, %136, %cst_134 {dimension_numbers = #tpu.dot_dimension_numbers<[1], [0], [0], [1], [0, 0, 1, 1], [], []>} : vector<256x4xbf16>, vector<4x4xbf16>, vector<256x4xf32> -> vector<256x4xf32>
    %138 = arith.addf %132, %137 : vector<256x4xf32>
    %cst_135 = arith.constant dense<0.000000e+00> : vector<4xf32>
    %139 = vector.multi_reduction <add>, %138, %cst_135 [0] : vector<256x4xf32> to vector<4xf32>
    %140 = vector.shape_cast %139 : vector<4xf32> to vector<1x4xf32>
    %141 = arith.mulf %138, %138 : vector<256x4xf32>
    %cst_136 = arith.constant dense<0.000000e+00> : vector<4xf32>
    %142 = vector.multi_reduction <add>, %141, %cst_136 [0] : vector<256x4xf32> to vector<4xf32>
    %143 = vector.shape_cast %142 : vector<4xf32> to vector<1x4xf32>
    %cst_137 = arith.constant 3.906250e-03 : f32
    %144 = vector.broadcast %cst_137 : f32 to vector<1x4xf32>
    %145 = arith.mulf %140, %144 : vector<1x4xf32>
    %cst_138 = arith.constant 3.906250e-03 : f32
    %146 = vector.broadcast %cst_138 : f32 to vector<1x4xf32>
    %147 = arith.mulf %143, %146 : vector<1x4xf32>
    %148 = arith.mulf %145, %145 : vector<1x4xf32>
    %149 = arith.subf %147, %148 : vector<1x4xf32>
    %cst_139 = arith.constant 0.000000e+00 : f32
    %150 = vector.broadcast %cst_139 : f32 to vector<1x4xf32>
    %151 = arith.maximumf %149, %150 : vector<1x4xf32>
    %cst_140 = arith.constant 9.99999974E-6 : f32
    %152 = vector.broadcast %cst_140 : f32 to vector<1x4xf32>
    %153 = arith.addf %151, %152 : vector<1x4xf32>
    %154 = math.rsqrt %153 : vector<1x4xf32>
    %155 = vector.broadcast %145 : vector<1x4xf32> to vector<256x4xf32>
    %156 = arith.subf %138, %155 : vector<256x4xf32>
    %157 = vector.broadcast %154 : vector<1x4xf32> to vector<256x4xf32>
    %158 = arith.mulf %156, %157 : vector<256x4xf32>
    %cst_141 = arith.constant 0.000000e+00 : f32
    %159 = vector.broadcast %cst_141 : f32 to vector<256x4xf32>
    %160 = arith.maximumf %158, %159 : vector<256x4xf32>
    %c0_142 = arith.constant 0 : index
    %c1_143 = arith.constant 1 : index
    %c1_144 = arith.constant 1 : index
    %c0_145 = arith.constant 0 : index
    %161 = vector.load %arg1[%c0_142, %c1_143, %c1_144, %c0_145] : memref<1x18x18x4xf32, #tpu.memory_space<vmem>>, vector<1x16x16x4xf32>
    %162 = vector.shape_cast %161 : vector<1x16x16x4xf32> to vector<16x16x4xf32>
    %163 = vector.shape_cast %162 : vector<16x16x4xf32> to vector<256x4xf32>
    %164 = arith.addf %160, %163 : vector<256x4xf32>
    %165 = vector.shape_cast %164 : vector<256x4xf32> to vector<16x16x4xf32>
    %c0_146 = arith.constant 0 : index
    %c0_147 = arith.constant 0 : index
    %c0_148 = arith.constant 0 : index
    %c0_149 = arith.constant 0 : index
    %166 = vector.load %arg4[%c0_146, %c0_147, %c0_148, %c0_149] : memref<1x16x16x4xf32, #tpu.memory_space<vmem>>, vector<1x16x16x4xf32>
    %167 = vector.shape_cast %166 : vector<1x16x16x4xf32> to vector<16x16x4xf32>
    %168 = vector.shape_cast %165 : vector<16x16x4xf32> to vector<1x16x16x4xf32>
    tpu.vector_store %arg4[%c0_146, %c0_147, %c0_148, %c0_149], %168 {strides = array<i32>} : memref<1x16x16x4xf32, #tpu.memory_space<vmem>>, vector<1x16x16x4xf32>,
    return
  }
  func.func @transform_0(%arg0: i32) -> (i32, i32, i32, i32) {
    %c0_i32 = arith.constant 0 : i32
    %c0_i32_0 = arith.constant 0 : i32
    %c0_i32_1 = arith.constant 0 : i32
    %c0_i32_2 = arith.constant 0 : i32
    return %arg0, %c0_i32, %c0_i32_0, %c0_i32_1 : i32, i32, i32, i32
  }
  func.func @transform_1(%arg0: i32) -> (i32, i32, i32) {
    %c0_i32 = arith.constant 0 : i32
    %c0_i32_0 = arith.constant 0 : i32
    %c0_i32_1 = arith.constant 0 : i32
    %c0_i32_2 = arith.constant 0 : i32
    return %c0_i32, %c0_i32_0, %c0_i32_1 : i32, i32, i32
  }
  func.func @transform_2(%arg0: i32) -> (i32, i32, i32) {
    %c0_i32 = arith.constant 0 : i32
    %c0_i32_0 = arith.constant 0 : i32
    %c0_i32_1 = arith.constant 0 : i32
    %c0_i32_2 = arith.constant 0 : i32
    return %c0_i32, %c0_i32_0, %c0_i32_1 : i32, i32, i32
  }
  func.func @transform_3(%arg0: i32) -> (i32, i32, i32, i32) {
    %c0_i32 = arith.constant 0 : i32
    %c0_i32_0 = arith.constant 0 : i32
    %c0_i32_1 = arith.constant 0 : i32
    %c0_i32_2 = arith.constant 0 : i32
    return %arg0, %c0_i32, %c0_i32_0, %c0_i32_1 : i32, i32, i32, i32
  }
}

</mosaic_0001>

<llo_original>
// kernel: resnet_block.1
$region0: #{resnet_block.1}
  #allocation0 [shape = 'u32[]', space=smem, size = 0x4, offset = 0x4, fixed_abs, tag = 'smem constant byte address 0x4 - core index']
  #allocation1 [shape = 'u32[144,128]{1,0:T(1,128)}', space=vmem, size = 0x12000, scoped, tag = 'internal scratch']
  #allocation2 [shape = 'bf16[18,18,4]{2,1,0:T(8,128)(2,1)}', space=vmem, size = 0x1b000, scoped, tag = 'scratch operand']
  %s0 = inlined_call_operand.vmem [shape: f32[2,18,18,4], index: 0, kind: input, shape index: {}]
  %s1 = inlined_call_operand.vmem [shape: bf16[9,4,4], index: 1, kind: input, shape index: {}]
  %s2 = inlined_call_operand.vmem [shape: bf16[9,4,4], index: 2, kind: input, shape index: {}]
  %s3 = inlined_call_operand.vmem [shape: f32[2,16,16,4], index: 3, kind: output, shape index: {}]
  %s4 = sld [smem:[#allocation0]]
  $region45: #{resnet_block.1} parent=0
    _
  %s6 = ssub.s32 1, %s4
  %s7 = scalar_select 0, %s6, %s4
  loop: start=0, step=1, limit=4
  $region2: #{resnet_block.1} parent=0 // loop_pre_header
    _
  $region3: #{resnet_block.1} parent=0 // loop_header
    %s9 = sphi 0, %s13
    %p10 = scmp.ge.s32.totalorder %s9, 4
    %s19 = sphi 0, %s21
    %s22 = sphi 0, %s19
    %s23 = sphi 0, %s22
    %s39 = sphi 0, %s23
    %s43 = sphi 0, %s43
    %s45 = sphi 0, %s43
    %s46 = sphi 0, %s45
    %s60 = sphi 0, %s46
    %s64 = sphi 0, %s64
    %s66 = sphi 0, %s64
    %s67 = sphi 0, %s66
    %s81 = sphi 0, %s67
    %s87 = sphi 0, %s89
    %s90 = sphi 0, %s87
    %s91 = sphi 0, %s90
    %s107 = sphi 0, %s91
  $region4: #{resnet_block.1} parent=0 // loop_header_branch
    %12 = sbr.rel (%p10) target = $region8
  $region5: #{resnet_block.1} parent=0 // loop_body
    %s14 = ssub.s32 %s9, 1
    %s15 = ssub.s32 %s9, 2
    %s16 = sadd.s32 %s9, 1
    %s17 = ssub.s32 %s9, %s16
    %p18 = scmp.eq.s32.totalorder %s17, 0
    %s20 = sadd.s32 %s19, 1
    %s21 = scalar_select %p18, %s19, %s20
    %p24 = pneg %p18
    %p25 = scmp.eq.s32.totalorder %s9, 1
    %p26 = por %p24, %p25
    %p27 = scmp.ne.s32.totalorder %s19, %s22
    %p28 = scmp.eq.s32.totalorder %s9, 0
    %p29 = por %p27, %p28
    %p30 = scmp.ne.s32.totalorder %s19, %s22
    %p31 = scmp.eq.s32.totalorder %s14, 1
    %p32 = por %p30, %p31
    %p33 = scmp.ne.s32.totalorder %s22, %s23
    %p34 = scmp.eq.s32.totalorder %s14, 0
    %p35 = por %p33, %p34
    %p36 = scmp.ne.s32.totalorder %s22, %s23
    %p37 = scmp.eq.s32.totalorder %s15, 1
    %p38 = por %p36, %p37
    %p40 = scmp.ne.s32.totalorder %s23, %s39
    %p41 = scmp.eq.s32.totalorder %s15, 0
    %p42 = por %p40, %p41
    %s44 = sadd.s32 %s43, 1
    %p47 = scmp.eq.s32.totalorder %s9, 1
    %p48 = scmp.ne.s32.totalorder %s43, %s45
    %p49 = scmp.eq.s32.totalorder %s9, 0
    %p50 = por %p48, %p49
    %p51 = scmp.ne.s32.totalorder %s43, %s45
    %p52 = scmp.eq.s32.totalorder %s14, 1
    %p53 = por %p51, %p52
    %p54 = scmp.ne.s32.totalorder %s45, %s46
    %p55 = scmp.eq.s32.totalorder %s14, 0
    %p56 = por %p54, %p55
    %p57 = scmp.ne.s32.totalorder %s45, %s46
    %p58 = scmp.eq.s32.totalorder %s15, 1
    %p59 = por %p57, %p58
    %p61 = scmp.ne.s32.totalorder %s46, %s60
    %p62 = scmp.eq.s32.totalorder %s15, 0
    %p63 = por %p61, %p62
    %s65 = sadd.s32 %s64, 1
    %p68 = scmp.eq.s32.totalorder %s9, 1
    %p69 = scmp.ne.s32.totalorder %s64, %s66
    %p70 = scmp.eq.s32.totalorder %s9, 0
    %p71 = por %p69, %p70
    %p72 = scmp.ne.s32.totalorder %s64, %s66
    %p73 = scmp.eq.s32.totalorder %s14, 1
    %p74 = por %p72, %p73
    %p75 = scmp.ne.s32.totalorder %s66, %s67
    %p76 = scmp.eq.s32.totalorder %s14, 0
    %p77 = por %p75, %p76
    %p78 = scmp.ne.s32.totalorder %s66, %s67
    %p79 = scmp.eq.s32.totalorder %s15, 1
    %p80 = por %p78, %p79
    %p82 = scmp.ne.s32.totalorder %s67, %s81
    %p83 = scmp.eq.s32.totalorder %s15, 0
    %p84 = por %p82, %p83
    %s85 = ssub.s32 %s9, %s16
    %p86 = scmp.eq.s32.totalorder %s85, 0
    %s88 = sadd.s32 %s87, 1
    %s89 = scalar_select %p86, %s87, %s88
    %p92 = pneg %p86
    %p93 = scmp.eq.s32.totalorder %s9, 1
    %p94 = por %p92, %p93
    %p95 = scmp.ne.s32.totalorder %s87, %s90
    %p96 = scmp.eq.s32.totalorder %s9, 0
    %p97 = por %p95, %p96
    %p98 = scmp.ne.s32.totalorder %s87, %s90
    %p99 = scmp.eq.s32.totalorder %s14, 1
    %p100 = por %p98, %p99
    %p101 = scmp.ne.s32.totalorder %s90, %s91
    %p102 = scmp.eq.s32.totalorder %s14, 0
    %p103 = por %p101, %p102
    %p104 = scmp.ne.s32.totalorder %s90, %s91
    %p105 = scmp.eq.s32.totalorder %s15, 1
    %p106 = por %p104, %p105
    %p108 = scmp.ne.s32.totalorder %s91, %s107
    %p109 = scmp.eq.s32.totalorder %s15, 0
    %p110 = por %p108, %p109
    %p111 = scmp.le.s32.totalorder 1, %s9
    %p112 = scmp.lt.s32.totalorder %s9, 3
    %p113 = pnand %p111, %p112
    %p114 = pneg %p113
    // Predicated region
    $region9: #{resnet_block.1} parent=5 // pred_check
      _
    $region10: #{resnet_block.1} parent=5 // pred_check_branch
      %116 = sbr.rel (%p113) target = $region12
    $region11: #{resnet_block.1} parent=5 // pred_region
      %s117 = ssub.s32 %s9, 1
      // Predicated region
      $region13: #{resnet_block.1} parent=11 // pred_check
        %p118 = pneg %p56
      $region14: #{resnet_block.1} parent=11 // pred_check_branch
        %120 = sbr.rel (%p118) target = $region16
      $region15: #{resnet_block.1} parent=11 // pred_region
        _
      $region16: #{resnet_block.1} parent=11 // pred_fallthru
        _
      // Predicated region
      $region17: #{resnet_block.1} parent=11 // pred_check
        %p121 = pneg %p77
      $region18: #{resnet_block.1} parent=11 // pred_check_branch
        %123 = sbr.rel (%p121) target = $region20
      $region19: #{resnet_block.1} parent=11 // pred_region
        _
      $region20: #{resnet_block.1} parent=11 // pred_fallthru
        _
    $region12: #{resnet_block.1} parent=5 // pred_fallthru
      _
    %p124 = scmp.lt.s32.totalorder %s9, 2
    // Predicated region
    $region21: #{resnet_block.1} parent=5 // pred_check
      %p125 = pneg %p124
    $region22: #{resnet_block.1} parent=5 // pred_check_branch
      %127 = sbr.rel (%p125) target = $region24
    $region23: #{resnet_block.1} parent=5 // pred_region
      // Predicated region
      $region25: #{resnet_block.1} parent=23 // pred_check
        %p128 = pneg %p29
      $region26: #{resnet_block.1} parent=23 // pred_check_branch
        %130 = sbr.rel (%p128) target = $region28
      $region27: #{resnet_block.1} parent=23 // pred_region
        %p131 = scmp.lt.s32.totalorder %s9, 1
        %s132 = scalar_select %p131, %s9, 1
        %s133 = smul.addr %s132, 54
        %s134 = smul.addr %s133, 8
        %s135 = scalar_lea.vmem %s0, %s134
      $region28: #{resnet_block.1} parent=23 // pred_fallthru
        _
    $region24: #{resnet_block.1} parent=5 // pred_fallthru
      _
    %p136 = scmp.le.s32.totalorder 1, %s9
    %p137 = scmp.lt.s32.totalorder %s9, 3
    %p138 = pnand %p136, %p137
    %p139 = pneg %p138
    // Predicated region
    $region29: #{resnet_block.1} parent=5 // pred_check
      _
    $region30: #{resnet_block.1} parent=5 // pred_check_branch
      %141 = sbr.rel (%p138) target = $region32
    $region31: #{resnet_block.1} parent=5 // pred_region
      %s142 = ssub.s32 %s9, 1
      %p143 = scmp.lt.s32.totalorder %s14, 1
      %s144 = scalar_select %p143, %s14, 1
      %s145 = smul.addr %s144, 54
      %s146 = smul.addr %s145, 8
      %s147 = scalar_lea.vmem %s0, %s146
      %p148 = pneg %p35
      %p149 = pneg %p32
      %p150 = pneg %p56
      %p151 = pneg %p53
      %p152 = pneg %p77
      %p153 = pneg %p74
      %p154 = pneg %p103
      %p155 = pneg %p100
      %p156 = scmp.lt.s32.totalorder %s14, 1
      %s157 = scalar_select %p156, %s14, 1
      %s158 = smul.addr %s157, 32
      %s159 = smul.addr %s158, 8
      %s160 = scalar_lea.vmem %s3, %s159
      %p161 = scmp.lt.s32.totalorder %s14, 1
      %s162 = scalar_select %p161, %s14, 1
      %s163 = smul.addr %s162, 54
      %s164 = smul.addr %s163, 8
      %s165 = scalar_lea.vmem %s0, %s164
      %p166 = scmp.lt.s32.totalorder %s14, 1
      %s167 = scalar_select %p166, %s14, 1
      %s168 = smul.addr %s167, 32
      %s169 = smul.addr %s168, 8
      %s170 = scalar_lea.vmem %s3, %s169
      %v172 = vld [vmem:[%s165] sm:$0xff]
      %v173 = vld [vmem:[%s165 + $0x8] sm:$0xff]
      %v174 = vld [vmem:[%s165 + $0x10] sm:$0x3]
      %v175 = vld [vmem:[%s165 + $0x18] sm:$0xff]
      %v176 = vld [vmem:[%s165 + $0x20] sm:$0xff]
      %v177 = vld [vmem:[%s165 + $0x28] sm:$0x3]
      %v178 = vld [vmem:[%s165 + $0x30] sm:$0xff]
      %v179 = vld [vmem:[%s165 + $0x38] sm:$0xff]
      %v180 = vld [vmem:[%s165 + $0x40] sm:$0x3]
      %v181 = vld [vmem:[%s165 + $0x48] sm:$0xff]
      %v182 = vld [vmem:[%s165 + $0x50] sm:$0xff]
      %v183 = vld [vmem:[%s165 + $0x58] sm:$0x3]
      %v184 = vld [vmem:[%s165 + $0x60] sm:$0xff]
      %v185 = vld [vmem:[%s165 + $0x68] sm:$0xff]
      %v186 = vld [vmem:[%s165 + $0x70] sm:$0x3]
      %v187 = vld [vmem:[%s165 + $0x78] sm:$0xff]
      %v188 = vld [vmem:[%s165 + $0x80] sm:$0xff]
      %v189 = vld [vmem:[%s165 + $0x88] sm:$0x3]
      %v190 = vld [vmem:[%s165 + $0x90] sm:$0xff]
      %v191 = vld [vmem:[%s165 + $0x98] sm:$0xff]
      %v192 = vld [vmem:[%s165 + $0xa0] sm:$0x3]
      %v193 = vld [vmem:[%s165 + $0xa8] sm:$0xff]
      %v194 = vld [vmem:[%s165 + $0xb0] sm:$0xff]
      %v195 = vld [vmem:[%s165 + $0xb8] sm:$0x3]
      %v196 = vld [vmem:[%s165 + $0xc0] sm:$0xff]
      %v197 = vld [vmem:[%s165 + $0xc8] sm:$0xff]
      %v198 = vld [vmem:[%s165 + $0xd0] sm:$0x3]
      %v199 = vld [vmem:[%s165 + $0xd8] sm:$0xff]
      %v200 = vld [vmem:[%s165 + $0xe0] sm:$0xff]
      %v201 = vld [vmem:[%s165 + $0xe8] sm:$0x3]
      %v202 = vld [vmem:[%s165 + $0xf0] sm:$0xff]
      %v203 = vld [vmem:[%s165 + $0xf8] sm:$0xff]
      %v204 = vld [vmem:[%s165 + $0x100] sm:$0x3]
      %v205 = vld [vmem:[%s165 + $0x108] sm:$0xff]
      %v206 = vld [vmem:[%s165 + $0x110] sm:$0xff]
      %v207 = vld [vmem:[%s165 + $0x118] sm:$0x3]
      %v208 = vld [vmem:[%s165 + $0x120] sm:$0xff]
      %v209 = vld [vmem:[%s165 + $0x128] sm:$0xff]
      %v210 = vld [vmem:[%s165 + $0x130] sm:$0x3]
      %v211 = vld [vmem:[%s165 + $0x138] sm:$0xff]
      %v212 = vld [vmem:[%s165 + $0x140] sm:$0xff]
      %v213 = vld [vmem:[%s165 + $0x148] sm:$0x3]
      %v214 = vld [vmem:[%s165 + $0x150] sm:$0xff]
      %v215 = vld [vmem:[%s165 + $0x158] sm:$0xff]
      %v216 = vld [vmem:[%s165 + $0x160] sm:$0x3]
      %v217 = vld [vmem:[%s165 + $0x168] sm:$0xff]
      %v218 = vld [vmem:[%s165 + $0x170] sm:$0xff]
      %v219 = vld [vmem:[%s165 + $0x178] sm:$0x3]
      %v220 = vld [vmem:[%s165 + $0x180] sm:$0xff]
      %v221 = vld [vmem:[%s165 + $0x188] sm:$0xff]
      %v222 = vld [vmem:[%s165 + $0x190] sm:$0x3]
      %v223 = vld [vmem:[%s165 + $0x198] sm:$0xff]
      %v224 = vld [vmem:[%s165 + $0x1a0] sm:$0xff]
      %v225 = vld [vmem:[%s165 + $0x1a8] sm:$0x3]
      %v226 = vpack.c.bf16 %v173, %v172
      %v227 = vpack.c.bf16 %v174, %v174
      %v228 = vpack.c.bf16 %v176, %v175
      %v229 = vpack.c.bf16 %v177, %v177
      %v230 = vpack.c.bf16 %v179, %v178
      %v231 = vpack.c.bf16 %v180, %v180
      %v232 = vpack.c.bf16 %v182, %v181
      %v233 = vpack.c.bf16 %v183, %v183
      %v234 = vpack.c.bf16 %v185, %v184
      %v235 = vpack.c.bf16 %v186, %v186
      %v236 = vpack.c.bf16 %v188, %v187
      %v237 = vpack.c.bf16 %v189, %v189
      %v238 = vpack.c.bf16 %v191, %v190
      %v239 = vpack.c.bf16 %v192, %v192
      %v240 = vpack.c.bf16 %v194, %v193
      %v241 = vpack.c.bf16 %v195, %v195
      %v242 = vpack.c.bf16 %v197, %v196
      %v243 = vpack.c.bf16 %v198, %v198
      %v244 = vpack.c.bf16 %v200, %v199
      %v245 = vpack.c.bf16 %v201, %v201
      %v246 = vpack.c.bf16 %v203, %v202
      %v247 = vpack.c.bf16 %v204, %v204
      %v248 = vpack.c.bf16 %v206, %v205
      %v249 = vpack.c.bf16 %v207, %v207
      %v250 = vpack.c.bf16 %v209, %v208
      %v251 = vpack.c.bf16 %v210, %v210
      %v252 = vpack.c.bf16 %v212, %v211
      %v253 = vpack.c.bf16 %v213, %v213
      %v254 = vpack.c.bf16 %v215, %v214
      %v255 = vpack.c.bf16 %v216, %v216
      %v256 = vpack.c.bf16 %v218, %v217
      %v257 = vpack.c.bf16 %v219, %v219
      %v258 = vpack.c.bf16 %v221, %v220
      %v259 = vpack.c.bf16 %v222, %v222
      %v260 = vpack.c.bf16 %v224, %v223
      %v261 = vpack.c.bf16 %v225, %v225
      %v298 = vunpack.c.l.b16 %v226
      %v299 = vunpack.c.h.b16 %v226
      %v300 = vunpack.c.l.b16 %v227
      %v301 = vunpack.c.l.b16 %v228
      %v302 = vunpack.c.h.b16 %v228
      %v303 = vunpack.c.l.b16 %v229
      %v304 = vunpack.c.l.b16 %v230
      %v305 = vunpack.c.h.b16 %v230
      %v306 = vunpack.c.l.b16 %v231
      %v307 = vunpack.c.l.b16 %v232
      %v308 = vunpack.c.h.b16 %v232
      %v309 = vunpack.c.l.b16 %v233
      %v310 = vunpack.c.l.b16 %v234
      %v311 = vunpack.c.h.b16 %v234
      %v312 = vunpack.c.l.b16 %v235
      %v313 = vunpack.c.l.b16 %v236
      %v314 = vunpack.c.h.b16 %v236
      %v315 = vunpack.c.l.b16 %v237
      %v316 = vunpack.c.l.b16 %v238
      %v317 = vunpack.c.h.b16 %v238
      %v318 = vunpack.c.l.b16 %v239
      %v319 = vunpack.c.l.b16 %v240
      %v320 = vunpack.c.h.b16 %v240
      %v321 = vunpack.c.l.b16 %v241
      %v322 = vunpack.c.l.b16 %v242
      %v323 = vunpack.c.h.b16 %v242
      %v324 = vunpack.c.l.b16 %v243
      %v325 = vunpack.c.l.b16 %v244
      %v326 = vunpack.c.h.b16 %v244
      %v327 = vunpack.c.l.b16 %v245
      %v328 = vunpack.c.l.b16 %v246
      %v329 = vunpack.c.h.b16 %v246
      %v330 = vunpack.c.l.b16 %v247
      %v331 = vunpack.c.l.b16 %v248
      %v332 = vunpack.c.h.b16 %v248
      %v333 = vunpack.c.l.b16 %v249
      %v334 = vunpack.c.l.b16 %v250
      %v335 = vunpack.c.h.b16 %v250
      %v336 = vunpack.c.l.b16 %v251
      %v337 = vunpack.c.l.b16 %v252
      %v338 = vunpack.c.h.b16 %v252
      %v339 = vunpack.c.l.b16 %v253
      %v340 = vunpack.c.l.b16 %v254
      %v341 = vunpack.c.h.b16 %v254
      %v342 = vunpack.c.l.b16 %v255
      %v343 = vunpack.c.l.b16 %v256
      %v344 = vunpack.c.h.b16 %v256
      %v345 = vunpack.c.l.b16 %v257
      %v346 = vunpack.c.l.b16 %v258
      %v347 = vunpack.c.h.b16 %v258
      %v348 = vunpack.c.l.b16 %v259
      %v349 = vunpack.c.l.b16 %v260
      %v350 = vunpack.c.h.b16 %v260
      %v351 = vunpack.c.l.b16 %v261
      %v352 = vpack.c.b16 %v298, %v298
      %v353 = vpack.c.b16 %v299, %v299
      %v354 = vpack.c.b16 %v300, %v300
      %v355 = vpack.c.b16 %v301, %v301
      %v356 = vpack.c.b16 %v302, %v302
      %v357 = vpack.c.b16 %v303, %v303
      %v358 = vpack.c.b16 %v304, %v304
      %v359 = vpack.c.b16 %v305, %v305
      %v360 = vpack.c.b16 %v306, %v306
      %v361 = vpack.c.b16 %v307, %v307
      %v362 = vpack.c.b16 %v308, %v308
      %v363 = vpack.c.b16 %v309, %v309
      %v364 = vpack.c.b16 %v310, %v310
      %v365 = vpack.c.b16 %v311, %v311
      %v366 = vpack.c.b16 %v312, %v312
      %v367 = vpack.c.b16 %v313, %v313
      %v368 = vpack.c.b16 %v314, %v314
      %v369 = vpack.c.b16 %v315, %v315
      %v370 = vpack.c.b16 %v316, %v316
      %v371 = vpack.c.b16 %v317, %v317
      %v372 = vpack.c.b16 %v318, %v318
      %v373 = vpack.c.b16 %v319, %v319
      %v374 = vpack.c.b16 %v320, %v320
      %v375 = vpack.c.b16 %v321, %v321
      %v376 = vpack.c.b16 %v322, %v322
      %v377 = vpack.c.b16 %v323, %v323
      %v378 = vpack.c.b16 %v324, %v324
      %v379 = vpack.c.b16 %v325, %v325
      %v380 = vpack.c.b16 %v326, %v326
      %v381 = vpack.c.b16 %v327, %v327
      %v382 = vpack.c.b16 %v328, %v328
      %v383 = vpack.c.b16 %v329, %v329
      %v384 = vpack.c.b16 %v330, %v330
      %v385 = vpack.c.b16 %v331, %v331
      %v386 = vpack.c.b16 %v332, %v332
      %v387 = vpack.c.b16 %v333, %v333
      %v388 = vpack.c.b16 %v334, %v334
      %v389 = vpack.c.b16 %v335, %v335
      %v390 = vpack.c.b16 %v336, %v336
      %v391 = vpack.c.b16 %v337, %v337
      %v392 = vpack.c.b16 %v338, %v338
      %v393 = vpack.c.b16 %v339, %v339
      %v394 = vpack.c.b16 %v340, %v340
      %v395 = vpack.c.b16 %v341, %v341
      %v396 = vpack.c.b16 %v342, %v342
      %v397 = vpack.c.b16 %v343, %v343
      %v398 = vpack.c.b16 %v344, %v344
      %v399 = vpack.c.b16 %v345, %v345
      %v400 = vpack.c.b16 %v346, %v346
      %v401 = vpack.c.b16 %v347, %v347
      %v402 = vpack.c.b16 %v348, %v348
      %v403 = vpack.c.b16 %v349, %v349
      %v404 = vpack.c.b16 %v350, %v350
      %v405 = vpack.c.b16 %v351, %v351
      %vm460 = vcmask 27648
      %461 = vst.msk [vmem:[#allocation2] sm:$0xf] %vm460, %v352
      %462 = vst.msk [vmem:[#allocation2 + $0x4] sm:$0xf] %vm460, %v353
      %vm463 = vcmask 24576
      %464 = vst.msk [vmem:[#allocation2 + $0x8] sm:$0x1] %vm463, %v354
      %465 = vst.msk [vmem:[#allocation2 + $0xc] sm:$0xf] %vm460, %v355
      %466 = vst.msk [vmem:[#allocation2 + $0x10] sm:$0xf] %vm460, %v356
      %467 = vst.msk [vmem:[#allocation2 + $0x14] sm:$0x1] %vm463, %v357
      %468 = vst.msk [vmem:[#allocation2 + $0x18] sm:$0xf] %vm460, %v358
      %469 = vst.msk [vmem:[#allocation2 + $0x1c] sm:$0xf] %vm460, %v359
      %470 = vst.msk [vmem:[#allocation2 + $0x20] sm:$0x1] %vm463, %v360
      %471 = vst.msk [vmem:[#allocation2 + $0x24] sm:$0xf] %vm460, %v361
      %472 = vst.msk [vmem:[#allocation2 + $0x28] sm:$0xf] %vm460, %v362
      %473 = vst.msk [vmem:[#allocation2 + $0x2c] sm:$0x1] %vm463, %v363
      %474 = vst.msk [vmem:[#allocation2 + $0x30] sm:$0xf] %vm460, %v364
      %475 = vst.msk [vmem:[#allocation2 + $0x34] sm:$0xf] %vm460, %v365
      %476 = vst.msk [vmem:[#allocation2 + $0x38] sm:$0x1] %vm463, %v366
      %477 = vst.msk [vmem:[#allocation2 + $0x3c] sm:$0xf] %vm460, %v367
      %478 = vst.msk [vmem:[#allocation2 + $0x40] sm:$0xf] %vm460, %v368
      %479 = vst.msk [vmem:[#allocation2 + $0x44] sm:$0x1] %vm463, %v369
      %480 = vst.msk [vmem:[#allocation2 + $0x48] sm:$0xf] %vm460, %v370
      %481 = vst.msk [vmem:[#allocation2 + $0x4c] sm:$0xf] %vm460, %v371
      %482 = vst.msk [vmem:[#allocation2 + $0x50] sm:$0x1] %vm463, %v372
      %483 = vst.msk [vmem:[#allocation2 + $0x54] sm:$0xf] %vm460, %v373
      %484 = vst.msk [vmem:[#allocation2 + $0x58] sm:$0xf] %vm460, %v374
      %485 = vst.msk [vmem:[#allocation2 + $0x5c] sm:$0x1] %vm463, %v375
      %486 = vst.msk [vmem:[#allocation2 + $0x60] sm:$0xf] %vm460, %v376
      %487 = vst.msk [vmem:[#allocation2 + $0x64] sm:$0xf] %vm460, %v377
      %488 = vst.msk [vmem:[#allocation2 + $0x68] sm:$0x1] %vm463, %v378
      %489 = vst.msk [vmem:[#allocation2 + $0x6c] sm:$0xf] %vm460, %v379
      %490 = vst.msk [vmem:[#allocation2 + $0x70] sm:$0xf] %vm460, %v380
      %491 = vst.msk [vmem:[#allocation2 + $0x74] sm:$0x1] %vm463, %v381
      %492 = vst.msk [vmem:[#allocation2 + $0x78] sm:$0xf] %vm460, %v382
      %493 = vst.msk [vmem:[#allocation2 + $0x7c] sm:$0xf] %vm460, %v383
      %494 = vst.msk [vmem:[#allocation2 + $0x80] sm:$0x1] %vm463, %v384
      %495 = vst.msk [vmem:[#allocation2 + $0x84] sm:$0xf] %vm460, %v385
      %496 = vst.msk [vmem:[#allocation2 + $0x88] sm:$0xf] %vm460, %v386
      %497 = vst.msk [vmem:[#allocation2 + $0x8c] sm:$0x1] %vm463, %v387
      %498 = vst.msk [vmem:[#allocation2 + $0x90] sm:$0xf] %vm460, %v388
      %499 = vst.msk [vmem:[#allocation2 + $0x94] sm:$0xf] %vm460, %v389
      %500 = vst.msk [vmem:[#allocation2 + $0x98] sm:$0x1] %vm463, %v390
      %501 = vst.msk [vmem:[#allocation2 + $0x9c] sm:$0xf] %vm460, %v391
      %502 = vst.msk [vmem:[#allocation2 + $0xa0] sm:$0xf] %vm460, %v392
      %503 = vst.msk [vmem:[#allocation2 + $0xa4] sm:$0x1] %vm463, %v393
      %504 = vst.msk [vmem:[#allocation2 + $0xa8] sm:$0xf] %vm460, %v394
      %505 = vst.msk [vmem:[#allocation2 + $0xac] sm:$0xf] %vm460, %v395
      %506 = vst.msk [vmem:[#allocation2 + $0xb0] sm:$0x1] %vm463, %v396
      %507 = vst.msk [vmem:[#allocation2 + $0xb4] sm:$0xf] %vm460, %v397
      %508 = vst.msk [vmem:[#allocation2 + $0xb8] sm:$0xf] %vm460, %v398
      %509 = vst.msk [vmem:[#allocation2 + $0xbc] sm:$0x1] %vm463, %v399
      %510 = vst.msk [vmem:[#allocation2 + $0xc0] sm:$0xf] %vm460, %v400
      %511 = vst.msk [vmem:[#allocation2 + $0xc4] sm:$0xf] %vm460, %v401
      %512 = vst.msk [vmem:[#allocation2 + $0xc8] sm:$0x1] %vm463, %v402
      %513 = vst.msk [vmem:[#allocation2 + $0xcc] sm:$0xf] %vm460, %v403
      %514 = vst.msk [vmem:[#allocation2 + $0xd0] sm:$0xf] %vm460, %v404
      %515 = vst.msk [vmem:[#allocation2 + $0xd4] sm:$0x1] %vm463, %v405
      %v516 = vld [vmem:[#allocation2] sm:$0xf]
      %v517 = vld [vmem:[#allocation2 + $0x4] sm:$0xf]
      %v518 = vld [vmem:[#allocation2 + $0xc] sm:$0xf]
      %v519 = vld [vmem:[#allocation2 + $0x10] sm:$0xf]
      %v520 = vld [vmem:[#allocation2 + $0x18] sm:$0xf]
      %v521 = vld [vmem:[#allocation2 + $0x1c] sm:$0xf]
      %v522 = vld [vmem:[#allocation2 + $0x24] sm:$0xf]
      %v523 = vld [vmem:[#allocation2 + $0x28] sm:$0xf]
      %v524 = vld [vmem:[#allocation2 + $0x30] sm:$0xf]
      %v525 = vld [vmem:[#allocation2 + $0x34] sm:$0xf]
      %v526 = vld [vmem:[#allocation2 + $0x3c] sm:$0xf]
      %v527 = vld [vmem:[#allocation2 + $0x40] sm:$0xf]
      %v528 = vld [vmem:[#allocation2 + $0x48] sm:$0xf]
      %v529 = vld [vmem:[#allocation2 + $0x4c] sm:$0xf]
      %v530 = vld [vmem:[#allocation2 + $0x54] sm:$0xf]
      %v531 = vld [vmem:[#allocation2 + $0x58] sm:$0xf]
      %v532 = vld [vmem:[#allocation2 + $0x60] sm:$0xf]
      %v533 = vld [vmem:[#allocation2 + $0x64] sm:$0xf]
      %v534 = vld [vmem:[#allocation2 + $0x6c] sm:$0xf]
      %v535 = vld [vmem:[#allocation2 + $0x70] sm:$0xf]
      %v536 = vld [vmem:[#allocation2 + $0x78] sm:$0xf]
      %v537 = vld [vmem:[#allocation2 + $0x7c] sm:$0xf]
      %v538 = vld [vmem:[#allocation2 + $0x84] sm:$0xf]
      %v539 = vld [vmem:[#allocation2 + $0x88] sm:$0xf]
      %v540 = vld [vmem:[#allocation2 + $0x90] sm:$0xf]
      %v541 = vld [vmem:[#allocation2 + $0x94] sm:$0xf]
      %v542 = vld [vmem:[#allocation2 + $0x9c] sm:$0xf]
      %v543 = vld [vmem:[#allocation2 + $0xa0] sm:$0xf]
      %v544 = vld [vmem:[#allocation2 + $0xa8] sm:$0xf]
      %v545 = vld [vmem:[#allocation2 + $0xac] sm:$0xf]
      %v546 = vld [vmem:[#allocation2 + $0xb4] sm:$0xf]
      %v547 = vld [vmem:[#allocation2 + $0xb8] sm:$0xf]
      %v548 = vld [vmem:[%s1] sm:$0x3]
      %v549 = vld [vmem:[#allocation2 + $0x8] sm:$0x1]
      %v550 = vld [vmem:[#allocation2 + $0x14] sm:$0x1]
      %v551 = vld [vmem:[#allocation2 + $0x20] sm:$0x1]
      %v552 = vld [vmem:[#allocation2 + $0x2c] sm:$0x1]
      %v553 = vld [vmem:[#allocation2 + $0x38] sm:$0x1]
      %v554 = vld [vmem:[#allocation2 + $0x44] sm:$0x1]
      %v555 = vld [vmem:[#allocation2 + $0x50] sm:$0x1]
      %v556 = vld [vmem:[#allocation2 + $0x5c] sm:$0x1]
      %v557 = vld [vmem:[#allocation2 + $0x68] sm:$0x1]
      %v558 = vld [vmem:[#allocation2 + $0x74] sm:$0x1]
      %v559 = vld [vmem:[#allocation2 + $0x80] sm:$0x1]
      %v560 = vld [vmem:[#allocation2 + $0x8c] sm:$0x1]
      %v561 = vld [vmem:[#allocation2 + $0x98] sm:$0x1]
      %v562 = vld [vmem:[#allocation2 + $0xa4] sm:$0x1]
      %v563 = vld [vmem:[#allocation2 + $0xb0] sm:$0x1]
      %v564 = vld [vmem:[#allocation2 + $0xbc] sm:$0x1]
      %vm565 = vsmask.f32 3328
      %vm566 = vsmask.f32 7440
      %vm567 = vmor %vm565, %vm566
      %v569 = vshrl.u32 %v516, 16
      %v571 = vrot.slane %v569, 4
      %v572 = vshll.u32 %v516, 16
      %v574 = vrot.slane %v572, 5
      %v575 = vor.u32 %v571, %v574
      %v576 = vrot.slane %v575, 4
      %v578 = vshll.u32 %v517, 16
      %v580 = vrot.slane %v578, 5
      %v581 = vsel %vm567, %v576, %v580
      %v582 = vshrl.u32 %v517, 16
      %v584 = vrot.slane %v582, 4
      %v585 = vor.u32 %v584, %v580
      %v586 = vrot.slane %v585, 4
      %v588 = vshll.u32 %v549, 16
      %v590 = vrot.slane %v588, 5
      %v591 = vsel %vm567, %v586, %v590
      %v593 = vshrl.u32 %v518, 16
      %v595 = vrot.slane %v593, 4
      %v596 = vshll.u32 %v518, 16
      %v598 = vrot.slane %v596, 5
      %v599 = vor.u32 %v595, %v598
      %v600 = vrot.slane %v599, 4
      %v602 = vshll.u32 %v519, 16
      %v604 = vrot.slane %v602, 5
      %v605 = vsel %vm567, %v600, %v604
      %v606 = vshrl.u32 %v519, 16
      %v608 = vrot.slane %v606, 4
      %v609 = vor.u32 %v608, %v604
      %v610 = vrot.slane %v609, 4
      %v612 = vshll.u32 %v550, 16
      %v614 = vrot.slane %v612, 5
      %v615 = vsel %vm567, %v610, %v614
      %v617 = vshrl.u32 %v520, 16
      %v619 = vrot.slane %v617, 4
      %v620 = vshll.u32 %v520, 16
      %v622 = vrot.slane %v620, 5
      %v623 = vor.u32 %v619, %v622
      %v624 = vrot.slane %v623, 4
      %v626 = vshll.u32 %v521, 16
      %v628 = vrot.slane %v626, 5
      %v629 = vsel %vm567, %v624, %v628
      %v630 = vshrl.u32 %v521, 16
      %v632 = vrot.slane %v630, 4
      %v633 = vor.u32 %v632, %v628
      %v634 = vrot.slane %v633, 4
      %v636 = vshll.u32 %v551, 16
      %v638 = vrot.slane %v636, 5
      %v639 = vsel %vm567, %v634, %v638
      %v641 = vshrl.u32 %v522, 16
      %v643 = vrot.slane %v641, 4
      %v644 = vshll.u32 %v522, 16
      %v646 = vrot.slane %v644, 5
      %v647 = vor.u32 %v643, %v646
      %v648 = vrot.slane %v647, 4
      %v650 = vshll.u32 %v523, 16
      %v652 = vrot.slane %v650, 5
      %v653 = vsel %vm567, %v648, %v652
      %v654 = vshrl.u32 %v523, 16
      %v656 = vrot.slane %v654, 4
      %v657 = vor.u32 %v656, %v652
      %v658 = vrot.slane %v657, 4
      %v660 = vshll.u32 %v552, 16
      %v662 = vrot.slane %v660, 5
      %v663 = vsel %vm567, %v658, %v662
      %v665 = vshrl.u32 %v524, 16
      %v667 = vrot.slane %v665, 4
      %v668 = vshll.u32 %v524, 16
      %v670 = vrot.slane %v668, 5
      %v671 = vor.u32 %v667, %v670
      %v672 = vrot.slane %v671, 4
      %v674 = vshll.u32 %v525, 16
      %v676 = vrot.slane %v674, 5
      %v677 = vsel %vm567, %v672, %v676
      %v678 = vshrl.u32 %v525, 16
      %v680 = vrot.slane %v678, 4
      %v681 = vor.u32 %v680, %v676
      %v682 = vrot.slane %v681, 4
      %v684 = vshll.u32 %v553, 16
      %v686 = vrot.slane %v684, 5
      %v687 = vsel %vm567, %v682, %v686
      %v689 = vshrl.u32 %v526, 16
      %v691 = vrot.slane %v689, 4
      %v692 = vshll.u32 %v526, 16
      %v694 = vrot.slane %v692, 5
      %v695 = vor.u32 %v691, %v694
      %v696 = vrot.slane %v695, 4
      %v698 = vshll.u32 %v527, 16
      %v700 = vrot.slane %v698, 5
      %v701 = vsel %vm567, %v696, %v700
      %v702 = vshrl.u32 %v527, 16
      %v704 = vrot.slane %v702, 4
      %v705 = vor.u32 %v704, %v700
      %v706 = vrot.slane %v705, 4
      %v708 = vshll.u32 %v554, 16
      %v710 = vrot.slane %v708, 5
      %v711 = vsel %vm567, %v706, %v710
      %v713 = vshrl.u32 %v528, 16
      %v715 = vrot.slane %v713, 4
      %v716 = vshll.u32 %v528, 16
      %v718 = vrot.slane %v716, 5
      %v719 = vor.u32 %v715, %v718
      %v720 = vrot.slane %v719, 4
      %v722 = vshll.u32 %v529, 16
      %v724 = vrot.slane %v722, 5
      %v725 = vsel %vm567, %v720, %v724
      %v726 = vshrl.u32 %v529, 16
      %v728 = vrot.slane %v726, 4
      %v729 = vor.u32 %v728, %v724
      %v730 = vrot.slane %v729, 4
      %v732 = vshll.u32 %v555, 16
      %v734 = vrot.slane %v732, 5
      %v735 = vsel %vm567, %v730, %v734
      %v737 = vshrl.u32 %v530, 16
      %v739 = vrot.slane %v737, 4
      %v740 = vshll.u32 %v530, 16
      %v742 = vrot.slane %v740, 5
      %v743 = vor.u32 %v739, %v742
      %v744 = vrot.slane %v743, 4
      %v746 = vshll.u32 %v531, 16
      %v748 = vrot.slane %v746, 5
      %v749 = vsel %vm567, %v744, %v748
      %v750 = vshrl.u32 %v531, 16
      %v752 = vrot.slane %v750, 4
      %v753 = vor.u32 %v752, %v748
      %v754 = vrot.slane %v753, 4
      %v756 = vshll.u32 %v556, 16
      %v758 = vrot.slane %v756, 5
      %v759 = vsel %vm567, %v754, %v758
      %v761 = vshrl.u32 %v532, 16
      %v763 = vrot.slane %v761, 4
      %v764 = vshll.u32 %v532, 16
      %v766 = vrot.slane %v764, 5
      %v767 = vor.u32 %v763, %v766
      %v768 = vrot.slane %v767, 4
      %v770 = vshll.u32 %v533, 16
      %v772 = vrot.slane %v770, 5
      %v773 = vsel %vm567, %v768, %v772
      %v774 = vshrl.u32 %v533, 16
      %v776 = vrot.slane %v774, 4
      %v777 = vor.u32 %v776, %v772
      %v778 = vrot.slane %v777, 4
      %v780 = vshll.u32 %v557, 16
      %v782 = vrot.slane %v780, 5
      %v783 = vsel %vm567, %v778, %v782
      %v785 = vshrl.u32 %v534, 16
      %v787 = vrot.slane %v785, 4
      %v788 = vshll.u32 %v534, 16
      %v790 = vrot.slane %v788, 5
      %v791 = vor.u32 %v787, %v790
      %v792 = vrot.slane %v791, 4
      %v794 = vshll.u32 %v535, 16
      %v796 = vrot.slane %v794, 5
      %v797 = vsel %vm567, %v792, %v796
      %v798 = vshrl.u32 %v535, 16
      %v800 = vrot.slane %v798, 4
      %v801 = vor.u32 %v800, %v796
      %v802 = vrot.slane %v801, 4
      %v804 = vshll.u32 %v558, 16
      %v806 = vrot.slane %v804, 5
      %v807 = vsel %vm567, %v802, %v806
      %v809 = vshrl.u32 %v536, 16
      %v811 = vrot.slane %v809, 4
      %v812 = vshll.u32 %v536, 16
      %v814 = vrot.slane %v812, 5
      %v815 = vor.u32 %v811, %v814
      %v816 = vrot.slane %v815, 4
      %v818 = vshll.u32 %v537, 16
      %v820 = vrot.slane %v818, 5
      %v821 = vsel %vm567, %v816, %v820
      %v822 = vshrl.u32 %v537, 16
      %v824 = vrot.slane %v822, 4
      %v825 = vor.u32 %v824, %v820
      %v826 = vrot.slane %v825, 4
      %v828 = vshll.u32 %v559, 16
      %v830 = vrot.slane %v828, 5
      %v831 = vsel %vm567, %v826, %v830
      %v833 = vshrl.u32 %v538, 16
      %v835 = vrot.slane %v833, 4
      %v836 = vshll.u32 %v538, 16
      %v838 = vrot.slane %v836, 5
      %v839 = vor.u32 %v835, %v838
      %v840 = vrot.slane %v839, 4
      %v842 = vshll.u32 %v539, 16
      %v844 = vrot.slane %v842, 5
      %v845 = vsel %vm567, %v840, %v844
      %v846 = vshrl.u32 %v539, 16
      %v848 = vrot.slane %v846, 4
      %v849 = vor.u32 %v848, %v844
      %v850 = vrot.slane %v849, 4
      %v852 = vshll.u32 %v560, 16
      %v854 = vrot.slane %v852, 5
      %v855 = vsel %vm567, %v850, %v854
      %v857 = vshrl.u32 %v540, 16
      %v859 = vrot.slane %v857, 4
      %v860 = vshll.u32 %v540, 16
      %v862 = vrot.slane %v860, 5
      %v863 = vor.u32 %v859, %v862
      %v864 = vrot.slane %v863, 4
      %v866 = vshll.u32 %v541, 16
      %v868 = vrot.slane %v866, 5
      %v869 = vsel %vm567, %v864, %v868
      %v870 = vshrl.u32 %v541, 16
      %v872 = vrot.slane %v870, 4
      %v873 = vor.u32 %v872, %v868
      %v874 = vrot.slane %v873, 4
      %v876 = vshll.u32 %v561, 16
      %v878 = vrot.slane %v876, 5
      %v879 = vsel %vm567, %v874, %v878
      %v881 = vshrl.u32 %v542, 16
      %v883 = vrot.slane %v881, 4
      %v884 = vshll.u32 %v542, 16
      %v886 = vrot.slane %v884, 5
      %v887 = vor.u32 %v883, %v886
      %v888 = vrot.slane %v887, 4
      %v890 = vshll.u32 %v543, 16
      %v892 = vrot.slane %v890, 5
      %v893 = vsel %vm567, %v888, %v892
      %v894 = vshrl.u32 %v543, 16
      %v896 = vrot.slane %v894, 4
      %v897 = vor.u32 %v896, %v892
      %v898 = vrot.slane %v897, 4
      %v900 = vshll.u32 %v562, 16
      %v902 = vrot.slane %v900, 5
      %v903 = vsel %vm567, %v898, %v902
      %v905 = vshrl.u32 %v544, 16
      %v907 = vrot.slane %v905, 4
      %v908 = vshll.u32 %v544, 16
      %v910 = vrot.slane %v908, 5
      %v911 = vor.u32 %v907, %v910
      %v912 = vrot.slane %v911, 4
      %v914 = vshll.u32 %v545, 16
      %v916 = vrot.slane %v914, 5
      %v917 = vsel %vm567, %v912, %v916
      %v918 = vshrl.u32 %v545, 16
      %v920 = vrot.slane %v918, 4
      %v921 = vor.u32 %v920, %v916
      %v922 = vrot.slane %v921, 4
      %v924 = vshll.u32 %v563, 16
      %v926 = vrot.slane %v924, 5
      %v927 = vsel %vm567, %v922, %v926
      %v929 = vshrl.u32 %v546, 16
      %v931 = vrot.slane %v929, 4
      %v932 = vshll.u32 %v546, 16
      %v934 = vrot.slane %v932, 5
      %v935 = vor.u32 %v931, %v934
      %v936 = vrot.slane %v935, 4
      %v938 = vshll.u32 %v547, 16
      %v940 = vrot.slane %v938, 5
      %v941 = vsel %vm567, %v936, %v940
      %v942 = vshrl.u32 %v547, 16
      %v944 = vrot.slane %v942, 4
      %v945 = vor.u32 %v944, %v940
      %v946 = vrot.slane %v945, 4
      %v948 = vshll.u32 %v564, 16
      %v950 = vrot.slane %v948, 5
      %v951 = vsel %vm567, %v946, %v950
      %s952 = scalar_lea.vmem %s1, 2
      %v953 = vld [vmem:[%s952] sm:$0x3]
      %v954 = vunpack.c.l.b16 %v581
      %v955 = vunpack.c.l.b16 %v591
      %v956 = vunpack.c.l.b16 %v605
      %v957 = vunpack.c.l.b16 %v615
      %v958 = vunpack.c.l.b16 %v629
      %v959 = vunpack.c.l.b16 %v639
      %v960 = vunpack.c.l.b16 %v653
      %v961 = vunpack.c.l.b16 %v663
      %v962 = vunpack.c.l.b16 %v677
      %v963 = vunpack.c.l.b16 %v687
      %v964 = vunpack.c.l.b16 %v701
      %v965 = vunpack.c.l.b16 %v711
      %v966 = vunpack.c.l.b16 %v725
      %v967 = vunpack.c.l.b16 %v735
      %v968 = vunpack.c.l.b16 %v749
      %v969 = vunpack.c.l.b16 %v759
      %v970 = vunpack.c.l.b16 %v773
      %v971 = vunpack.c.l.b16 %v783
      %v972 = vunpack.c.l.b16 %v797
      %v973 = vunpack.c.l.b16 %v807
      %v974 = vunpack.c.l.b16 %v821
      %v975 = vunpack.c.l.b16 %v831
      %v976 = vunpack.c.l.b16 %v845
      %v977 = vunpack.c.l.b16 %v855
      %v978 = vunpack.c.l.b16 %v869
      %v979 = vunpack.c.l.b16 %v879
      %v980 = vunpack.c.l.b16 %v893
      %v981 = vunpack.c.l.b16 %v903
      %v982 = vunpack.c.l.b16 %v917
      %v983 = vunpack.c.l.b16 %v927
      %v984 = vunpack.c.l.b16 %v941
      %v985 = vunpack.c.l.b16 %v951
      %v986 = vpack.c.b16 %v955, %v954
      %v987 = vpack.c.b16 %v957, %v956
      %v988 = vpack.c.b16 %v959, %v958
      %v989 = vpack.c.b16 %v961, %v960
      %v990 = vpack.c.b16 %v963, %v962
      %v991 = vpack.c.b16 %v965, %v964
      %v992 = vpack.c.b16 %v967, %v966
      %v993 = vpack.c.b16 %v969, %v968
      %v994 = vpack.c.b16 %v971, %v970
      %v995 = vpack.c.b16 %v973, %v972
      %v996 = vpack.c.b16 %v975, %v974
      %v997 = vpack.c.b16 %v977, %v976
      %v998 = vpack.c.b16 %v979, %v978
      %v999 = vpack.c.b16 %v981, %v980
      %v1000 = vpack.c.b16 %v983, %v982
      %v1001 = vpack.c.b16 %v985, %v984
      %vm1002 = vcmask 31744
      %v1004 = vsel %vm1002, %v986, 0
      %v1007 = vsel %vm1002, %v987, 0
      %v1010 = vsel %vm1002, %v988, 0
      %v1013 = vsel %vm1002, %v989, 0
      %v1016 = vsel %vm1002, %v990, 0
      %v1019 = vsel %vm1002, %v991, 0
      %v1022 = vsel %vm1002, %v992, 0
      %v1025 = vsel %vm1002, %v993, 0
      %v1028 = vsel %vm1002, %v994, 0
      %v1031 = vsel %vm1002, %v995, 0
      %v1034 = vsel %vm1002, %v996, 0
      %v1037 = vsel %vm1002, %v997, 0
      %v1040 = vsel %vm1002, %v998, 0
      %v1043 = vsel %vm1002, %v999, 0
      %v1046 = vsel %vm1002, %v1000, 0
      %v1049 = vsel %vm1002, %v1001, 0
      %vm1051 = vcmask 1041408
      %v1053 = vsel %vm1051, %v953, 0
      %1055 = vmatprep.subr.bf16.mxu0 0
      %1056 = vmatpush1.bf16.msra.mxu0 %v1053
      %1057 = vmatprep.subr.bf16.mxu0 0
      %1058 = vmatpush1.bf16.msra.mxu0 0
      %1059 = vmatprep.subr.bf16.mxu0 0
      %1060 = vmatpush1.bf16.msra.mxu0 0
      %1061 = vmatprep.subr.bf16.mxu0 0
      %1062 = vmatpush1.bf16.msra.mxu0 0
      %1063 = vmatprep.subr.bf16.mxu0 0
      %1064 = vmatpush1.bf16.msra.mxu0 0
      %1065 = vmatprep.subr.bf16.mxu0 0
      %1066 = vmatpush1.bf16.msra.mxu0 0
      %1067 = vmatprep.subr.bf16.mxu0 0
      %1068 = vmatpush1.bf16.msra.mxu0 0
      %1069 = vmatprep.subr.bf16.mxu0 0
      %1070 = vmatpush1.bf16.msra.mxu0 0
      %1071 = vmatprep.subr.bf16.mxu0 0
      %1072 = vmatpush1.bf16.msra.mxu0 0
      %1073 = vmatprep.subr.bf16.mxu0 0
      %1074 = vmatpush1.bf16.msra.mxu0 0
      %1075 = vmatprep.subr.bf16.mxu0 0
      %1076 = vmatpush1.bf16.msra.mxu0 0
      %1077 = vmatprep.subr.bf16.mxu0 0
      %1078 = vmatpush1.bf16.msra.mxu0 0
      %1079 = vmatprep.subr.bf16.mxu0 0
      %1080 = vmatpush1.bf16.msra.mxu0 0
      %1081 = vmatprep.subr.bf16.mxu0 0
      %1082 = vmatpush1.bf16.msra.mxu0 0
      %1083 = vmatprep.subr.bf16.mxu0 0
      %1084 = vmatpush1.bf16.msra.mxu0 0
      %1085 = vmatprep.subr.bf16.mxu0 0
      %1086 = vmatpush1.bf16.msra.mxu0 0
      %1087 = vmatprep.mubr.bf16.mxu0 0
      %1088 = vmatmul.mubr.bf16.gmra.mrb[0].mxu0 %v1004
      %v1089 = vpop.f32.mrb[0].mxu0
      %v1090 = vadd.f32 0.0, %v1089
      %v1091 = vpop.f32.mrb[0].mxu0
      %v1092 = vpop.f32.mrb[0].mxu0
      %v1093 = vadd.f32 0.0, %v1092
      %v1094 = vpop.f32.mrb[0].mxu0
      %1095 = vmatprep.mubr.bf16.mxu0 0
      %1096 = vmatmul.mubr.bf16.gmra.mrb[0].mxu0 %v1007
      %v1097 = vpop.f32.mrb[0].mxu0
      %v1098 = vadd.f32 0.0, %v1097
      %v1099 = vpop.f32.mrb[0].mxu0
      %v1100 = vpop.f32.mrb[0].mxu0
      %v1101 = vadd.f32 0.0, %v1100
      %v1102 = vpop.f32.mrb[0].mxu0
      %1103 = vmatprep.mubr.bf16.mxu0 0
      %1104 = vmatmul.mubr.bf16.gmra.mrb[0].mxu0 %v1010
      %v1105 = vpop.f32.mrb[0].mxu0
      %v1106 = vadd.f32 0.0, %v1105
      %v1107 = vpop.f32.mrb[0].mxu0
      %v1108 = vpop.f32.mrb[0].mxu0
      %v1109 = vadd.f32 0.0, %v1108
      %v1110 = vpop.f32.mrb[0].mxu0
      %1111 = vmatprep.mubr.bf16.mxu0 0
      %1112 = vmatmul.mubr.bf16.gmra.mrb[0].mxu0 %v1013
      %v1113 = vpop.f32.mrb[0].mxu0
      %v1114 = vadd.f32 0.0, %v1113
      %v1115 = vpop.f32.mrb[0].mxu0
      %v1116 = vpop.f32.mrb[0].mxu0
      %v1117 = vadd.f32 0.0, %v1116
      %v1118 = vpop.f32.mrb[0].mxu0
      %1119 = vmatprep.mubr.bf16.mxu0 0
      %1120 = vmatmul.mubr.bf16.gmra.mrb[0].mxu0 %v1016
      %v1121 = vpop.f32.mrb[0].mxu0
      %v1122 = vadd.f32 0.0, %v1121
      %v1123 = vpop.f32.mrb[0].mxu0
      %v1124 = vpop.f32.mrb[0].mxu0
      %v1125 = vadd.f32 0.0, %v1124
      %v1126 = vpop.f32.mrb[0].mxu0
      %1127 = vmatprep.mubr.bf16.mxu0 0
      %1128 = vmatmul.mubr.bf16.gmra.mrb[0].mxu0 %v1019
      %v1129 = vpop.f32.mrb[0].mxu0
      %v1130 = vadd.f32 0.0, %v1129
      %v1131 = vpop.f32.mrb[0].mxu0
      %v1132 = vpop.f32.mrb[0].mxu0
      %v1133 = vadd.f32 0.0, %v1132
      %v1134 = vpop.f32.mrb[0].mxu0
      %1135 = vmatprep.mubr.bf16.mxu0 0
      %1136 = vmatmul.mubr.bf16.gmra.mrb[0].mxu0 %v1022
      %v1137 = vpop.f32.mrb[0].mxu0
      %v1138 = vadd.f32 0.0, %v1137
      %v1139 = vpop.f32.mrb[0].mxu0
      %v1140 = vpop.f32.mrb[0].mxu0
      %v1141 = vadd.f32 0.0, %v1140
      %v1142 = vpop.f32.mrb[0].mxu0
      %1143 = vmatprep.mubr.bf16.mxu0 0
      %1144 = vmatmul.mubr.bf16.gmra.mrb[0].mxu0 %v1025
      %v1145 = vpop.f32.mrb[0].mxu0
      %v1146 = vadd.f32 0.0, %v1145
      %v1147 = vpop.f32.mrb[0].mxu0
      %v1148 = vpop.f32.mrb[0].mxu0
      %v1149 = vadd.f32 0.0, %v1148
      %v1150 = vpop.f32.mrb[0].mxu0
      %1151 = vmatprep.mubr.bf16.mxu0 0
      %1152 = vmatmul.mubr.bf16.gmra.mrb[0].mxu0 %v1028
      %v1153 = vpop.f32.mrb[0].mxu0
      %v1154 = vadd.f32 0.0, %v1153
      %v1155 = vpop.f32.mrb[0].mxu0
      %v1156 = vpop.f32.mrb[0].mxu0
      %v1157 = vadd.f32 0.0, %v1156
      %v1158 = vpop.f32.mrb[0].mxu0
      %1159 = vmatprep.mubr.bf16.mxu0 0
      %1160 = vmatmul.mubr.bf16.gmra.mrb[0].mxu0 %v1031
      %v1161 = vpop.f32.mrb[0].mxu0
      %v1162 = vadd.f32 0.0, %v1161
      %v1163 = vpop.f32.mrb[0].mxu0
      %v1164 = vpop.f32.mrb[0].mxu0
      %v1165 = vadd.f32 0.0, %v1164
      %v1166 = vpop.f32.mrb[0].mxu0
      %1167 = vmatprep.mubr.bf16.mxu0 0
      %1168 = vmatmul.mubr.bf16.gmra.mrb[0].mxu0 %v1034
      %v1169 = vpop.f32.mrb[0].mxu0
      %v1170 = vadd.f32 0.0, %v1169
      %v1171 = vpop.f32.mrb[0].mxu0
      %v1172 = vpop.f32.mrb[0].mxu0
      %v1173 = vadd.f32 0.0, %v1172
      %v1174 = vpop.f32.mrb[0].mxu0
      %1175 = vmatprep.mubr.bf16.mxu0 0
      %1176 = vmatmul.mubr.bf16.gmra.mrb[0].mxu0 %v1037
      %v1177 = vpop.f32.mrb[0].mxu0
      %v1178 = vadd.f32 0.0, %v1177
      %v1179 = vpop.f32.mrb[0].mxu0
      %v1180 = vpop.f32.mrb[0].mxu0
      %v1181 = vadd.f32 0.0, %v1180
      %v1182 = vpop.f32.mrb[0].mxu0
      %1183 = vmatprep.mubr.bf16.mxu0 0
      %1184 = vmatmul.mubr.bf16.gmra.mrb[0].mxu0 %v1040
      %v1185 = vpop.f32.mrb[0].mxu0
      %v1186 = vadd.f32 0.0, %v1185
      %v1187 = vpop.f32.mrb[0].mxu0
      %v1188 = vpop.f32.mrb[0].mxu0
      %v1189 = vadd.f32 0.0, %v1188
      %v1190 = vpop.f32.mrb[0].mxu0
      %1191 = vmatprep.mubr.bf16.mxu0 0
      %1192 = vmatmul.mubr.bf16.gmra.mrb[0].mxu0 %v1043
      %v1193 = vpop.f32.mrb[0].mxu0
      %v1194 = vadd.f32 0.0, %v1193
      %v1195 = vpop.f32.mrb[0].mxu0
      %v1196 = vpop.f32.mrb[0].mxu0
      %v1197 = vadd.f32 0.0, %v1196
      %v1198 = vpop.f32.mrb[0].mxu0
      %1199 = vmatprep.mubr.bf16.mxu0 0
      %1200 = vmatmul.mubr.bf16.gmra.mrb[0].mxu0 %v1046
      %v1201 = vpop.f32.mrb[0].mxu0
      %v1202 = vadd.f32 0.0, %v1201
      %v1203 = vpop.f32.mrb[0].mxu0
      %v1204 = vpop.f32.mrb[0].mxu0
      %v1205 = vadd.f32 0.0, %v1204
      %v1206 = vpop.f32.mrb[0].mxu0
      %1207 = vmatprep.mubr.bf16.mxu0 0
      %1208 = vmatmul.mubr.bf16.gmra.mrb[0].mxu0 %v1049
      %v1209 = vpop.f32.mrb[0].mxu0
      %v1210 = vadd.f32 0.0, %v1209
      %v1211 = vpop.f32.mrb[0].mxu0
      %v1212 = vpop.f32.mrb[0].mxu0
      %v1213 = vadd.f32 0.0, %v1212
      %v1214 = vpop.f32.mrb[0].mxu0
      %1215 = vdwg.mxu0
      %v1248 = vunpack.c.l.b16 %v516
      %v1249 = vunpack.c.l.b16 %v517
      %v1250 = vunpack.c.l.b16 %v518
      %v1251 = vunpack.c.l.b16 %v519
      %v1252 = vunpack.c.l.b16 %v520
      %v1253 = vunpack.c.l.b16 %v521
      %v1254 = vunpack.c.l.b16 %v522
      %v1255 = vunpack.c.l.b16 %v523
      %v1256 = vunpack.c.l.b16 %v524
      %v1257 = vunpack.c.l.b16 %v525
      %v1258 = vunpack.c.l.b16 %v526
      %v1259 = vunpack.c.l.b16 %v527
      %v1260 = vunpack.c.l.b16 %v528
      %v1261 = vunpack.c.l.b16 %v529
      %v1262 = vunpack.c.l.b16 %v530
      %v1263 = vunpack.c.l.b16 %v531
      %v1264 = vunpack.c.l.b16 %v532
      %v1265 = vunpack.c.l.b16 %v533
      %v1266 = vunpack.c.l.b16 %v534
      %v1267 = vunpack.c.l.b16 %v535
      %v1268 = vunpack.c.l.b16 %v536
      %v1269 = vunpack.c.l.b16 %v537
      %v1270 = vunpack.c.l.b16 %v538
      %v1271 = vunpack.c.l.b16 %v539
      %v1272 = vunpack.c.l.b16 %v540
      %v1273 = vunpack.c.l.b16 %v541
      %v1274 = vunpack.c.l.b16 %v542
      %v1275 = vunpack.c.l.b16 %v543
      %v1276 = vunpack.c.l.b16 %v544
      %v1277 = vunpack.c.l.b16 %v545
      %v1278 = vunpack.c.l.b16 %v546
      %v1279 = vunpack.c.l.b16 %v547
      %v1280 = vpack.c.b16 %v1249, %v1248
      %v1281 = vpack.c.b16 %v1251, %v1250
      %v1282 = vpack.c.b16 %v1253, %v1252
      %v1283 = vpack.c.b16 %v1255, %v1254
      %v1284 = vpack.c.b16 %v1257, %v1256
      %v1285 = vpack.c.b16 %v1259, %v1258
      %v1286 = vpack.c.b16 %v1261, %v1260
      %v1287 = vpack.c.b16 %v1263, %v1262
      %v1288 = vpack.c.b16 %v1265, %v1264
      %v1289 = vpack.c.b16 %v1267, %v1266
      %v1290 = vpack.c.b16 %v1269, %v1268
      %v1291 = vpack.c.b16 %v1271, %v1270
      %v1292 = vpack.c.b16 %v1273, %v1272
      %v1293 = vpack.c.b16 %v1275, %v1274
      %v1294 = vpack.c.b16 %v1277, %v1276
      %v1295 = vpack.c.b16 %v1279, %v1278
      %v1297 = vsel %vm1002, %v1280, 0
      %v1300 = vsel %vm1002, %v1281, 0
      %v1303 = vsel %vm1002, %v1282, 0
      %v1306 = vsel %vm1002, %v1283, 0
      %v1309 = vsel %vm1002, %v1284, 0
      %v1312 = vsel %vm1002, %v1285, 0
      %v1315 = vsel %vm1002, %v1286, 0
      %v1318 = vsel %vm1002, %v1287, 0
      %v1321 = vsel %vm1002, %v1288, 0
      %v1324 = vsel %vm1002, %v1289, 0
      %v1327 = vsel %vm1002, %v1290, 0
      %v1330 = vsel %vm1002, %v1291, 0
      %v1333 = vsel %vm1002, %v1292, 0
      %v1336 = vsel %vm1002, %v1293, 0
      %v1339 = vsel %vm1002, %v1294, 0
      %v1342 = vsel %vm1002, %v1295, 0
      %v1345 = vsel %vm1051, %v548, 0
      %1347 = vmatprep.subr.bf16.mxu0 0
      %1348 = vmatpush1.bf16.msra.mxu0 %v1345
      %1349 = vmatprep.subr.bf16.mxu0 0
      %1350 = vmatpush1.bf16.msra.mxu0 0
      %1351 = vmatprep.subr.bf16.mxu0 0
      %1352 = vmatpush1.bf16.msra.mxu0 0
      %1353 = vmatprep.subr.bf16.mxu0 0
      %1354 = vmatpush1.bf16.msra.mxu0 0
      %1355 = vmatprep.subr.bf16.mxu0 0
      %1356 = vmatpush1.bf16.msra.mxu0 0
      %1357 = vmatprep.subr.bf16.mxu0 0
      %1358 = vmatpush1.bf16.msra.mxu0 0
      %1359 = vmatprep.subr.bf16.mxu0 0
      %1360 = vmatpush1.bf16.msra.mxu0 0
      %1361 = vmatprep.subr.bf16.mxu0 0
      %1362 = vmatpush1.bf16.msra.mxu0 0
      %1363 = vmatprep.subr.bf16.mxu0 0
      %1364 = vmatpush1.bf16.msra.mxu0 0
      %1365 = vmatprep.subr.bf16.mxu0 0
      %1366 = vmatpush1.bf16.msra.mxu0 0
      %1367 = vmatprep.subr.bf16.mxu0 0
      %1368 = vmatpush1.bf16.msra.mxu0 0
      %1369 = vmatprep.subr.bf16.mxu0 0
      %1370 = vmatpush1.bf16.msra.mxu0 0
      %1371 = vmatprep.subr.bf16.mxu0 0
      %1372 = vmatpush1.bf16.msra.mxu0 0
      %1373 = vmatprep.subr.bf16.mxu0 0
      %1374 = vmatpush1.bf16.msra.mxu0 0
      %1375 = vmatprep.subr.bf16.mxu0 0
      %1376 = vmatpush1.bf16.msra.mxu0 0
      %1377 = vmatprep.subr.bf16.mxu0 0
      %1378 = vmatpush1.bf16.msra.mxu0 0
      %1379 = vmatprep.mubr.bf16.mxu0 0
      %1380 = vmatmul.mubr.bf16.gmra.mrb[0].mxu0 %v1297
      %v1381 = vpop.f32.mrb[0].mxu0
      %v1382 = vadd.f32 %v1090, %v1381
      %v1383 = vpop.f32.mrb[0].mxu0
      %v1384 = vpop.f32.mrb[0].mxu0
      %v1385 = vadd.f32 %v1093, %v1384
      %v1386 = vpop.f32.mrb[0].mxu0
      %1387 = vmatprep.mubr.bf16.mxu0 0
      %1388 = vmatmul.mubr.bf16.gmra.mrb[0].mxu0 %v1300
      %v1389 = vpop.f32.mrb[0].mxu0
      %v1390 = vadd.f32 %v1098, %v1389
      %v1391 = vpop.f32.mrb[0].mxu0
      %v1392 = vpop.f32.mrb[0].mxu0
      %v1393 = vadd.f32 %v1101, %v1392
      %v1394 = vpop.f32.mrb[0].mxu0
      %1395 = vmatprep.mubr.bf16.mxu0 0
      %1396 = vmatmul.mubr.bf16.gmra.mrb[0].mxu0 %v1303
      %v1397 = vpop.f32.mrb[0].mxu0
      %v1398 = vadd.f32 %v1106, %v1397
      %v1399 = vpop.f32.mrb[0].mxu0
      %v1400 = vpop.f32.mrb[0].mxu0
      %v1401 = vadd.f32 %v1109, %v1400
      %v1402 = vpop.f32.mrb[0].mxu0
      %1403 = vmatprep.mubr.bf16.mxu0 0
      %1404 = vmatmul.mubr.bf16.gmra.mrb[0].mxu0 %v1306
      %v1405 = vpop.f32.mrb[0].mxu0
      %v1406 = vadd.f32 %v1114, %v1405
      %v1407 = vpop.f32.mrb[0].mxu0
      %v1408 = vpop.f32.mrb[0].mxu0
      %v1409 = vadd.f32 %v1117, %v1408
      %v1410 = vpop.f32.mrb[0].mxu0
      %1411 = vmatprep.mubr.bf16.mxu0 0
      %1412 = vmatmul.mubr.bf16.gmra.mrb[0].mxu0 %v1309
      %v1413 = vpop.f32.mrb[0].mxu0
      %v1414 = vadd.f32 %v1122, %v1413
      %v1415 = vpop.f32.mrb[0].mxu0
      %v1416 = vpop.f32.mrb[0].mxu0
      %v1417 = vadd.f32 %v1125, %v1416
      %v1418 = vpop.f32.mrb[0].mxu0
      %1419 = vmatprep.mubr.bf16.mxu0 0
      %1420 = vmatmul.mubr.bf16.gmra.mrb[0].mxu0 %v1312
      %v1421 = vpop.f32.mrb[0].mxu0
      %v1422 = vadd.f32 %v1130, %v1421
      %v1423 = vpop.f32.mrb[0].mxu0
      %v1424 = vpop.f32.mrb[0].mxu0
      %v1425 = vadd.f32 %v1133, %v1424
      %v1426 = vpop.f32.mrb[0].mxu0
      %1427 = vmatprep.mubr.bf16.mxu0 0
      %1428 = vmatmul.mubr.bf16.gmra.mrb[0].mxu0 %v1315
      %v1429 = vpop.f32.mrb[0].mxu0
      %v1430 = vadd.f32 %v1138, %v1429
      %v1431 = vpop.f32.mrb[0].mxu0
      %v1432 = vpop.f32.mrb[0].mxu0
      %v1433 = vadd.f32 %v1141, %v1432
      %v1434 = vpop.f32.mrb[0].mxu0
      %1435 = vmatprep.mubr.bf16.mxu0 0
      %1436 = vmatmul.mubr.bf16.gmra.mrb[0].mxu0 %v1318
      %v1437 = vpop.f32.mrb[0].mxu0
      %v1438 = vadd.f32 %v1146, %v1437
      %v1439 = vpop.f32.mrb[0].mxu0
      %v1440 = vpop.f32.mrb[0].mxu0
      %v1441 = vadd.f32 %v1149, %v1440
      %v1442 = vpop.f32.mrb[0].mxu0
      %1443 = vmatprep.mubr.bf16.mxu0 0
      %1444 = vmatmul.mubr.bf16.gmra.mrb[0].mxu0 %v1321
      %v1445 = vpop.f32.mrb[0].mxu0
      %v1446 = vadd.f32 %v1154, %v1445
      %v1447 = vpop.f32.mrb[0].mxu0
      %v1448 = vpop.f32.mrb[0].mxu0
      %v1449 = vadd.f32 %v1157, %v1448
      %v1450 = vpop.f32.mrb[0].mxu0
      %1451 = vmatprep.mubr.bf16.mxu0 0
      %1452 = vmatmul.mubr.bf16.gmra.mrb[0].mxu0 %v1324
      %v1453 = vpop.f32.mrb[0].mxu0
      %v1454 = vadd.f32 %v1162, %v1453
      %v1455 = vpop.f32.mrb[0].mxu0
      %v1456 = vpop.f32.mrb[0].mxu0
      %v1457 = vadd.f32 %v1165, %v1456
      %v1458 = vpop.f32.mrb[0].mxu0
      %1459 = vmatprep.mubr.bf16.mxu0 0
      %1460 = vmatmul.mubr.bf16.gmra.mrb[0].mxu0 %v1327
      %v1461 = vpop.f32.mrb[0].mxu0
      %v1462 = vadd.f32 %v1170, %v1461
      %v1463 = vpop.f32.mrb[0].mxu0
      %v1464 = vpop.f32.mrb[0].mxu0
      %v1465 = vadd.f32 %v1173, %v1464
      %v1466 = vpop.f32.mrb[0].mxu0
      %1467 = vmatprep.mubr.bf16.mxu0 0
      %1468 = vmatmul.mubr.bf16.gmra.mrb[0].mxu0 %v1330
      %v1469 = vpop.f32.mrb[0].mxu0
      %v1470 = vadd.f32 %v1178, %v1469
      %v1471 = vpop.f32.mrb[0].mxu0
      %v1472 = vpop.f32.mrb[0].mxu0
      %v1473 = vadd.f32 %v1181, %v1472
      %v1474 = vpop.f32.mrb[0].mxu0
      %1475 = vmatprep.mubr.bf16.mxu0 0
      %1476 = vmatmul.mubr.bf16.gmra.mrb[0].mxu0 %v1333
      %v1477 = vpop.f32.mrb[0].mxu0
      %v1478 = vadd.f32 %v1186, %v1477
      %v1479 = vpop.f32.mrb[0].mxu0
      %v1480 = vpop.f32.mrb[0].mxu0
      %v1481 = vadd.f32 %v1189, %v1480
      %v1482 = vpop.f32.mrb[0].mxu0
      %1483 = vmatprep.mubr.bf16.mxu0 0
      %1484 = vmatmul.mubr.bf16.gmra.mrb[0].mxu0 %v1336
      %v1485 = vpop.f32.mrb[0].mxu0
      %v1486 = vadd.f32 %v1194, %v1485
      %v1487 = vpop.f32.mrb[0].mxu0
      %v1488 = vpop.f32.mrb[0].mxu0
      %v1489 = vadd.f32 %v1197, %v1488
      %v1490 = vpop.f32.mrb[0].mxu0
      %1491 = vmatprep.mubr.bf16.mxu0 0
      %1492 = vmatmul.mubr.bf16.gmra.mrb[0].mxu0 %v1339
      %v1493 = vpop.f32.mrb[0].mxu0
      %v1494 = vadd.f32 %v1202, %v1493
      %v1495 = vpop.f32.mrb[0].mxu0
      %v1496 = vpop.f32.mrb[0].mxu0
      %v1497 = vadd.f32 %v1205, %v1496
      %v1498 = vpop.f32.mrb[0].mxu0
      %1499 = vmatprep.mubr.bf16.mxu0 0
      %1500 = vmatmul.mubr.bf16.gmra.mrb[0].mxu0 %v1342
      %v1501 = vpop.f32.mrb[0].mxu0
      %v1502 = vadd.f32 %v1210, %v1501
      %v1503 = vpop.f32.mrb[0].mxu0
      %v1504 = vpop.f32.mrb[0].mxu0
      %v1505 = vadd.f32 %v1213, %v1504
      %v1506 = vpop.f32.mrb[0].mxu0
      %1507 = vdwg.mxu0
      %v1508 = vld [vmem:[#allocation2] sm:$0xe]
      %v1509 = vld [vmem:[#allocation2 + $0xc] sm:$0xe]
      %v1510 = vld [vmem:[#allocation2 + $0x18] sm:$0xe]
      %v1511 = vld [vmem:[#allocation2 + $0x24] sm:$0xe]
      %v1512 = vld [vmem:[#allocation2 + $0x30] sm:$0xe]
      %v1513 = vld [vmem:[#allocation2 + $0x3c] sm:$0xe]
      %v1514 = vld [vmem:[#allocation2 + $0x48] sm:$0xe]
      %v1515 = vld [vmem:[#allocation2 + $0x54] sm:$0xe]
      %v1516 = vld [vmem:[#allocation2 + $0x60] sm:$0xe]
      %v1517 = vld [vmem:[#allocation2 + $0x6c] sm:$0xe]
      %v1518 = vld [vmem:[#allocation2 + $0x78] sm:$0xe]
      %v1519 = vld [vmem:[#allocation2 + $0x84] sm:$0xe]
      %v1520 = vld [vmem:[#allocation2 + $0x90] sm:$0xe]
      %v1521 = vld [vmem:[#allocation2 + $0x9c] sm:$0xe]
      %v1522 = vld [vmem:[#allocation2 + $0xa8] sm:$0xe]
      %v1523 = vld [vmem:[#allocation2 + $0xb4] sm:$0xe]
      %vm1556 = vcmask 1042432
      %vm1557 = vcmask 1046532
      %vm1558 = vmor %vm1556, %vm1557
      %v1559 = vrot.slane %v1508, 5
      %v1560 = vrot.slane %v1559, 4
      %v1561 = vrot.slane %v517, 5
      %v1562 = vsel %vm1558, %v1560, %v1561
      %v1563 = vrot.slane %v1561, 4
      %v1564 = vrot.slane %v549, 5
      %v1565 = vsel %vm1558, %v1563, %v1564
      %v1566 = vrot.slane %v1509, 5
      %v1567 = vrot.slane %v1566, 4
      %v1568 = vrot.slane %v519, 5
      %v1569 = vsel %vm1558, %v1567, %v1568
      %v1570 = vrot.slane %v1568, 4
      %v1571 = vrot.slane %v550, 5
      %v1572 = vsel %vm1558, %v1570, %v1571
      %v1573 = vrot.slane %v1510, 5
      %v1574 = vrot.slane %v1573, 4
      %v1575 = vrot.slane %v521, 5
      %v1576 = vsel %vm1558, %v1574, %v1575
      %v1577 = vrot.slane %v1575, 4
      %v1578 = vrot.slane %v551, 5
      %v1579 = vsel %vm1558, %v1577, %v1578
      %v1580 = vrot.slane %v1511, 5
      %v1581 = vrot.slane %v1580, 4
      %v1582 = vrot.slane %v523, 5
      %v1583 = vsel %vm1558, %v1581, %v1582
      %v1584 = vrot.slane %v1582, 4
      %v1585 = vrot.slane %v552, 5
      %v1586 = vsel %vm1558, %v1584, %v1585
      %v1587 = vrot.slane %v1512, 5
      %v1588 = vrot.slane %v1587, 4
      %v1589 = vrot.slane %v525, 5
      %v1590 = vsel %vm1558, %v1588, %v1589
      %v1591 = vrot.slane %v1589, 4
      %v1592 = vrot.slane %v553, 5
      %v1593 = vsel %vm1558, %v1591, %v1592
      %v1594 = vrot.slane %v1513, 5
      %v1595 = vrot.slane %v1594, 4
      %v1596 = vrot.slane %v527, 5
      %v1597 = vsel %vm1558, %v1595, %v1596
      %v1598 = vrot.slane %v1596, 4
      %v1599 = vrot.slane %v554, 5
      %v1600 = vsel %vm1558, %v1598, %v1599
      %v1601 = vrot.slane %v1514, 5
      %v1602 = vrot.slane %v1601, 4
      %v1603 = vrot.slane %v529, 5
      %v1604 = vsel %vm1558, %v1602, %v1603
      %v1605 = vrot.slane %v1603, 4
      %v1606 = vrot.slane %v555, 5
      %v1607 = vsel %vm1558, %v1605, %v1606
      %v1608 = vrot.slane %v1515, 5
      %v1609 = vrot.slane %v1608, 4
      %v1610 = vrot.slane %v531, 5
      %v1611 = vsel %vm1558, %v1609, %v1610
      %v1612 = vrot.slane %v1610, 4
      %v1613 = vrot.slane %v556, 5
      %v1614 = vsel %vm1558, %v1612, %v1613
      %v1615 = vrot.slane %v1516, 5
      %v1616 = vrot.slane %v1615, 4
      %v1617 = vrot.slane %v533, 5
      %v1618 = vsel %vm1558, %v1616, %v1617
      %v1619 = vrot.slane %v1617, 4
      %v1620 = vrot.slane %v557, 5
      %v1621 = vsel %vm1558, %v1619, %v1620
      %v1622 = vrot.slane %v1517, 5
      %v1623 = vrot.slane %v1622, 4
      %v1624 = vrot.slane %v535, 5
      %v1625 = vsel %vm1558, %v1623, %v1624
      %v1626 = vrot.slane %v1624, 4
      %v1627 = vrot.slane %v558, 5
      %v1628 = vsel %vm1558, %v1626, %v1627
      %v1629 = vrot.slane %v1518, 5
      %v1630 = vrot.slane %v1629, 4
      %v1631 = vrot.slane %v537, 5
      %v1632 = vsel %vm1558, %v1630, %v1631
      %v1633 = vrot.slane %v1631, 4
      %v1634 = vrot.slane %v559, 5
      %v1635 = vsel %vm1558, %v1633, %v1634
      %v1636 = vrot.slane %v1519, 5
      %v1637 = vrot.slane %v1636, 4
      %v1638 = vrot.slane %v539, 5
      %v1639 = vsel %vm1558, %v1637, %v1638
      %v1640 = vrot.slane %v1638, 4
      %v1641 = vrot.slane %v560, 5
      %v1642 = vsel %vm1558, %v1640, %v1641
      %v1643 = vrot.slane %v1520, 5
      %v1644 = vrot.slane %v1643, 4
      %v1645 = vrot.slane %v541, 5
      %v1646 = vsel %vm1558, %v1644, %v1645
      %v1647 = vrot.slane %v1645, 4
      %v1648 = vrot.slane %v561, 5
      %v1649 = vsel %vm1558, %v1647, %v1648
      %v1650 = vrot.slane %v1521, 5
      %v1651 = vrot.slane %v1650, 4
      %v1652 = vrot.slane %v543, 5
      %v1653 = vsel %vm1558, %v1651, %v1652
      %v1654 = vrot.slane %v1652, 4
      %v1655 = vrot.slane %v562, 5
      %v1656 = vsel %vm1558, %v1654, %v1655
      %v1657 = vrot.slane %v1522, 5
      %v1658 = vrot.slane %v1657, 4
      %v1659 = vrot.slane %v545, 5
      %v1660 = vsel %vm1558, %v1658, %v1659
      %v1661 = vrot.slane %v1659, 4
      %v1662 = vrot.slane %v563, 5
      %v1663 = vsel %vm1558, %v1661, %v1662
      %v1664 = vrot.slane %v1523, 5
      %v1665 = vrot.slane %v1664, 4
      %v1666 = vrot.slane %v547, 5
      %v1667 = vsel %vm1558, %v1665, %v1666
      %v1668 = vrot.slane %v1666, 4
      %v1669 = vrot.slane %v564, 5
      %v1670 = vsel %vm1558, %v1668, %v1669
      %s1671 = scalar_lea.vmem %s1, 4
      %v1672 = vld [vmem:[%s1671] sm:$0x3]
      %v1673 = vunpack.c.l.b16 %v1562
      %v1674 = vunpack.c.l.b16 %v1565
      %v1675 = vunpack.c.l.b16 %v1569
      %v1676 = vunpack.c.l.b16 %v1572
      %v1677 = vunpack.c.l.b16 %v1576
      %v1678 = vunpack.c.l.b16 %v1579
      %v1679 = vunpack.c.l.b16 %v1583
      %v1680 = vunpack.c.l.b16 %v1586
      %v1681 = vunpack.c.l.b16 %v1590
      %v1682 = vunpack.c.l.b16 %v1593
      %v1683 = vunpack.c.l.b16 %v1597
      %v1684 = vunpack.c.l.b16 %v1600
      %v1685 = vunpack.c.l.b16 %v1604
      %v1686 = vunpack.c.l.b16 %v1607
      %v1687 = vunpack.c.l.b16 %v1611
      %v1688 = vunpack.c.l.b16 %v1614
      %v1689 = vunpack.c.l.b16 %v1618
      %v1690 = vunpack.c.l.b16 %v1621
      %v1691 = vunpack.c.l.b16 %v1625
      %v1692 = vunpack.c.l.b16 %v1628
      %v1693 = vunpack.c.l.b16 %v1632
      %v1694 = vunpack.c.l.b16 %v1635
      %v1695 = vunpack.c.l.b16 %v1639
      %v1696 = vunpack.c.l.b16 %v1642
      %v1697 = vunpack.c.l.b16 %v1646
      %v1698 = vunpack.c.l.b16 %v1649
      %v1699 = vunpack.c.l.b16 %v1653
      %v1700 = vunpack.c.l.b16 %v1656
      %v1701 = vunpack.c.l.b16 %v1660
      %v1702 = vunpack.c.l.b16 %v1663
      %v1703 = vunpack.c.l.b16 %v1667
      %v1704 = vunpack.c.l.b16 %v1670
      %v1705 = vpack.c.b16 %v1674, %v1673
      %v1706 = vpack.c.b16 %v1676, %v1675
      %v1707 = vpack.c.b16 %v1678, %v1677
      %v1708 = vpack.c.b16 %v1680, %v1679
      %v1709 = vpack.c.b16 %v1682, %v1681
      %v1710 = vpack.c.b16 %v1684, %v1683
      %v1711 = vpack.c.b16 %v1686, %v1685
      %v1712 = vpack.c.b16 %v1688, %v1687
      %v1713 = vpack.c.b16 %v1690, %v1689
      %v1714 = vpack.c.b16 %v1692, %v1691
      %v1715 = vpack.c.b16 %v1694, %v1693
      %v1716 = vpack.c.b16 %v1696, %v1695
      %v1717 = vpack.c.b16 %v1698, %v1697
      %v1718 = vpack.c.b16 %v1700, %v1699
      %v1719 = vpack.c.b16 %v1702, %v1701
      %v1720 = vpack.c.b16 %v1704, %v1703
      %v1722 = vsel %vm1002, %v1705, 0
      %v1725 = vsel %vm1002, %v1706, 0
      %v1728 = vsel %vm1002, %v1707, 0
      %v1731 = vsel %vm1002, %v1708, 0
      %v1734 = vsel %vm1002, %v1709, 0
      %v1737 = vsel %vm1002, %v1710, 0
      %v1740 = vsel %vm1002, %v1711, 0
      %v1743 = vsel %vm1002, %v1712, 0
      %v1746 = vsel %vm1002, %v1713, 0
      %v1749 = vsel %vm1002, %v1714, 0
      %v1752 = vsel %vm1002, %v1715, 0
      %v1755 = vsel %vm1002, %v1716, 0
      %v1758 = vsel %vm1002, %v1717, 0
      %v1761 = vsel %vm1002, %v1718, 0
      %v1764 = vsel %vm1002, %v1719, 0
      %v1767 = vsel %vm1002, %v1720, 0
      %v1770 = vsel %vm1051, %v1672, 0
      %1772 = vmatprep.subr.bf16.mxu0 0
      %1773 = vmatpush1.bf16.msra.mxu0 %v1770
      %1774 = vmatprep.subr.bf16.mxu0 0
      %1775 = vmatpush1.bf16.msra.mxu0 0
      %1776 = vmatprep.subr.bf16.mxu0 0
      %1777 = vmatpush1.bf16.msra.mxu0 0
      %1778 = vmatprep.subr.bf16.mxu0 0
      %1779 = vmatpush1.bf16.msra.mxu0 0
      %1780 = vmatprep.subr.bf16.mxu0 0
      %1781 = vmatpush1.bf16.msra.mxu0 0
      %1782 = vmatprep.subr.bf16.mxu0 0
      %1783 = vmatpush1.bf16.msra.mxu0 0
      %1784 = vmatprep.subr.bf16.mxu0 0
      %1785 = vmatpush1.bf16.msra.mxu0 0
      %1786 = vmatprep.subr.bf16.mxu0 0
      %1787 = vmatpush1.bf16.msra.mxu0 0
      %1788 = vmatprep.subr.bf16.mxu0 0
      %1789 = vmatpush1.bf16.msra.mxu0 0
      %1790 = vmatprep.subr.bf16.mxu0 0
      %1791 = vmatpush1.bf16.msra.mxu0 0
      %1792 = vmatprep.subr.bf16.mxu0 0
      %1793 = vmatpush1.bf16.msra.mxu0 0
      %1794 = vmatprep.subr.bf16.mxu0 0
      %1795 = vmatpush1.bf16.msra.mxu0 0
      %1796 = vmatprep.subr.bf16.mxu0 0
      %1797 = vmatpush1.bf16.msra.mxu0 0
      %1798 = vmatprep.subr.bf16.mxu0 0
      %1799 = vmatpush1.bf16.msra.mxu0 0
      %1800 = vmatprep.subr.bf16.mxu0 0
      %1801 = vmatpush1.bf16.msra.mxu0 0
      %1802 = vmatprep.subr.bf16.mxu0 0
      %1803 = vmatpush1.bf16.msra.mxu0 0
      %1804 = vmatprep.mubr.bf16.mxu0 0
      %1805 = vmatmul.mubr.bf16.gmra.mrb[0].mxu0 %v1722
      %v1806 = vpop.f32.mrb[0].mxu0
      %v1807 = vadd.f32 0.0, %v1806
      %v1808 = vpop.f32.mrb[0].mxu0
      %v1809 = vpop.f32.mrb[0].mxu0
      %v1810 = vadd.f32 0.0, %v1809
      %v1811 = vpop.f32.mrb[0].mxu0
      %1812 = vmatprep.mubr.bf16.mxu0 0
      %1813 = vmatmul.mubr.bf16.gmra.mrb[0].mxu0 %v1725
      %v1814 = vpop.f32.mrb[0].mxu0
      %v1815 = vadd.f32 0.0, %v1814
      %v1816 = vpop.f32.mrb[0].mxu0
      %v1817 = vpop.f32.mrb[0].mxu0
      %v1818 = vadd.f32 0.0, %v1817
      %v1819 = vpop.f32.mrb[0].mxu0
      %1820 = vmatprep.mubr.bf16.mxu0 0
      %1821 = vmatmul.mubr.bf16.gmra.mrb[0].mxu0 %v1728
      %v1822 = vpop.f32.mrb[0].mxu0
      %v1823 = vadd.f32 0.0, %v1822
      %v1824 = vpop.f32.mrb[0].mxu0
      %v1825 = vpop.f32.mrb[0].mxu0
      %v1826 = vadd.f32 0.0, %v1825
      %v1827 = vpop.f32.mrb[0].mxu0
      %1828 = vmatprep.mubr.bf16.mxu0 0
      %1829 = vmatmul.mubr.bf16.gmra.mrb[0].mxu0 %v1731
      %v1830 = vpop.f32.mrb[0].mxu0
      %v1831 = vadd.f32 0.0, %v1830
      %v1832 = vpop.f32.mrb[0].mxu0
      %v1833 = vpop.f32.mrb[0].mxu0
      %v1834 = vadd.f32 0.0, %v1833
      %v1835 = vpop.f32.mrb[0].mxu0
      %1836 = vmatprep.mubr.bf16.mxu0 0
      %1837 = vmatmul.mubr.bf16.gmra.mrb[0].mxu0 %v1734
      %v1838 = vpop.f32.mrb[0].mxu0
      %v1839 = vadd.f32 0.0, %v1838
      %v1840 = vpop.f32.mrb[0].mxu0
      %v1841 = vpop.f32.mrb[0].mxu0
      %v1842 = vadd.f32 0.0, %v1841
      %v1843 = vpop.f32.mrb[0].mxu0
      %1844 = vmatprep.mubr.bf16.mxu0 0
      %1845 = vmatmul.mubr.bf16.gmra.mrb[0].mxu0 %v1737
      %v1846 = vpop.f32.mrb[0].mxu0
      %v1847 = vadd.f32 0.0, %v1846
      %v1848 = vpop.f32.mrb[0].mxu0
      %v1849 = vpop.f32.mrb[0].mxu0
      %v1850 = vadd.f32 0.0, %v1849
      %v1851 = vpop.f32.mrb[0].mxu0
      %1852 = vmatprep.mubr.bf16.mxu0 0
      %1853 = vmatmul.mubr.bf16.gmra.mrb[0].mxu0 %v1740
      %v1854 = vpop.f32.mrb[0].mxu0
      %v1855 = vadd.f32 0.0, %v1854
      %v1856 = vpop.f32.mrb[0].mxu0
      %v1857 = vpop.f32.mrb[0].mxu0
      %v1858 = vadd.f32 0.0, %v1857
      %v1859 = vpop.f32.mrb[0].mxu0
      %1860 = vmatprep.mubr.bf16.mxu0 0
      %1861 = vmatmul.mubr.bf16.gmra.mrb[0].mxu0 %v1743
      %v1862 = vpop.f32.mrb[0].mxu0
      %v1863 = vadd.f32 0.0, %v1862
      %v1864 = vpop.f32.mrb[0].mxu0
      %v1865 = vpop.f32.mrb[0].mxu0
      %v1866 = vadd.f32 0.0, %v1865
      %v1867 = vpop.f32.mrb[0].mxu0
      %1868 = vmatprep.mubr.bf16.mxu0 0
      %1869 = vmatmul.mubr.bf16.gmra.mrb[0].mxu0 %v1746
      %v1870 = vpop.f32.mrb[0].mxu0
      %v1871 = vadd.f32 0.0, %v1870
      %v1872 = vpop.f32.mrb[0].mxu0
      %v1873 = vpop.f32.mrb[0].mxu0
      %v1874 = vadd.f32 0.0, %v1873
      %v1875 = vpop.f32.mrb[0].mxu0
      %1876 = vmatprep.mubr.bf16.mxu0 0
      %1877 = vmatmul.mubr.bf16.gmra.mrb[0].mxu0 %v1749
      %v1878 = vpop.f32.mrb[0].mxu0
      %v1879 = vadd.f32 0.0, %v1878
      %v1880 = vpop.f32.mrb[0].mxu0
      %v1881 = vpop.f32.mrb[0].mxu0
      %v1882 = vadd.f32 0.0, %v1881
      %v1883 = vpop.f32.mrb[0].mxu0
      %1884 = vmatprep.mubr.bf16.mxu0 0
      %1885 = vmatmul.mubr.bf16.gmra.mrb[0].mxu0 %v1752
      %v1886 = vpop.f32.mrb[0].mxu0
      %v1887 = vadd.f32 0.0, %v1886
      %v1888 = vpop.f32.mrb[0].mxu0
      %v1889 = vpop.f32.mrb[0].mxu0
      %v1890 = vadd.f32 0.0, %v1889
      %v1891 = vpop.f32.mrb[0].mxu0
      %1892 = vmatprep.mubr.bf16.mxu0 0
      %1893 = vmatmul.mubr.bf16.gmra.mrb[0].mxu0 %v1755
      %v1894 = vpop.f32.mrb[0].mxu0
      %v1895 = vadd.f32 0.0, %v1894
      %v1896 = vpop.f32.mrb[0].mxu0
      %v1897 = vpop.f32.mrb[0].mxu0
      %v1898 = vadd.f32 0.0, %v1897
      %v1899 = vpop.f32.mrb[0].mxu0
      %1900 = vmatprep.mubr.bf16.mxu0 0
      %1901 = vmatmul.mubr.bf16.gmra.mrb[0].mxu0 %v1758
      %v1902 = vpop.f32.mrb[0].mxu0
      %v1903 = vadd.f32 0.0, %v1902
      %v1904 = vpop.f32.mrb[0].mxu0
      %v1905 = vpop.f32.mrb[0].mxu0
      %v1906 = vadd.f32 0.0, %v1905
      %v1907 = vpop.f32.mrb[0].mxu0
      %1908 = vmatprep.mubr.bf16.mxu0 0
      %1909 = vmatmul.mubr.bf16.gmra.mrb[0].mxu0 %v1761
      %v1910 = vpop.f32.mrb[0].mxu0
      %v1911 = vadd.f32 0.0, %v1910
      %v1912 = vpop.f32.mrb[0].mxu0
      %v1913 = vpop.f32.mrb[0].mxu0
      %v1914 = vadd.f32 0.0, %v1913
      %v1915 = vpop.f32.mrb[0].mxu0
      %1916 = vmatprep.mubr.bf16.mxu0 0
      %1917 = vmatmul.mubr.bf16.gmra.mrb[0].mxu0 %v1764
      %v1918 = vpop.f32.mrb[0].mxu0
      %v1919 = vadd.f32 0.0, %v1918
      %v1920 = vpop.f32.mrb[0].mxu0
      %v1921 = vpop.f32.mrb[0].mxu0
      %v1922 = vadd.f32 0.0, %v1921
      %v1923 = vpop.f32.mrb[0].mxu0
      %1924 = vmatprep.mubr.bf16.mxu0 0
      %1925 = vmatmul.mubr.bf16.gmra.mrb[0].mxu0 %v1767
      %v1926 = vpop.f32.mrb[0].mxu0
      %v1927 = vadd.f32 0.0, %v1926
      %v1928 = vpop.f32.mrb[0].mxu0
      %v1929 = vpop.f32.mrb[0].mxu0
      %v1930 = vadd.f32 0.0, %v1929
      %v1931 = vpop.f32.mrb[0].mxu0
      %1932 = vdwg.mxu0
      %v1933 = vadd.f32 %v1382, %v1807
      %v1934 = vadd.f32 %v1385, %v1810
      %v1935 = vadd.f32 %v1390, %v1815
      %v1936 = vadd.f32 %v1393, %v1818
      %v1937 = vadd.f32 %v1398, %v1823
      %v1938 = vadd.f32 %v1401, %v1826
      %v1939 = vadd.f32 %v1406, %v1831
      %v1940 = vadd.f32 %v1409, %v1834
      %v1941 = vadd.f32 %v1414, %v1839
      %v1942 = vadd.f32 %v1417, %v1842
      %v1943 = vadd.f32 %v1422, %v1847
      %v1944 = vadd.f32 %v1425, %v1850
      %v1945 = vadd.f32 %v1430, %v1855
      %v1946 = vadd.f32 %v1433, %v1858
      %v1947 = vadd.f32 %v1438, %v1863
      %v1948 = vadd.f32 %v1441, %v1866
      %v1949 = vadd.f32 %v1446, %v1871
      %v1950 = vadd.f32 %v1449, %v1874
      %v1951 = vadd.f32 %v1454, %v1879
      %v1952 = vadd.f32 %v1457, %v1882
      %v1953 = vadd.f32 %v1462, %v1887
      %v1954 = vadd.f32 %v1465, %v1890
      %v1955 = vadd.f32 %v1470, %v1895
      %v1956 = vadd.f32 %v1473, %v1898
      %v1957 = vadd.f32 %v1478, %v1903
      %v1958 = vadd.f32 %v1481, %v1906
      %v1959 = vadd.f32 %v1486, %v1911
      %v1960 = vadd.f32 %v1489, %v1914
      %v1961 = vadd.f32 %v1494, %v1919
      %v1962 = vadd.f32 %v1497, %v1922
      %v1963 = vadd.f32 %v1502, %v1927
      %v1964 = vadd.f32 %v1505, %v1930
      %s1965 = scalar_lea.vmem [#allocation2], 12
      %v1966 = vld [vmem:[%s1965] sm:$0xf]
      %v1967 = vld [vmem:[%s1965 + $0x4] sm:$0xf]
      %v1968 = vld [vmem:[%s1965 + $0xc] sm:$0xf]
      %v1969 = vld [vmem:[%s1965 + $0x10] sm:$0xf]
      %v1970 = vld [vmem:[%s1965 + $0x18] sm:$0xf]
      %v1971 = vld [vmem:[%s1965 + $0x1c] sm:$0xf]
      %v1972 = vld [vmem:[%s1965 + $0x24] sm:$0xf]
      %v1973 = vld [vmem:[%s1965 + $0x28] sm:$0xf]
      %v1974 = vld [vmem:[%s1965 + $0x30] sm:$0xf]
      %v1975 = vld [vmem:[%s1965 + $0x34] sm:$0xf]
      %v1976 = vld [vmem:[%s1965 + $0x3c] sm:$0xf]
      %v1977 = vld [vmem:[%s1965 + $0x40] sm:$0xf]
      %v1978 = vld [vmem:[%s1965 + $0x48] sm:$0xf]
      %v1979 = vld [vmem:[%s1965 + $0x4c] sm:$0xf]
      %v1980 = vld [vmem:[%s1965 + $0x54] sm:$0xf]
      %v1981 = vld [vmem:[%s1965 + $0x58] sm:$0xf]
      %v1982 = vld [vmem:[%s1965 + $0x60] sm:$0xf]
      %v1983 = vld [vmem:[%s1965 + $0x64] sm:$0xf]
      %v1984 = vld [vmem:[%s1965 + $0x6c] sm:$0xf]
      %v1985 = vld [vmem:[%s1965 + $0x70] sm:$0xf]
      %v1986 = vld [vmem:[%s1965 + $0x78] sm:$0xf]
      %v1987 = vld [vmem:[%s1965 + $0x7c] sm:$0xf]
      %v1988 = vld [vmem:[%s1965 + $0x84] sm:$0xf]
      %v1989 = vld [vmem:[%s1965 + $0x88] sm:$0xf]
      %v1990 = vld [vmem:[%s1965 + $0x90] sm:$0xf]
      %v1991 = vld [vmem:[%s1965 + $0x94] sm:$0xf]
      %v1992 = vld [vmem:[%s1965 + $0x9c] sm:$0xf]
      %v1993 = vld [vmem:[%s1965 + $0xa0] sm:$0xf]
      %v1994 = vld [vmem:[%s1965 + $0xa8] sm:$0xf]
      %v1995 = vld [vmem:[%s1965 + $0xac] sm:$0xf]
      %v1996 = vld [vmem:[%s1965 + $0xb4] sm:$0xf]
      %v1997 = vld [vmem:[%s1965 + $0xb8] sm:$0xf]
      %s1998 = scalar_lea.vmem %s1, 6
      %v1999 = vld [vmem:[%s1998] sm:$0x3]
      %v2032 = vunpack.c.l.b16 %v1966
      %v2033 = vunpack.c.l.b16 %v1967
      %v2034 = vunpack.c.l.b16 %v1968
      %v2035 = vunpack.c.l.b16 %v1969
      %v2036 = vunpack.c.l.b16 %v1970
      %v2037 = vunpack.c.l.b16 %v1971
      %v2038 = vunpack.c.l.b16 %v1972
      %v2039 = vunpack.c.l.b16 %v1973
      %v2040 = vunpack.c.l.b16 %v1974
      %v2041 = vunpack.c.l.b16 %v1975
      %v2042 = vunpack.c.l.b16 %v1976
      %v2043 = vunpack.c.l.b16 %v1977
      %v2044 = vunpack.c.l.b16 %v1978
      %v2045 = vunpack.c.l.b16 %v1979
      %v2046 = vunpack.c.l.b16 %v1980
      %v2047 = vunpack.c.l.b16 %v1981
      %v2048 = vunpack.c.l.b16 %v1982
      %v2049 = vunpack.c.l.b16 %v1983
      %v2050 = vunpack.c.l.b16 %v1984
      %v2051 = vunpack.c.l.b16 %v1985
      %v2052 = vunpack.c.l.b16 %v1986
      %v2053 = vunpack.c.l.b16 %v1987
      %v2054 = vunpack.c.l.b16 %v1988
      %v2055 = vunpack.c.l.b16 %v1989
      %v2056 = vunpack.c.l.b16 %v1990
      %v2057 = vunpack.c.l.b16 %v1991
      %v2058 = vunpack.c.l.b16 %v1992
      %v2059 = vunpack.c.l.b16 %v1993
      %v2060 = vunpack.c.l.b16 %v1994
      %v2061 = vunpack.c.l.b16 %v1995
      %v2062 = vunpack.c.l.b16 %v1996
      %v2063 = vunpack.c.l.b16 %v1997
      %v2064 = vpack.c.b16 %v2033, %v2032
      %v2065 = vpack.c.b16 %v2035, %v2034
      %v2066 = vpack.c.b16 %v2037, %v2036
      %v2067 = vpack.c.b16 %v2039, %v2038
      %v2068 = vpack.c.b16 %v2041, %v2040
      %v2069 = vpack.c.b16 %v2043, %v2042
      %v2070 = vpack.c.b16 %v2045, %v2044
      %v2071 = vpack.c.b16 %v2047, %v2046
      %v2072 = vpack.c.b16 %v2049, %v2048
      %v2073 = vpack.c.b16 %v2051, %v2050
      %v2074 = vpack.c.b16 %v2053, %v2052
      %v2075 = vpack.c.b16 %v2055, %v2054
      %v2076 = vpack.c.b16 %v2057, %v2056
      %v2077 = vpack.c.b16 %v2059, %v2058
      %v2078 = vpack.c.b16 %v2061, %v2060
      %v2079 = vpack.c.b16 %v2063, %v2062
      %v2081 = vsel %vm1002, %v2064, 0
      %v2084 = vsel %vm1002, %v2065, 0
      %v2087 = vsel %vm1002, %v2066, 0
      %v2090 = vsel %vm1002, %v2067, 0
      %v2093 = vsel %vm1002, %v2068, 0
      %v2096 = vsel %vm1002, %v2069, 0
      %v2099 = vsel %vm1002, %v2070, 0
      %v2102 = vsel %vm1002, %v2071, 0
      %v2105 = vsel %vm1002, %v2072, 0
      %v2108 = vsel %vm1002, %v2073, 0
      %v2111 = vsel %vm1002, %v2074, 0
      %v2114 = vsel %vm1002, %v2075, 0
      %v2117 = vsel %vm1002, %v2076, 0
      %v2120 = vsel %vm1002, %v2077, 0
      %v2123 = vsel %vm1002, %v2078, 0
      %v2126 = vsel %vm1002, %v2079, 0
      %v2129 = vsel %vm1051, %v1999, 0
      %2131 = vmatprep.subr.bf16.mxu0 0
      %2132 = vmatpush1.bf16.msra.mxu0 %v2129
      %2133 = vmatprep.subr.bf16.mxu0 0
      %2134 = vmatpush1.bf16.msra.mxu0 0
      %2135 = vmatprep.subr.bf16.mxu0 0
      %2136 = vmatpush1.bf16.msra.mxu0 0
      %2137 = vmatprep.subr.bf16.mxu0 0
      %2138 = vmatpush1.bf16.msra.mxu0 0
      %2139 = vmatprep.subr.bf16.mxu0 0
      %2140 = vmatpush1.bf16.msra.mxu0 0
      %2141 = vmatprep.subr.bf16.mxu0 0
      %2142 = vmatpush1.bf16.msra.mxu0 0
      %2143 = vmatprep.subr.bf16.mxu0 0
      %2144 = vmatpush1.bf16.msra.mxu0 0
      %2145 = vmatprep.subr.bf16.mxu0 0
      %2146 = vmatpush1.bf16.msra.mxu0 0
      %2147 = vmatprep.subr.bf16.mxu0 0
      %2148 = vmatpush1.bf16.msra.mxu0 0
      %2149 = vmatprep.subr.bf16.mxu0 0
      %2150 = vmatpush1.bf16.msra.mxu0 0
      %2151 = vmatprep.subr.bf16.mxu0 0
      %2152 = vmatpush1.bf16.msra.mxu0 0
      %2153 = vmatprep.subr.bf16.mxu0 0
      %2154 = vmatpush1.bf16.msra.mxu0 0
      %2155 = vmatprep.subr.bf16.mxu0 0
      %2156 = vmatpush1.bf16.msra.mxu0 0
      %2157 = vmatprep.subr.bf16.mxu0 0
      %2158 = vmatpush1.bf16.msra.mxu0 0
      %2159 = vmatprep.subr.bf16.mxu0 0
      %2160 = vmatpush1.bf16.msra.mxu0 0
      %2161 = vmatprep.subr.bf16.mxu0 0
      %2162 = vmatpush1.bf16.msra.mxu0 0
      %2163 = vmatprep.mubr.bf16.mxu0 0
      %2164 = vmatmul.mubr.bf16.gmra.mrb[0].mxu0 %v2081
      %v2165 = vpop.f32.mrb[0].mxu0
      %v2166 = vadd.f32 0.0, %v2165
      %v2167 = vpop.f32.mrb[0].mxu0
      %v2168 = vpop.f32.mrb[0].mxu0
      %v2169 = vadd.f32 0.0, %v2168
      %v2170 = vpop.f32.mrb[0].mxu0
      %2171 = vmatprep.mubr.bf16.mxu0 0
      %2172 = vmatmul.mubr.bf16.gmra.mrb[0].mxu0 %v2084
      %v2173 = vpop.f32.mrb[0].mxu0
      %v2174 = vadd.f32 0.0, %v2173
      %v2175 = vpop.f32.mrb[0].mxu0
      %v2176 = vpop.f32.mrb[0].mxu0
      %v2177 = vadd.f32 0.0, %v2176
      %v2178 = vpop.f32.mrb[0].mxu0
      %2179 = vmatprep.mubr.bf16.mxu0 0
      %2180 = vmatmul.mubr.bf16.gmra.mrb[0].mxu0 %v2087
      %v2181 = vpop.f32.mrb[0].mxu0
      %v2182 = vadd.f32 0.0, %v2181
      %v2183 = vpop.f32.mrb[0].mxu0
      %v2184 = vpop.f32.mrb[0].mxu0
      %v2185 = vadd.f32 0.0, %v2184
      %v2186 = vpop.f32.mrb[0].mxu0
      %2187 = vmatprep.mubr.bf16.mxu0 0
      %2188 = vmatmul.mubr.bf16.gmra.mrb[0].mxu0 %v2090
      %v2189 = vpop.f32.mrb[0].mxu0
      %v2190 = vadd.f32 0.0, %v2189
      %v2191 = vpop.f32.mrb[0].mxu0
      %v2192 = vpop.f32.mrb[0].mxu0
      %v2193 = vadd.f32 0.0, %v2192
      %v2194 = vpop.f32.mrb[0].mxu0
      %2195 = vmatprep.mubr.bf16.mxu0 0
      %2196 = vmatmul.mubr.bf16.gmra.mrb[0].mxu0 %v2093
      %v2197 = vpop.f32.mrb[0].mxu0
      %v2198 = vadd.f32 0.0, %v2197
      %v2199 = vpop.f32.mrb[0].mxu0
      %v2200 = vpop.f32.mrb[0].mxu0
      %v2201 = vadd.f32 0.0, %v2200
      %v2202 = vpop.f32.mrb[0].mxu0
      %2203 = vmatprep.mubr.bf16.mxu0 0
      %2204 = vmatmul.mubr.bf16.gmra.mrb[0].mxu0 %v2096
      %v2205 = vpop.f32.mrb[0].mxu0
      %v2206 = vadd.f32 0.0, %v2205
      %v2207 = vpop.f32.mrb[0].mxu0
      %v2208 = vpop.f32.mrb[0].mxu0
      %v2209 = vadd.f32 0.0, %v2208
      %v2210 = vpop.f32.mrb[0].mxu0
      %2211 = vmatprep.mubr.bf16.mxu0 0
      %2212 = vmatmul.mubr.bf16.gmra.mrb[0].mxu0 %v2099
      %v2213 = vpop.f32.mrb[0].mxu0
      %v2214 = vadd.f32 0.0, %v2213
      %v2215 = vpop.f32.mrb[0].mxu0
      %v2216 = vpop.f32.mrb[0].mxu0
      %v2217 = vadd.f32 0.0, %v2216
      %v2218 = vpop.f32.mrb[0].mxu0
      %2219 = vmatprep.mubr.bf16.mxu0 0
      %2220 = vmatmul.mubr.bf16.gmra.mrb[0].mxu0 %v2102
      %v2221 = vpop.f32.mrb[0].mxu0
      %v2222 = vadd.f32 0.0, %v2221
      %v2223 = vpop.f32.mrb[0].mxu0
      %v2224 = vpop.f32.mrb[0].mxu0
      %v2225 = vadd.f32 0.0, %v2224
      %v2226 = vpop.f32.mrb[0].mxu0
      %2227 = vmatprep.mubr.bf16.mxu0 0
      %2228 = vmatmul.mubr.bf16.gmra.mrb[0].mxu0 %v2105
      %v2229 = vpop.f32.mrb[0].mxu0
      %v2230 = vadd.f32 0.0, %v2229
      %v2231 = vpop.f32.mrb[0].mxu0
      %v2232 = vpop.f32.mrb[0].mxu0
      %v2233 = vadd.f32 0.0, %v2232
      %v2234 = vpop.f32.mrb[0].mxu0
      %2235 = vmatprep.mubr.bf16.mxu0 0
      %2236 = vmatmul.mubr.bf16.gmra.mrb[0].mxu0 %v2108
      %v2237 = vpop.f32.mrb[0].mxu0
      %v2238 = vadd.f32 0.0, %v2237
      %v2239 = vpop.f32.mrb[0].mxu0
      %v2240 = vpop.f32.mrb[0].mxu0
      %v2241 = vadd.f32 0.0, %v2240
      %v2242 = vpop.f32.mrb[0].mxu0
      %2243 = vmatprep.mubr.bf16.mxu0 0
      %2244 = vmatmul.mubr.bf16.gmra.mrb[0].mxu0 %v2111
      %v2245 = vpop.f32.mrb[0].mxu0
      %v2246 = vadd.f32 0.0, %v2245
      %v2247 = vpop.f32.mrb[0].mxu0
      %v2248 = vpop.f32.mrb[0].mxu0
      %v2249 = vadd.f32 0.0, %v2248
      %v2250 = vpop.f32.mrb[0].mxu0
      %2251 = vmatprep.mubr.bf16.mxu0 0
      %2252 = vmatmul.mubr.bf16.gmra.mrb[0].mxu0 %v2114
      %v2253 = vpop.f32.mrb[0].mxu0
      %v2254 = vadd.f32 0.0, %v2253
      %v2255 = vpop.f32.mrb[0].mxu0
      %v2256 = vpop.f32.mrb[0].mxu0
      %v2257 = vadd.f32 0.0, %v2256
      %v2258 = vpop.f32.mrb[0].mxu0
      %2259 = vmatprep.mubr.bf16.mxu0 0
      %2260 = vmatmul.mubr.bf16.gmra.mrb[0].mxu0 %v2117
      %v2261 = vpop.f32.mrb[0].mxu0
      %v2262 = vadd.f32 0.0, %v2261
      %v2263 = vpop.f32.mrb[0].mxu0
      %v2264 = vpop.f32.mrb[0].mxu0
      %v2265 = vadd.f32 0.0, %v2264
      %v2266 = vpop.f32.mrb[0].mxu0
      %2267 = vmatprep.mubr.bf16.mxu0 0
      %2268 = vmatmul.mubr.bf16.gmra.mrb[0].mxu0 %v2120
      %v2269 = vpop.f32.mrb[0].mxu0
      %v2270 = vadd.f32 0.0, %v2269
      %v2271 = vpop.f32.mrb[0].mxu0
      %v2272 = vpop.f32.mrb[0].mxu0
      %v2273 = vadd.f32 0.0, %v2272
      %v2274 = vpop.f32.mrb[0].mxu0
      %2275 = vmatprep.mubr.bf16.mxu0 0
      %2276 = vmatmul.mubr.bf16.gmra.mrb[0].mxu0 %v2123
      %v2277 = vpop.f32.mrb[0].mxu0
      %v2278 = vadd.f32 0.0, %v2277
      %v2279 = vpop.f32.mrb[0].mxu0
      %v2280 = vpop.f32.mrb[0].mxu0
      %v2281 = vadd.f32 0.0, %v2280
      %v2282 = vpop.f32.mrb[0].mxu0
      %2283 = vmatprep.mubr.bf16.mxu0 0
      %2284 = vmatmul.mubr.bf16.gmra.mrb[0].mxu0 %v2126
      %v2285 = vpop.f32.mrb[0].mxu0
      %v2286 = vadd.f32 0.0, %v2285
      %v2287 = vpop.f32.mrb[0].mxu0
      %v2288 = vpop.f32.mrb[0].mxu0
      %v2289 = vadd.f32 0.0, %v2288
      %v2290 = vpop.f32.mrb[0].mxu0
      %2291 = vdwg.mxu0
      %v2292 = vadd.f32 %v1933, %v2166
      %v2293 = vadd.f32 %v1934, %v2169
      %v2294 = vadd.f32 %v1935, %v2174
      %v2295 = vadd.f32 %v1936, %v2177
      %v2296 = vadd.f32 %v1937, %v2182
      %v2297 = vadd.f32 %v1938, %v2185
      %v2298 = vadd.f32 %v1939, %v2190
      %v2299 = vadd.f32 %v1940, %v2193
      %v2300 = vadd.f32 %v1941, %v2198
      %v2301 = vadd.f32 %v1942, %v2201
      %v2302 = vadd.f32 %v1943, %v2206
      %v2303 = vadd.f32 %v1944, %v2209
      %v2304 = vadd.f32 %v1945, %v2214
      %v2305 = vadd.f32 %v1946, %v2217
      %v2306 = vadd.f32 %v1947, %v2222
      %v2307 = vadd.f32 %v1948, %v2225
      %v2308 = vadd.f32 %v1949, %v2230
      %v2309 = vadd.f32 %v1950, %v2233
      %v2310 = vadd.f32 %v1951, %v2238
      %v2311 = vadd.f32 %v1952, %v2241
      %v2312 = vadd.f32 %v1953, %v2246
      %v2313 = vadd.f32 %v1954, %v2249
      %v2314 = vadd.f32 %v1955, %v2254
      %v2315 = vadd.f32 %v1956, %v2257
      %v2316 = vadd.f32 %v1957, %v2262
      %v2317 = vadd.f32 %v1958, %v2265
      %v2318 = vadd.f32 %v1959, %v2270
      %v2319 = vadd.f32 %v1960, %v2273
      %v2320 = vadd.f32 %v1961, %v2278
      %v2321 = vadd.f32 %v1962, %v2281
      %v2322 = vadd.f32 %v1963, %v2286
      %v2323 = vadd.f32 %v1964, %v2289
      %v2324 = vld [vmem:[%s1965] sm:$0xf]
      %v2325 = vld [vmem:[%s1965 + $0x4] sm:$0xf]
      %v2326 = vld [vmem:[%s1965 + $0x8] sm:$0x1]
      %v2327 = vld [vmem:[%s1965 + $0xc] sm:$0xf]
      %v2328 = vld [vmem:[%s1965 + $0x10] sm:$0xf]
      %v2329 = vld [vmem:[%s1965 + $0x14] sm:$0x1]
      %v2330 = vld [vmem:[%s1965 + $0x18] sm:$0xf]
      %v2331 = vld [vmem:[%s1965 + $0x1c] sm:$0xf]
      %v2332 = vld [vmem:[%s1965 + $0x20] sm:$0x1]
      %v2333 = vld [vmem:[%s1965 + $0x24] sm:$0xf]
      %v2334 = vld [vmem:[%s1965 + $0x28] sm:$0xf]
      %v2335 = vld [vmem:[%s1965 + $0x2c] sm:$0x1]
      %v2336 = vld [vmem:[%s1965 + $0x30] sm:$0xf]
      %v2337 = vld [vmem:[%s1965 + $0x34] sm:$0xf]
      %v2338 = vld [vmem:[%s1965 + $0x38] sm:$0x1]
      %v2339 = vld [vmem:[%s1965 + $0x3c] sm:$0xf]
      %v2340 = vld [vmem:[%s1965 + $0x40] sm:$0xf]
      %v2341 = vld [vmem:[%s1965 + $0x44] sm:$0x1]
      %v2342 = vld [vmem:[%s1965 + $0x48] sm:$0xf]
      %v2343 = vld [vmem:[%s1965 + $0x4c] sm:$0xf]
      %v2344 = vld [vmem:[%s1965 + $0x50] sm:$0x1]
      %v2345 = vld [vmem:[%s1965 + $0x54] sm:$0xf]
      %v2346 = vld [vmem:[%s1965 + $0x58] sm:$0xf]
      %v2347 = vld [vmem:[%s1965 + $0x5c] sm:$0x1]
      %v2348 = vld [vmem:[%s1965 + $0x60] sm:$0xf]
      %v2349 = vld [vmem:[%s1965 + $0x64] sm:$0xf]
      %v2350 = vld [vmem:[%s1965 + $0x68] sm:$0x1]
      %v2351 = vld [vmem:[%s1965 + $0x6c] sm:$0xf]
      %v2352 = vld [vmem:[%s1965 + $0x70] sm:$0xf]
      %v2353 = vld [vmem:[%s1965 + $0x74] sm:$0x1]
      %v2354 = vld [vmem:[%s1965 + $0x78] sm:$0xf]
      %v2355 = vld [vmem:[%s1965 + $0x7c] sm:$0xf]
      %v2356 = vld [vmem:[%s1965 + $0x80] sm:$0x1]
      %v2357 = vld [vmem:[%s1965 + $0x84] sm:$0xf]
      %v2358 = vld [vmem:[%s1965 + $0x88] sm:$0xf]
      %v2359 = vld [vmem:[%s1965 + $0x8c] sm:$0x1]
      %v2360 = vld [vmem:[%s1965 + $0x90] sm:$0xf]
      %v2361 = vld [vmem:[%s1965 + $0x94] sm:$0xf]
      %v2362 = vld [vmem:[%s1965 + $0x98] sm:$0x1]
      %v2363 = vld [vmem:[%s1965 + $0x9c] sm:$0xf]
      %v2364 = vld [vmem:[%s1965 + $0xa0] sm:$0xf]
      %v2365 = vld [vmem:[%s1965 + $0xa4] sm:$0x1]
      %v2366 = vld [vmem:[%s1965 + $0xa8] sm:$0xf]
      %v2367 = vld [vmem:[%s1965 + $0xac] sm:$0xf]
      %v2368 = vld [vmem:[%s1965 + $0xb0] sm:$0x1]
      %v2369 = vld [vmem:[%s1965 + $0xb4] sm:$0xf]
      %v2370 = vld [vmem:[%s1965 + $0xb8] sm:$0xf]
      %v2371 = vld [vmem:[%s1965 + $0xbc] sm:$0x1]
      %v2373 = vshrl.u32 %v2324, 16
      %v2375 = vrot.slane %v2373, 4
      %v2376 = vshll.u32 %v2324, 16
      %v2378 = vrot.slane %v2376, 5
      %v2379 = vor.u32 %v2375, %v2378
      %v2380 = vrot.slane %v2379, 4
      %v2382 = vshll.u32 %v2325, 16
      %v2384 = vrot.slane %v2382, 5
      %v2385 = vsel %vm567, %v2380, %v2384
      %v2386 = vshrl.u32 %v2325, 16
      %v2388 = vrot.slane %v2386, 4
      %v2389 = vor.u32 %v2388, %v2384
      %v2390 = vrot.slane %v2389, 4
      %v2392 = vshll.u32 %v2326, 16
      %v2394 = vrot.slane %v2392, 5
      %v2395 = vsel %vm567, %v2390, %v2394
      %v2397 = vshrl.u32 %v2327, 16
      %v2399 = vrot.slane %v2397, 4
      %v2400 = vshll.u32 %v2327, 16
      %v2402 = vrot.slane %v2400, 5
      %v2403 = vor.u32 %v2399, %v2402
      %v2404 = vrot.slane %v2403, 4
      %v2406 = vshll.u32 %v2328, 16
      %v2408 = vrot.slane %v2406, 5
      %v2409 = vsel %vm567, %v2404, %v2408
      %v2410 = vshrl.u32 %v2328, 16
      %v2412 = vrot.slane %v2410, 4
      %v2413 = vor.u32 %v2412, %v2408
      %v2414 = vrot.slane %v2413, 4
      %v2416 = vshll.u32 %v2329, 16
      %v2418 = vrot.slane %v2416, 5
      %v2419 = vsel %vm567, %v2414, %v2418
      %v2421 = vshrl.u32 %v2330, 16
      %v2423 = vrot.slane %v2421, 4
      %v2424 = vshll.u32 %v2330, 16
      %v2426 = vrot.slane %v2424, 5
      %v2427 = vor.u32 %v2423, %v2426
      %v2428 = vrot.slane %v2427, 4
      %v2430 = vshll.u32 %v2331, 16
      %v2432 = vrot.slane %v2430, 5
      %v2433 = vsel %vm567, %v2428, %v2432
      %v2434 = vshrl.u32 %v2331, 16
      %v2436 = vrot.slane %v2434, 4
      %v2437 = vor.u32 %v2436, %v2432
      %v2438 = vrot.slane %v2437, 4
      %v2440 = vshll.u32 %v2332, 16
      %v2442 = vrot.slane %v2440, 5
      %v2443 = vsel %vm567, %v2438, %v2442
      %v2445 = vshrl.u32 %v2333, 16
      %v2447 = vrot.slane %v2445, 4
      %v2448 = vshll.u32 %v2333, 16
      %v2450 = vrot.slane %v2448, 5
      %v2451 = vor.u32 %v2447, %v2450
      %v2452 = vrot.slane %v2451, 4
      %v2454 = vshll.u32 %v2334, 16
      %v2456 = vrot.slane %v2454, 5
      %v2457 = vsel %vm567, %v2452, %v2456
      %v2458 = vshrl.u32 %v2334, 16
      %v2460 = vrot.slane %v2458, 4
      %v2461 = vor.u32 %v2460, %v2456
      %v2462 = vrot.slane %v2461, 4
      %v2464 = vshll.u32 %v2335, 16
      %v2466 = vrot.slane %v2464, 5
      %v2467 = vsel %vm567, %v2462, %v2466
      %v2469 = vshrl.u32 %v2336, 16
      %v2471 = vrot.slane %v2469, 4
      %v2472 = vshll.u32 %v2336, 16
      %v2474 = vrot.slane %v2472, 5
      %v2475 = vor.u32 %v2471, %v2474
      %v2476 = vrot.slane %v2475, 4
      %v2478 = vshll.u32 %v2337, 16
      %v2480 = vrot.slane %v2478, 5
      %v2481 = vsel %vm567, %v2476, %v2480
      %v2482 = vshrl.u32 %v2337, 16
      %v2484 = vrot.slane %v2482, 4
      %v2485 = vor.u32 %v2484, %v2480
      %v2486 = vrot.slane %v2485, 4
      %v2488 = vshll.u32 %v2338, 16
      %v2490 = vrot.slane %v2488, 5
      %v2491 = vsel %vm567, %v2486, %v2490
      %v2493 = vshrl.u32 %v2339, 16
      %v2495 = vrot.slane %v2493, 4
      %v2496 = vshll.u32 %v2339, 16
      %v2498 = vrot.slane %v2496, 5
      %v2499 = vor.u32 %v2495, %v2498
      %v2500 = vrot.slane %v2499, 4
      %v2502 = vshll.u32 %v2340, 16
      %v2504 = vrot.slane %v2502, 5
      %v2505 = vsel %vm567, %v2500, %v2504
      %v2506 = vshrl.u32 %v2340, 16
      %v2508 = vrot.slane %v2506, 4
      %v2509 = vor.u32 %v2508, %v2504
      %v2510 = vrot.slane %v2509, 4
      %v2512 = vshll.u32 %v2341, 16
      %v2514 = vrot.slane %v2512, 5
      %v2515 = vsel %vm567, %v2510, %v2514
      %v2517 = vshrl.u32 %v2342, 16
      %v2519 = vrot.slane %v2517, 4
      %v2520 = vshll.u32 %v2342, 16
      %v2522 = vrot.slane %v2520, 5
      %v2523 = vor.u32 %v2519, %v2522
      %v2524 = vrot.slane %v2523, 4
      %v2526 = vshll.u32 %v2343, 16
      %v2528 = vrot.slane %v2526, 5
      %v2529 = vsel %vm567, %v2524, %v2528
      %v2530 = vshrl.u32 %v2343, 16
      %v2532 = vrot.slane %v2530, 4
      %v2533 = vor.u32 %v2532, %v2528
      %v2534 = vrot.slane %v2533, 4
      %v2536 = vshll.u32 %v2344, 16
      %v2538 = vrot.slane %v2536, 5
      %v2539 = vsel %vm567, %v2534, %v2538
      %v2541 = vshrl.u32 %v2345, 16
      %v2543 = vrot.slane %v2541, 4
      %v2544 = vshll.u32 %v2345, 16
      %v2546 = vrot.slane %v2544, 5
      %v2547 = vor.u32 %v2543, %v2546
      %v2548 = vrot.slane %v2547, 4
      %v2550 = vshll.u32 %v2346, 16
      %v2552 = vrot.slane %v2550, 5
      %v2553 = vsel %vm567, %v2548, %v2552
      %v2554 = vshrl.u32 %v2346, 16
      %v2556 = vrot.slane %v2554, 4
      %v2557 = vor.u32 %v2556, %v2552
      %v2558 = vrot.slane %v2557, 4
      %v2560 = vshll.u32 %v2347, 16
      %v2562 = vrot.slane %v2560, 5
      %v2563 = vsel %vm567, %v2558, %v2562
      %v2565 = vshrl.u32 %v2348, 16
      %v2567 = vrot.slane %v2565, 4
      %v2568 = vshll.u32 %v2348, 16
      %v2570 = vrot.slane %v2568, 5
      %v2571 = vor.u32 %v2567, %v2570
      %v2572 = vrot.slane %v2571, 4
      %v2574 = vshll.u32 %v2349, 16
      %v2576 = vrot.slane %v2574, 5
      %v2577 = vsel %vm567, %v2572, %v2576
      %v2578 = vshrl.u32 %v2349, 16
      %v2580 = vrot.slane %v2578, 4
      %v2581 = vor.u32 %v2580, %v2576
      %v2582 = vrot.slane %v2581, 4
      %v2584 = vshll.u32 %v2350, 16
      %v2586 = vrot.slane %v2584, 5
      %v2587 = vsel %vm567, %v2582, %v2586
      %v2589 = vshrl.u32 %v2351, 16
      %v2591 = vrot.slane %v2589, 4
      %v2592 = vshll.u32 %v2351, 16
      %v2594 = vrot.slane %v2592, 5
      %v2595 = vor.u32 %v2591, %v2594
      %v2596 = vrot.slane %v2595, 4
      %v2598 = vshll.u32 %v2352, 16
      %v2600 = vrot.slane %v2598, 5
      %v2601 = vsel %vm567, %v2596, %v2600
      %v2602 = vshrl.u32 %v2352, 16
      %v2604 = vrot.slane %v2602, 4
      %v2605 = vor.u32 %v2604, %v2600
      %v2606 = vrot.slane %v2605, 4
      %v2608 = vshll.u32 %v2353, 16
      %v2610 = vrot.slane %v2608, 5
      %v2611 = vsel %vm567, %v2606, %v2610
      %v2613 = vshrl.u32 %v2354, 16
      %v2615 = vrot.slane %v2613, 4
      %v2616 = vshll.u32 %v2354, 16
      %v2618 = vrot.slane %v2616, 5
      %v2619 = vor.u32 %v2615, %v2618
      %v2620 = vrot.slane %v2619, 4
      %v2622 = vshll.u32 %v2355, 16
      %v2624 = vrot.slane %v2622, 5
      %v2625 = vsel %vm567, %v2620, %v2624
      %v2626 = vshrl.u32 %v2355, 16
      %v2628 = vrot.slane %v2626, 4
      %v2629 = vor.u32 %v2628, %v2624
      %v2630 = vrot.slane %v2629, 4
      %v2632 = vshll.u32 %v2356, 16
      %v2634 = vrot.slane %v2632, 5
      %v2635 = vsel %vm567, %v2630, %v2634
      %v2637 = vshrl.u32 %v2357, 16
      %v2639 = vrot.slane %v2637, 4
      %v2640 = vshll.u32 %v2357, 16
      %v2642 = vrot.slane %v2640, 5
      %v2643 = vor.u32 %v2639, %v2642
      %v2644 = vrot.slane %v2643, 4
      %v2646 = vshll.u32 %v2358, 16
      %v2648 = vrot.slane %v2646, 5
      %v2649 = vsel %vm567, %v2644, %v2648
      %v2650 = vshrl.u32 %v2358, 16
      %v2652 = vrot.slane %v2650, 4
      %v2653 = vor.u32 %v2652, %v2648
      %v2654 = vrot.slane %v2653, 4
      %v2656 = vshll.u32 %v2359, 16
      %v2658 = vrot.slane %v2656, 5
      %v2659 = vsel %vm567, %v2654, %v2658
      %v2661 = vshrl.u32 %v2360, 16
      %v2663 = vrot.slane %v2661, 4
      %v2664 = vshll.u32 %v2360, 16
      %v2666 = vrot.slane %v2664, 5
      %v2667 = vor.u32 %v2663, %v2666
      %v2668 = vrot.slane %v2667, 4
      %v2670 = vshll.u32 %v2361, 16
      %v2672 = vrot.slane %v2670, 5
      %v2673 = vsel %vm567, %v2668, %v2672
      %v2674 = vshrl.u32 %v2361, 16
      %v2676 = vrot.slane %v2674, 4
      %v2677 = vor.u32 %v2676, %v2672
      %v2678 = vrot.slane %v2677, 4
      %v2680 = vshll.u32 %v2362, 16
      %v2682 = vrot.slane %v2680, 5
      %v2683 = vsel %vm567, %v2678, %v2682
      %v2685 = vshrl.u32 %v2363, 16
      %v2687 = vrot.slane %v2685, 4
      %v2688 = vshll.u32 %v2363, 16
      %v2690 = vrot.slane %v2688, 5
      %v2691 = vor.u32 %v2687, %v2690
      %v2692 = vrot.slane %v2691, 4
      %v2694 = vshll.u32 %v2364, 16
      %v2696 = vrot.slane %v2694, 5
      %v2697 = vsel %vm567, %v2692, %v2696
      %v2698 = vshrl.u32 %v2364, 16
      %v2700 = vrot.slane %v2698, 4
      %v2701 = vor.u32 %v2700, %v2696
      %v2702 = vrot.slane %v2701, 4
      %v2704 = vshll.u32 %v2365, 16
      %v2706 = vrot.slane %v2704, 5
      %v2707 = vsel %vm567, %v2702, %v2706
      %v2709 = vshrl.u32 %v2366, 16
      %v2711 = vrot.slane %v2709, 4
      %v2712 = vshll.u32 %v2366, 16
      %v2714 = vrot.slane %v2712, 5
      %v2715 = vor.u32 %v2711, %v2714
      %v2716 = vrot.slane %v2715, 4
      %v2718 = vshll.u32 %v2367, 16
      %v2720 = vrot.slane %v2718, 5
      %v2721 = vsel %vm567, %v2716, %v2720
      %v2722 = vshrl.u32 %v2367, 16
      %v2724 = vrot.slane %v2722, 4
      %v2725 = vor.u32 %v2724, %v2720
      %v2726 = vrot.slane %v2725, 4
      %v2728 = vshll.u32 %v2368, 16
      %v2730 = vrot.slane %v2728, 5
      %v2731 = vsel %vm567, %v2726, %v2730
      %v2733 = vshrl.u32 %v2369, 16
      %v2735 = vrot.slane %v2733, 4
      %v2736 = vshll.u32 %v2369, 16
      %v2738 = vrot.slane %v2736, 5
      %v2739 = vor.u32 %v2735, %v2738
      %v2740 = vrot.slane %v2739, 4
      %v2742 = vshll.u32 %v2370, 16
      %v2744 = vrot.slane %v2742, 5
      %v2745 = vsel %vm567, %v2740, %v2744
      %v2746 = vshrl.u32 %v2370, 16
      %v2748 = vrot.slane %v2746, 4
      %v2749 = vor.u32 %v2748, %v2744
      %v2750 = vrot.slane %v2749, 4
      %v2752 = vshll.u32 %v2371, 16
      %v2754 = vrot.slane %v2752, 5
      %v2755 = vsel %vm567, %v2750, %v2754
      %s2756 = scalar_lea.vmem %s1, 8
      %v2757 = vld [vmem:[%s2756] sm:$0x3]
      %v2758 = vunpack.c.l.b16 %v2385
      %v2759 = vunpack.c.l.b16 %v2395
      %v2760 = vunpack.c.l.b16 %v2409
      %v2761 = vunpack.c.l.b16 %v2419
      %v2762 = vunpack.c.l.b16 %v2433
      %v2763 = vunpack.c.l.b16 %v2443
      %v2764 = vunpack.c.l.b16 %v2457
      %v2765 = vunpack.c.l.b16 %v2467
      %v2766 = vunpack.c.l.b16 %v2481
      %v2767 = vunpack.c.l.b16 %v2491
      %v2768 = vunpack.c.l.b16 %v2505
      %v2769 = vunpack.c.l.b16 %v2515
      %v2770 = vunpack.c.l.b16 %v2529
      %v2771 = vunpack.c.l.b16 %v2539
      %v2772 = vunpack.c.l.b16 %v2553
      %v2773 = vunpack.c.l.b16 %v2563
      %v2774 = vunpack.c.l.b16 %v2577
      %v2775 = vunpack.c.l.b16 %v2587
      %v2776 = vunpack.c.l.b16 %v2601
      %v2777 = vunpack.c.l.b16 %v2611
      %v2778 = vunpack.c.l.b16 %v2625
      %v2779 = vunpack.c.l.b16 %v2635
      %v2780 = vunpack.c.l.b16 %v2649
      %v2781 = vunpack.c.l.b16 %v2659
      %v2782 = vunpack.c.l.b16 %v2673
      %v2783 = vunpack.c.l.b16 %v2683
      %v2784 = vunpack.c.l.b16 %v2697
      %v2785 = vunpack.c.l.b16 %v2707
      %v2786 = vunpack.c.l.b16 %v2721
      %v2787 = vunpack.c.l.b16 %v2731
      %v2788 = vunpack.c.l.b16 %v2745
      %v2789 = vunpack.c.l.b16 %v2755
      %v2790 = vpack.c.b16 %v2759, %v2758
      %v2791 = vpack.c.b16 %v2761, %v2760
      %v2792 = vpack.c.b16 %v2763, %v2762
      %v2793 = vpack.c.b16 %v2765, %v2764
      %v2794 = vpack.c.b16 %v2767, %v2766
      %v2795 = vpack.c.b16 %v2769, %v2768
      %v2796 = vpack.c.b16 %v2771, %v2770
      %v2797 = vpack.c.b16 %v2773, %v2772
      %v2798 = vpack.c.b16 %v2775, %v2774
      %v2799 = vpack.c.b16 %v2777, %v2776
      %v2800 = vpack.c.b16 %v2779, %v2778
      %v2801 = vpack.c.b16 %v2781, %v2780
      %v2802 = vpack.c.b16 %v2783, %v2782
      %v2803 = vpack.c.b16 %v2785, %v2784
      %v2804 = vpack.c.b16 %v2787, %v2786
      %v2805 = vpack.c.b16 %v2789, %v2788
      %v2807 = vsel %vm1002, %v2790, 0
      %v2810 = vsel %vm1002, %v2791, 0
      %v2813 = vsel %vm1002, %v2792, 0
      %v2816 = vsel %vm1002, %v2793, 0
      %v2819 = vsel %vm1002, %v2794, 0
      %v2822 = vsel %vm1002, %v2795, 0
      %v2825 = vsel %vm1002, %v2796, 0
      %v2828 = vsel %vm1002, %v2797, 0
      %v2831 = vsel %vm1002, %v2798, 0
      %v2834 = vsel %vm1002, %v2799, 0
      %v2837 = vsel %vm1002, %v2800, 0
      %v2840 = vsel %vm1002, %v2801, 0
      %v2843 = vsel %vm1002, %v2802, 0
      %v2846 = vsel %vm1002, %v2803, 0
      %v2849 = vsel %vm1002, %v2804, 0
      %v2852 = vsel %vm1002, %v2805, 0
      %v2855 = vsel %vm1051, %v2757, 0
      %2857 = vmatprep.subr.bf16.mxu0 0
      %2858 = vmatpush1.bf16.msra.mxu0 %v2855
      %2859 = vmatprep.subr.bf16.mxu0 0
      %2860 = vmatpush1.bf16.msra.mxu0 0
      %2861 = vmatprep.subr.bf16.mxu0 0
      %2862 = vmatpush1.bf16.msra.mxu0 0
      %2863 = vmatprep.subr.bf16.mxu0 0
      %2864 = vmatpush1.bf16.msra.mxu0 0
      %2865 = vmatprep.subr.bf16.mxu0 0
      %2866 = vmatpush1.bf16.msra.mxu0 0
      %2867 = vmatprep.subr.bf16.mxu0 0
      %2868 = vmatpush1.bf16.msra.mxu0 0
      %2869 = vmatprep.subr.bf16.mxu0 0
      %2870 = vmatpush1.bf16.msra.mxu0 0
      %2871 = vmatprep.subr.bf16.mxu0 0
      %2872 = vmatpush1.bf16.msra.mxu0 0
      %2873 = vmatprep.subr.bf16.mxu0 0
      %2874 = vmatpush1.bf16.msra.mxu0 0
      %2875 = vmatprep.subr.bf16.mxu0 0
      %2876 = vmatpush1.bf16.msra.mxu0 0
      %2877 = vmatprep.subr.bf16.mxu0 0
      %2878 = vmatpush1.bf16.msra.mxu0 0
      %2879 = vmatprep.subr.bf16.mxu0 0
      %2880 = vmatpush1.bf16.msra.mxu0 0
      %2881 = vmatprep.subr.bf16.mxu0 0
      %2882 = vmatpush1.bf16.msra.mxu0 0
      %2883 = vmatprep.subr.bf16.mxu0 0
      %2884 = vmatpush1.bf16.msra.mxu0 0
      %2885 = vmatprep.subr.bf16.mxu0 0
      %2886 = vmatpush1.bf16.msra.mxu0 0
      %2887 = vmatprep.subr.bf16.mxu0 0
      %2888 = vmatpush1.bf16.msra.mxu0 0
      %2889 = vmatprep.mubr.bf16.mxu0 0
      %2890 = vmatmul.mubr.bf16.gmra.mrb[0].mxu0 %v2807
      %v2891 = vpop.f32.mrb[0].mxu0
      %v2892 = vadd.f32 0.0, %v2891
      %v2893 = vpop.f32.mrb[0].mxu0
      %v2894 = vpop.f32.mrb[0].mxu0
      %v2895 = vadd.f32 0.0, %v2894
      %v2896 = vpop.f32.mrb[0].mxu0
      %2897 = vmatprep.mubr.bf16.mxu0 0
      %2898 = vmatmul.mubr.bf16.gmra.mrb[0].mxu0 %v2810
      %v2899 = vpop.f32.mrb[0].mxu0
      %v2900 = vadd.f32 0.0, %v2899
      %v2901 = vpop.f32.mrb[0].mxu0
      %v2902 = vpop.f32.mrb[0].mxu0
      %v2903 = vadd.f32 0.0, %v2902
      %v2904 = vpop.f32.mrb[0].mxu0
      %2905 = vmatprep.mubr.bf16.mxu0 0
      %2906 = vmatmul.mubr.bf16.gmra.mrb[0].mxu0 %v2813
      %v2907 = vpop.f32.mrb[0].mxu0
      %v2908 = vadd.f32 0.0, %v2907
      %v2909 = vpop.f32.mrb[0].mxu0
      %v2910 = vpop.f32.mrb[0].mxu0
      %v2911 = vadd.f32 0.0, %v2910
      %v2912 = vpop.f32.mrb[0].mxu0
      %2913 = vmatprep.mubr.bf16.mxu0 0
      %2914 = vmatmul.mubr.bf16.gmra.mrb[0].mxu0 %v2816
      %v2915 = vpop.f32.mrb[0].mxu0
      %v2916 = vadd.f32 0.0, %v2915
      %v2917 = vpop.f32.mrb[0].mxu0
      %v2918 = vpop.f32.mrb[0].mxu0
      %v2919 = vadd.f32 0.0, %v2918
      %v2920 = vpop.f32.mrb[0].mxu0
      %2921 = vmatprep.mubr.bf16.mxu0 0
      %2922 = vmatmul.mubr.bf16.gmra.mrb[0].mxu0 %v2819
      %v2923 = vpop.f32.mrb[0].mxu0
      %v2924 = vadd.f32 0.0, %v2923
      %v2925 = vpop.f32.mrb[0].mxu0
      %v2926 = vpop.f32.mrb[0].mxu0
      %v2927 = vadd.f32 0.0, %v2926
      %v2928 = vpop.f32.mrb[0].mxu0
      %2929 = vmatprep.mubr.bf16.mxu0 0
      %2930 = vmatmul.mubr.bf16.gmra.mrb[0].mxu0 %v2822
      %v2931 = vpop.f32.mrb[0].mxu0
      %v2932 = vadd.f32 0.0, %v2931
      %v2933 = vpop.f32.mrb[0].mxu0
      %v2934 = vpop.f32.mrb[0].mxu0
      %v2935 = vadd.f32 0.0, %v2934
      %v2936 = vpop.f32.mrb[0].mxu0
      %2937 = vmatprep.mubr.bf16.mxu0 0
      %2938 = vmatmul.mubr.bf16.gmra.mrb[0].mxu0 %v2825
      %v2939 = vpop.f32.mrb[0].mxu0
      %v2940 = vadd.f32 0.0, %v2939
      %v2941 = vpop.f32.mrb[0].mxu0
      %v2942 = vpop.f32.mrb[0].mxu0
      %v2943 = vadd.f32 0.0, %v2942
      %v2944 = vpop.f32.mrb[0].mxu0
      %2945 = vmatprep.mubr.bf16.mxu0 0
      %2946 = vmatmul.mubr.bf16.gmra.mrb[0].mxu0 %v2828
      %v2947 = vpop.f32.mrb[0].mxu0
      %v2948 = vadd.f32 0.0, %v2947
      %v2949 = vpop.f32.mrb[0].mxu0
      %v2950 = vpop.f32.mrb[0].mxu0
      %v2951 = vadd.f32 0.0, %v2950
      %v2952 = vpop.f32.mrb[0].mxu0
      %2953 = vmatprep.mubr.bf16.mxu0 0
      %2954 = vmatmul.mubr.bf16.gmra.mrb[0].mxu0 %v2831
      %v2955 = vpop.f32.mrb[0].mxu0
      %v2956 = vadd.f32 0.0, %v2955
      %v2957 = vpop.f32.mrb[0].mxu0
      %v2958 = vpop.f32.mrb[0].mxu0
      %v2959 = vadd.f32 0.0, %v2958
      %v2960 = vpop.f32.mrb[0].mxu0
      %2961 = vmatprep.mubr.bf16.mxu0 0
      %2962 = vmatmul.mubr.bf16.gmra.mrb[0].mxu0 %v2834
      %v2963 = vpop.f32.mrb[0].mxu0
      %v2964 = vadd.f32 0.0, %v2963
      %v2965 = vpop.f32.mrb[0].mxu0
      %v2966 = vpop.f32.mrb[0].mxu0
      %v2967 = vadd.f32 0.0, %v2966
      %v2968 = vpop.f32.mrb[0].mxu0
      %2969 = vmatprep.mubr.bf16.mxu0 0
      %2970 = vmatmul.mubr.bf16.gmra.mrb[0].mxu0 %v2837
      %v2971 = vpop.f32.mrb[0].mxu0
      %v2972 = vadd.f32 0.0, %v2971
      %v2973 = vpop.f32.mrb[0].mxu0
      %v2974 = vpop.f32.mrb[0].mxu0
      %v2975 = vadd.f32 0.0, %v2974
      %v2976 = vpop.f32.mrb[0].mxu0
      %2977 = vmatprep.mubr.bf16.mxu0 0
      %2978 = vmatmul.mubr.bf16.gmra.mrb[0].mxu0 %v2840
      %v2979 = vpop.f32.mrb[0].mxu0
      %v2980 = vadd.f32 0.0, %v2979
      %v2981 = vpop.f32.mrb[0].mxu0
      %v2982 = vpop.f32.mrb[0].mxu0
      %v2983 = vadd.f32 0.0, %v2982
      %v2984 = vpop.f32.mrb[0].mxu0
      %2985 = vmatprep.mubr.bf16.mxu0 0
      %2986 = vmatmul.mubr.bf16.gmra.mrb[0].mxu0 %v2843
      %v2987 = vpop.f32.mrb[0].mxu0
      %v2988 = vadd.f32 0.0, %v2987
      %v2989 = vpop.f32.mrb[0].mxu0
      %v2990 = vpop.f32.mrb[0].mxu0
      %v2991 = vadd.f32 0.0, %v2990
      %v2992 = vpop.f32.mrb[0].mxu0
      %2993 = vmatprep.mubr.bf16.mxu0 0
      %2994 = vmatmul.mubr.bf16.gmra.mrb[0].mxu0 %v2846
      %v2995 = vpop.f32.mrb[0].mxu0
      %v2996 = vadd.f32 0.0, %v2995
      %v2997 = vpop.f32.mrb[0].mxu0
      %v2998 = vpop.f32.mrb[0].mxu0
      %v2999 = vadd.f32 0.0, %v2998
      %v3000 = vpop.f32.mrb[0].mxu0
      %3001 = vmatprep.mubr.bf16.mxu0 0
      %3002 = vmatmul.mubr.bf16.gmra.mrb[0].mxu0 %v2849
      %v3003 = vpop.f32.mrb[0].mxu0
      %v3004 = vadd.f32 0.0, %v3003
      %v3005 = vpop.f32.mrb[0].mxu0
      %v3006 = vpop.f32.mrb[0].mxu0
      %v3007 = vadd.f32 0.0, %v3006
      %v3008 = vpop.f32.mrb[0].mxu0
      %3009 = vmatprep.mubr.bf16.mxu0 0
      %3010 = vmatmul.mubr.bf16.gmra.mrb[0].mxu0 %v2852
      %v3011 = vpop.f32.mrb[0].mxu0
      %v3012 = vadd.f32 0.0, %v3011
      %v3013 = vpop.f32.mrb[0].mxu0
      %v3014 = vpop.f32.mrb[0].mxu0
      %v3015 = vadd.f32 0.0, %v3014
      %v3016 = vpop.f32.mrb[0].mxu0
      %3017 = vdwg.mxu0
      %v3018 = vadd.f32 %v2292, %v2892
      %v3019 = vadd.f32 %v2293, %v2895
      %v3020 = vadd.f32 %v2294, %v2900
      %v3021 = vadd.f32 %v2295, %v2903
      %v3022 = vadd.f32 %v2296, %v2908
      %v3023 = vadd.f32 %v2297, %v2911
      %v3024 = vadd.f32 %v2298, %v2916
      %v3025 = vadd.f32 %v2299, %v2919
      %v3026 = vadd.f32 %v2300, %v2924
      %v3027 = vadd.f32 %v2301, %v2927
      %v3028 = vadd.f32 %v2302, %v2932
      %v3029 = vadd.f32 %v2303, %v2935
      %v3030 = vadd.f32 %v2304, %v2940
      %v3031 = vadd.f32 %v2305, %v2943
      %v3032 = vadd.f32 %v2306, %v2948
      %v3033 = vadd.f32 %v2307, %v2951
      %v3034 = vadd.f32 %v2308, %v2956
      %v3035 = vadd.f32 %v2309, %v2959
      %v3036 = vadd.f32 %v2310, %v2964
      %v3037 = vadd.f32 %v2311, %v2967
      %v3038 = vadd.f32 %v2312, %v2972
      %v3039 = vadd.f32 %v2313, %v2975
      %v3040 = vadd.f32 %v2314, %v2980
      %v3041 = vadd.f32 %v2315, %v2983
      %v3042 = vadd.f32 %v2316, %v2988
      %v3043 = vadd.f32 %v2317, %v2991
      %v3044 = vadd.f32 %v2318, %v2996
      %v3045 = vadd.f32 %v2319, %v2999
      %v3046 = vadd.f32 %v2320, %v3004
      %v3047 = vadd.f32 %v2321, %v3007
      %v3048 = vadd.f32 %v2322, %v3012
      %v3049 = vadd.f32 %v2323, %v3015
      %v3050 = vld [vmem:[%s1965] sm:$0xe]
      %v3051 = vld [vmem:[%s1965 + $0xc] sm:$0xe]
      %v3052 = vld [vmem:[%s1965 + $0x18] sm:$0xe]
      %v3053 = vld [vmem:[%s1965 + $0x24] sm:$0xe]
      %v3054 = vld [vmem:[%s1965 + $0x30] sm:$0xe]
      %v3055 = vld [vmem:[%s1965 + $0x3c] sm:$0xe]
      %v3056 = vld [vmem:[%s1965 + $0x48] sm:$0xe]
      %v3057 = vld [vmem:[%s1965 + $0x54] sm:$0xe]
      %v3058 = vld [vmem:[%s1965 + $0x60] sm:$0xe]
      %v3059 = vld [vmem:[%s1965 + $0x6c] sm:$0xe]
      %v3060 = vld [vmem:[%s1965 + $0x78] sm:$0xe]
      %v3061 = vld [vmem:[%s1965 + $0x84] sm:$0xe]
      %v3062 = vld [vmem:[%s1965 + $0x90] sm:$0xe]
      %v3063 = vld [vmem:[%s1965 + $0x9c] sm:$0xe]
      %v3064 = vld [vmem:[%s1965 + $0xa8] sm:$0xe]
      %v3065 = vld [vmem:[%s1965 + $0xb4] sm:$0xe]
      %v3114 = vrot.slane %v3050, 5
      %v3115 = vrot.slane %v3114, 4
      %v3116 = vrot.slane %v2325, 5
      %v3117 = vsel %vm1558, %v3115, %v3116
      %v3118 = vrot.slane %v3116, 4
      %v3119 = vrot.slane %v2326, 5
      %v3120 = vsel %vm1558, %v3118, %v3119
      %v3121 = vrot.slane %v3051, 5
      %v3122 = vrot.slane %v3121, 4
      %v3123 = vrot.slane %v2328, 5
      %v3124 = vsel %vm1558, %v3122, %v3123
      %v3125 = vrot.slane %v3123, 4
      %v3126 = vrot.slane %v2329, 5
      %v3127 = vsel %vm1558, %v3125, %v3126
      %v3128 = vrot.slane %v3052, 5
      %v3129 = vrot.slane %v3128, 4
      %v3130 = vrot.slane %v2331, 5
      %v3131 = vsel %vm1558, %v3129, %v3130
      %v3132 = vrot.slane %v3130, 4
      %v3133 = vrot.slane %v2332, 5
      %v3134 = vsel %vm1558, %v3132, %v3133
      %v3135 = vrot.slane %v3053, 5
      %v3136 = vrot.slane %v3135, 4
      %v3137 = vrot.slane %v2334, 5
      %v3138 = vsel %vm1558, %v3136, %v3137
      %v3139 = vrot.slane %v3137, 4
      %v3140 = vrot.slane %v2335, 5
      %v3141 = vsel %vm1558, %v3139, %v3140
      %v3142 = vrot.slane %v3054, 5
      %v3143 = vrot.slane %v3142, 4
      %v3144 = vrot.slane %v2337, 5
      %v3145 = vsel %vm1558, %v3143, %v3144
      %v3146 = vrot.slane %v3144, 4
      %v3147 = vrot.slane %v2338, 5
      %v3148 = vsel %vm1558, %v3146, %v3147
      %v3149 = vrot.slane %v3055, 5
      %v3150 = vrot.slane %v3149, 4
      %v3151 = vrot.slane %v2340, 5
      %v3152 = vsel %vm1558, %v3150, %v3151
      %v3153 = vrot.slane %v3151, 4
      %v3154 = vrot.slane %v2341, 5
      %v3155 = vsel %vm1558, %v3153, %v3154
      %v3156 = vrot.slane %v3056, 5
      %v3157 = vrot.slane %v3156, 4
      %v3158 = vrot.slane %v2343, 5
      %v3159 = vsel %vm1558, %v3157, %v3158
      %v3160 = vrot.slane %v3158, 4
      %v3161 = vrot.slane %v2344, 5
      %v3162 = vsel %vm1558, %v3160, %v3161
      %v3163 = vrot.slane %v3057, 5
      %v3164 = vrot.slane %v3163, 4
      %v3165 = vrot.slane %v2346, 5
      %v3166 = vsel %vm1558, %v3164, %v3165
      %v3167 = vrot.slane %v3165, 4
      %v3168 = vrot.slane %v2347, 5
      %v3169 = vsel %vm1558, %v3167, %v3168
      %v3170 = vrot.slane %v3058, 5
      %v3171 = vrot.slane %v3170, 4
      %v3172 = vrot.slane %v2349, 5
      %v3173 = vsel %vm1558, %v3171, %v3172
      %v3174 = vrot.slane %v3172, 4
      %v3175 = vrot.slane %v2350, 5
      %v3176 = vsel %vm1558, %v3174, %v3175
      %v3177 = vrot.slane %v3059, 5
      %v3178 = vrot.slane %v3177, 4
      %v3179 = vrot.slane %v2352, 5
      %v3180 = vsel %vm1558, %v3178, %v3179
      %v3181 = vrot.slane %v3179, 4
      %v3182 = vrot.slane %v2353, 5
      %v3183 = vsel %vm1558, %v3181, %v3182
      %v3184 = vrot.slane %v3060, 5
      %v3185 = vrot.slane %v3184, 4
      %v3186 = vrot.slane %v2355, 5
      %v3187 = vsel %vm1558, %v3185, %v3186
      %v3188 = vrot.slane %v3186, 4
      %v3189 = vrot.slane %v2356, 5
      %v3190 = vsel %vm1558, %v3188, %v3189
      %v3191 = vrot.slane %v3061, 5
      %v3192 = vrot.slane %v3191, 4
      %v3193 = vrot.slane %v2358, 5
      %v3194 = vsel %vm1558, %v3192, %v3193
      %v3195 = vrot.slane %v3193, 4
      %v3196 = vrot.slane %v2359, 5
      %v3197 = vsel %vm1558, %v3195, %v3196
      %v3198 = vrot.slane %v3062, 5
      %v3199 = vrot.slane %v3198, 4
      %v3200 = vrot.slane %v2361, 5
      %v3201 = vsel %vm1558, %v3199, %v3200
      %v3202 = vrot.slane %v3200, 4
      %v3203 = vrot.slane %v2362, 5
      %v3204 = vsel %vm1558, %v3202, %v3203
      %v3205 = vrot.slane %v3063, 5
      %v3206 = vrot.slane %v3205, 4
      %v3207 = vrot.slane %v2364, 5
      %v3208 = vsel %vm1558, %v3206, %v3207
      %v3209 = vrot.slane %v3207, 4
      %v3210 = vrot.slane %v2365, 5
      %v3211 = vsel %vm1558, %v3209, %v3210
      %v3212 = vrot.slane %v3064, 5
      %v3213 = vrot.slane %v3212, 4
      %v3214 = vrot.slane %v2367, 5
      %v3215 = vsel %vm1558, %v3213, %v3214
      %v3216 = vrot.slane %v3214, 4
      %v3217 = vrot.slane %v2368, 5
      %v3218 = vsel %vm1558, %v3216, %v3217
      %v3219 = vrot.slane %v3065, 5
      %v3220 = vrot.slane %v3219, 4
      %v3221 = vrot.slane %v2370, 5
      %v3222 = vsel %vm1558, %v3220, %v3221
      %v3223 = vrot.slane %v3221, 4
      %v3224 = vrot.slane %v2371, 5
      %v3225 = vsel %vm1558, %v3223, %v3224
      %s3226 = scalar_lea.vmem %s1, 10
      %v3227 = vld [vmem:[%s3226] sm:$0x3]
      %v3228 = vunpack.c.l.b16 %v3117
      %v3229 = vunpack.c.l.b16 %v3120
      %v3230 = vunpack.c.l.b16 %v3124
      %v3231 = vunpack.c.l.b16 %v3127
      %v3232 = vunpack.c.l.b16 %v3131
      %v3233 = vunpack.c.l.b16 %v3134
      %v3234 = vunpack.c.l.b16 %v3138
      %v3235 = vunpack.c.l.b16 %v3141
      %v3236 = vunpack.c.l.b16 %v3145
      %v3237 = vunpack.c.l.b16 %v3148
      %v3238 = vunpack.c.l.b16 %v3152
      %v3239 = vunpack.c.l.b16 %v3155
      %v3240 = vunpack.c.l.b16 %v3159
      %v3241 = vunpack.c.l.b16 %v3162
      %v3242 = vunpack.c.l.b16 %v3166
      %v3243 = vunpack.c.l.b16 %v3169
      %v3244 = vunpack.c.l.b16 %v3173
      %v3245 = vunpack.c.l.b16 %v3176
      %v3246 = vunpack.c.l.b16 %v3180
      %v3247 = vunpack.c.l.b16 %v3183
      %v3248 = vunpack.c.l.b16 %v3187
      %v3249 = vunpack.c.l.b16 %v3190
      %v3250 = vunpack.c.l.b16 %v3194
      %v3251 = vunpack.c.l.b16 %v3197
      %v3252 = vunpack.c.l.b16 %v3201
      %v3253 = vunpack.c.l.b16 %v3204
      %v3254 = vunpack.c.l.b16 %v3208
      %v3255 = vunpack.c.l.b16 %v3211
      %v3256 = vunpack.c.l.b16 %v3215
      %v3257 = vunpack.c.l.b16 %v3218
      %v3258 = vunpack.c.l.b16 %v3222
      %v3259 = vunpack.c.l.b16 %v3225
      %v3260 = vpack.c.b16 %v3229, %v3228
      %v3261 = vpack.c.b16 %v3231, %v3230
      %v3262 = vpack.c.b16 %v3233, %v3232
      %v3263 = vpack.c.b16 %v3235, %v3234
      %v3264 = vpack.c.b16 %v3237, %v3236
      %v3265 = vpack.c.b16 %v3239, %v3238
      %v3266 = vpack.c.b16 %v3241, %v3240
      %v3267 = vpack.c.b16 %v3243, %v3242
      %v3268 = vpack.c.b16 %v3245, %v3244
      %v3269 = vpack.c.b16 %v3247, %v3246
      %v3270 = vpack.c.b16 %v3249, %v3248
      %v3271 = vpack.c.b16 %v3251, %v3250
      %v3272 = vpack.c.b16 %v3253, %v3252
      %v3273 = vpack.c.b16 %v3255, %v3254
      %v3274 = vpack.c.b16 %v3257, %v3256
      %v3275 = vpack.c.b16 %v3259, %v3258
      %v3277 = vsel %vm1002, %v3260, 0
      %v3280 = vsel %vm1002, %v3261, 0
      %v3283 = vsel %vm1002, %v3262, 0
      %v3286 = vsel %vm1002, %v3263, 0
      %v3289 = vsel %vm1002, %v3264, 0
      %v3292 = vsel %vm1002, %v3265, 0
      %v3295 = vsel %vm1002, %v3266, 0
      %v3298 = vsel %vm1002, %v3267, 0
      %v3301 = vsel %vm1002, %v3268, 0
      %v3304 = vsel %vm1002, %v3269, 0
      %v3307 = vsel %vm1002, %v3270, 0
      %v3310 = vsel %vm1002, %v3271, 0
      %v3313 = vsel %vm1002, %v3272, 0
      %v3316 = vsel %vm1002, %v3273, 0
      %v3319 = vsel %vm1002, %v3274, 0
      %v3322 = vsel %vm1002, %v3275, 0
      %v3325 = vsel %vm1051, %v3227, 0
      %3327 = vmatprep.subr.bf16.mxu0 0
      %3328 = vmatpush1.bf16.msra.mxu0 %v3325
      %3329 = vmatprep.subr.bf16.mxu0 0
      %3330 = vmatpush1.bf16.msra.mxu0 0
      %3331 = vmatprep.subr.bf16.mxu0 0
      %3332 = vmatpush1.bf16.msra.mxu0 0
      %3333 = vmatprep.subr.bf16.mxu0 0
      %3334 = vmatpush1.bf16.msra.mxu0 0
      %3335 = vmatprep.subr.bf16.mxu0 0
      %3336 = vmatpush1.bf16.msra.mxu0 0
      %3337 = vmatprep.subr.bf16.mxu0 0
      %3338 = vmatpush1.bf16.msra.mxu0 0
      %3339 = vmatprep.subr.bf16.mxu0 0
      %3340 = vmatpush1.bf16.msra.mxu0 0
      %3341 = vmatprep.subr.bf16.mxu0 0
      %3342 = vmatpush1.bf16.msra.mxu0 0
      %3343 = vmatprep.subr.bf16.mxu0 0
      %3344 = vmatpush1.bf16.msra.mxu0 0
      %3345 = vmatprep.subr.bf16.mxu0 0
      %3346 = vmatpush1.bf16.msra.mxu0 0
      %3347 = vmatprep.subr.bf16.mxu0 0
      %3348 = vmatpush1.bf16.msra.mxu0 0
      %3349 = vmatprep.subr.bf16.mxu0 0
      %3350 = vmatpush1.bf16.msra.mxu0 0
      %3351 = vmatprep.subr.bf16.mxu0 0
      %3352 = vmatpush1.bf16.msra.mxu0 0
      %3353 = vmatprep.subr.bf16.mxu0 0
      %3354 = vmatpush1.bf16.msra.mxu0 0
      %3355 = vmatprep.subr.bf16.mxu0 0
      %3356 = vmatpush1.bf16.msra.mxu0 0
      %3357 = vmatprep.subr.bf16.mxu0 0
      %3358 = vmatpush1.bf16.msra.mxu0 0
      %3359 = vmatprep.mubr.bf16.mxu0 0
      %3360 = vmatmul.mubr.bf16.gmra.mrb[0].mxu0 %v3277
      %v3361 = vpop.f32.mrb[0].mxu0
      %v3362 = vadd.f32 0.0, %v3361
      %v3363 = vpop.f32.mrb[0].mxu0
      %v3364 = vpop.f32.mrb[0].mxu0
      %v3365 = vadd.f32 0.0, %v3364
      %v3366 = vpop.f32.mrb[0].mxu0
      %3367 = vmatprep.mubr.bf16.mxu0 0
      %3368 = vmatmul.mubr.bf16.gmra.mrb[0].mxu0 %v3280
      %v3369 = vpop.f32.mrb[0].mxu0
      %v3370 = vadd.f32 0.0, %v3369
      %v3371 = vpop.f32.mrb[0].mxu0
      %v3372 = vpop.f32.mrb[0].mxu0
      %v3373 = vadd.f32 0.0, %v3372
      %v3374 = vpop.f32.mrb[0].mxu0
      %3375 = vmatprep.mubr.bf16.mxu0 0
      %3376 = vmatmul.mubr.bf16.gmra.mrb[0].mxu0 %v3283
      %v3377 = vpop.f32.mrb[0].mxu0
      %v3378 = vadd.f32 0.0, %v3377
      %v3379 = vpop.f32.mrb[0].mxu0
      %v3380 = vpop.f32.mrb[0].mxu0
      %v3381 = vadd.f32 0.0, %v3380
      %v3382 = vpop.f32.mrb[0].mxu0
      %3383 = vmatprep.mubr.bf16.mxu0 0
      %3384 = vmatmul.mubr.bf16.gmra.mrb[0].mxu0 %v3286
      %v3385 = vpop.f32.mrb[0].mxu0
      %v3386 = vadd.f32 0.0, %v3385
      %v3387 = vpop.f32.mrb[0].mxu0
      %v3388 = vpop.f32.mrb[0].mxu0
      %v3389 = vadd.f32 0.0, %v3388
      %v3390 = vpop.f32.mrb[0].mxu0
      %3391 = vmatprep.mubr.bf16.mxu0 0
      %3392 = vmatmul.mubr.bf16.gmra.mrb[0].mxu0 %v3289
      %v3393 = vpop.f32.mrb[0].mxu0
      %v3394 = vadd.f32 0.0, %v3393
      %v3395 = vpop.f32.mrb[0].mxu0
      %v3396 = vpop.f32.mrb[0].mxu0
      %v3397 = vadd.f32 0.0, %v3396
      %v3398 = vpop.f32.mrb[0].mxu0
      %3399 = vmatprep.mubr.bf16.mxu0 0
      %3400 = vmatmul.mubr.bf16.gmra.mrb[0].mxu0 %v3292
      %v3401 = vpop.f32.mrb[0].mxu0
      %v3402 = vadd.f32 0.0, %v3401
      %v3403 = vpop.f32.mrb[0].mxu0
      %v3404 = vpop.f32.mrb[0].mxu0
      %v3405 = vadd.f32 0.0, %v3404
      %v3406 = vpop.f32.mrb[0].mxu0
      %3407 = vmatprep.mubr.bf16.mxu0 0
      %3408 = vmatmul.mubr.bf16.gmra.mrb[0].mxu0 %v3295
      %v3409 = vpop.f32.mrb[0].mxu0
      %v3410 = vadd.f32 0.0, %v3409
      %v3411 = vpop.f32.mrb[0].mxu0
      %v3412 = vpop.f32.mrb[0].mxu0
      %v3413 = vadd.f32 0.0, %v3412
      %v3414 = vpop.f32.mrb[0].mxu0
      %3415 = vmatprep.mubr.bf16.mxu0 0
      %3416 = vmatmul.mubr.bf16.gmra.mrb[0].mxu0 %v3298
      %v3417 = vpop.f32.mrb[0].mxu0
      %v3418 = vadd.f32 0.0, %v3417
      %v3419 = vpop.f32.mrb[0].mxu0
      %v3420 = vpop.f32.mrb[0].mxu0
      %v3421 = vadd.f32 0.0, %v3420
      %v3422 = vpop.f32.mrb[0].mxu0
      %3423 = vmatprep.mubr.bf16.mxu0 0
      %3424 = vmatmul.mubr.bf16.gmra.mrb[0].mxu0 %v3301
      %v3425 = vpop.f32.mrb[0].mxu0
      %v3426 = vadd.f32 0.0, %v3425
      %v3427 = vpop.f32.mrb[0].mxu0
      %v3428 = vpop.f32.mrb[0].mxu0
      %v3429 = vadd.f32 0.0, %v3428
      %v3430 = vpop.f32.mrb[0].mxu0
      %3431 = vmatprep.mubr.bf16.mxu0 0
      %3432 = vmatmul.mubr.bf16.gmra.mrb[0].mxu0 %v3304
      %v3433 = vpop.f32.mrb[0].mxu0
      %v3434 = vadd.f32 0.0, %v3433
      %v3435 = vpop.f32.mrb[0].mxu0
      %v3436 = vpop.f32.mrb[0].mxu0
      %v3437 = vadd.f32 0.0, %v3436
      %v3438 = vpop.f32.mrb[0].mxu0
      %3439 = vmatprep.mubr.bf16.mxu0 0
      %3440 = vmatmul.mubr.bf16.gmra.mrb[0].mxu0 %v3307
      %v3441 = vpop.f32.mrb[0].mxu0
      %v3442 = vadd.f32 0.0, %v3441
      %v3443 = vpop.f32.mrb[0].mxu0
      %v3444 = vpop.f32.mrb[0].mxu0
      %v3445 = vadd.f32 0.0, %v3444
      %v3446 = vpop.f32.mrb[0].mxu0
      %3447 = vmatprep.mubr.bf16.mxu0 0
      %3448 = vmatmul.mubr.bf16.gmra.mrb[0].mxu0 %v3310
      %v3449 = vpop.f32.mrb[0].mxu0
      %v3450 = vadd.f32 0.0, %v3449
      %v3451 = vpop.f32.mrb[0].mxu0
      %v3452 = vpop.f32.mrb[0].mxu0
      %v3453 = vadd.f32 0.0, %v3452
      %v3454 = vpop.f32.mrb[0].mxu0
      %3455 = vmatprep.mubr.bf16.mxu0 0
      %3456 = vmatmul.mubr.bf16.gmra.mrb[0].mxu0 %v3313
      %v3457 = vpop.f32.mrb[0].mxu0
      %v3458 = vadd.f32 0.0, %v3457
      %v3459 = vpop.f32.mrb[0].mxu0
      %v3460 = vpop.f32.mrb[0].mxu0
      %v3461 = vadd.f32 0.0, %v3460
      %v3462 = vpop.f32.mrb[0].mxu0
      %3463 = vmatprep.mubr.bf16.mxu0 0
      %3464 = vmatmul.mubr.bf16.gmra.mrb[0].mxu0 %v3316
      %v3465 = vpop.f32.mrb[0].mxu0
      %v3466 = vadd.f32 0.0, %v3465
      %v3467 = vpop.f32.mrb[0].mxu0
      %v3468 = vpop.f32.mrb[0].mxu0
      %v3469 = vadd.f32 0.0, %v3468
      %v3470 = vpop.f32.mrb[0].mxu0
      %3471 = vmatprep.mubr.bf16.mxu0 0
      %3472 = vmatmul.mubr.bf16.gmra.mrb[0].mxu0 %v3319
      %v3473 = vpop.f32.mrb[0].mxu0
      %v3474 = vadd.f32 0.0, %v3473
      %v3475 = vpop.f32.mrb[0].mxu0
      %v3476 = vpop.f32.mrb[0].mxu0
      %v3477 = vadd.f32 0.0, %v3476
      %v3478 = vpop.f32.mrb[0].mxu0
      %3479 = vmatprep.mubr.bf16.mxu0 0
      %3480 = vmatmul.mubr.bf16.gmra.mrb[0].mxu0 %v3322
      %v3481 = vpop.f32.mrb[0].mxu0
      %v3482 = vadd.f32 0.0, %v3481
      %v3483 = vpop.f32.mrb[0].mxu0
      %v3484 = vpop.f32.mrb[0].mxu0
      %v3485 = vadd.f32 0.0, %v3484
      %v3486 = vpop.f32.mrb[0].mxu0
      %3487 = vdwg.mxu0
      %v3488 = vadd.f32 %v3018, %v3362
      %v3489 = vadd.f32 %v3019, %v3365
      %v3490 = vadd.f32 %v3020, %v3370
      %v3491 = vadd.f32 %v3021, %v3373
      %v3492 = vadd.f32 %v3022, %v3378
      %v3493 = vadd.f32 %v3023, %v3381
      %v3494 = vadd.f32 %v3024, %v3386
      %v3495 = vadd.f32 %v3025, %v3389
      %v3496 = vadd.f32 %v3026, %v3394
      %v3497 = vadd.f32 %v3027, %v3397
      %v3498 = vadd.f32 %v3028, %v3402
      %v3499 = vadd.f32 %v3029, %v3405
      %v3500 = vadd.f32 %v3030, %v3410
      %v3501 = vadd.f32 %v3031, %v3413
      %v3502 = vadd.f32 %v3032, %v3418
      %v3503 = vadd.f32 %v3033, %v3421
      %v3504 = vadd.f32 %v3034, %v3426
      %v3505 = vadd.f32 %v3035, %v3429
      %v3506 = vadd.f32 %v3036, %v3434
      %v3507 = vadd.f32 %v3037, %v3437
      %v3508 = vadd.f32 %v3038, %v3442
      %v3509 = vadd.f32 %v3039, %v3445
      %v3510 = vadd.f32 %v3040, %v3450
      %v3511 = vadd.f32 %v3041, %v3453
      %v3512 = vadd.f32 %v3042, %v3458
      %v3513 = vadd.f32 %v3043, %v3461
      %v3514 = vadd.f32 %v3044, %v3466
      %v3515 = vadd.f32 %v3045, %v3469
      %v3516 = vadd.f32 %v3046, %v3474
      %v3517 = vadd.f32 %v3047, %v3477
      %v3518 = vadd.f32 %v3048, %v3482
      %v3519 = vadd.f32 %v3049, %v3485
      %s3520 = scalar_lea.vmem [#allocation2], 24
      %v3521 = vld [vmem:[%s3520] sm:$0xf]
      %v3522 = vld [vmem:[%s3520 + $0x4] sm:$0xf]
      %v3523 = vld [vmem:[%s3520 + $0xc] sm:$0xf]
      %v3524 = vld [vmem:[%s3520 + $0x10] sm:$0xf]
      %v3525 = vld [vmem:[%s3520 + $0x18] sm:$0xf]
      %v3526 = vld [vmem:[%s3520 + $0x1c] sm:$0xf]
      %v3527 = vld [vmem:[%s3520 + $0x24] sm:$0xf]
      %v3528 = vld [vmem:[%s3520 + $0x28] sm:$0xf]
      %v3529 = vld [vmem:[%s3520 + $0x30] sm:$0xf]
      %v3530 = vld [vmem:[%s3520 + $0x34] sm:$0xf]
      %v3531 = vld [vmem:[%s3520 + $0x3c] sm:$0xf]
      %v3532 = vld [vmem:[%s3520 + $0x40] sm:$0xf]
      %v3533 = vld [vmem:[%s3520 + $0x48] sm:$0xf]
      %v3534 = vld [vmem:[%s3520 + $0x4c] sm:$0xf]
      %v3535 = vld [vmem:[%s3520 + $0x54] sm:$0xf]
      %v3536 = vld [vmem:[%s3520 + $0x58] sm:$0xf]
      %v3537 = vld [vmem:[%s3520 + $0x60] sm:$0xf]
      %v3538 = vld [vmem:[%s3520 + $0x64] sm:$0xf]
      %v3539 = vld [vmem:[%s3520 + $0x6c] sm:$0xf]
      %v3540 = vld [vmem:[%s3520 + $0x70] sm:$0xf]
      %v3541 = vld [vmem:[%s3520 + $0x78] sm:$0xf]
      %v3542 = vld [vmem:[%s3520 + $0x7c] sm:$0xf]
      %v3543 = vld [vmem:[%s3520 + $0x84] sm:$0xf]
      %v3544 = vld [vmem:[%s3520 + $0x88] sm:$0xf]
      %v3545 = vld [vmem:[%s3520 + $0x90] sm:$0xf]
      %v3546 = vld [vmem:[%s3520 + $0x94] sm:$0xf]
      %v3547 = vld [vmem:[%s3520 + $0x9c] sm:$0xf]
      %v3548 = vld [vmem:[%s3520 + $0xa0] sm:$0xf]
      %v3549 = vld [vmem:[%s3520 + $0xa8] sm:$0xf]
      %v3550 = vld [vmem:[%s3520 + $0xac] sm:$0xf]
      %v3551 = vld [vmem:[%s3520 + $0xb4] sm:$0xf]
      %v3552 = vld [vmem:[%s3520 + $0xb8] sm:$0xf]
      %s3553 = scalar_lea.vmem %s1, 12
      %v3554 = vld [vmem:[%s3553] sm:$0x3]
      %v3587 = vunpack.c.l.b16 %v3521
      %v3588 = vunpack.c.l.b16 %v3522
      %v3589 = vunpack.c.l.b16 %v3523
      %v3590 = vunpack.c.l.b16 %v3524
      %v3591 = vunpack.c.l.b16 %v3525
      %v3592 = vunpack.c.l.b16 %v3526
      %v3593 = vunpack.c.l.b16 %v3527
      %v3594 = vunpack.c.l.b16 %v3528
      %v3595 = vunpack.c.l.b16 %v3529
      %v3596 = vunpack.c.l.b16 %v3530
      %v3597 = vunpack.c.l.b16 %v3531
      %v3598 = vunpack.c.l.b16 %v3532
      %v3599 = vunpack.c.l.b16 %v3533
      %v3600 = vunpack.c.l.b16 %v3534
      %v3601 = vunpack.c.l.b16 %v3535
      %v3602 = vunpack.c.l.b16 %v3536
      %v3603 = vunpack.c.l.b16 %v3537
      %v3604 = vunpack.c.l.b16 %v3538
      %v3605 = vunpack.c.l.b16 %v3539
      %v3606 = vunpack.c.l.b16 %v3540
      %v3607 = vunpack.c.l.b16 %v3541
      %v3608 = vunpack.c.l.b16 %v3542
      %v3609 = vunpack.c.l.b16 %v3543
      %v3610 = vunpack.c.l.b16 %v3544
      %v3611 = vunpack.c.l.b16 %v3545
      %v3612 = vunpack.c.l.b16 %v3546
      %v3613 = vunpack.c.l.b16 %v3547
      %v3614 = vunpack.c.l.b16 %v3548
      %v3615 = vunpack.c.l.b16 %v3549
      %v3616 = vunpack.c.l.b16 %v3550
      %v3617 = vunpack.c.l.b16 %v3551
      %v3618 = vunpack.c.l.b16 %v3552
      %v3619 = vpack.c.b16 %v3588, %v3587
      %v3620 = vpack.c.b16 %v3590, %v3589
      %v3621 = vpack.c.b16 %v3592, %v3591
      %v3622 = vpack.c.b16 %v3594, %v3593
      %v3623 = vpack.c.b16 %v3596, %v3595
      %v3624 = vpack.c.b16 %v3598, %v3597
      %v3625 = vpack.c.b16 %v3600, %v3599
      %v3626 = vpack.c.b16 %v3602, %v3601
      %v3627 = vpack.c.b16 %v3604, %v3603
      %v3628 = vpack.c.b16 %v3606, %v3605
      %v3629 = vpack.c.b16 %v3608, %v3607
      %v3630 = vpack.c.b16 %v3610, %v3609
      %v3631 = vpack.c.b16 %v3612, %v3611
      %v3632 = vpack.c.b16 %v3614, %v3613
      %v3633 = vpack.c.b16 %v3616, %v3615
      %v3634 = vpack.c.b16 %v3618, %v3617
      %v3636 = vsel %vm1002, %v3619, 0
      %v3639 = vsel %vm1002, %v3620, 0
      %v3642 = vsel %vm1002, %v3621, 0
      %v3645 = vsel %vm1002, %v3622, 0
      %v3648 = vsel %vm1002, %v3623, 0
      %v3651 = vsel %vm1002, %v3624, 0
      %v3654 = vsel %vm1002, %v3625, 0
      %v3657 = vsel %vm1002, %v3626, 0
      %v3660 = vsel %vm1002, %v3627, 0
      %v3663 = vsel %vm1002, %v3628, 0
      %v3666 = vsel %vm1002, %v3629, 0
      %v3669 = vsel %vm1002, %v3630, 0
      %v3672 = vsel %vm1002, %v3631, 0
      %v3675 = vsel %vm1002, %v3632, 0
      %v3678 = vsel %vm1002, %v3633, 0
      %v3681 = vsel %vm1002, %v3634, 0
      %v3684 = vsel %vm1051, %v3554, 0
      %3686 = vmatprep.subr.bf16.mxu0 0
      %3687 = vmatpush1.bf16.msra.mxu0 %v3684
      %3688 = vmatprep.subr.bf16.mxu0 0
      %3689 = vmatpush1.bf16.msra.mxu0 0
      %3690 = vmatprep.subr.bf16.mxu0 0
      %3691 = vmatpush1.bf16.msra.mxu0 0
      %3692 = vmatprep.subr.bf16.mxu0 0
      %3693 = vmatpush1.bf16.msra.mxu0 0
      %3694 = vmatprep.subr.bf16.mxu0 0
      %3695 = vmatpush1.bf16.msra.mxu0 0
      %3696 = vmatprep.subr.bf16.mxu0 0
      %3697 = vmatpush1.bf16.msra.mxu0 0
      %3698 = vmatprep.subr.bf16.mxu0 0
      %3699 = vmatpush1.bf16.msra.mxu0 0
      %3700 = vmatprep.subr.bf16.mxu0 0
      %3701 = vmatpush1.bf16.msra.mxu0 0
      %3702 = vmatprep.subr.bf16.mxu0 0
      %3703 = vmatpush1.bf16.msra.mxu0 0
      %3704 = vmatprep.subr.bf16.mxu0 0
      %3705 = vmatpush1.bf16.msra.mxu0 0
      %3706 = vmatprep.subr.bf16.mxu0 0
      %3707 = vmatpush1.bf16.msra.mxu0 0
      %3708 = vmatprep.subr.bf16.mxu0 0
      %3709 = vmatpush1.bf16.msra.mxu0 0
      %3710 = vmatprep.subr.bf16.mxu0 0
      %3711 = vmatpush1.bf16.msra.mxu0 0
      %3712 = vmatprep.subr.bf16.mxu0 0
      %3713 = vmatpush1.bf16.msra.mxu0 0
      %3714 = vmatprep.subr.bf16.mxu0 0
      %3715 = vmatpush1.bf16.msra.mxu0 0
      %3716 = vmatprep.subr.bf16.mxu0 0
      %3717 = vmatpush1.bf16.msra.mxu0 0
      %3718 = vmatprep.mubr.bf16.mxu0 0
      %3719 = vmatmul.mubr.bf16.gmra.mrb[0].mxu0 %v3636
      %v3720 = vpop.f32.mrb[0].mxu0
      %v3721 = vadd.f32 0.0, %v3720
      %v3722 = vpop.f32.mrb[0].mxu0
      %v3723 = vpop.f32.mrb[0].mxu0
      %v3724 = vadd.f32 0.0, %v3723
      %v3725 = vpop.f32.mrb[0].mxu0
      %3726 = vmatprep.mubr.bf16.mxu0 0
      %3727 = vmatmul.mubr.bf16.gmra.mrb[0].mxu0 %v3639
      %v3728 = vpop.f32.mrb[0].mxu0
      %v3729 = vadd.f32 0.0, %v3728
      %v3730 = vpop.f32.mrb[0].mxu0
      %v3731 = vpop.f32.mrb[0].mxu0
      %v3732 = vadd.f32 0.0, %v3731
      %v3733 = vpop.f32.mrb[0].mxu0
      %3734 = vmatprep.mubr.bf16.mxu0 0
      %3735 = vmatmul.mubr.bf16.gmra.mrb[0].mxu0 %v3642
      %v3736 = vpop.f32.mrb[0].mxu0
      %v3737 = vadd.f32 0.0, %v3736
      %v3738 = vpop.f32.mrb[0].mxu0
      %v3739 = vpop.f32.mrb[0].mxu0
      %v3740 = vadd.f32 0.0, %v3739
      %v3741 = vpop.f32.mrb[0].mxu0
      %3742 = vmatprep.mubr.bf16.mxu0 0
      %3743 = vmatmul.mubr.bf16.gmra.mrb[0].mxu0 %v3645
      %v3744 = vpop.f32.mrb[0].mxu0
      %v3745 = vadd.f32 0.0, %v3744
      %v3746 = vpop.f32.mrb[0].mxu0
      %v3747 = vpop.f32.mrb[0].mxu0
      %v3748 = vadd.f32 0.0, %v3747
      %v3749 = vpop.f32.mrb[0].mxu0
      %3750 = vmatprep.mubr.bf16.mxu0 0
      %3751 = vmatmul.mubr.bf16.gmra.mrb[0].mxu0 %v3648
      %v3752 = vpop.f32.mrb[0].mxu0
      %v3753 = vadd.f32 0.0, %v3752
      %v3754 = vpop.f32.mrb[0].mxu0
      %v3755 = vpop.f32.mrb[0].mxu0
      %v3756 = vadd.f32 0.0, %v3755
      %v3757 = vpop.f32.mrb[0].mxu0
      %3758 = vmatprep.mubr.bf16.mxu0 0
      %3759 = vmatmul.mubr.bf16.gmra.mrb[0].mxu0 %v3651
      %v3760 = vpop.f32.mrb[0].mxu0
      %v3761 = vadd.f32 0.0, %v3760
      %v3762 = vpop.f32.mrb[0].mxu0
      %v3763 = vpop.f32.mrb[0].mxu0
      %v3764 = vadd.f32 0.0, %v3763
      %v3765 = vpop.f32.mrb[0].mxu0
      %3766 = vmatprep.mubr.bf16.mxu0 0
      %3767 = vmatmul.mubr.bf16.gmra.mrb[0].mxu0 %v3654
      %v3768 = vpop.f32.mrb[0].mxu0
      %v3769 = vadd.f32 0.0, %v3768
      %v3770 = vpop.f32.mrb[0].mxu0
      %v3771 = vpop.f32.mrb[0].mxu0
      %v3772 = vadd.f32 0.0, %v3771
      %v3773 = vpop.f32.mrb[0].mxu0
      %3774 = vmatprep.mubr.bf16.mxu0 0
      %3775 = vmatmul.mubr.bf16.gmra.mrb[0].mxu0 %v3657
      %v3776 = vpop.f32.mrb[0].mxu0
      %v3777 = vadd.f32 0.0, %v3776
      %v3778 = vpop.f32.mrb[0].mxu0
      %v3779 = vpop.f32.mrb[0].mxu0
      %v3780 = vadd.f32 0.0, %v3779
      %v3781 = vpop.f32.mrb[0].mxu0
      %3782 = vmatprep.mubr.bf16.mxu0 0
      %3783 = vmatmul.mubr.bf16.gmra.mrb[0].mxu0 %v3660
      %v3784 = vpop.f32.mrb[0].mxu0
      %v3785 = vadd.f32 0.0, %v3784
      %v3786 = vpop.f32.mrb[0].mxu0
      %v3787 = vpop.f32.mrb[0].mxu0
      %v3788 = vadd.f32 0.0, %v3787
      %v3789 = vpop.f32.mrb[0].mxu0
      %3790 = vmatprep.mubr.bf16.mxu0 0
      %3791 = vmatmul.mubr.bf16.gmra.mrb[0].mxu0 %v3663
      %v3792 = vpop.f32.mrb[0].mxu0
      %v3793 = vadd.f32 0.0, %v3792
      %v3794 = vpop.f32.mrb[0].mxu0
      %v3795 = vpop.f32.mrb[0].mxu0
      %v3796 = vadd.f32 0.0, %v3795
      %v3797 = vpop.f32.mrb[0].mxu0
      %3798 = vmatprep.mubr.bf16.mxu0 0
      %3799 = vmatmul.mubr.bf16.gmra.mrb[0].mxu0 %v3666
      %v3800 = vpop.f32.mrb[0].mxu0
      %v3801 = vadd.f32 0.0, %v3800
      %v3802 = vpop.f32.mrb[0].mxu0
      %v3803 = vpop.f32.mrb[0].mxu0
      %v3804 = vadd.f32 0.0, %v3803
      %v3805 = vpop.f32.mrb[0].mxu0
      %3806 = vmatprep.mubr.bf16.mxu0 0
      %3807 = vmatmul.mubr.bf16.gmra.mrb[0].mxu0 %v3669
      %v3808 = vpop.f32.mrb[0].mxu0
      %v3809 = vadd.f32 0.0, %v3808
      %v3810 = vpop.f32.mrb[0].mxu0
      %v3811 = vpop.f32.mrb[0].mxu0
      %v3812 = vadd.f32 0.0, %v3811
      %v3813 = vpop.f32.mrb[0].mxu0
      %3814 = vmatprep.mubr.bf16.mxu0 0
      %3815 = vmatmul.mubr.bf16.gmra.mrb[0].mxu0 %v3672
      %v3816 = vpop.f32.mrb[0].mxu0
      %v3817 = vadd.f32 0.0, %v3816
      %v3818 = vpop.f32.mrb[0].mxu0
      %v3819 = vpop.f32.mrb[0].mxu0
      %v3820 = vadd.f32 0.0, %v3819
      %v3821 = vpop.f32.mrb[0].mxu0
      %3822 = vmatprep.mubr.bf16.mxu0 0
      %3823 = vmatmul.mubr.bf16.gmra.mrb[0].mxu0 %v3675
      %v3824 = vpop.f32.mrb[0].mxu0
      %v3825 = vadd.f32 0.0, %v3824
      %v3826 = vpop.f32.mrb[0].mxu0
      %v3827 = vpop.f32.mrb[0].mxu0
      %v3828 = vadd.f32 0.0, %v3827
      %v3829 = vpop.f32.mrb[0].mxu0
      %3830 = vmatprep.mubr.bf16.mxu0 0
      %3831 = vmatmul.mubr.bf16.gmra.mrb[0].mxu0 %v3678
      %v3832 = vpop.f32.mrb[0].mxu0
      %v3833 = vadd.f32 0.0, %v3832
      %v3834 = vpop.f32.mrb[0].mxu0
      %v3835 = vpop.f32.mrb[0].mxu0
      %v3836 = vadd.f32 0.0, %v3835
      %v3837 = vpop.f32.mrb[0].mxu0
      %3838 = vmatprep.mubr.bf16.mxu0 0
      %3839 = vmatmul.mubr.bf16.gmra.mrb[0].mxu0 %v3681
      %v3840 = vpop.f32.mrb[0].mxu0
      %v3841 = vadd.f32 0.0, %v3840
      %v3842 = vpop.f32.mrb[0].mxu0
      %v3843 = vpop.f32.mrb[0].mxu0
      %v3844 = vadd.f32 0.0, %v3843
      %v3845 = vpop.f32.mrb[0].mxu0
      %3846 = vdwg.mxu0
      %v3847 = vadd.f32 %v3488, %v3721
      %v3848 = vadd.f32 %v3489, %v3724
      %v3849 = vadd.f32 %v3490, %v3729
      %v3850 = vadd.f32 %v3491, %v3732
      %v3851 = vadd.f32 %v3492, %v3737
      %v3852 = vadd.f32 %v3493, %v3740
      %v3853 = vadd.f32 %v3494, %v3745
      %v3854 = vadd.f32 %v3495, %v3748
      %v3855 = vadd.f32 %v3496, %v3753
      %v3856 = vadd.f32 %v3497, %v3756
      %v3857 = vadd.f32 %v3498, %v3761
      %v3858 = vadd.f32 %v3499, %v3764
      %v3859 = vadd.f32 %v3500, %v3769
      %v3860 = vadd.f32 %v3501, %v3772
      %v3861 = vadd.f32 %v3502, %v3777
      %v3862 = vadd.f32 %v3503, %v3780
      %v3863 = vadd.f32 %v3504, %v3785
      %v3864 = vadd.f32 %v3505, %v3788
      %v3865 = vadd.f32 %v3506, %v3793
      %v3866 = vadd.f32 %v3507, %v3796
      %v3867 = vadd.f32 %v3508, %v3801
      %v3868 = vadd.f32 %v3509, %v3804
      %v3869 = vadd.f32 %v3510, %v3809
      %v3870 = vadd.f32 %v3511, %v3812
      %v3871 = vadd.f32 %v3512, %v3817
      %v3872 = vadd.f32 %v3513, %v3820
      %v3873 = vadd.f32 %v3514, %v3825
      %v3874 = vadd.f32 %v3515, %v3828
      %v3875 = vadd.f32 %v3516, %v3833
      %v3876 = vadd.f32 %v3517, %v3836
      %v3877 = vadd.f32 %v3518, %v3841
      %v3878 = vadd.f32 %v3519, %v3844
      %v3879 = vld [vmem:[%s3520] sm:$0xf]
      %v3880 = vld [vmem:[%s3520 + $0x4] sm:$0xf]
      %v3881 = vld [vmem:[%s3520 + $0x8] sm:$0x1]
      %v3882 = vld [vmem:[%s3520 + $0xc] sm:$0xf]
      %v3883 = vld [vmem:[%s3520 + $0x10] sm:$0xf]
      %v3884 = vld [vmem:[%s3520 + $0x14] sm:$0x1]
      %v3885 = vld [vmem:[%s3520 + $0x18] sm:$0xf]
      %v3886 = vld [vmem:[%s3520 + $0x1c] sm:$0xf]
      %v3887 = vld [vmem:[%s3520 + $0x20] sm:$0x1]
      %v3888 = vld [vmem:[%s3520 + $0x24] sm:$0xf]
      %v3889 = vld [vmem:[%s3520 + $0x28] sm:$0xf]
      %v3890 = vld [vmem:[%s3520 + $0x2c] sm:$0x1]
      %v3891 = vld [vmem:[%s3520 + $0x30] sm:$0xf]
      %v3892 = vld [vmem:[%s3520 + $0x34] sm:$0xf]
      %v3893 = vld [vmem:[%s3520 + $0x38] sm:$0x1]
      %v3894 = vld [vmem:[%s3520 + $0x3c] sm:$0xf]
      %v3895 = vld [vmem:[%s3520 + $0x40] sm:$0xf]
      %v3896 = vld [vmem:[%s3520 + $0x44] sm:$0x1]
      %v3897 = vld [vmem:[%s3520 + $0x48] sm:$0xf]
      %v3898 = vld [vmem:[%s3520 + $0x4c] sm:$0xf]
      %v3899 = vld [vmem:[%s3520 + $0x50] sm:$0x1]
      %v3900 = vld [vmem:[%s3520 + $0x54] sm:$0xf]
      %v3901 = vld [vmem:[%s3520 + $0x58] sm:$0xf]
      %v3902 = vld [vmem:[%s3520 + $0x5c] sm:$0x1]
      %v3903 = vld [vmem:[%s3520 + $0x60] sm:$0xf]
      %v3904 = vld [vmem:[%s3520 + $0x64] sm:$0xf]
      %v3905 = vld [vmem:[%s3520 + $0x68] sm:$0x1]
      %v3906 = vld [vmem:[%s3520 + $0x6c] sm:$0xf]
      %v3907 = vld [vmem:[%s3520 + $0x70] sm:$0xf]
      %v3908 = vld [vmem:[%s3520 + $0x74] sm:$0x1]
      %v3909 = vld [vmem:[%s3520 + $0x78] sm:$0xf]
      %v3910 = vld [vmem:[%s3520 + $0x7c] sm:$0xf]
      %v3911 = vld [vmem:[%s3520 + $0x80] sm:$0x1]
      %v3912 = vld [vmem:[%s3520 + $0x84] sm:$0xf]
      %v3913 = vld [vmem:[%s3520 + $0x88] sm:$0xf]
      %v3914 = vld [vmem:[%s3520 + $0x8c] sm:$0x1]
      %v3915 = vld [vmem:[%s3520 + $0x90] sm:$0xf]
      %v3916 = vld [vmem:[%s3520 + $0x94] sm:$0xf]
      %v3917 = vld [vmem:[%s3520 + $0x98] sm:$0x1]
      %v3918 = vld [vmem:[%s3520 + $0x9c] sm:$0xf]
      %v3919 = vld [vmem:[%s3520 + $0xa0] sm:$0xf]
      %v3920 = vld [vmem:[%s3520 + $0xa4] sm:$0x1]
      %v3921 = vld [vmem:[%s3520 + $0xa8] sm:$0xf]
      %v3922 = vld [vmem:[%s3520 + $0xac] sm:$0xf]
      %v3923 = vld [vmem:[%s3520 + $0xb0] sm:$0x1]
      %v3924 = vld [vmem:[%s3520 + $0xb4] sm:$0xf]
      %v3925 = vld [vmem:[%s3520 + $0xb8] sm:$0xf]
      %v3926 = vld [vmem:[%s3520 + $0xbc] sm:$0x1]
      %v3928 = vshrl.u32 %v3879, 16
      %v3930 = vrot.slane %v3928, 4
      %v3931 = vshll.u32 %v3879, 16
      %v3933 = vrot.slane %v3931, 5
      %v3934 = vor.u32 %v3930, %v3933
      %v3935 = vrot.slane %v3934, 4
      %v3937 = vshll.u32 %v3880, 16
      %v3939 = vrot.slane %v3937, 5
      %v3940 = vsel %vm567, %v3935, %v3939
      %v3941 = vshrl.u32 %v3880, 16
      %v3943 = vrot.slane %v3941, 4
      %v3944 = vor.u32 %v3943, %v3939
      %v3945 = vrot.slane %v3944, 4
      %v3947 = vshll.u32 %v3881, 16
      %v3949 = vrot.slane %v3947, 5
      %v3950 = vsel %vm567, %v3945, %v3949
      %v3952 = vshrl.u32 %v3882, 16
      %v3954 = vrot.slane %v3952, 4
      %v3955 = vshll.u32 %v3882, 16
      %v3957 = vrot.slane %v3955, 5
      %v3958 = vor.u32 %v3954, %v3957
      %v3959 = vrot.slane %v3958, 4
      %v3961 = vshll.u32 %v3883, 16
      %v3963 = vrot.slane %v3961, 5
      %v3964 = vsel %vm567, %v3959, %v3963
      %v3965 = vshrl.u32 %v3883, 16
      %v3967 = vrot.slane %v3965, 4
      %v3968 = vor.u32 %v3967, %v3963
      %v3969 = vrot.slane %v3968, 4
      %v3971 = vshll.u32 %v3884, 16
      %v3973 = vrot.slane %v3971, 5
      %v3974 = vsel %vm567, %v3969, %v3973
      %v3976 = vshrl.u32 %v3885, 16
      %v3978 = vrot.slane %v3976, 4
      %v3979 = vshll.u32 %v3885, 16
      %v3981 = vrot.slane %v3979, 5
      %v3982 = vor.u32 %v3978, %v3981
      %v3983 = vrot.slane %v3982, 4
      %v3985 = vshll.u32 %v3886, 16
      %v3987 = vrot.slane %v3985, 5
      %v3988 = vsel %vm567, %v3983, %v3987
      %v3989 = vshrl.u32 %v3886, 16
      %v3991 = vrot.slane %v3989, 4
      %v3992 = vor.u32 %v3991, %v3987
      %v3993 = vrot.slane %v3992, 4
      %v3995 = vshll.u32 %v3887, 16
      %v3997 = vrot.slane %v3995, 5
      %v3998 = vsel %vm567, %v3993, %v3997
      %v4000 = vshrl.u32 %v3888, 16
      %v4002 = vrot.slane %v4000, 4
      %v4003 = vshll.u32 %v3888, 16
      %v4005 = vrot.slane %v4003, 5
      %v4006 = vor.u32 %v4002, %v4005
      %v4007 = vrot.slane %v4006, 4
      %v4009 = vshll.u32 %v3889, 16
      %v4011 = vrot.slane %v4009, 5
      %v4012 = vsel %vm567, %v4007, %v4011
      %v4013 = vshrl.u32 %v3889, 16
      %v4015 = vrot.slane %v4013, 4
      %v4016 = vor.u32 %v4015, %v4011
      %v4017 = vrot.slane %v4016, 4
      %v4019 = vshll.u32 %v3890, 16
      %v4021 = vrot.slane %v4019, 5
      %v4022 = vsel %vm567, %v4017, %v4021
      %v4024 = vshrl.u32 %v3891, 16
      %v4026 = vrot.slane %v4024, 4
      %v4027 = vshll.u32 %v3891, 16
      %v4029 = vrot.slane %v4027, 5
      %v4030 = vor.u32 %v4026, %v4029
      %v4031 = vrot.slane %v4030, 4
      %v4033 = vshll.u32 %v3892, 16
      %v4035 = vrot.slane %v4033, 5
      %v4036 = vsel %vm567, %v4031, %v4035
      %v4037 = vshrl.u32 %v3892, 16
      %v4039 = vrot.slane %v4037, 4
      %v4040 = vor.u32 %v4039, %v4035
      %v4041 = vrot.slane %v4040, 4
      %v4043 = vshll.u32 %v3893, 16
      %v4045 = vrot.slane %v4043, 5
      %v4046 = vsel %vm567, %v4041, %v4045
      %v4048 = vshrl.u32 %v3894, 16
      %v4050 = vrot.slane %v4048, 4
      %v4051 = vshll.u32 %v3894, 16
      %v4053 = vrot.slane %v4051, 5
      %v4054 = vor.u32 %v4050, %v4053
      %v4055 = vrot.slane %v4054, 4
      %v4057 = vshll.u32 %v3895, 16
      %v4059 = vrot.slane %v4057, 5
      %v4060 = vsel %vm567, %v4055, %v4059
      %v4061 = vshrl.u32 %v3895, 16
      %v4063 = vrot.slane %v4061, 4
      %v4064 = vor.u32 %v4063, %v4059
      %v4065 = vrot.slane %v4064, 4
      %v4067 = vshll.u32 %v3896, 16
      %v4069 = vrot.slane %v4067, 5
      %v4070 = vsel %vm567, %v4065, %v4069
      %v4072 = vshrl.u32 %v3897, 16
      %v4074 = vrot.slane %v4072, 4
      %v4075 = vshll.u32 %v3897, 16
      %v4077 = vrot.slane %v4075, 5
      %v4078 = vor.u32 %v4074, %v4077
      %v4079 = vrot.slane %v4078, 4
      %v4081 = vshll.u32 %v3898, 16
      %v4083 = vrot.slane %v4081, 5
      %v4084 = vsel %vm567, %v4079, %v4083
      %v4085 = vshrl.u32 %v3898, 16
      %v4087 = vrot.slane %v4085, 4
      %v4088 = vor.u32 %v4087, %v4083
      %v4089 = vrot.slane %v4088, 4
      %v4091 = vshll.u32 %v3899, 16
      %v4093 = vrot.slane %v4091, 5
      %v4094 = vsel %vm567, %v4089, %v4093
      %v4096 = vshrl.u32 %v3900, 16
      %v4098 = vrot.slane %v4096, 4
      %v4099 = vshll.u32 %v3900, 16
      %v4101 = vrot.slane %v4099, 5
      %v4102 = vor.u32 %v4098, %v4101
      %v4103 = vrot.slane %v4102, 4
      %v4105 = vshll.u32 %v3901, 16
      %v4107 = vrot.slane %v4105, 5
      %v4108 = vsel %vm567, %v4103, %v4107
      %v4109 = vshrl.u32 %v3901, 16
      %v4111 = vrot.slane %v4109, 4
      %v4112 = vor.u32 %v4111, %v4107
      %v4113 = vrot.slane %v4112, 4
      %v4115 = vshll.u32 %v3902, 16
      %v4117 = vrot.slane %v4115, 5
      %v4118 = vsel %vm567, %v4113, %v4117
      %v4120 = vshrl.u32 %v3903, 16
      %v4122 = vrot.slane %v4120, 4
      %v4123 = vshll.u32 %v3903, 16
      %v4125 = vrot.slane %v4123, 5
      %v4126 = vor.u32 %v4122, %v4125
      %v4127 = vrot.slane %v4126, 4
      %v4129 = vshll.u32 %v3904, 16
      %v4131 = vrot.slane %v4129, 5
      %v4132 = vsel %vm567, %v4127, %v4131
      %v4133 = vshrl.u32 %v3904, 16
      %v4135 = vrot.slane %v4133, 4
      %v4136 = vor.u32 %v4135, %v4131
      %v4137 = vrot.slane %v4136, 4
      %v4139 = vshll.u32 %v3905, 16
      %v4141 = vrot.slane %v4139, 5
      %v4142 = vsel %vm567, %v4137, %v4141
      %v4144 = vshrl.u32 %v3906, 16
      %v4146 = vrot.slane %v4144, 4
      %v4147 = vshll.u32 %v3906, 16
      %v4149 = vrot.slane %v4147, 5
      %v4150 = vor.u32 %v4146, %v4149
      %v4151 = vrot.slane %v4150, 4
      %v4153 = vshll.u32 %v3907, 16
      %v4155 = vrot.slane %v4153, 5
      %v4156 = vsel %vm567, %v4151, %v4155
      %v4157 = vshrl.u32 %v3907, 16
      %v4159 = vrot.slane %v4157, 4
      %v4160 = vor.u32 %v4159, %v4155
      %v4161 = vrot.slane %v4160, 4
      %v4163 = vshll.u32 %v3908, 16
      %v4165 = vrot.slane %v4163, 5
      %v4166 = vsel %vm567, %v4161, %v4165
      %v4168 = vshrl.u32 %v3909, 16
      %v4170 = vrot.slane %v4168, 4
      %v4171 = vshll.u32 %v3909, 16
      %v4173 = vrot.slane %v4171, 5
      %v4174 = vor.u32 %v4170, %v4173
      %v4175 = vrot.slane %v4174, 4
      %v4177 = vshll.u32 %v3910, 16
      %v4179 = vrot.slane %v4177, 5
      %v4180 = vsel %vm567, %v4175, %v4179
      %v4181 = vshrl.u32 %v3910, 16
      %v4183 = vrot.slane %v4181, 4
      %v4184 = vor.u32 %v4183, %v4179
      %v4185 = vrot.slane %v4184, 4
      %v4187 = vshll.u32 %v3911, 16
      %v4189 = vrot.slane %v4187, 5
      %v4190 = vsel %vm567, %v4185, %v4189
      %v4192 = vshrl.u32 %v3912, 16
      %v4194 = vrot.slane %v4192, 4
      %v4195 = vshll.u32 %v3912, 16
      %v4197 = vrot.slane %v4195, 5
      %v4198 = vor.u32 %v4194, %v4197
      %v4199 = vrot.slane %v4198, 4
      %v4201 = vshll.u32 %v3913, 16
      %v4203 = vrot.slane %v4201, 5
      %v4204 = vsel %vm567, %v4199, %v4203
      %v4205 = vshrl.u32 %v3913, 16
      %v4207 = vrot.slane %v4205, 4
      %v4208 = vor.u32 %v4207, %v4203
      %v4209 = vrot.slane %v4208, 4
      %v4211 = vshll.u32 %v3914, 16
      %v4213 = vrot.slane %v4211, 5
      %v4214 = vsel %vm567, %v4209, %v4213
      %v4216 = vshrl.u32 %v3915, 16
      %v4218 = vrot.slane %v4216, 4
      %v4219 = vshll.u32 %v3915, 16
      %v4221 = vrot.slane %v4219, 5
      %v4222 = vor.u32 %v4218, %v4221
      %v4223 = vrot.slane %v4222, 4
      %v4225 = vshll.u32 %v3916, 16
      %v4227 = vrot.slane %v4225, 5
      %v4228 = vsel %vm567, %v4223, %v4227
      %v4229 = vshrl.u32 %v3916, 16
      %v4231 = vrot.slane %v4229, 4
      %v4232 = vor.u32 %v4231, %v4227
      %v4233 = vrot.slane %v4232, 4
      %v4235 = vshll.u32 %v3917, 16
      %v4237 = vrot.slane %v4235, 5
      %v4238 = vsel %vm567, %v4233, %v4237
      %v4240 = vshrl.u32 %v3918, 16
      %v4242 = vrot.slane %v4240, 4
      %v4243 = vshll.u32 %v3918, 16
      %v4245 = vrot.slane %v4243, 5
      %v4246 = vor.u32 %v4242, %v4245
      %v4247 = vrot.slane %v4246, 4
      %v4249 = vshll.u32 %v3919, 16
      %v4251 = vrot.slane %v4249, 5
      %v4252 = vsel %vm567, %v4247, %v4251
      %v4253 = vshrl.u32 %v3919, 16
      %v4255 = vrot.slane %v4253, 4
      %v4256 = vor.u32 %v4255, %v4251
      %v4257 = vrot.slane %v4256, 4
      %v4259 = vshll.u32 %v3920, 16
      %v4261 = vrot.slane %v4259, 5
      %v4262 = vsel %vm567, %v4257, %v4261
      %v4264 = vshrl.u32 %v3921, 16
      %v4266 = vrot.slane %v4264, 4
      %v4267 = vshll.u32 %v3921, 16
      %v4269 = vrot.slane %v4267, 5
      %v4270 = vor.u32 %v4266, %v4269
      %v4271 = vrot.slane %v4270, 4
      %v4273 = vshll.u32 %v3922, 16
      %v4275 = vrot.slane %v4273, 5
      %v4276 = vsel %vm567, %v4271, %v4275
      %v4277 = vshrl.u32 %v3922, 16
      %v4279 = vrot.slane %v4277, 4
      %v4280 = vor.u32 %v4279, %v4275
      %v4281 = vrot.slane %v4280, 4
      %v4283 = vshll.u32 %v3923, 16
      %v4285 = vrot.slane %v4283, 5
      %v4286 = vsel %vm567, %v4281, %v4285
      %v4288 = vshrl.u32 %v3924, 16
      %v4290 = vrot.slane %v4288, 4
      %v4291 = vshll.u32 %v3924, 16
      %v4293 = vrot.slane %v4291, 5
      %v4294 = vor.u32 %v4290, %v4293
      %v4295 = vrot.slane %v4294, 4
      %v4297 = vshll.u32 %v3925, 16
      %v4299 = vrot.slane %v4297, 5
      %v4300 = vsel %vm567, %v4295, %v4299
      %v4301 = vshrl.u32 %v3925, 16
      %v4303 = vrot.slane %v4301, 4
      %v4304 = vor.u32 %v4303, %v4299
      %v4305 = vrot.slane %v4304, 4
      %v4307 = vshll.u32 %v3926, 16
      %v4309 = vrot.slane %v4307, 5
      %v4310 = vsel %vm567, %v4305, %v4309
      %s4311 = scalar_lea.vmem %s1, 14
      %v4312 = vld [vmem:[%s4311] sm:$0x3]
      %v4313 = vunpack.c.l.b16 %v3940
      %v4314 = vunpack.c.l.b16 %v3950
      %v4315 = vunpack.c.l.b16 %v3964
      %v4316 = vunpack.c.l.b16 %v3974
      %v4317 = vunpack.c.l.b16 %v3988
      %v4318 = vunpack.c.l.b16 %v3998
      %v4319 = vunpack.c.l.b16 %v4012
      %v4320 = vunpack.c.l.b16 %v4022
      %v4321 = vunpack.c.l.b16 %v4036
      %v4322 = vunpack.c.l.b16 %v4046
      %v4323 = vunpack.c.l.b16 %v4060
      %v4324 = vunpack.c.l.b16 %v4070
      %v4325 = vunpack.c.l.b16 %v4084
      %v4326 = vunpack.c.l.b16 %v4094
      %v4327 = vunpack.c.l.b16 %v4108
      %v4328 = vunpack.c.l.b16 %v4118
      %v4329 = vunpack.c.l.b16 %v4132
      %v4330 = vunpack.c.l.b16 %v4142
      %v4331 = vunpack.c.l.b16 %v4156
      %v4332 = vunpack.c.l.b16 %v4166
      %v4333 = vunpack.c.l.b16 %v4180
      %v4334 = vunpack.c.l.b16 %v4190
      %v4335 = vunpack.c.l.b16 %v4204
      %v4336 = vunpack.c.l.b16 %v4214
      %v4337 = vunpack.c.l.b16 %v4228
      %v4338 = vunpack.c.l.b16 %v4238
      %v4339 = vunpack.c.l.b16 %v4252
      %v4340 = vunpack.c.l.b16 %v4262
      %v4341 = vunpack.c.l.b16 %v4276
      %v4342 = vunpack.c.l.b16 %v4286
      %v4343 = vunpack.c.l.b16 %v4300
      %v4344 = vunpack.c.l.b16 %v4310
      %v4345 = vpack.c.b16 %v4314, %v4313
      %v4346 = vpack.c.b16 %v4316, %v4315
      %v4347 = vpack.c.b16 %v4318, %v4317
      %v4348 = vpack.c.b16 %v4320, %v4319
      %v4349 = vpack.c.b16 %v4322, %v4321
      %v4350 = vpack.c.b16 %v4324, %v4323
      %v4351 = vpack.c.b16 %v4326, %v4325
      %v4352 = vpack.c.b16 %v4328, %v4327
      %v4353 = vpack.c.b16 %v4330, %v4329
      %v4354 = vpack.c.b16 %v4332, %v4331
      %v4355 = vpack.c.b16 %v4334, %v4333
      %v4356 = vpack.c.b16 %v4336, %v4335
      %v4357 = vpack.c.b16 %v4338, %v4337
      %v4358 = vpack.c.b16 %v4340, %v4339
      %v4359 = vpack.c.b16 %v4342, %v4341
      %v4360 = vpack.c.b16 %v4344, %v4343
      %v4362 = vsel %vm1002, %v4345, 0
      %v4365 = vsel %vm1002, %v4346, 0
      %v4368 = vsel %vm1002, %v4347, 0
      %v4371 = vsel %vm1002, %v4348, 0
      %v4374 = vsel %vm1002, %v4349, 0
      %v4377 = vsel %vm1002, %v4350, 0
      %v4380 = vsel %vm1002, %v4351, 0
      %v4383 = vsel %vm1002, %v4352, 0
      %v4386 = vsel %vm1002, %v4353, 0
      %v4389 = vsel %vm1002, %v4354, 0
      %v4392 = vsel %vm1002, %v4355, 0
      %v4395 = vsel %vm1002, %v4356, 0
      %v4398 = vsel %vm1002, %v4357, 0
      %v4401 = vsel %vm1002, %v4358, 0
      %v4404 = vsel %vm1002, %v4359, 0
      %v4407 = vsel %vm1002, %v4360, 0
      %v4410 = vsel %vm1051, %v4312, 0
      %4412 = vmatprep.subr.bf16.mxu0 0
      %4413 = vmatpush1.bf16.msra.mxu0 %v4410
      %4414 = vmatprep.subr.bf16.mxu0 0
      %4415 = vmatpush1.bf16.msra.mxu0 0
      %4416 = vmatprep.subr.bf16.mxu0 0
      %4417 = vmatpush1.bf16.msra.mxu0 0
      %4418 = vmatprep.subr.bf16.mxu0 0
      %4419 = vmatpush1.bf16.msra.mxu0 0
      %4420 = vmatprep.subr.bf16.mxu0 0
      %4421 = vmatpush1.bf16.msra.mxu0 0
      %4422 = vmatprep.subr.bf16.mxu0 0
      %4423 = vmatpush1.bf16.msra.mxu0 0
      %4424 = vmatprep.subr.bf16.mxu0 0
      %4425 = vmatpush1.bf16.msra.mxu0 0
      %4426 = vmatprep.subr.bf16.mxu0 0
      %4427 = vmatpush1.bf16.msra.mxu0 0
      %4428 = vmatprep.subr.bf16.mxu0 0
      %4429 = vmatpush1.bf16.msra.mxu0 0
      %4430 = vmatprep.subr.bf16.mxu0 0
      %4431 = vmatpush1.bf16.msra.mxu0 0
      %4432 = vmatprep.subr.bf16.mxu0 0
      %4433 = vmatpush1.bf16.msra.mxu0 0
      %4434 = vmatprep.subr.bf16.mxu0 0
      %4435 = vmatpush1.bf16.msra.mxu0 0
      %4436 = vmatprep.subr.bf16.mxu0 0
      %4437 = vmatpush1.bf16.msra.mxu0 0
      %4438 = vmatprep.subr.bf16.mxu0 0
      %4439 = vmatpush1.bf16.msra.mxu0 0
      %4440 = vmatprep.subr.bf16.mxu0 0
      %4441 = vmatpush1.bf16.msra.mxu0 0
      %4442 = vmatprep.subr.bf16.mxu0 0
      %4443 = vmatpush1.bf16.msra.mxu0 0
      %4444 = vmatprep.mubr.bf16.mxu0 0
      %4445 = vmatmul.mubr.bf16.gmra.mrb[0].mxu0 %v4362
      %v4446 = vpop.f32.mrb[0].mxu0
      %v4447 = vadd.f32 0.0, %v4446
      %v4448 = vpop.f32.mrb[0].mxu0
      %v4449 = vpop.f32.mrb[0].mxu0
      %v4450 = vadd.f32 0.0, %v4449
      %v4451 = vpop.f32.mrb[0].mxu0
      %4452 = vmatprep.mubr.bf16.mxu0 0
      %4453 = vmatmul.mubr.bf16.gmra.mrb[0].mxu0 %v4365
      %v4454 = vpop.f32.mrb[0].mxu0
      %v4455 = vadd.f32 0.0, %v4454
      %v4456 = vpop.f32.mrb[0].mxu0
      %v4457 = vpop.f32.mrb[0].mxu0
      %v4458 = vadd.f32 0.0, %v4457
      %v4459 = vpop.f32.mrb[0].mxu0
      %4460 = vmatprep.mubr.bf16.mxu0 0
      %4461 = vmatmul.mubr.bf16.gmra.mrb[0].mxu0 %v4368
      %v4462 = vpop.f32.mrb[0].mxu0
      %v4463 = vadd.f32 0.0, %v4462
      %v4464 = vpop.f32.mrb[0].mxu0
      %v4465 = vpop.f32.mrb[0].mxu0
      %v4466 = vadd.f32 0.0, %v4465
      %v4467 = vpop.f32.mrb[0].mxu0
      %4468 = vmatprep.mubr.bf16.mxu0 0
      %4469 = vmatmul.mubr.bf16.gmra.mrb[0].mxu0 %v4371
      %v4470 = vpop.f32.mrb[0].mxu0
      %v4471 = vadd.f32 0.0, %v4470
      %v4472 = vpop.f32.mrb[0].mxu0
      %v4473 = vpop.f32.mrb[0].mxu0
      %v4474 = vadd.f32 0.0, %v4473
      %v4475 = vpop.f32.mrb[0].mxu0
      %4476 = vmatprep.mubr.bf16.mxu0 0
      %4477 = vmatmul.mubr.bf16.gmra.mrb[0].mxu0 %v4374
      %v4478 = vpop.f32.mrb[0].mxu0
      %v4479 = vadd.f32 0.0, %v4478
      %v4480 = vpop.f32.mrb[0].mxu0
      %v4481 = vpop.f32.mrb[0].mxu0
      %v4482 = vadd.f32 0.0, %v4481
      %v4483 = vpop.f32.mrb[0].mxu0
      %4484 = vmatprep.mubr.bf16.mxu0 0
      %4485 = vmatmul.mubr.bf16.gmra.mrb[0].mxu0 %v4377
      %v4486 = vpop.f32.mrb[0].mxu0
      %v4487 = vadd.f32 0.0, %v4486
      %v4488 = vpop.f32.mrb[0].mxu0
      %v4489 = vpop.f32.mrb[0].mxu0
      %v4490 = vadd.f32 0.0, %v4489
      %v4491 = vpop.f32.mrb[0].mxu0
      %4492 = vmatprep.mubr.bf16.mxu0 0
      %4493 = vmatmul.mubr.bf16.gmra.mrb[0].mxu0 %v4380
      %v4494 = vpop.f32.mrb[0].mxu0
      %v4495 = vadd.f32 0.0, %v4494
      %v4496 = vpop.f32.mrb[0].mxu0
      %v4497 = vpop.f32.mrb[0].mxu0
      %v4498 = vadd.f32 0.0, %v4497
      %v4499 = vpop.f32.mrb[0].mxu0
      %4500 = vmatprep.mubr.bf16.mxu0 0
      %4501 = vmatmul.mubr.bf16.gmra.mrb[0].mxu0 %v4383
      %v4502 = vpop.f32.mrb[0].mxu0
      %v4503 = vadd.f32 0.0, %v4502
      %v4504 = vpop.f32.mrb[0].mxu0
      %v4505 = vpop.f32.mrb[0].mxu0
      %v4506 = vadd.f32 0.0, %v4505
      %v4507 = vpop.f32.mrb[0].mxu0
      %4508 = vmatprep.mubr.bf16.mxu0 0
      %4509 = vmatmul.mubr.bf16.gmra.mrb[0].mxu0 %v4386
      %v4510 = vpop.f32.mrb[0].mxu0
      %v4511 = vadd.f32 0.0, %v4510
      %v4512 = vpop.f32.mrb[0].mxu0
      %v4513 = vpop.f32.mrb[0].mxu0
      %v4514 = vadd.f32 0.0, %v4513
      %v4515 = vpop.f32.mrb[0].mxu0
      %4516 = vmatprep.mubr.bf16.mxu0 0
      %4517 = vmatmul.mubr.bf16.gmra.mrb[0].mxu0 %v4389
      %v4518 = vpop.f32.mrb[0].mxu0
      %v4519 = vadd.f32 0.0, %v4518
      %v4520 = vpop.f32.mrb[0].mxu0
      %v4521 = vpop.f32.mrb[0].mxu0
      %v4522 = vadd.f32 0.0, %v4521
      %v4523 = vpop.f32.mrb[0].mxu0
      %4524 = vmatprep.mubr.bf16.mxu0 0
      %4525 = vmatmul.mubr.bf16.gmra.mrb[0].mxu0 %v4392
      %v4526 = vpop.f32.mrb[0].mxu0
      %v4527 = vadd.f32 0.0, %v4526
      %v4528 = vpop.f32.mrb[0].mxu0
      %v4529 = vpop.f32.mrb[0].mxu0
      %v4530 = vadd.f32 0.0, %v4529
      %v4531 = vpop.f32.mrb[0].mxu0
      %4532 = vmatprep.mubr.bf16.mxu0 0
      %4533 = vmatmul.mubr.bf16.gmra.mrb[0].mxu0 %v4395
      %v4534 = vpop.f32.mrb[0].mxu0
      %v4535 = vadd.f32 0.0, %v4534
      %v4536 = vpop.f32.mrb[0].mxu0
      %v4537 = vpop.f32.mrb[0].mxu0
      %v4538 = vadd.f32 0.0, %v4537
      %v4539 = vpop.f32.mrb[0].mxu0
      %4540 = vmatprep.mubr.bf16.mxu0 0
      %4541 = vmatmul.mubr.bf16.gmra.mrb[0].mxu0 %v4398
      %v4542 = vpop.f32.mrb[0].mxu0
      %v4543 = vadd.f32 0.0, %v4542
      %v4544 = vpop.f32.mrb[0].mxu0
      %v4545 = vpop.f32.mrb[0].mxu0
      %v4546 = vadd.f32 0.0, %v4545
      %v4547 = vpop.f32.mrb[0].mxu0
      %4548 = vmatprep.mubr.bf16.mxu0 0
      %4549 = vmatmul.mubr.bf16.gmra.mrb[0].mxu0 %v4401
      %v4550 = vpop.f32.mrb[0].mxu0
      %v4551 = vadd.f32 0.0, %v4550
      %v4552 = vpop.f32.mrb[0].mxu0
      %v4553 = vpop.f32.mrb[0].mxu0
      %v4554 = vadd.f32 0.0, %v4553
      %v4555 = vpop.f32.mrb[0].mxu0
      %4556 = vmatprep.mubr.bf16.mxu0 0
      %4557 = vmatmul.mubr.bf16.gmra.mrb[0].mxu0 %v4404
      %v4558 = vpop.f32.mrb[0].mxu0
      %v4559 = vadd.f32 0.0, %v4558
      %v4560 = vpop.f32.mrb[0].mxu0
      %v4561 = vpop.f32.mrb[0].mxu0
      %v4562 = vadd.f32 0.0, %v4561
      %v4563 = vpop.f32.mrb[0].mxu0
      %4564 = vmatprep.mubr.bf16.mxu0 0
      %4565 = vmatmul.mubr.bf16.gmra.mrb[0].mxu0 %v4407
      %v4566 = vpop.f32.mrb[0].mxu0
      %v4567 = vadd.f32 0.0, %v4566
      %v4568 = vpop.f32.mrb[0].mxu0
      %v4569 = vpop.f32.mrb[0].mxu0
      %v4570 = vadd.f32 0.0, %v4569
      %v4571 = vpop.f32.mrb[0].mxu0
      %4572 = vdwg.mxu0
      %v4573 = vadd.f32 %v3847, %v4447
      %v4574 = vadd.f32 %v3848, %v4450
      %v4575 = vadd.f32 %v3849, %v4455
      %v4576 = vadd.f32 %v3850, %v4458
      %v4577 = vadd.f32 %v3851, %v4463
      %v4578 = vadd.f32 %v3852, %v4466
      %v4579 = vadd.f32 %v3853, %v4471
      %v4580 = vadd.f32 %v3854, %v4474
      %v4581 = vadd.f32 %v3855, %v4479
      %v4582 = vadd.f32 %v3856, %v4482
      %v4583 = vadd.f32 %v3857, %v4487
      %v4584 = vadd.f32 %v3858, %v4490
      %v4585 = vadd.f32 %v3859, %v4495
      %v4586 = vadd.f32 %v3860, %v4498
      %v4587 = vadd.f32 %v3861, %v4503
      %v4588 = vadd.f32 %v3862, %v4506
      %v4589 = vadd.f32 %v3863, %v4511
      %v4590 = vadd.f32 %v3864, %v4514
      %v4591 = vadd.f32 %v3865, %v4519
      %v4592 = vadd.f32 %v3866, %v4522
      %v4593 = vadd.f32 %v3867, %v4527
      %v4594 = vadd.f32 %v3868, %v4530
      %v4595 = vadd.f32 %v3869, %v4535
      %v4596 = vadd.f32 %v3870, %v4538
      %v4597 = vadd.f32 %v3871, %v4543
      %v4598 = vadd.f32 %v3872, %v4546
      %v4599 = vadd.f32 %v3873, %v4551
      %v4600 = vadd.f32 %v3874, %v4554
      %v4601 = vadd.f32 %v3875, %v4559
      %v4602 = vadd.f32 %v3876, %v4562
      %v4603 = vadd.f32 %v3877, %v4567
      %v4604 = vadd.f32 %v3878, %v4570
      %v4605 = vld [vmem:[%s3520] sm:$0xe]
      %v4606 = vld [vmem:[%s3520 + $0xc] sm:$0xe]
      %v4607 = vld [vmem:[%s3520 + $0x18] sm:$0xe]
      %v4608 = vld [vmem:[%s3520 + $0x24] sm:$0xe]
      %v4609 = vld [vmem:[%s3520 + $0x30] sm:$0xe]
      %v4610 = vld [vmem:[%s3520 + $0x3c] sm:$0xe]
      %v4611 = vld [vmem:[%s3520 + $0x48] sm:$0xe]
      %v4612 = vld [vmem:[%s3520 + $0x54] sm:$0xe]
      %v4613 = vld [vmem:[%s3520 + $0x60] sm:$0xe]
      %v4614 = vld [vmem:[%s3520 + $0x6c] sm:$0xe]
      %v4615 = vld [vmem:[%s3520 + $0x78] sm:$0xe]
      %v4616 = vld [vmem:[%s3520 + $0x84] sm:$0xe]
      %v4617 = vld [vmem:[%s3520 + $0x90] sm:$0xe]
      %v4618 = vld [vmem:[%s3520 + $0x9c] sm:$0xe]
      %v4619 = vld [vmem:[%s3520 + $0xa8] sm:$0xe]
      %v4620 = vld [vmem:[%s3520 + $0xb4] sm:$0xe]
      %v4669 = vrot.slane %v4605, 5
      %v4670 = vrot.slane %v4669, 4
      %v4671 = vrot.slane %v3880, 5
      %v4672 = vsel %vm1558, %v4670, %v4671
      %v4673 = vrot.slane %v4671, 4
      %v4674 = vrot.slane %v3881, 5
      %v4675 = vsel %vm1558, %v4673, %v4674
      %v4676 = vrot.slane %v4606, 5
      %v4677 = vrot.slane %v4676, 4
      %v4678 = vrot.slane %v3883, 5
      %v4679 = vsel %vm1558, %v4677, %v4678
      %v4680 = vrot.slane %v4678, 4
      %v4681 = vrot.slane %v3884, 5
      %v4682 = vsel %vm1558, %v4680, %v4681
      %v4683 = vrot.slane %v4607, 5
      %v4684 = vrot.slane %v4683, 4
      %v4685 = vrot.slane %v3886, 5
      %v4686 = vsel %vm1558, %v4684, %v4685
      %v4687 = vrot.slane %v4685, 4
      %v4688 = vrot.slane %v3887, 5
      %v4689 = vsel %vm1558, %v4687, %v4688
      %v4690 = vrot.slane %v4608, 5
      %v4691 = vrot.slane %v4690, 4
      %v4692 = vrot.slane %v3889, 5
      %v4693 = vsel %vm1558, %v4691, %v4692
      %v4694 = vrot.slane %v4692, 4
      %v4695 = vrot.slane %v3890, 5
      %v4696 = vsel %vm1558, %v4694, %v4695
      %v4697 = vrot.slane %v4609, 5
      %v4698 = vrot.slane %v4697, 4
      %v4699 = vrot.slane %v3892, 5
      %v4700 = vsel %vm1558, %v4698, %v4699
      %v4701 = vrot.slane %v4699, 4
      %v4702 = vrot.slane %v3893, 5
      %v4703 = vsel %vm1558, %v4701, %v4702
      %v4704 = vrot.slane %v4610, 5
      %v4705 = vrot.slane %v4704, 4
      %v4706 = vrot.slane %v3895, 5
      %v4707 = vsel %vm1558, %v4705, %v4706
      %v4708 = vrot.slane %v4706, 4
      %v4709 = vrot.slane %v3896, 5
      %v4710 = vsel %vm1558, %v4708, %v4709
      %v4711 = vrot.slane %v4611, 5
      %v4712 = vrot.slane %v4711, 4
      %v4713 = vrot.slane %v3898, 5
      %v4714 = vsel %vm1558, %v4712, %v4713
      %v4715 = vrot.slane %v4713, 4
      %v4716 = vrot.slane %v3899, 5
      %v4717 = vsel %vm1558, %v4715, %v4716
      %v4718 = vrot.slane %v4612, 5
      %v4719 = vrot.slane %v4718, 4
      %v4720 = vrot.slane %v3901, 5
      %v4721 = vsel %vm1558, %v4719, %v4720
      %v4722 = vrot.slane %v4720, 4
      %v4723 = vrot.slane %v3902, 5
      %v4724 = vsel %vm1558, %v4722, %v4723
      %v4725 = vrot.slane %v4613, 5
      %v4726 = vrot.slane %v4725, 4
      %v4727 = vrot.slane %v3904, 5
      %v4728 = vsel %vm1558, %v4726, %v4727
      %v4729 = vrot.slane %v4727, 4
      %v4730 = vrot.slane %v3905, 5
      %v4731 = vsel %vm1558, %v4729, %v4730
      %v4732 = vrot.slane %v4614, 5
      %v4733 = vrot.slane %v4732, 4
      %v4734 = vrot.slane %v3907, 5
      %v4735 = vsel %vm1558, %v4733, %v4734
      %v4736 = vrot.slane %v4734, 4
      %v4737 = vrot.slane %v3908, 5
      %v4738 = vsel %vm1558, %v4736, %v4737
      %v4739 = vrot.slane %v4615, 5
      %v4740 = vrot.slane %v4739, 4
      %v4741 = vrot.slane %v3910, 5
      %v4742 = vsel %vm1558, %v4740, %v4741
      %v4743 = vrot.slane %v4741, 4
      %v4744 = vrot.slane %v3911, 5
      %v4745 = vsel %vm1558, %v4743, %v4744
      %v4746 = vrot.slane %v4616, 5
      %v4747 = vrot.slane %v4746, 4
      %v4748 = vrot.slane %v3913, 5
      %v4749 = vsel %vm1558, %v4747, %v4748
      %v4750 = vrot.slane %v4748, 4
      %v4751 = vrot.slane %v3914, 5
      %v4752 = vsel %vm1558, %v4750, %v4751
      %v4753 = vrot.slane %v4617, 5
      %v4754 = vrot.slane %v4753, 4
      %v4755 = vrot.slane %v3916, 5
      %v4756 = vsel %vm1558, %v4754, %v4755
      %v4757 = vrot.slane %v4755, 4
      %v4758 = vrot.slane %v3917, 5
      %v4759 = vsel %vm1558, %v4757, %v4758
      %v4760 = vrot.slane %v4618, 5
      %v4761 = vrot.slane %v4760, 4
      %v4762 = vrot.slane %v3919, 5
      %v4763 = vsel %vm1558, %v4761, %v4762
      %v4764 = vrot.slane %v4762, 4
      %v4765 = vrot.slane %v3920, 5
      %v4766 = vsel %vm1558, %v4764, %v4765
      %v4767 = vrot.slane %v4619, 5
      %v4768 = vrot.slane %v4767, 4
      %v4769 = vrot.slane %v3922, 5
      %v4770 = vsel %vm1558, %v4768, %v4769
      %v4771 = vrot.slane %v4769, 4
      %v4772 = vrot.slane %v3923, 5
      %v4773 = vsel %vm1558, %v4771, %v4772
      %v4774 = vrot.slane %v4620, 5
      %v4775 = vrot.slane %v4774, 4
      %v4776 = vrot.slane %v3925, 5
      %v4777 = vsel %vm1558, %v4775, %v4776
      %v4778 = vrot.slane %v4776, 4
      %v4779 = vrot.slane %v3926, 5
      %v4780 = vsel %vm1558, %v4778, %v4779
      %s4781 = scalar_lea.vmem %s1, 16
      %v4782 = vld [vmem:[%s4781] sm:$0x3]
      %v4783 = vunpack.c.l.b16 %v4672
      %v4784 = vunpack.c.l.b16 %v4675
      %v4785 = vunpack.c.l.b16 %v4679
      %v4786 = vunpack.c.l.b16 %v4682
      %v4787 = vunpack.c.l.b16 %v4686
      %v4788 = vunpack.c.l.b16 %v4689
      %v4789 = vunpack.c.l.b16 %v4693
      %v4790 = vunpack.c.l.b16 %v4696
      %v4791 = vunpack.c.l.b16 %v4700
      %v4792 = vunpack.c.l.b16 %v4703
      %v4793 = vunpack.c.l.b16 %v4707
      %v4794 = vunpack.c.l.b16 %v4710
      %v4795 = vunpack.c.l.b16 %v4714
      %v4796 = vunpack.c.l.b16 %v4717
      %v4797 = vunpack.c.l.b16 %v4721
      %v4798 = vunpack.c.l.b16 %v4724
      %v4799 = vunpack.c.l.b16 %v4728
      %v4800 = vunpack.c.l.b16 %v4731
      %v4801 = vunpack.c.l.b16 %v4735
      %v4802 = vunpack.c.l.b16 %v4738
      %v4803 = vunpack.c.l.b16 %v4742
      %v4804 = vunpack.c.l.b16 %v4745
      %v4805 = vunpack.c.l.b16 %v4749
      %v4806 = vunpack.c.l.b16 %v4752
      %v4807 = vunpack.c.l.b16 %v4756
      %v4808 = vunpack.c.l.b16 %v4759
      %v4809 = vunpack.c.l.b16 %v4763
      %v4810 = vunpack.c.l.b16 %v4766
      %v4811 = vunpack.c.l.b16 %v4770
      %v4812 = vunpack.c.l.b16 %v4773
      %v4813 = vunpack.c.l.b16 %v4777
      %v4814 = vunpack.c.l.b16 %v4780
      %v4815 = vpack.c.b16 %v4784, %v4783
      %v4816 = vpack.c.b16 %v4786, %v4785
      %v4817 = vpack.c.b16 %v4788, %v4787
      %v4818 = vpack.c.b16 %v4790, %v4789
      %v4819 = vpack.c.b16 %v4792, %v4791
      %v4820 = vpack.c.b16 %v4794, %v4793
      %v4821 = vpack.c.b16 %v4796, %v4795
      %v4822 = vpack.c.b16 %v4798, %v4797
      %v4823 = vpack.c.b16 %v4800, %v4799
      %v4824 = vpack.c.b16 %v4802, %v4801
      %v4825 = vpack.c.b16 %v4804, %v4803
      %v4826 = vpack.c.b16 %v4806, %v4805
      %v4827 = vpack.c.b16 %v4808, %v4807
      %v4828 = vpack.c.b16 %v4810, %v4809
      %v4829 = vpack.c.b16 %v4812, %v4811
      %v4830 = vpack.c.b16 %v4814, %v4813
      %v4832 = vsel %vm1002, %v4815, 0
      %v4835 = vsel %vm1002, %v4816, 0
      %v4838 = vsel %vm1002, %v4817, 0
      %v4841 = vsel %vm1002, %v4818, 0
      %v4844 = vsel %vm1002, %v4819, 0
      %v4847 = vsel %vm1002, %v4820, 0
      %v4850 = vsel %vm1002, %v4821, 0
      %v4853 = vsel %vm1002, %v4822, 0
      %v4856 = vsel %vm1002, %v4823, 0
      %v4859 = vsel %vm1002, %v4824, 0
      %v4862 = vsel %vm1002, %v4825, 0
      %v4865 = vsel %vm1002, %v4826, 0
      %v4868 = vsel %vm1002, %v4827, 0
      %v4871 = vsel %vm1002, %v4828, 0
      %v4874 = vsel %vm1002, %v4829, 0
      %v4877 = vsel %vm1002, %v4830, 0
      %v4880 = vsel %vm1051, %v4782, 0
      %4882 = vmatprep.subr.bf16.mxu0 0
      %4883 = vmatpush1.bf16.msra.mxu0 %v4880
      %4884 = vmatprep.subr.bf16.mxu0 0
      %4885 = vmatpush1.bf16.msra.mxu0 0
      %4886 = vmatprep.subr.bf16.mxu0 0
      %4887 = vmatpush1.bf16.msra.mxu0 0
      %4888 = vmatprep.subr.bf16.mxu0 0
      %4889 = vmatpush1.bf16.msra.mxu0 0
      %4890 = vmatprep.subr.bf16.mxu0 0
      %4891 = vmatpush1.bf16.msra.mxu0 0
      %4892 = vmatprep.subr.bf16.mxu0 0
      %4893 = vmatpush1.bf16.msra.mxu0 0
      %4894 = vmatprep.subr.bf16.mxu0 0
      %4895 = vmatpush1.bf16.msra.mxu0 0
      %4896 = vmatprep.subr.bf16.mxu0 0
      %4897 = vmatpush1.bf16.msra.mxu0 0
      %4898 = vmatprep.subr.bf16.mxu0 0
      %4899 = vmatpush1.bf16.msra.mxu0 0
      %4900 = vmatprep.subr.bf16.mxu0 0
      %4901 = vmatpush1.bf16.msra.mxu0 0
      %4902 = vmatprep.subr.bf16.mxu0 0
      %4903 = vmatpush1.bf16.msra.mxu0 0
      %4904 = vmatprep.subr.bf16.mxu0 0
      %4905 = vmatpush1.bf16.msra.mxu0 0
      %4906 = vmatprep.subr.bf16.mxu0 0
      %4907 = vmatpush1.bf16.msra.mxu0 0
      %4908 = vmatprep.subr.bf16.mxu0 0
      %4909 = vmatpush1.bf16.msra.mxu0 0
      %4910 = vmatprep.subr.bf16.mxu0 0
      %4911 = vmatpush1.bf16.msra.mxu0 0
      %4912 = vmatprep.subr.bf16.mxu0 0
      %4913 = vmatpush1.bf16.msra.mxu0 0
      %4914 = vmatprep.mubr.bf16.mxu0 0
      %4915 = vmatmul.mubr.bf16.gmra.mrb[0].mxu0 %v4832
      %v4916 = vpop.f32.mrb[0].mxu0
      %v4917 = vadd.f32 0.0, %v4916
      %v4918 = vpop.f32.mrb[0].mxu0
      %v4919 = vpop.f32.mrb[0].mxu0
      %v4920 = vadd.f32 0.0, %v4919
      %v4921 = vpop.f32.mrb[0].mxu0
      %4922 = vmatprep.mubr.bf16.mxu0 0
      %4923 = vmatmul.mubr.bf16.gmra.mrb[0].mxu0 %v4835
      %v4924 = vpop.f32.mrb[0].mxu0
      %v4925 = vadd.f32 0.0, %v4924
      %v4926 = vpop.f32.mrb[0].mxu0
      %v4927 = vpop.f32.mrb[0].mxu0
      %v4928 = vadd.f32 0.0, %v4927
      %v4929 = vpop.f32.mrb[0].mxu0
      %4930 = vmatprep.mubr.bf16.mxu0 0
      %4931 = vmatmul.mubr.bf16.gmra.mrb[0].mxu0 %v4838
      %v4932 = vpop.f32.mrb[0].mxu0
      %v4933 = vadd.f32 0.0, %v4932
      %v4934 = vpop.f32.mrb[0].mxu0
      %v4935 = vpop.f32.mrb[0].mxu0
      %v4936 = vadd.f32 0.0, %v4935
      %v4937 = vpop.f32.mrb[0].mxu0
      %4938 = vmatprep.mubr.bf16.mxu0 0
      %4939 = vmatmul.mubr.bf16.gmra.mrb[0].mxu0 %v4841
      %v4940 = vpop.f32.mrb[0].mxu0
      %v4941 = vadd.f32 0.0, %v4940
      %v4942 = vpop.f32.mrb[0].mxu0
      %v4943 = vpop.f32.mrb[0].mxu0
      %v4944 = vadd.f32 0.0, %v4943
      %v4945 = vpop.f32.mrb[0].mxu0
      %4946 = vmatprep.mubr.bf16.mxu0 0
      %4947 = vmatmul.mubr.bf16.gmra.mrb[0].mxu0 %v4844
      %v4948 = vpop.f32.mrb[0].mxu0
      %v4949 = vadd.f32 0.0, %v4948
      %v4950 = vpop.f32.mrb[0].mxu0
      %v4951 = vpop.f32.mrb[0].mxu0
      %v4952 = vadd.f32 0.0, %v4951
      %v4953 = vpop.f32.mrb[0].mxu0
      %4954 = vmatprep.mubr.bf16.mxu0 0
      %4955 = vmatmul.mubr.bf16.gmra.mrb[0].mxu0 %v4847
      %v4956 = vpop.f32.mrb[0].mxu0
      %v4957 = vadd.f32 0.0, %v4956
      %v4958 = vpop.f32.mrb[0].mxu0
      %v4959 = vpop.f32.mrb[0].mxu0
      %v4960 = vadd.f32 0.0, %v4959
      %v4961 = vpop.f32.mrb[0].mxu0
      %4962 = vmatprep.mubr.bf16.mxu0 0
      %4963 = vmatmul.mubr.bf16.gmra.mrb[0].mxu0 %v4850
      %v4964 = vpop.f32.mrb[0].mxu0
      %v4965 = vadd.f32 0.0, %v4964
      %v4966 = vpop.f32.mrb[0].mxu0
      %v4967 = vpop.f32.mrb[0].mxu0
      %v4968 = vadd.f32 0.0, %v4967
      %v4969 = vpop.f32.mrb[0].mxu0
      %4970 = vmatprep.mubr.bf16.mxu0 0
      %4971 = vmatmul.mubr.bf16.gmra.mrb[0].mxu0 %v4853
      %v4972 = vpop.f32.mrb[0].mxu0
      %v4973 = vadd.f32 0.0, %v4972
      %v4974 = vpop.f32.mrb[0].mxu0
      %v4975 = vpop.f32.mrb[0].mxu0
      %v4976 = vadd.f32 0.0, %v4975
      %v4977 = vpop.f32.mrb[0].mxu0
      %4978 = vmatprep.mubr.bf16.mxu0 0
      %4979 = vmatmul.mubr.bf16.gmra.mrb[0].mxu0 %v4856
      %v4980 = vpop.f32.mrb[0].mxu0
      %v4981 = vadd.f32 0.0, %v4980
      %v4982 = vpop.f32.mrb[0].mxu0
      %v4983 = vpop.f32.mrb[0].mxu0
      %v4984 = vadd.f32 0.0, %v4983
      %v4985 = vpop.f32.mrb[0].mxu0
      %4986 = vmatprep.mubr.bf16.mxu0 0
      %4987 = vmatmul.mubr.bf16.gmra.mrb[0].mxu0 %v4859
      %v4988 = vpop.f32.mrb[0].mxu0
      %v4989 = vadd.f32 0.0, %v4988
      %v4990 = vpop.f32.mrb[0].mxu0
      %v4991 = vpop.f32.mrb[0].mxu0
      %v4992 = vadd.f32 0.0, %v4991
      %v4993 = vpop.f32.mrb[0].mxu0
      %4994 = vmatprep.mubr.bf16.mxu0 0
      %4995 = vmatmul.mubr.bf16.gmra.mrb[0].mxu0 %v4862
      %v4996 = vpop.f32.mrb[0].mxu0
      %v4997 = vadd.f32 0.0, %v4996
      %v4998 = vpop.f32.mrb[0].mxu0
      %v4999 = vpop.f32.mrb[0].mxu0
      %v5000 = vadd.f32 0.0, %v4999
      %v5001 = vpop.f32.mrb[0].mxu0
      %5002 = vmatprep.mubr.bf16.mxu0 0
      %5003 = vmatmul.mubr.bf16.gmra.mrb[0].mxu0 %v4865
      %v5004 = vpop.f32.mrb[0].mxu0
      %v5005 = vadd.f32 0.0, %v5004
      %v5006 = vpop.f32.mrb[0].mxu0
      %v5007 = vpop.f32.mrb[0].mxu0
      %v5008 = vadd.f32 0.0, %v5007
      %v5009 = vpop.f32.mrb[0].mxu0
      %5010 = vmatprep.mubr.bf16.mxu0 0
      %5011 = vmatmul.mubr.bf16.gmra.mrb[0].mxu0 %v4868
      %v5012 = vpop.f32.mrb[0].mxu0
      %v5013 = vadd.f32 0.0, %v5012
      %v5014 = vpop.f32.mrb[0].mxu0
      %v5015 = vpop.f32.mrb[0].mxu0
      %v5016 = vadd.f32 0.0, %v5015
      %v5017 = vpop.f32.mrb[0].mxu0
      %5018 = vmatprep.mubr.bf16.mxu0 0
      %5019 = vmatmul.mubr.bf16.gmra.mrb[0].mxu0 %v4871
      %v5020 = vpop.f32.mrb[0].mxu0
      %v5021 = vadd.f32 0.0, %v5020
      %v5022 = vpop.f32.mrb[0].mxu0
      %v5023 = vpop.f32.mrb[0].mxu0
      %v5024 = vadd.f32 0.0, %v5023
      %v5025 = vpop.f32.mrb[0].mxu0
      %5026 = vmatprep.mubr.bf16.mxu0 0
      %5027 = vmatmul.mubr.bf16.gmra.mrb[0].mxu0 %v4874
      %v5028 = vpop.f32.mrb[0].mxu0
      %v5029 = vadd.f32 0.0, %v5028
      %v5030 = vpop.f32.mrb[0].mxu0
      %v5031 = vpop.f32.mrb[0].mxu0
      %v5032 = vadd.f32 0.0, %v5031
      %v5033 = vpop.f32.mrb[0].mxu0
      %5034 = vmatprep.mubr.bf16.mxu0 0
      %5035 = vmatmul.mubr.bf16.gmra.mrb[0].mxu0 %v4877
      %v5036 = vpop.f32.mrb[0].mxu0
      %v5037 = vadd.f32 0.0, %v5036
      %v5038 = vpop.f32.mrb[0].mxu0
      %v5039 = vpop.f32.mrb[0].mxu0
      %v5040 = vadd.f32 0.0, %v5039
      %v5041 = vpop.f32.mrb[0].mxu0
      %5042 = vdwg.mxu0
      %v5043 = vadd.f32 %v4573, %v4917
      %v5044 = vadd.f32 %v4574, %v4920
      %v5045 = vadd.f32 %v4575, %v4925
      %v5046 = vadd.f32 %v4576, %v4928
      %v5047 = vadd.f32 %v4577, %v4933
      %v5048 = vadd.f32 %v4578, %v4936
      %v5049 = vadd.f32 %v4579, %v4941
      %v5050 = vadd.f32 %v4580, %v4944
      %v5051 = vadd.f32 %v4581, %v4949
      %v5052 = vadd.f32 %v4582, %v4952
      %v5053 = vadd.f32 %v4583, %v4957
      %v5054 = vadd.f32 %v4584, %v4960
      %v5055 = vadd.f32 %v4585, %v4965
      %v5056 = vadd.f32 %v4586, %v4968
      %v5057 = vadd.f32 %v4587, %v4973
      %v5058 = vadd.f32 %v4588, %v4976
      %v5059 = vadd.f32 %v4589, %v4981
      %v5060 = vadd.f32 %v4590, %v4984
      %v5061 = vadd.f32 %v4591, %v4989
      %v5062 = vadd.f32 %v4592, %v4992
      %v5063 = vadd.f32 %v4593, %v4997
      %v5064 = vadd.f32 %v4594, %v5000
      %v5065 = vadd.f32 %v4595, %v5005
      %v5066 = vadd.f32 %v4596, %v5008
      %v5067 = vadd.f32 %v4597, %v5013
      %v5068 = vadd.f32 %v4598, %v5016
      %v5069 = vadd.f32 %v4599, %v5021
      %v5070 = vadd.f32 %v4600, %v5024
      %v5071 = vadd.f32 %v4601, %v5029
      %v5072 = vadd.f32 %v4602, %v5032
      %v5073 = vadd.f32 %v4603, %v5037
      %v5074 = vadd.f32 %v4604, %v5040
      %v5075 = vsel %vm1002, %v5043, 0.0
      %v5076 = vsel %vm1002, %v5044, 0.0
      %v5077 = vadd.f32 %v5075, %v5076
      %v5078 = vsel %vm1002, %v5045, 0.0
      %v5079 = vadd.f32 %v5077, %v5078
      %v5080 = vsel %vm1002, %v5046, 0.0
      %v5081 = vadd.f32 %v5079, %v5080
      %v5082 = vsel %vm1002, %v5047, 0.0
      %v5083 = vadd.f32 %v5081, %v5082
      %v5084 = vsel %vm1002, %v5048, 0.0
      %v5085 = vadd.f32 %v5083, %v5084
      %v5086 = vsel %vm1002, %v5049, 0.0
      %v5087 = vadd.f32 %v5085, %v5086
      %v5088 = vsel %vm1002, %v5050, 0.0
      %v5089 = vadd.f32 %v5087, %v5088
      %v5090 = vsel %vm1002, %v5051, 0.0
      %v5091 = vadd.f32 %v5089, %v5090
      %v5092 = vsel %vm1002, %v5052, 0.0
      %v5093 = vadd.f32 %v5091, %v5092
      %v5094 = vsel %vm1002, %v5053, 0.0
      %v5095 = vadd.f32 %v5093, %v5094
      %v5096 = vsel %vm1002, %v5054, 0.0
      %v5097 = vadd.f32 %v5095, %v5096
      %v5098 = vsel %vm1002, %v5055, 0.0
      %v5099 = vadd.f32 %v5097, %v5098
      %v5100 = vsel %vm1002, %v5056, 0.0
      %v5101 = vadd.f32 %v5099, %v5100
      %v5102 = vsel %vm1002, %v5057, 0.0
      %v5103 = vadd.f32 %v5101, %v5102
      %v5104 = vsel %vm1002, %v5058, 0.0
      %v5105 = vadd.f32 %v5103, %v5104
      %v5106 = vsel %vm1002, %v5059, 0.0
      %v5107 = vadd.f32 %v5105, %v5106
      %v5108 = vsel %vm1002, %v5060, 0.0
      %v5109 = vadd.f32 %v5107, %v5108
      %v5110 = vsel %vm1002, %v5061, 0.0
      %v5111 = vadd.f32 %v5109, %v5110
      %v5112 = vsel %vm1002, %v5062, 0.0
      %v5113 = vadd.f32 %v5111, %v5112
      %v5114 = vsel %vm1002, %v5063, 0.0
      %v5115 = vadd.f32 %v5113, %v5114
      %v5116 = vsel %vm1002, %v5064, 0.0
      %v5117 = vadd.f32 %v5115, %v5116
      %v5118 = vsel %vm1002, %v5065, 0.0
      %v5119 = vadd.f32 %v5117, %v5118
      %v5120 = vsel %vm1002, %v5066, 0.0
      %v5121 = vadd.f32 %v5119, %v5120
      %v5122 = vsel %vm1002, %v5067, 0.0
      %v5123 = vadd.f32 %v5121, %v5122
      %v5124 = vsel %vm1002, %v5068, 0.0
      %v5125 = vadd.f32 %v5123, %v5124
      %v5126 = vsel %vm1002, %v5069, 0.0
      %v5127 = vadd.f32 %v5125, %v5126
      %v5128 = vsel %vm1002, %v5070, 0.0
      %v5129 = vadd.f32 %v5127, %v5128
      %v5130 = vsel %vm1002, %v5071, 0.0
      %v5131 = vadd.f32 %v5129, %v5130
      %v5132 = vsel %vm1002, %v5072, 0.0
      %v5133 = vadd.f32 %v5131, %v5132
      %v5134 = vsel %vm1002, %v5073, 0.0
      %v5135 = vadd.f32 %v5133, %v5134
      %v5136 = vsel %vm1002, %v5074, 0.0
      %v5137 = vadd.f32 %v5135, %v5136
      %v5138 = vrot.slane %v5137, 4
      %v5139 = vadd.f32 %v5137, %v5138
      %v5140 = vrot.slane %v5139, 2
      %v5141 = vadd.f32 %v5139, %v5140
      %v5142 = vrot.slane %v5141, 1
      %v5143 = vadd.f32 %v5141, %v5142
      %v5144 = vmul.f32 %v5043, %v5043
      %v5145 = vmul.f32 %v5044, %v5044
      %v5146 = vmul.f32 %v5045, %v5045
      %v5147 = vmul.f32 %v5046, %v5046
      %v5148 = vmul.f32 %v5047, %v5047
      %v5149 = vmul.f32 %v5048, %v5048
      %v5150 = vmul.f32 %v5049, %v5049
      %v5151 = vmul.f32 %v5050, %v5050
      %v5152 = vmul.f32 %v5051, %v5051
      %v5153 = vmul.f32 %v5052, %v5052
      %v5154 = vmul.f32 %v5053, %v5053
      %v5155 = vmul.f32 %v5054, %v5054
      %v5156 = vmul.f32 %v5055, %v5055
      %v5157 = vmul.f32 %v5056, %v5056
      %v5158 = vmul.f32 %v5057, %v5057
      %v5159 = vmul.f32 %v5058, %v5058
      %v5160 = vmul.f32 %v5059, %v5059
      %v5161 = vmul.f32 %v5060, %v5060
      %v5162 = vmul.f32 %v5061, %v5061
      %v5163 = vmul.f32 %v5062, %v5062
      %v5164 = vmul.f32 %v5063, %v5063
      %v5165 = vmul.f32 %v5064, %v5064
      %v5166 = vmul.f32 %v5065, %v5065
      %v5167 = vmul.f32 %v5066, %v5066
      %v5168 = vmul.f32 %v5067, %v5067
      %v5169 = vmul.f32 %v5068, %v5068
      %v5170 = vmul.f32 %v5069, %v5069
      %v5171 = vmul.f32 %v5070, %v5070
      %v5172 = vmul.f32 %v5071, %v5071
      %v5173 = vmul.f32 %v5072, %v5072
      %v5174 = vmul.f32 %v5073, %v5073
      %v5175 = vmul.f32 %v5074, %v5074
      %v5176 = vsel %vm1002, %v5144, 0.0
      %v5177 = vsel %vm1002, %v5145, 0.0
      %v5178 = vadd.f32 %v5176, %v5177
      %v5179 = vsel %vm1002, %v5146, 0.0
      %v5180 = vadd.f32 %v5178, %v5179
      %v5181 = vsel %vm1002, %v5147, 0.0
      %v5182 = vadd.f32 %v5180, %v5181
      %v5183 = vsel %vm1002, %v5148, 0.0
      %v5184 = vadd.f32 %v5182, %v5183
      %v5185 = vsel %vm1002, %v5149, 0.0
      %v5186 = vadd.f32 %v5184, %v5185
      %v5187 = vsel %vm1002, %v5150, 0.0
      %v5188 = vadd.f32 %v5186, %v5187
      %v5189 = vsel %vm1002, %v5151, 0.0
      %v5190 = vadd.f32 %v5188, %v5189
      %v5191 = vsel %vm1002, %v5152, 0.0
      %v5192 = vadd.f32 %v5190, %v5191
      %v5193 = vsel %vm1002, %v5153, 0.0
      %v5194 = vadd.f32 %v5192, %v5193
      %v5195 = vsel %vm1002, %v5154, 0.0
      %v5196 = vadd.f32 %v5194, %v5195
      %v5197 = vsel %vm1002, %v5155, 0.0
      %v5198 = vadd.f32 %v5196, %v5197
      %v5199 = vsel %vm1002, %v5156, 0.0
      %v5200 = vadd.f32 %v5198, %v5199
      %v5201 = vsel %vm1002, %v5157, 0.0
      %v5202 = vadd.f32 %v5200, %v5201
      %v5203 = vsel %vm1002, %v5158, 0.0
      %v5204 = vadd.f32 %v5202, %v5203
      %v5205 = vsel %vm1002, %v5159, 0.0
      %v5206 = vadd.f32 %v5204, %v5205
      %v5207 = vsel %vm1002, %v5160, 0.0
      %v5208 = vadd.f32 %v5206, %v5207
      %v5209 = vsel %vm1002, %v5161, 0.0
      %v5210 = vadd.f32 %v5208, %v5209
      %v5211 = vsel %vm1002, %v5162, 0.0
      %v5212 = vadd.f32 %v5210, %v5211
      %v5213 = vsel %vm1002, %v5163, 0.0
      %v5214 = vadd.f32 %v5212, %v5213
      %v5215 = vsel %vm1002, %v5164, 0.0
      %v5216 = vadd.f32 %v5214, %v5215
      %v5217 = vsel %vm1002, %v5165, 0.0
      %v5218 = vadd.f32 %v5216, %v5217
      %v5219 = vsel %vm1002, %v5166, 0.0
      %v5220 = vadd.f32 %v5218, %v5219
      %v5221 = vsel %vm1002, %v5167, 0.0
      %v5222 = vadd.f32 %v5220, %v5221
      %v5223 = vsel %vm1002, %v5168, 0.0
      %v5224 = vadd.f32 %v5222, %v5223
      %v5225 = vsel %vm1002, %v5169, 0.0
      %v5226 = vadd.f32 %v5224, %v5225
      %v5227 = vsel %vm1002, %v5170, 0.0
      %v5228 = vadd.f32 %v5226, %v5227
      %v5229 = vsel %vm1002, %v5171, 0.0
      %v5230 = vadd.f32 %v5228, %v5229
      %v5231 = vsel %vm1002, %v5172, 0.0
      %v5232 = vadd.f32 %v5230, %v5231
      %v5233 = vsel %vm1002, %v5173, 0.0
      %v5234 = vadd.f32 %v5232, %v5233
      %v5235 = vsel %vm1002, %v5174, 0.0
      %v5236 = vadd.f32 %v5234, %v5235
      %v5237 = vsel %vm1002, %v5175, 0.0
      %v5238 = vadd.f32 %v5236, %v5237
      %v5239 = vrot.slane %v5238, 4
      %v5240 = vadd.f32 %v5238, %v5239
      %v5241 = vrot.slane %v5240, 2
      %v5242 = vadd.f32 %v5240, %v5241
      %v5243 = vrot.slane %v5242, 1
      %v5244 = vadd.f32 %v5242, %v5243
      %v5245 = vmul.f32 %v5143, 0.00390625
      %v5246 = vmul.f32 %v5244, 0.00390625
      %v5247 = vmul.f32 %v5245, %v5245
      %v5248 = vsub.f32 %v5246, %v5247
      %v5249 = vmax.f32 %v5248, 0.0
      %v5250 = vadd.f32 %v5249, 1e-05
      %v5251 = vrsqrt.pop %v5250
      %v5252 = vsub.f32 %v5043, %v5245
      %v5253 = vsub.f32 %v5044, %v5245
      %v5254 = vsub.f32 %v5045, %v5245
      %v5255 = vsub.f32 %v5046, %v5245
      %v5256 = vsub.f32 %v5047, %v5245
      %v5257 = vsub.f32 %v5048, %v5245
      %v5258 = vsub.f32 %v5049, %v5245
      %v5259 = vsub.f32 %v5050, %v5245
      %v5260 = vsub.f32 %v5051, %v5245
      %v5261 = vsub.f32 %v5052, %v5245
      %v5262 = vsub.f32 %v5053, %v5245
      %v5263 = vsub.f32 %v5054, %v5245
      %v5264 = vsub.f32 %v5055, %v5245
      %v5265 = vsub.f32 %v5056, %v5245
      %v5266 = vsub.f32 %v5057, %v5245
      %v5267 = vsub.f32 %v5058, %v5245
      %v5268 = vsub.f32 %v5059, %v5245
      %v5269 = vsub.f32 %v5060, %v5245
      %v5270 = vsub.f32 %v5061, %v5245
      %v5271 = vsub.f32 %v5062, %v5245
      %v5272 = vsub.f32 %v5063, %v5245
      %v5273 = vsub.f32 %v5064, %v5245
      %v5274 = vsub.f32 %v5065, %v5245
      %v5275 = vsub.f32 %v5066, %v5245
      %v5276 = vsub.f32 %v5067, %v5245
      %v5277 = vsub.f32 %v5068, %v5245
      %v5278 = vsub.f32 %v5069, %v5245
      %v5279 = vsub.f32 %v5070, %v5245
      %v5280 = vsub.f32 %v5071, %v5245
      %v5281 = vsub.f32 %v5072, %v5245
      %v5282 = vsub.f32 %v5073, %v5245
      %v5283 = vsub.f32 %v5074, %v5245
      %v5284 = vmul.f32 %v5252, %v5251
      %v5285 = vmul.f32 %v5253, %v5251
      %v5286 = vmul.f32 %v5254, %v5251
      %v5287 = vmul.f32 %v5255, %v5251
      %v5288 = vmul.f32 %v5256, %v5251
      %v5289 = vmul.f32 %v5257, %v5251
      %v5290 = vmul.f32 %v5258, %v5251
      %v5291 = vmul.f32 %v5259, %v5251
      %v5292 = vmul.f32 %v5260, %v5251
      %v5293 = vmul.f32 %v5261, %v5251
      %v5294 = vmul.f32 %v5262, %v5251
      %v5295 = vmul.f32 %v5263, %v5251
      %v5296 = vmul.f32 %v5264, %v5251
      %v5297 = vmul.f32 %v5265, %v5251
      %v5298 = vmul.f32 %v5266, %v5251
      %v5299 = vmul.f32 %v5267, %v5251
      %v5300 = vmul.f32 %v5268, %v5251
      %v5301 = vmul.f32 %v5269, %v5251
      %v5302 = vmul.f32 %v5270, %v5251
      %v5303 = vmul.f32 %v5271, %v5251
      %v5304 = vmul.f32 %v5272, %v5251
      %v5305 = vmul.f32 %v5273, %v5251
      %v5306 = vmul.f32 %v5274, %v5251
      %v5307 = vmul.f32 %v5275, %v5251
      %v5308 = vmul.f32 %v5276, %v5251
      %v5309 = vmul.f32 %v5277, %v5251
      %v5310 = vmul.f32 %v5278, %v5251
      %v5311 = vmul.f32 %v5279, %v5251
      %v5312 = vmul.f32 %v5280, %v5251
      %v5313 = vmul.f32 %v5281, %v5251
      %v5314 = vmul.f32 %v5282, %v5251
      %v5315 = vmul.f32 %v5283, %v5251
      %v5316 = vmax.f32 %v5284, 0.0
      %v5317 = vmax.f32 %v5285, 0.0
      %v5318 = vmax.f32 %v5286, 0.0
      %v5319 = vmax.f32 %v5287, 0.0
      %v5320 = vmax.f32 %v5288, 0.0
      %v5321 = vmax.f32 %v5289, 0.0
      %v5322 = vmax.f32 %v5290, 0.0
      %v5323 = vmax.f32 %v5291, 0.0
      %v5324 = vmax.f32 %v5292, 0.0
      %v5325 = vmax.f32 %v5293, 0.0
      %v5326 = vmax.f32 %v5294, 0.0
      %v5327 = vmax.f32 %v5295, 0.0
      %v5328 = vmax.f32 %v5296, 0.0
      %v5329 = vmax.f32 %v5297, 0.0
      %v5330 = vmax.f32 %v5298, 0.0
      %v5331 = vmax.f32 %v5299, 0.0
      %v5332 = vmax.f32 %v5300, 0.0
      %v5333 = vmax.f32 %v5301, 0.0
      %v5334 = vmax.f32 %v5302, 0.0
      %v5335 = vmax.f32 %v5303, 0.0
      %v5336 = vmax.f32 %v5304, 0.0
      %v5337 = vmax.f32 %v5305, 0.0
      %v5338 = vmax.f32 %v5306, 0.0
      %v5339 = vmax.f32 %v5307, 0.0
      %v5340 = vmax.f32 %v5308, 0.0
      %v5341 = vmax.f32 %v5309, 0.0
      %v5342 = vmax.f32 %v5310, 0.0
      %v5343 = vmax.f32 %v5311, 0.0
      %v5344 = vmax.f32 %v5312, 0.0
      %v5345 = vmax.f32 %v5313, 0.0
      %v5346 = vmax.f32 %v5314, 0.0
      %v5347 = vmax.f32 %v5315, 0.0
      %vm5381 = vcmask 1040384
      %v5382 = vrot.slane 0.0, 7
      %v5383 = vsel %vm5381, %v5382, %v5382
      %v5384 = vrot.slane %v5316, 7
      %v5385 = vrot.slane %v5317, 7
      %v5386 = vsel %vm5381, %v5384, %v5385
      %v5387 = vrot.slane %v5318, 7
      %v5388 = vrot.slane %v5319, 7
      %v5389 = vsel %vm5381, %v5387, %v5388
      %v5390 = vrot.slane %v5320, 7
      %v5391 = vrot.slane %v5321, 7
      %v5392 = vsel %vm5381, %v5390, %v5391
      %v5393 = vrot.slane %v5322, 7
      %v5394 = vrot.slane %v5323, 7
      %v5395 = vsel %vm5381, %v5393, %v5394
      %v5396 = vrot.slane %v5324, 7
      %v5397 = vrot.slane %v5325, 7
      %v5398 = vsel %vm5381, %v5396, %v5397
      %v5399 = vrot.slane %v5326, 7
      %v5400 = vrot.slane %v5327, 7
      %v5401 = vsel %vm5381, %v5399, %v5400
      %v5402 = vrot.slane %v5328, 7
      %v5403 = vrot.slane %v5329, 7
      %v5404 = vsel %vm5381, %v5402, %v5403
      %v5405 = vrot.slane %v5330, 7
      %v5406 = vrot.slane %v5331, 7
      %v5407 = vsel %vm5381, %v5405, %v5406
      %v5408 = vrot.slane %v5332, 7
      %v5409 = vrot.slane %v5333, 7
      %v5410 = vsel %vm5381, %v5408, %v5409
      %v5411 = vrot.slane %v5334, 7
      %v5412 = vrot.slane %v5335, 7
      %v5413 = vsel %vm5381, %v5411, %v5412
      %v5414 = vrot.slane %v5336, 7
      %v5415 = vrot.slane %v5337, 7
      %v5416 = vsel %vm5381, %v5414, %v5415
      %v5417 = vrot.slane %v5338, 7
      %v5418 = vrot.slane %v5339, 7
      %v5419 = vsel %vm5381, %v5417, %v5418
      %v5420 = vrot.slane %v5340, 7
      %v5421 = vrot.slane %v5341, 7
      %v5422 = vsel %vm5381, %v5420, %v5421
      %v5423 = vrot.slane %v5342, 7
      %v5424 = vrot.slane %v5343, 7
      %v5425 = vsel %vm5381, %v5423, %v5424
      %v5426 = vrot.slane %v5344, 7
      %v5427 = vrot.slane %v5345, 7
      %v5428 = vsel %vm5381, %v5426, %v5427
      %v5429 = vrot.slane %v5346, 7
      %v5430 = vrot.slane %v5347, 7
      %v5431 = vsel %vm5381, %v5429, %v5430
      %v5482 = vsel %vm5381, 0.0, %v5382
      %v5483 = vsel %vm5381, 0.0, %v5384
      %v5484 = vsel %vm5381, 0.0, %v5387
      %v5485 = vsel %vm5381, 0.0, %v5390
      %v5486 = vsel %vm5381, 0.0, %v5393
      %v5487 = vsel %vm5381, 0.0, %v5396
      %v5488 = vsel %vm5381, 0.0, %v5399
      %v5489 = vsel %vm5381, 0.0, %v5402
      %v5490 = vsel %vm5381, 0.0, %v5405
      %v5491 = vsel %vm5381, 0.0, %v5408
      %v5492 = vsel %vm5381, 0.0, %v5411
      %v5493 = vsel %vm5381, 0.0, %v5414
      %v5494 = vsel %vm5381, 0.0, %v5417
      %v5495 = vsel %vm5381, 0.0, %v5420
      %v5496 = vsel %vm5381, 0.0, %v5423
      %v5497 = vsel %vm5381, 0.0, %v5426
      %v5498 = vsel %vm5381, 0.0, %v5429
      %v5499 = vsel %vm5381, %v5382, 0.0
      %v5500 = vsel %vm5381, %v5385, 0.0
      %v5501 = vsel %vm5381, %v5388, 0.0
      %v5502 = vsel %vm5381, %v5391, 0.0
      %v5503 = vsel %vm5381, %v5394, 0.0
      %v5504 = vsel %vm5381, %v5397, 0.0
      %v5505 = vsel %vm5381, %v5400, 0.0
      %v5506 = vsel %vm5381, %v5403, 0.0
      %v5507 = vsel %vm5381, %v5406, 0.0
      %v5508 = vsel %vm5381, %v5409, 0.0
      %v5509 = vsel %vm5381, %v5412, 0.0
      %v5510 = vsel %vm5381, %v5415, 0.0
      %v5511 = vsel %vm5381, %v5418, 0.0
      %v5512 = vsel %vm5381, %v5421, 0.0
      %v5513 = vsel %vm5381, %v5424, 0.0
      %v5514 = vsel %vm5381, %v5427, 0.0
      %v5515 = vsel %vm5381, %v5430, 0.0
      %v5516 = vpack.c.bf16 %v5383, %v5482
      %v5517 = vpack.c.bf16 %v5499, %v5499
      %v5518 = vpack.c.bf16 %v5386, %v5483
      %v5519 = vpack.c.bf16 %v5500, %v5500
      %v5520 = vpack.c.bf16 %v5389, %v5484
      %v5521 = vpack.c.bf16 %v5501, %v5501
      %v5522 = vpack.c.bf16 %v5392, %v5485
      %v5523 = vpack.c.bf16 %v5502, %v5502
      %v5524 = vpack.c.bf16 %v5395, %v5486
      %v5525 = vpack.c.bf16 %v5503, %v5503
      %v5526 = vpack.c.bf16 %v5398, %v5487
      %v5527 = vpack.c.bf16 %v5504, %v5504
      %v5528 = vpack.c.bf16 %v5401, %v5488
      %v5529 = vpack.c.bf16 %v5505, %v5505
      %v5530 = vpack.c.bf16 %v5404, %v5489
      %v5531 = vpack.c.bf16 %v5506, %v5506
      %v5532 = vpack.c.bf16 %v5407, %v5490
      %v5533 = vpack.c.bf16 %v5507, %v5507
      %v5534 = vpack.c.bf16 %v5410, %v5491
      %v5535 = vpack.c.bf16 %v5508, %v5508
      %v5536 = vpack.c.bf16 %v5413, %v5492
      %v5537 = vpack.c.bf16 %v5509, %v5509
      %v5538 = vpack.c.bf16 %v5416, %v5493
      %v5539 = vpack.c.bf16 %v5510, %v5510
      %v5540 = vpack.c.bf16 %v5419, %v5494
      %v5541 = vpack.c.bf16 %v5511, %v5511
      %v5542 = vpack.c.bf16 %v5422, %v5495
      %v5543 = vpack.c.bf16 %v5512, %v5512
      %v5544 = vpack.c.bf16 %v5425, %v5496
      %v5545 = vpack.c.bf16 %v5513, %v5513
      %v5546 = vpack.c.bf16 %v5428, %v5497
      %v5547 = vpack.c.bf16 %v5514, %v5514
      %v5548 = vpack.c.bf16 %v5431, %v5498
      %v5549 = vpack.c.bf16 %v5515, %v5515
      %v5584 = vunpack.c.l.b16 %v5516
      %v5585 = vunpack.c.h.b16 %v5516
      %v5586 = vunpack.c.l.b16 %v5517
      %v5587 = vunpack.c.l.b16 %v5518
      %v5588 = vunpack.c.h.b16 %v5518
      %v5589 = vunpack.c.l.b16 %v5519
      %v5590 = vunpack.c.l.b16 %v5520
      %v5591 = vunpack.c.h.b16 %v5520
      %v5592 = vunpack.c.l.b16 %v5521
      %v5593 = vunpack.c.l.b16 %v5522
      %v5594 = vunpack.c.h.b16 %v5522
      %v5595 = vunpack.c.l.b16 %v5523
      %v5596 = vunpack.c.l.b16 %v5524
      %v5597 = vunpack.c.h.b16 %v5524
      %v5598 = vunpack.c.l.b16 %v5525
      %v5599 = vunpack.c.l.b16 %v5526
      %v5600 = vunpack.c.h.b16 %v5526
      %v5601 = vunpack.c.l.b16 %v5527
      %v5602 = vunpack.c.l.b16 %v5528
      %v5603 = vunpack.c.h.b16 %v5528
      %v5604 = vunpack.c.l.b16 %v5529
      %v5605 = vunpack.c.l.b16 %v5530
      %v5606 = vunpack.c.h.b16 %v5530
      %v5607 = vunpack.c.l.b16 %v5531
      %v5608 = vunpack.c.l.b16 %v5532
      %v5609 = vunpack.c.h.b16 %v5532
      %v5610 = vunpack.c.l.b16 %v5533
      %v5611 = vunpack.c.l.b16 %v5534
      %v5612 = vunpack.c.h.b16 %v5534
      %v5613 = vunpack.c.l.b16 %v5535
      %v5614 = vunpack.c.l.b16 %v5536
      %v5615 = vunpack.c.h.b16 %v5536
      %v5616 = vunpack.c.l.b16 %v5537
      %v5617 = vunpack.c.l.b16 %v5538
      %v5618 = vunpack.c.h.b16 %v5538
      %v5619 = vunpack.c.l.b16 %v5539
      %v5620 = vunpack.c.l.b16 %v5540
      %v5621 = vunpack.c.h.b16 %v5540
      %v5622 = vunpack.c.l.b16 %v5541
      %v5623 = vunpack.c.l.b16 %v5542
      %v5624 = vunpack.c.h.b16 %v5542
      %v5625 = vunpack.c.l.b16 %v5543
      %v5626 = vunpack.c.l.b16 %v5544
      %v5627 = vunpack.c.h.b16 %v5544
      %v5628 = vunpack.c.l.b16 %v5545
      %v5629 = vunpack.c.l.b16 %v5546
      %v5630 = vunpack.c.h.b16 %v5546
      %v5631 = vunpack.c.l.b16 %v5547
      %v5632 = vunpack.c.l.b16 %v5548
      %v5633 = vunpack.c.h.b16 %v5548
      %v5634 = vunpack.c.l.b16 %v5549
      %v5635 = vpack.c.b16 %v5584, %v5584
      %v5636 = vpack.c.b16 %v5585, %v5585
      %v5637 = vpack.c.b16 %v5586, %v5586
      %v5638 = vpack.c.b16 %v5587, %v5587
      %v5639 = vpack.c.b16 %v5588, %v5588
      %v5640 = vpack.c.b16 %v5589, %v5589
      %v5641 = vpack.c.b16 %v5590, %v5590
      %v5642 = vpack.c.b16 %v5591, %v5591
      %v5643 = vpack.c.b16 %v5592, %v5592
      %v5644 = vpack.c.b16 %v5593, %v5593
      %v5645 = vpack.c.b16 %v5594, %v5594
      %v5646 = vpack.c.b16 %v5595, %v5595
      %v5647 = vpack.c.b16 %v5596, %v5596
      %v5648 = vpack.c.b16 %v5597, %v5597
      %v5649 = vpack.c.b16 %v5598, %v5598
      %v5650 = vpack.c.b16 %v5599, %v5599
      %v5651 = vpack.c.b16 %v5600, %v5600
      %v5652 = vpack.c.b16 %v5601, %v5601
      %v5653 = vpack.c.b16 %v5602, %v5602
      %v5654 = vpack.c.b16 %v5603, %v5603
      %v5655 = vpack.c.b16 %v5604, %v5604
      %v5656 = vpack.c.b16 %v5605, %v5605
      %v5657 = vpack.c.b16 %v5606, %v5606
      %v5658 = vpack.c.b16 %v5607, %v5607
      %v5659 = vpack.c.b16 %v5608, %v5608
      %v5660 = vpack.c.b16 %v5609, %v5609
      %v5661 = vpack.c.b16 %v5610, %v5610
      %v5662 = vpack.c.b16 %v5611, %v5611
      %v5663 = vpack.c.b16 %v5612, %v5612
      %v5664 = vpack.c.b16 %v5613, %v5613
      %v5665 = vpack.c.b16 %v5614, %v5614
      %v5666 = vpack.c.b16 %v5615, %v5615
      %v5667 = vpack.c.b16 %v5616, %v5616
      %v5668 = vpack.c.b16 %v5617, %v5617
      %v5669 = vpack.c.b16 %v5618, %v5618
      %v5670 = vpack.c.b16 %v5619, %v5619
      %v5671 = vpack.c.b16 %v5620, %v5620
      %v5672 = vpack.c.b16 %v5621, %v5621
      %v5673 = vpack.c.b16 %v5622, %v5622
      %v5674 = vpack.c.b16 %v5623, %v5623
      %v5675 = vpack.c.b16 %v5624, %v5624
      %v5676 = vpack.c.b16 %v5625, %v5625
      %v5677 = vpack.c.b16 %v5626, %v5626
      %v5678 = vpack.c.b16 %v5627, %v5627
      %v5679 = vpack.c.b16 %v5628, %v5628
      %v5680 = vpack.c.b16 %v5629, %v5629
      %v5681 = vpack.c.b16 %v5630, %v5630
      %v5682 = vpack.c.b16 %v5631, %v5631
      %v5683 = vpack.c.b16 %v5632, %v5632
      %v5684 = vpack.c.b16 %v5633, %v5633
      %v5685 = vpack.c.b16 %v5634, %v5634
      %5737 = vst.msk [vmem:[#allocation2] sm:$0xf] %vm460, %v5635
      %5738 = vst.msk [vmem:[#allocation2 + $0x4] sm:$0xf] %vm460, %v5636
      %5739 = vst.msk [vmem:[#allocation2 + $0x8] sm:$0x1] %vm463, %v5637
      %5740 = vst.msk [vmem:[#allocation2 + $0xc] sm:$0xf] %vm460, %v5638
      %5741 = vst.msk [vmem:[#allocation2 + $0x10] sm:$0xf] %vm460, %v5639
      %5742 = vst.msk [vmem:[#allocation2 + $0x14] sm:$0x1] %vm463, %v5640
      %5743 = vst.msk [vmem:[#allocation2 + $0x18] sm:$0xf] %vm460, %v5641
      %5744 = vst.msk [vmem:[#allocation2 + $0x1c] sm:$0xf] %vm460, %v5642
      %5745 = vst.msk [vmem:[#allocation2 + $0x20] sm:$0x1] %vm463, %v5643
      %5746 = vst.msk [vmem:[#allocation2 + $0x24] sm:$0xf] %vm460, %v5644
      %5747 = vst.msk [vmem:[#allocation2 + $0x28] sm:$0xf] %vm460, %v5645
      %5748 = vst.msk [vmem:[#allocation2 + $0x2c] sm:$0x1] %vm463, %v5646
      %5749 = vst.msk [vmem:[#allocation2 + $0x30] sm:$0xf] %vm460, %v5647
      %5750 = vst.msk [vmem:[#allocation2 + $0x34] sm:$0xf] %vm460, %v5648
      %5751 = vst.msk [vmem:[#allocation2 + $0x38] sm:$0x1] %vm463, %v5649
      %5752 = vst.msk [vmem:[#allocation2 + $0x3c] sm:$0xf] %vm460, %v5650
      %5753 = vst.msk [vmem:[#allocation2 + $0x40] sm:$0xf] %vm460, %v5651
      %5754 = vst.msk [vmem:[#allocation2 + $0x44] sm:$0x1] %vm463, %v5652
      %5755 = vst.msk [vmem:[#allocation2 + $0x48] sm:$0xf] %vm460, %v5653
      %5756 = vst.msk [vmem:[#allocation2 + $0x4c] sm:$0xf] %vm460, %v5654
      %5757 = vst.msk [vmem:[#allocation2 + $0x50] sm:$0x1] %vm463, %v5655
      %5758 = vst.msk [vmem:[#allocation2 + $0x54] sm:$0xf] %vm460, %v5656
      %5759 = vst.msk [vmem:[#allocation2 + $0x58] sm:$0xf] %vm460, %v5657
      %5760 = vst.msk [vmem:[#allocation2 + $0x5c] sm:$0x1] %vm463, %v5658
      %5761 = vst.msk [vmem:[#allocation2 + $0x60] sm:$0xf] %vm460, %v5659
      %5762 = vst.msk [vmem:[#allocation2 + $0x64] sm:$0xf] %vm460, %v5660
      %5763 = vst.msk [vmem:[#allocation2 + $0x68] sm:$0x1] %vm463, %v5661
      %5764 = vst.msk [vmem:[#allocation2 + $0x6c] sm:$0xf] %vm460, %v5662
      %5765 = vst.msk [vmem:[#allocation2 + $0x70] sm:$0xf] %vm460, %v5663
      %5766 = vst.msk [vmem:[#allocation2 + $0x74] sm:$0x1] %vm463, %v5664
      %5767 = vst.msk [vmem:[#allocation2 + $0x78] sm:$0xf] %vm460, %v5665
      %5768 = vst.msk [vmem:[#allocation2 + $0x7c] sm:$0xf] %vm460, %v5666
      %5769 = vst.msk [vmem:[#allocation2 + $0x80] sm:$0x1] %vm463, %v5667
      %5770 = vst.msk [vmem:[#allocation2 + $0x84] sm:$0xf] %vm460, %v5668
      %5771 = vst.msk [vmem:[#allocation2 + $0x88] sm:$0xf] %vm460, %v5669
      %5772 = vst.msk [vmem:[#allocation2 + $0x8c] sm:$0x1] %vm463, %v5670
      %5773 = vst.msk [vmem:[#allocation2 + $0x90] sm:$0xf] %vm460, %v5671
      %5774 = vst.msk [vmem:[#allocation2 + $0x94] sm:$0xf] %vm460, %v5672
      %5775 = vst.msk [vmem:[#allocation2 + $0x98] sm:$0x1] %vm463, %v5673
      %5776 = vst.msk [vmem:[#allocation2 + $0x9c] sm:$0xf] %vm460, %v5674
      %5777 = vst.msk [vmem:[#allocation2 + $0xa0] sm:$0xf] %vm460, %v5675
      %5778 = vst.msk [vmem:[#allocation2 + $0xa4] sm:$0x1] %vm463, %v5676
      %5779 = vst.msk [vmem:[#allocation2 + $0xa8] sm:$0xf] %vm460, %v5677
      %5780 = vst.msk [vmem:[#allocation2 + $0xac] sm:$0xf] %vm460, %v5678
      %5781 = vst.msk [vmem:[#allocation2 + $0xb0] sm:$0x1] %vm463, %v5679
      %5782 = vst.msk [vmem:[#allocation2 + $0xb4] sm:$0xf] %vm460, %v5680
      %5783 = vst.msk [vmem:[#allocation2 + $0xb8] sm:$0xf] %vm460, %v5681
      %5784 = vst.msk [vmem:[#allocation2 + $0xbc] sm:$0x1] %vm463, %v5682
      %5785 = vst.msk [vmem:[#allocation2 + $0xc0] sm:$0xf] %vm460, %v5683
      %5786 = vst.msk [vmem:[#allocation2 + $0xc4] sm:$0xf] %vm460, %v5684
      %5787 = vst.msk [vmem:[#allocation2 + $0xc8] sm:$0x1] %vm463, %v5685
      %5788 = vst.msk [vmem:[#allocation2 + $0xcc] sm:$0xf] %vm460, %v5635
      %5789 = vst.msk [vmem:[#allocation2 + $0xd0] sm:$0xf] %vm460, %v5636
      %5790 = vst.msk [vmem:[#allocation2 + $0xd4] sm:$0x1] %vm463, %v5637
      %v5791 = vld [vmem:[#allocation2] sm:$0xf]
      %v5792 = vld [vmem:[#allocation2 + $0x4] sm:$0xf]
      %v5793 = vld [vmem:[#allocation2 + $0xc] sm:$0xf]
      %v5794 = vld [vmem:[#allocation2 + $0x10] sm:$0xf]
      %v5795 = vld [vmem:[#allocation2 + $0x18] sm:$0xf]
      %v5796 = vld [vmem:[#allocation2 + $0x1c] sm:$0xf]
      %v5797 = vld [vmem:[#allocation2 + $0x24] sm:$0xf]
      %v5798 = vld [vmem:[#allocation2 + $0x28] sm:$0xf]
      %v5799 = vld [vmem:[#allocation2 + $0x30] sm:$0xf]
      %v5800 = vld [vmem:[#allocation2 + $0x34] sm:$0xf]
      %v5801 = vld [vmem:[#allocation2 + $0x3c] sm:$0xf]
      %v5802 = vld [vmem:[#allocation2 + $0x40] sm:$0xf]
      %v5803 = vld [vmem:[#allocation2 + $0x48] sm:$0xf]
      %v5804 = vld [vmem:[#allocation2 + $0x4c] sm:$0xf]
      %v5805 = vld [vmem:[#allocation2 + $0x54] sm:$0xf]
      %v5806 = vld [vmem:[#allocation2 + $0x58] sm:$0xf]
      %v5807 = vld [vmem:[#allocation2 + $0x60] sm:$0xf]
      %v5808 = vld [vmem:[#allocation2 + $0x64] sm:$0xf]
      %v5809 = vld [vmem:[#allocation2 + $0x6c] sm:$0xf]
      %v5810 = vld [vmem:[#allocation2 + $0x70] sm:$0xf]
      %v5811 = vld [vmem:[#allocation2 + $0x78] sm:$0xf]
      %v5812 = vld [vmem:[#allocation2 + $0x7c] sm:$0xf]
      %v5813 = vld [vmem:[#allocation2 + $0x84] sm:$0xf]
      %v5814 = vld [vmem:[#allocation2 + $0x88] sm:$0xf]
      %v5815 = vld [vmem:[#allocation2 + $0x90] sm:$0xf]
      %v5816 = vld [vmem:[#allocation2 + $0x94] sm:$0xf]
      %v5817 = vld [vmem:[#allocation2 + $0x9c] sm:$0xf]
      %v5818 = vld [vmem:[#allocation2 + $0xa0] sm:$0xf]
      %v5819 = vld [vmem:[#allocation2 + $0xa8] sm:$0xf]
      %v5820 = vld [vmem:[#allocation2 + $0xac] sm:$0xf]
      %v5821 = vld [vmem:[#allocation2 + $0xb4] sm:$0xf]
      %v5822 = vld [vmem:[#allocation2 + $0xb8] sm:$0xf]
      %v5823 = vld [vmem:[%s2] sm:$0x3]
      %v5824 = vld [vmem:[#allocation2 + $0x8] sm:$0x1]
      %v5825 = vld [vmem:[#allocation2 + $0x14] sm:$0x1]
      %v5826 = vld [vmem:[#allocation2 + $0x20] sm:$0x1]
      %v5827 = vld [vmem:[#allocation2 + $0x2c] sm:$0x1]
      %v5828 = vld [vmem:[#allocation2 + $0x38] sm:$0x1]
      %v5829 = vld [vmem:[#allocation2 + $0x44] sm:$0x1]
      %v5830 = vld [vmem:[#allocation2 + $0x50] sm:$0x1]
      %v5831 = vld [vmem:[#allocation2 + $0x5c] sm:$0x1]
      %v5832 = vld [vmem:[#allocation2 + $0x68] sm:$0x1]
      %v5833 = vld [vmem:[#allocation2 + $0x74] sm:$0x1]
      %v5834 = vld [vmem:[#allocation2 + $0x80] sm:$0x1]
      %v5835 = vld [vmem:[#allocation2 + $0x8c] sm:$0x1]
      %v5836 = vld [vmem:[#allocation2 + $0x98] sm:$0x1]
      %v5837 = vld [vmem:[#allocation2 + $0xa4] sm:$0x1]
      %v5838 = vld [vmem:[#allocation2 + $0xb0] sm:$0x1]
      %v5839 = vld [vmem:[#allocation2 + $0xbc] sm:$0x1]
      %v5841 = vshrl.u32 %v5791, 16
      %v5843 = vrot.slane %v5841, 4
      %v5844 = vshll.u32 %v5791, 16
      %v5846 = vrot.slane %v5844, 5
      %v5847 = vor.u32 %v5843, %v5846
      %v5848 = vrot.slane %v5847, 4
      %v5850 = vshll.u32 %v5792, 16
      %v5852 = vrot.slane %v5850, 5
      %v5853 = vsel %vm567, %v5848, %v5852
      %v5854 = vshrl.u32 %v5792, 16
      %v5856 = vrot.slane %v5854, 4
      %v5857 = vor.u32 %v5856, %v5852
      %v5858 = vrot.slane %v5857, 4
      %v5860 = vshll.u32 %v5824, 16
      %v5862 = vrot.slane %v5860, 5
      %v5863 = vsel %vm567, %v5858, %v5862
      %v5865 = vshrl.u32 %v5793, 16
      %v5867 = vrot.slane %v5865, 4
      %v5868 = vshll.u32 %v5793, 16
      %v5870 = vrot.slane %v5868, 5
      %v5871 = vor.u32 %v5867, %v5870
      %v5872 = vrot.slane %v5871, 4
      %v5874 = vshll.u32 %v5794, 16
      %v5876 = vrot.slane %v5874, 5
      %v5877 = vsel %vm567, %v5872, %v5876
      %v5878 = vshrl.u32 %v5794, 16
      %v5880 = vrot.slane %v5878, 4
      %v5881 = vor.u32 %v5880, %v5876
      %v5882 = vrot.slane %v5881, 4
      %v5884 = vshll.u32 %v5825, 16
      %v5886 = vrot.slane %v5884, 5
      %v5887 = vsel %vm567, %v5882, %v5886
      %v5889 = vshrl.u32 %v5795, 16
      %v5891 = vrot.slane %v5889, 4
      %v5892 = vshll.u32 %v5795, 16
      %v5894 = vrot.slane %v5892, 5
      %v5895 = vor.u32 %v5891, %v5894
      %v5896 = vrot.slane %v5895, 4
      %v5898 = vshll.u32 %v5796, 16
      %v5900 = vrot.slane %v5898, 5
      %v5901 = vsel %vm567, %v5896, %v5900
      %v5902 = vshrl.u32 %v5796, 16
      %v5904 = vrot.slane %v5902, 4
      %v5905 = vor.u32 %v5904, %v5900
      %v5906 = vrot.slane %v5905, 4
      %v5908 = vshll.u32 %v5826, 16
      %v5910 = vrot.slane %v5908, 5
      %v5911 = vsel %vm567, %v5906, %v5910
      %v5913 = vshrl.u32 %v5797, 16
      %v5915 = vrot.slane %v5913, 4
      %v5916 = vshll.u32 %v5797, 16
      %v5918 = vrot.slane %v5916, 5
      %v5919 = vor.u32 %v5915, %v5918
      %v5920 = vrot.slane %v5919, 4
      %v5922 = vshll.u32 %v5798, 16
      %v5924 = vrot.slane %v5922, 5
      %v5925 = vsel %vm567, %v5920, %v5924
      %v5926 = vshrl.u32 %v5798, 16
      %v5928 = vrot.slane %v5926, 4
      %v5929 = vor.u32 %v5928, %v5924
      %v5930 = vrot.slane %v5929, 4
      %v5932 = vshll.u32 %v5827, 16
      %v5934 = vrot.slane %v5932, 5
      %v5935 = vsel %vm567, %v5930, %v5934
      %v5937 = vshrl.u32 %v5799, 16
      %v5939 = vrot.slane %v5937, 4
      %v5940 = vshll.u32 %v5799, 16
      %v5942 = vrot.slane %v5940, 5
      %v5943 = vor.u32 %v5939, %v5942
      %v5944 = vrot.slane %v5943, 4
      %v5946 = vshll.u32 %v5800, 16
      %v5948 = vrot.slane %v5946, 5
      %v5949 = vsel %vm567, %v5944, %v5948
      %v5950 = vshrl.u32 %v5800, 16
      %v5952 = vrot.slane %v5950, 4
      %v5953 = vor.u32 %v5952, %v5948
      %v5954 = vrot.slane %v5953, 4
      %v5956 = vshll.u32 %v5828, 16
      %v5958 = vrot.slane %v5956, 5
      %v5959 = vsel %vm567, %v5954, %v5958
      %v5961 = vshrl.u32 %v5801, 16
      %v5963 = vrot.slane %v5961, 4
      %v5964 = vshll.u32 %v5801, 16
      %v5966 = vrot.slane %v5964, 5
      %v5967 = vor.u32 %v5963, %v5966
      %v5968 = vrot.slane %v5967, 4
      %v5970 = vshll.u32 %v5802, 16
      %v5972 = vrot.slane %v5970, 5
      %v5973 = vsel %vm567, %v5968, %v5972
      %v5974 = vshrl.u32 %v5802, 16
      %v5976 = vrot.slane %v5974, 4
      %v5977 = vor.u32 %v5976, %v5972
      %v5978 = vrot.slane %v5977, 4
      %v5980 = vshll.u32 %v5829, 16
      %v5982 = vrot.slane %v5980, 5
      %v5983 = vsel %vm567, %v5978, %v5982
      %v5985 = vshrl.u32 %v5803, 16
      %v5987 = vrot.slane %v5985, 4
      %v5988 = vshll.u32 %v5803, 16
      %v5990 = vrot.slane %v5988, 5
      %v5991 = vor.u32 %v5987, %v5990
      %v5992 = vrot.slane %v5991, 4
      %v5994 = vshll.u32 %v5804, 16
      %v5996 = vrot.slane %v5994, 5
      %v5997 = vsel %vm567, %v5992, %v5996
      %v5998 = vshrl.u32 %v5804, 16
      %v6000 = vrot.slane %v5998, 4
      %v6001 = vor.u32 %v6000, %v5996
      %v6002 = vrot.slane %v6001, 4
      %v6004 = vshll.u32 %v5830, 16
      %v6006 = vrot.slane %v6004, 5
      %v6007 = vsel %vm567, %v6002, %v6006
      %v6009 = vshrl.u32 %v5805, 16
      %v6011 = vrot.slane %v6009, 4
      %v6012 = vshll.u32 %v5805, 16
      %v6014 = vrot.slane %v6012, 5
      %v6015 = vor.u32 %v6011, %v6014
      %v6016 = vrot.slane %v6015, 4
      %v6018 = vshll.u32 %v5806, 16
      %v6020 = vrot.slane %v6018, 5
      %v6021 = vsel %vm567, %v6016, %v6020
      %v6022 = vshrl.u32 %v5806, 16
      %v6024 = vrot.slane %v6022, 4
      %v6025 = vor.u32 %v6024, %v6020
      %v6026 = vrot.slane %v6025, 4
      %v6028 = vshll.u32 %v5831, 16
      %v6030 = vrot.slane %v6028, 5
      %v6031 = vsel %vm567, %v6026, %v6030
      %v6033 = vshrl.u32 %v5807, 16
      %v6035 = vrot.slane %v6033, 4
      %v6036 = vshll.u32 %v5807, 16
      %v6038 = vrot.slane %v6036, 5
      %v6039 = vor.u32 %v6035, %v6038
      %v6040 = vrot.slane %v6039, 4
      %v6042 = vshll.u32 %v5808, 16
      %v6044 = vrot.slane %v6042, 5
      %v6045 = vsel %vm567, %v6040, %v6044
      %v6046 = vshrl.u32 %v5808, 16
      %v6048 = vrot.slane %v6046, 4
      %v6049 = vor.u32 %v6048, %v6044
      %v6050 = vrot.slane %v6049, 4
      %v6052 = vshll.u32 %v5832, 16
      %v6054 = vrot.slane %v6052, 5
      %v6055 = vsel %vm567, %v6050, %v6054
      %v6057 = vshrl.u32 %v5809, 16
      %v6059 = vrot.slane %v6057, 4
      %v6060 = vshll.u32 %v5809, 16
      %v6062 = vrot.slane %v6060, 5
      %v6063 = vor.u32 %v6059, %v6062
      %v6064 = vrot.slane %v6063, 4
      %v6066 = vshll.u32 %v5810, 16
      %v6068 = vrot.slane %v6066, 5
      %v6069 = vsel %vm567, %v6064, %v6068
      %v6070 = vshrl.u32 %v5810, 16
      %v6072 = vrot.slane %v6070, 4
      %v6073 = vor.u32 %v6072, %v6068
      %v6074 = vrot.slane %v6073, 4
      %v6076 = vshll.u32 %v5833, 16
      %v6078 = vrot.slane %v6076, 5
      %v6079 = vsel %vm567, %v6074, %v6078
      %v6081 = vshrl.u32 %v5811, 16
      %v6083 = vrot.slane %v6081, 4
      %v6084 = vshll.u32 %v5811, 16
      %v6086 = vrot.slane %v6084, 5
      %v6087 = vor.u32 %v6083, %v6086
      %v6088 = vrot.slane %v6087, 4
      %v6090 = vshll.u32 %v5812, 16
      %v6092 = vrot.slane %v6090, 5
      %v6093 = vsel %vm567, %v6088, %v6092
      %v6094 = vshrl.u32 %v5812, 16
      %v6096 = vrot.slane %v6094, 4
      %v6097 = vor.u32 %v6096, %v6092
      %v6098 = vrot.slane %v6097, 4
      %v6100 = vshll.u32 %v5834, 16
      %v6102 = vrot.slane %v6100, 5
      %v6103 = vsel %vm567, %v6098, %v6102
      %v6105 = vshrl.u32 %v5813, 16
      %v6107 = vrot.slane %v6105, 4
      %v6108 = vshll.u32 %v5813, 16
      %v6110 = vrot.slane %v6108, 5
      %v6111 = vor.u32 %v6107, %v6110
      %v6112 = vrot.slane %v6111, 4
      %v6114 = vshll.u32 %v5814, 16
      %v6116 = vrot.slane %v6114, 5
      %v6117 = vsel %vm567, %v6112, %v6116
      %v6118 = vshrl.u32 %v5814, 16
      %v6120 = vrot.slane %v6118, 4
      %v6121 = vor.u32 %v6120, %v6116
      %v6122 = vrot.slane %v6121, 4
      %v6124 = vshll.u32 %v5835, 16
      %v6126 = vrot.slane %v6124, 5
      %v6127 = vsel %vm567, %v6122, %v6126
      %v6129 = vshrl.u32 %v5815, 16
      %v6131 = vrot.slane %v6129, 4
      %v6132 = vshll.u32 %v5815, 16
      %v6134 = vrot.slane %v6132, 5
      %v6135 = vor.u32 %v6131, %v6134
      %v6136 = vrot.slane %v6135, 4
      %v6138 = vshll.u32 %v5816, 16
      %v6140 = vrot.slane %v6138, 5
      %v6141 = vsel %vm567, %v6136, %v6140
      %v6142 = vshrl.u32 %v5816, 16
      %v6144 = vrot.slane %v6142, 4
      %v6145 = vor.u32 %v6144, %v6140
      %v6146 = vrot.slane %v6145, 4
      %v6148 = vshll.u32 %v5836, 16
      %v6150 = vrot.slane %v6148, 5
      %v6151 = vsel %vm567, %v6146, %v6150
      %v6153 = vshrl.u32 %v5817, 16
      %v6155 = vrot.slane %v6153, 4
      %v6156 = vshll.u32 %v5817, 16
      %v6158 = vrot.slane %v6156, 5
      %v6159 = vor.u32 %v6155, %v6158
      %v6160 = vrot.slane %v6159, 4
      %v6162 = vshll.u32 %v5818, 16
      %v6164 = vrot.slane %v6162, 5
      %v6165 = vsel %vm567, %v6160, %v6164
      %v6166 = vshrl.u32 %v5818, 16
      %v6168 = vrot.slane %v6166, 4
      %v6169 = vor.u32 %v6168, %v6164
      %v6170 = vrot.slane %v6169, 4
      %v6172 = vshll.u32 %v5837, 16
      %v6174 = vrot.slane %v6172, 5
      %v6175 = vsel %vm567, %v6170, %v6174
      %v6177 = vshrl.u32 %v5819, 16
      %v6179 = vrot.slane %v6177, 4
      %v6180 = vshll.u32 %v5819, 16
      %v6182 = vrot.slane %v6180, 5
      %v6183 = vor.u32 %v6179, %v6182
      %v6184 = vrot.slane %v6183, 4
      %v6186 = vshll.u32 %v5820, 16
      %v6188 = vrot.slane %v6186, 5
      %v6189 = vsel %vm567, %v6184, %v6188
      %v6190 = vshrl.u32 %v5820, 16
      %v6192 = vrot.slane %v6190, 4
      %v6193 = vor.u32 %v6192, %v6188
      %v6194 = vrot.slane %v6193, 4
      %v6196 = vshll.u32 %v5838, 16
      %v6198 = vrot.slane %v6196, 5
      %v6199 = vsel %vm567, %v6194, %v6198
      %v6201 = vshrl.u32 %v5821, 16
      %v6203 = vrot.slane %v6201, 4
      %v6204 = vshll.u32 %v5821, 16
      %v6206 = vrot.slane %v6204, 5
      %v6207 = vor.u32 %v6203, %v6206
      %v6208 = vrot.slane %v6207, 4
      %v6210 = vshll.u32 %v5822, 16
      %v6212 = vrot.slane %v6210, 5
      %v6213 = vsel %vm567, %v6208, %v6212
      %v6214 = vshrl.u32 %v5822, 16
      %v6216 = vrot.slane %v6214, 4
      %v6217 = vor.u32 %v6216, %v6212
      %v6218 = vrot.slane %v6217, 4
      %v6220 = vshll.u32 %v5839, 16
      %v6222 = vrot.slane %v6220, 5
      %v6223 = vsel %vm567, %v6218, %v6222
      %s6224 = scalar_lea.vmem %s2, 2
      %v6225 = vld [vmem:[%s6224] sm:$0x3]
      %v6226 = vunpack.c.l.b16 %v5853
      %v6227 = vunpack.c.l.b16 %v5863
      %v6228 = vunpack.c.l.b16 %v5877
      %v6229 = vunpack.c.l.b16 %v5887
      %v6230 = vunpack.c.l.b16 %v5901
      %v6231 = vunpack.c.l.b16 %v5911
      %v6232 = vunpack.c.l.b16 %v5925
      %v6233 = vunpack.c.l.b16 %v5935
      %v6234 = vunpack.c.l.b16 %v5949
      %v6235 = vunpack.c.l.b16 %v5959
      %v6236 = vunpack.c.l.b16 %v5973
      %v6237 = vunpack.c.l.b16 %v5983
      %v6238 = vunpack.c.l.b16 %v5997
      %v6239 = vunpack.c.l.b16 %v6007
      %v6240 = vunpack.c.l.b16 %v6021
      %v6241 = vunpack.c.l.b16 %v6031
      %v6242 = vunpack.c.l.b16 %v6045
      %v6243 = vunpack.c.l.b16 %v6055
      %v6244 = vunpack.c.l.b16 %v6069
      %v6245 = vunpack.c.l.b16 %v6079
      %v6246 = vunpack.c.l.b16 %v6093
      %v6247 = vunpack.c.l.b16 %v6103
      %v6248 = vunpack.c.l.b16 %v6117
      %v6249 = vunpack.c.l.b16 %v6127
      %v6250 = vunpack.c.l.b16 %v6141
      %v6251 = vunpack.c.l.b16 %v6151
      %v6252 = vunpack.c.l.b16 %v6165
      %v6253 = vunpack.c.l.b16 %v6175
      %v6254 = vunpack.c.l.b16 %v6189
      %v6255 = vunpack.c.l.b16 %v6199
      %v6256 = vunpack.c.l.b16 %v6213
      %v6257 = vunpack.c.l.b16 %v6223
      %v6258 = vpack.c.b16 %v6227, %v6226
      %v6259 = vpack.c.b16 %v6229, %v6228
      %v6260 = vpack.c.b16 %v6231, %v6230
      %v6261 = vpack.c.b16 %v6233, %v6232
      %v6262 = vpack.c.b16 %v6235, %v6234
      %v6263 = vpack.c.b16 %v6237, %v6236
      %v6264 = vpack.c.b16 %v6239, %v6238
      %v6265 = vpack.c.b16 %v6241, %v6240
      %v6266 = vpack.c.b16 %v6243, %v6242
      %v6267 = vpack.c.b16 %v6245, %v6244
      %v6268 = vpack.c.b16 %v6247, %v6246
      %v6269 = vpack.c.b16 %v6249, %v6248
      %v6270 = vpack.c.b16 %v6251, %v6250
      %v6271 = vpack.c.b16 %v6253, %v6252
      %v6272 = vpack.c.b16 %v6255, %v6254
      %v6273 = vpack.c.b16 %v6257, %v6256
      %v6275 = vsel %vm1002, %v6258, 0
      %v6278 = vsel %vm1002, %v6259, 0
      %v6281 = vsel %vm1002, %v6260, 0
      %v6284 = vsel %vm1002, %v6261, 0
      %v6287 = vsel %vm1002, %v6262, 0
      %v6290 = vsel %vm1002, %v6263, 0
      %v6293 = vsel %vm1002, %v6264, 0
      %v6296 = vsel %vm1002, %v6265, 0
      %v6299 = vsel %vm1002, %v6266, 0
      %v6302 = vsel %vm1002, %v6267, 0
      %v6305 = vsel %vm1002, %v6268, 0
      %v6308 = vsel %vm1002, %v6269, 0
      %v6311 = vsel %vm1002, %v6270, 0
      %v6314 = vsel %vm1002, %v6271, 0
      %v6317 = vsel %vm1002, %v6272, 0
      %v6320 = vsel %vm1002, %v6273, 0
      %v6323 = vsel %vm1051, %v6225, 0
      %6325 = vmatprep.subr.bf16.mxu0 0
      %6326 = vmatpush1.bf16.msra.mxu0 %v6323
      %6327 = vmatprep.subr.bf16.mxu0 0
      %6328 = vmatpush1.bf16.msra.mxu0 0
      %6329 = vmatprep.subr.bf16.mxu0 0
      %6330 = vmatpush1.bf16.msra.mxu0 0
      %6331 = vmatprep.subr.bf16.mxu0 0
      %6332 = vmatpush1.bf16.msra.mxu0 0
      %6333 = vmatprep.subr.bf16.mxu0 0
      %6334 = vmatpush1.bf16.msra.mxu0 0
      %6335 = vmatprep.subr.bf16.mxu0 0
      %6336 = vmatpush1.bf16.msra.mxu0 0
      %6337 = vmatprep.subr.bf16.mxu0 0
      %6338 = vmatpush1.bf16.msra.mxu0 0
      %6339 = vmatprep.subr.bf16.mxu0 0
      %6340 = vmatpush1.bf16.msra.mxu0 0
      %6341 = vmatprep.subr.bf16.mxu0 0
      %6342 = vmatpush1.bf16.msra.mxu0 0
      %6343 = vmatprep.subr.bf16.mxu0 0
      %6344 = vmatpush1.bf16.msra.mxu0 0
      %6345 = vmatprep.subr.bf16.mxu0 0
      %6346 = vmatpush1.bf16.msra.mxu0 0
      %6347 = vmatprep.subr.bf16.mxu0 0
      %6348 = vmatpush1.bf16.msra.mxu0 0
      %6349 = vmatprep.subr.bf16.mxu0 0
      %6350 = vmatpush1.bf16.msra.mxu0 0
      %6351 = vmatprep.subr.bf16.mxu0 0
      %6352 = vmatpush1.bf16.msra.mxu0 0
      %6353 = vmatprep.subr.bf16.mxu0 0
      %6354 = vmatpush1.bf16.msra.mxu0 0
      %6355 = vmatprep.subr.bf16.mxu0 0
      %6356 = vmatpush1.bf16.msra.mxu0 0
      %6357 = vmatprep.mubr.bf16.mxu0 0
      %6358 = vmatmul.mubr.bf16.gmra.mrb[0].mxu0 %v6275
      %v6359 = vpop.f32.mrb[0].mxu0
      %v6360 = vadd.f32 0.0, %v6359
      %v6361 = vpop.f32.mrb[0].mxu0
      %v6362 = vpop.f32.mrb[0].mxu0
      %v6363 = vadd.f32 0.0, %v6362
      %v6364 = vpop.f32.mrb[0].mxu0
      %6365 = vmatprep.mubr.bf16.mxu0 0
      %6366 = vmatmul.mubr.bf16.gmra.mrb[0].mxu0 %v6278
      %v6367 = vpop.f32.mrb[0].mxu0
      %v6368 = vadd.f32 0.0, %v6367
      %v6369 = vpop.f32.mrb[0].mxu0
      %v6370 = vpop.f32.mrb[0].mxu0
      %v6371 = vadd.f32 0.0, %v6370
      %v6372 = vpop.f32.mrb[0].mxu0
      %6373 = vmatprep.mubr.bf16.mxu0 0
      %6374 = vmatmul.mubr.bf16.gmra.mrb[0].mxu0 %v6281
      %v6375 = vpop.f32.mrb[0].mxu0
      %v6376 = vadd.f32 0.0, %v6375
      %v6377 = vpop.f32.mrb[0].mxu0
      %v6378 = vpop.f32.mrb[0].mxu0
      %v6379 = vadd.f32 0.0, %v6378
      %v6380 = vpop.f32.mrb[0].mxu0
      %6381 = vmatprep.mubr.bf16.mxu0 0
      %6382 = vmatmul.mubr.bf16.gmra.mrb[0].mxu0 %v6284
      %v6383 = vpop.f32.mrb[0].mxu0
      %v6384 = vadd.f32 0.0, %v6383
      %v6385 = vpop.f32.mrb[0].mxu0
      %v6386 = vpop.f32.mrb[0].mxu0
      %v6387 = vadd.f32 0.0, %v6386
      %v6388 = vpop.f32.mrb[0].mxu0
      %6389 = vmatprep.mubr.bf16.mxu0 0
      %6390 = vmatmul.mubr.bf16.gmra.mrb[0].mxu0 %v6287
      %v6391 = vpop.f32.mrb[0].mxu0
      %v6392 = vadd.f32 0.0, %v6391
      %v6393 = vpop.f32.mrb[0].mxu0
      %v6394 = vpop.f32.mrb[0].mxu0
      %v6395 = vadd.f32 0.0, %v6394
      %v6396 = vpop.f32.mrb[0].mxu0
      %6397 = vmatprep.mubr.bf16.mxu0 0
      %6398 = vmatmul.mubr.bf16.gmra.mrb[0].mxu0 %v6290
      %v6399 = vpop.f32.mrb[0].mxu0
      %v6400 = vadd.f32 0.0, %v6399
      %v6401 = vpop.f32.mrb[0].mxu0
      %v6402 = vpop.f32.mrb[0].mxu0
      %v6403 = vadd.f32 0.0, %v6402
      %v6404 = vpop.f32.mrb[0].mxu0
      %6405 = vmatprep.mubr.bf16.mxu0 0
      %6406 = vmatmul.mubr.bf16.gmra.mrb[0].mxu0 %v6293
      %v6407 = vpop.f32.mrb[0].mxu0
      %v6408 = vadd.f32 0.0, %v6407
      %v6409 = vpop.f32.mrb[0].mxu0
      %v6410 = vpop.f32.mrb[0].mxu0
      %v6411 = vadd.f32 0.0, %v6410
      %v6412 = vpop.f32.mrb[0].mxu0
      %6413 = vmatprep.mubr.bf16.mxu0 0
      %6414 = vmatmul.mubr.bf16.gmra.mrb[0].mxu0 %v6296
      %v6415 = vpop.f32.mrb[0].mxu0
      %v6416 = vadd.f32 0.0, %v6415
      %v6417 = vpop.f32.mrb[0].mxu0
      %v6418 = vpop.f32.mrb[0].mxu0
      %v6419 = vadd.f32 0.0, %v6418
      %v6420 = vpop.f32.mrb[0].mxu0
      %6421 = vmatprep.mubr.bf16.mxu0 0
      %6422 = vmatmul.mubr.bf16.gmra.mrb[0].mxu0 %v6299
      %v6423 = vpop.f32.mrb[0].mxu0
      %v6424 = vadd.f32 0.0, %v6423
      %v6425 = vpop.f32.mrb[0].mxu0
      %v6426 = vpop.f32.mrb[0].mxu0
      %v6427 = vadd.f32 0.0, %v6426
      %v6428 = vpop.f32.mrb[0].mxu0
      %6429 = vmatprep.mubr.bf16.mxu0 0
      %6430 = vmatmul.mubr.bf16.gmra.mrb[0].mxu0 %v6302
      %v6431 = vpop.f32.mrb[0].mxu0
      %v6432 = vadd.f32 0.0, %v6431
      %v6433 = vpop.f32.mrb[0].mxu0
      %v6434 = vpop.f32.mrb[0].mxu0
      %v6435 = vadd.f32 0.0, %v6434
      %v6436 = vpop.f32.mrb[0].mxu0
      %6437 = vmatprep.mubr.bf16.mxu0 0
      %6438 = vmatmul.mubr.bf16.gmra.mrb[0].mxu0 %v6305
      %v6439 = vpop.f32.mrb[0].mxu0
      %v6440 = vadd.f32 0.0, %v6439
      %v6441 = vpop.f32.mrb[0].mxu0
      %v6442 = vpop.f32.mrb[0].mxu0
      %v6443 = vadd.f32 0.0, %v6442
      %v6444 = vpop.f32.mrb[0].mxu0
      %6445 = vmatprep.mubr.bf16.mxu0 0
      %6446 = vmatmul.mubr.bf16.gmra.mrb[0].mxu0 %v6308
      %v6447 = vpop.f32.mrb[0].mxu0
      %v6448 = vadd.f32 0.0, %v6447
      %v6449 = vpop.f32.mrb[0].mxu0
      %v6450 = vpop.f32.mrb[0].mxu0
      %v6451 = vadd.f32 0.0, %v6450
      %v6452 = vpop.f32.mrb[0].mxu0
      %6453 = vmatprep.mubr.bf16.mxu0 0
      %6454 = vmatmul.mubr.bf16.gmra.mrb[0].mxu0 %v6311
      %v6455 = vpop.f32.mrb[0].mxu0
      %v6456 = vadd.f32 0.0, %v6455
      %v6457 = vpop.f32.mrb[0].mxu0
      %v6458 = vpop.f32.mrb[0].mxu0
      %v6459 = vadd.f32 0.0, %v6458
      %v6460 = vpop.f32.mrb[0].mxu0
      %6461 = vmatprep.mubr.bf16.mxu0 0
      %6462 = vmatmul.mubr.bf16.gmra.mrb[0].mxu0 %v6314
      %v6463 = vpop.f32.mrb[0].mxu0
      %v6464 = vadd.f32 0.0, %v6463
      %v6465 = vpop.f32.mrb[0].mxu0
      %v6466 = vpop.f32.mrb[0].mxu0
      %v6467 = vadd.f32 0.0, %v6466
      %v6468 = vpop.f32.mrb[0].mxu0
      %6469 = vmatprep.mubr.bf16.mxu0 0
      %6470 = vmatmul.mubr.bf16.gmra.mrb[0].mxu0 %v6317
      %v6471 = vpop.f32.mrb[0].mxu0
      %v6472 = vadd.f32 0.0, %v6471
      %v6473 = vpop.f32.mrb[0].mxu0
      %v6474 = vpop.f32.mrb[0].mxu0
      %v6475 = vadd.f32 0.0, %v6474
      %v6476 = vpop.f32.mrb[0].mxu0
      %6477 = vmatprep.mubr.bf16.mxu0 0
      %6478 = vmatmul.mubr.bf16.gmra.mrb[0].mxu0 %v6320
      %v6479 = vpop.f32.mrb[0].mxu0
      %v6480 = vadd.f32 0.0, %v6479
      %v6481 = vpop.f32.mrb[0].mxu0
      %v6482 = vpop.f32.mrb[0].mxu0
      %v6483 = vadd.f32 0.0, %v6482
      %v6484 = vpop.f32.mrb[0].mxu0
      %6485 = vdwg.mxu0
      %v6518 = vunpack.c.l.b16 %v5791
      %v6519 = vunpack.c.l.b16 %v5792
      %v6520 = vunpack.c.l.b16 %v5793
      %v6521 = vunpack.c.l.b16 %v5794
      %v6522 = vunpack.c.l.b16 %v5795
      %v6523 = vunpack.c.l.b16 %v5796
      %v6524 = vunpack.c.l.b16 %v5797
      %v6525 = vunpack.c.l.b16 %v5798
      %v6526 = vunpack.c.l.b16 %v5799
      %v6527 = vunpack.c.l.b16 %v5800
      %v6528 = vunpack.c.l.b16 %v5801
      %v6529 = vunpack.c.l.b16 %v5802
      %v6530 = vunpack.c.l.b16 %v5803
      %v6531 = vunpack.c.l.b16 %v5804
      %v6532 = vunpack.c.l.b16 %v5805
      %v6533 = vunpack.c.l.b16 %v5806
      %v6534 = vunpack.c.l.b16 %v5807
      %v6535 = vunpack.c.l.b16 %v5808
      %v6536 = vunpack.c.l.b16 %v5809
      %v6537 = vunpack.c.l.b16 %v5810
      %v6538 = vunpack.c.l.b16 %v5811
      %v6539 = vunpack.c.l.b16 %v5812
      %v6540 = vunpack.c.l.b16 %v5813
      %v6541 = vunpack.c.l.b16 %v5814
      %v6542 = vunpack.c.l.b16 %v5815
      %v6543 = vunpack.c.l.b16 %v5816
      %v6544 = vunpack.c.l.b16 %v5817
      %v6545 = vunpack.c.l.b16 %v5818
      %v6546 = vunpack.c.l.b16 %v5819
      %v6547 = vunpack.c.l.b16 %v5820
      %v6548 = vunpack.c.l.b16 %v5821
      %v6549 = vunpack.c.l.b16 %v5822
      %v6550 = vpack.c.b16 %v6519, %v6518
      %v6551 = vpack.c.b16 %v6521, %v6520
      %v6552 = vpack.c.b16 %v6523, %v6522
      %v6553 = vpack.c.b16 %v6525, %v6524
      %v6554 = vpack.c.b16 %v6527, %v6526
      %v6555 = vpack.c.b16 %v6529, %v6528
      %v6556 = vpack.c.b16 %v6531, %v6530
      %v6557 = vpack.c.b16 %v6533, %v6532
      %v6558 = vpack.c.b16 %v6535, %v6534
      %v6559 = vpack.c.b16 %v6537, %v6536
      %v6560 = vpack.c.b16 %v6539, %v6538
      %v6561 = vpack.c.b16 %v6541, %v6540
      %v6562 = vpack.c.b16 %v6543, %v6542
      %v6563 = vpack.c.b16 %v6545, %v6544
      %v6564 = vpack.c.b16 %v6547, %v6546
      %v6565 = vpack.c.b16 %v6549, %v6548
      %v6567 = vsel %vm1002, %v6550, 0
      %v6570 = vsel %vm1002, %v6551, 0
      %v6573 = vsel %vm1002, %v6552, 0
      %v6576 = vsel %vm1002, %v6553, 0
      %v6579 = vsel %vm1002, %v6554, 0
      %v6582 = vsel %vm1002, %v6555, 0
      %v6585 = vsel %vm1002, %v6556, 0
      %v6588 = vsel %vm1002, %v6557, 0
      %v6591 = vsel %vm1002, %v6558, 0
      %v6594 = vsel %vm1002, %v6559, 0
      %v6597 = vsel %vm1002, %v6560, 0
      %v6600 = vsel %vm1002, %v6561, 0
      %v6603 = vsel %vm1002, %v6562, 0
      %v6606 = vsel %vm1002, %v6563, 0
      %v6609 = vsel %vm1002, %v6564, 0
      %v6612 = vsel %vm1002, %v6565, 0
      %v6615 = vsel %vm1051, %v5823, 0
      %6617 = vmatprep.subr.bf16.mxu0 0
      %6618 = vmatpush1.bf16.msra.mxu0 %v6615
      %6619 = vmatprep.subr.bf16.mxu0 0
      %6620 = vmatpush1.bf16.msra.mxu0 0
      %6621 = vmatprep.subr.bf16.mxu0 0
      %6622 = vmatpush1.bf16.msra.mxu0 0
      %6623 = vmatprep.subr.bf16.mxu0 0
      %6624 = vmatpush1.bf16.msra.mxu0 0
      %6625 = vmatprep.subr.bf16.mxu0 0
      %6626 = vmatpush1.bf16.msra.mxu0 0
      %6627 = vmatprep.subr.bf16.mxu0 0
      %6628 = vmatpush1.bf16.msra.mxu0 0
      %6629 = vmatprep.subr.bf16.mxu0 0
      %6630 = vmatpush1.bf16.msra.mxu0 0
      %6631 = vmatprep.subr.bf16.mxu0 0
      %6632 = vmatpush1.bf16.msra.mxu0 0
      %6633 = vmatprep.subr.bf16.mxu0 0
      %6634 = vmatpush1.bf16.msra.mxu0 0
      %6635 = vmatprep.subr.bf16.mxu0 0
      %6636 = vmatpush1.bf16.msra.mxu0 0
      %6637 = vmatprep.subr.bf16.mxu0 0
      %6638 = vmatpush1.bf16.msra.mxu0 0
      %6639 = vmatprep.subr.bf16.mxu0 0
      %6640 = vmatpush1.bf16.msra.mxu0 0
      %6641 = vmatprep.subr.bf16.mxu0 0
      %6642 = vmatpush1.bf16.msra.mxu0 0
      %6643 = vmatprep.subr.bf16.mxu0 0
      %6644 = vmatpush1.bf16.msra.mxu0 0
      %6645 = vmatprep.subr.bf16.mxu0 0
      %6646 = vmatpush1.bf16.msra.mxu0 0
      %6647 = vmatprep.subr.bf16.mxu0 0
      %6648 = vmatpush1.bf16.msra.mxu0 0
      %6649 = vmatprep.mubr.bf16.mxu0 0
      %6650 = vmatmul.mubr.bf16.gmra.mrb[0].mxu0 %v6567
      %v6651 = vpop.f32.mrb[0].mxu0
      %v6652 = vadd.f32 %v6360, %v6651
      %v6653 = vpop.f32.mrb[0].mxu0
      %v6654 = vpop.f32.mrb[0].mxu0
      %v6655 = vadd.f32 %v6363, %v6654
      %v6656 = vpop.f32.mrb[0].mxu0
      %6657 = vmatprep.mubr.bf16.mxu0 0
      %6658 = vmatmul.mubr.bf16.gmra.mrb[0].mxu0 %v6570
      %v6659 = vpop.f32.mrb[0].mxu0
      %v6660 = vadd.f32 %v6368, %v6659
      %v6661 = vpop.f32.mrb[0].mxu0
      %v6662 = vpop.f32.mrb[0].mxu0
      %v6663 = vadd.f32 %v6371, %v6662
      %v6664 = vpop.f32.mrb[0].mxu0
      %6665 = vmatprep.mubr.bf16.mxu0 0
      %6666 = vmatmul.mubr.bf16.gmra.mrb[0].mxu0 %v6573
      %v6667 = vpop.f32.mrb[0].mxu0
      %v6668 = vadd.f32 %v6376, %v6667
      %v6669 = vpop.f32.mrb[0].mxu0
      %v6670 = vpop.f32.mrb[0].mxu0
      %v6671 = vadd.f32 %v6379, %v6670
      %v6672 = vpop.f32.mrb[0].mxu0
      %6673 = vmatprep.mubr.bf16.mxu0 0
      %6674 = vmatmul.mubr.bf16.gmra.mrb[0].mxu0 %v6576
      %v6675 = vpop.f32.mrb[0].mxu0
      %v6676 = vadd.f32 %v6384, %v6675
      %v6677 = vpop.f32.mrb[0].mxu0
      %v6678 = vpop.f32.mrb[0].mxu0
      %v6679 = vadd.f32 %v6387, %v6678
      %v6680 = vpop.f32.mrb[0].mxu0
      %6681 = vmatprep.mubr.bf16.mxu0 0
      %6682 = vmatmul.mubr.bf16.gmra.mrb[0].mxu0 %v6579
      %v6683 = vpop.f32.mrb[0].mxu0
      %v6684 = vadd.f32 %v6392, %v6683
      %v6685 = vpop.f32.mrb[0].mxu0
      %v6686 = vpop.f32.mrb[0].mxu0
      %v6687 = vadd.f32 %v6395, %v6686
      %v6688 = vpop.f32.mrb[0].mxu0
      %6689 = vmatprep.mubr.bf16.mxu0 0
      %6690 = vmatmul.mubr.bf16.gmra.mrb[0].mxu0 %v6582
      %v6691 = vpop.f32.mrb[0].mxu0
      %v6692 = vadd.f32 %v6400, %v6691
      %v6693 = vpop.f32.mrb[0].mxu0
      %v6694 = vpop.f32.mrb[0].mxu0
      %v6695 = vadd.f32 %v6403, %v6694
      %v6696 = vpop.f32.mrb[0].mxu0
      %6697 = vmatprep.mubr.bf16.mxu0 0
      %6698 = vmatmul.mubr.bf16.gmra.mrb[0].mxu0 %v6585
      %v6699 = vpop.f32.mrb[0].mxu0
      %v6700 = vadd.f32 %v6408, %v6699
      %v6701 = vpop.f32.mrb[0].mxu0
      %v6702 = vpop.f32.mrb[0].mxu0
      %v6703 = vadd.f32 %v6411, %v6702
      %v6704 = vpop.f32.mrb[0].mxu0
      %6705 = vmatprep.mubr.bf16.mxu0 0
      %6706 = vmatmul.mubr.bf16.gmra.mrb[0].mxu0 %v6588
      %v6707 = vpop.f32.mrb[0].mxu0
      %v6708 = vadd.f32 %v6416, %v6707
      %v6709 = vpop.f32.mrb[0].mxu0
      %v6710 = vpop.f32.mrb[0].mxu0
      %v6711 = vadd.f32 %v6419, %v6710
      %v6712 = vpop.f32.mrb[0].mxu0
      %6713 = vmatprep.mubr.bf16.mxu0 0
      %6714 = vmatmul.mubr.bf16.gmra.mrb[0].mxu0 %v6591
      %v6715 = vpop.f32.mrb[0].mxu0
      %v6716 = vadd.f32 %v6424, %v6715
      %v6717 = vpop.f32.mrb[0].mxu0
      %v6718 = vpop.f32.mrb[0].mxu0
      %v6719 = vadd.f32 %v6427, %v6718
      %v6720 = vpop.f32.mrb[0].mxu0
      %6721 = vmatprep.mubr.bf16.mxu0 0
      %6722 = vmatmul.mubr.bf16.gmra.mrb[0].mxu0 %v6594
      %v6723 = vpop.f32.mrb[0].mxu0
      %v6724 = vadd.f32 %v6432, %v6723
      %v6725 = vpop.f32.mrb[0].mxu0
      %v6726 = vpop.f32.mrb[0].mxu0
      %v6727 = vadd.f32 %v6435, %v6726
      %v6728 = vpop.f32.mrb[0].mxu0
      %6729 = vmatprep.mubr.bf16.mxu0 0
      %6730 = vmatmul.mubr.bf16.gmra.mrb[0].mxu0 %v6597
      %v6731 = vpop.f32.mrb[0].mxu0
      %v6732 = vadd.f32 %v6440, %v6731
      %v6733 = vpop.f32.mrb[0].mxu0
      %v6734 = vpop.f32.mrb[0].mxu0
      %v6735 = vadd.f32 %v6443, %v6734
      %v6736 = vpop.f32.mrb[0].mxu0
      %6737 = vmatprep.mubr.bf16.mxu0 0
      %6738 = vmatmul.mubr.bf16.gmra.mrb[0].mxu0 %v6600
      %v6739 = vpop.f32.mrb[0].mxu0
      %v6740 = vadd.f32 %v6448, %v6739
      %v6741 = vpop.f32.mrb[0].mxu0
      %v6742 = vpop.f32.mrb[0].mxu0
      %v6743 = vadd.f32 %v6451, %v6742
      %v6744 = vpop.f32.mrb[0].mxu0
      %6745 = vmatprep.mubr.bf16.mxu0 0
      %6746 = vmatmul.mubr.bf16.gmra.mrb[0].mxu0 %v6603
      %v6747 = vpop.f32.mrb[0].mxu0
      %v6748 = vadd.f32 %v6456, %v6747
      %v6749 = vpop.f32.mrb[0].mxu0
      %v6750 = vpop.f32.mrb[0].mxu0
      %v6751 = vadd.f32 %v6459, %v6750
      %v6752 = vpop.f32.mrb[0].mxu0
      %6753 = vmatprep.mubr.bf16.mxu0 0
      %6754 = vmatmul.mubr.bf16.gmra.mrb[0].mxu0 %v6606
      %v6755 = vpop.f32.mrb[0].mxu0
      %v6756 = vadd.f32 %v6464, %v6755
      %v6757 = vpop.f32.mrb[0].mxu0
      %v6758 = vpop.f32.mrb[0].mxu0
      %v6759 = vadd.f32 %v6467, %v6758
      %v6760 = vpop.f32.mrb[0].mxu0
      %6761 = vmatprep.mubr.bf16.mxu0 0
      %6762 = vmatmul.mubr.bf16.gmra.mrb[0].mxu0 %v6609
      %v6763 = vpop.f32.mrb[0].mxu0
      %v6764 = vadd.f32 %v6472, %v6763
      %v6765 = vpop.f32.mrb[0].mxu0
      %v6766 = vpop.f32.mrb[0].mxu0
      %v6767 = vadd.f32 %v6475, %v6766
      %v6768 = vpop.f32.mrb[0].mxu0
      %6769 = vmatprep.mubr.bf16.mxu0 0
      %6770 = vmatmul.mubr.bf16.gmra.mrb[0].mxu0 %v6612
      %v6771 = vpop.f32.mrb[0].mxu0
      %v6772 = vadd.f32 %v6480, %v6771
      %v6773 = vpop.f32.mrb[0].mxu0
      %v6774 = vpop.f32.mrb[0].mxu0
      %v6775 = vadd.f32 %v6483, %v6774
      %v6776 = vpop.f32.mrb[0].mxu0
      %6777 = vdwg.mxu0
      %v6778 = vld [vmem:[#allocation2] sm:$0xe]
      %v6779 = vld [vmem:[#allocation2 + $0xc] sm:$0xe]
      %v6780 = vld [vmem:[#allocation2 + $0x18] sm:$0xe]
      %v6781 = vld [vmem:[#allocation2 + $0x24] sm:$0xe]
      %v6782 = vld [vmem:[#allocation2 + $0x30] sm:$0xe]
      %v6783 = vld [vmem:[#allocation2 + $0x3c] sm:$0xe]
      %v6784 = vld [vmem:[#allocation2 + $0x48] sm:$0xe]
      %v6785 = vld [vmem:[#allocation2 + $0x54] sm:$0xe]
      %v6786 = vld [vmem:[#allocation2 + $0x60] sm:$0xe]
      %v6787 = vld [vmem:[#allocation2 + $0x6c] sm:$0xe]
      %v6788 = vld [vmem:[#allocation2 + $0x78] sm:$0xe]
      %v6789 = vld [vmem:[#allocation2 + $0x84] sm:$0xe]
      %v6790 = vld [vmem:[#allocation2 + $0x90] sm:$0xe]
      %v6791 = vld [vmem:[#allocation2 + $0x9c] sm:$0xe]
      %v6792 = vld [vmem:[#allocation2 + $0xa8] sm:$0xe]
      %v6793 = vld [vmem:[#allocation2 + $0xb4] sm:$0xe]
      %v6826 = vrot.slane %v6778, 5
      %v6827 = vrot.slane %v6826, 4
      %v6828 = vrot.slane %v5792, 5
      %v6829 = vsel %vm1558, %v6827, %v6828
      %v6830 = vrot.slane %v6828, 4
      %v6831 = vrot.slane %v5824, 5
      %v6832 = vsel %vm1558, %v6830, %v6831
      %v6833 = vrot.slane %v6779, 5
      %v6834 = vrot.slane %v6833, 4
      %v6835 = vrot.slane %v5794, 5
      %v6836 = vsel %vm1558, %v6834, %v6835
      %v6837 = vrot.slane %v6835, 4
      %v6838 = vrot.slane %v5825, 5
      %v6839 = vsel %vm1558, %v6837, %v6838
      %v6840 = vrot.slane %v6780, 5
      %v6841 = vrot.slane %v6840, 4
      %v6842 = vrot.slane %v5796, 5
      %v6843 = vsel %vm1558, %v6841, %v6842
      %v6844 = vrot.slane %v6842, 4
      %v6845 = vrot.slane %v5826, 5
      %v6846 = vsel %vm1558, %v6844, %v6845
      %v6847 = vrot.slane %v6781, 5
      %v6848 = vrot.slane %v6847, 4
      %v6849 = vrot.slane %v5798, 5
      %v6850 = vsel %vm1558, %v6848, %v6849
      %v6851 = vrot.slane %v6849, 4
      %v6852 = vrot.slane %v5827, 5
      %v6853 = vsel %vm1558, %v6851, %v6852
      %v6854 = vrot.slane %v6782, 5
      %v6855 = vrot.slane %v6854, 4
      %v6856 = vrot.slane %v5800, 5
      %v6857 = vsel %vm1558, %v6855, %v6856
      %v6858 = vrot.slane %v6856, 4
      %v6859 = vrot.slane %v5828, 5
      %v6860 = vsel %vm1558, %v6858, %v6859
      %v6861 = vrot.slane %v6783, 5
      %v6862 = vrot.slane %v6861, 4
      %v6863 = vrot.slane %v5802, 5
      %v6864 = vsel %vm1558, %v6862, %v6863
      %v6865 = vrot.slane %v6863, 4
      %v6866 = vrot.slane %v5829, 5
      %v6867 = vsel %vm1558, %v6865, %v6866
      %v6868 = vrot.slane %v6784, 5
      %v6869 = vrot.slane %v6868, 4
      %v6870 = vrot.slane %v5804, 5
      %v6871 = vsel %vm1558, %v6869, %v6870
      %v6872 = vrot.slane %v6870, 4
      %v6873 = vrot.slane %v5830, 5
      %v6874 = vsel %vm1558, %v6872, %v6873
      %v6875 = vrot.slane %v6785, 5
      %v6876 = vrot.slane %v6875, 4
      %v6877 = vrot.slane %v5806, 5
      %v6878 = vsel %vm1558, %v6876, %v6877
      %v6879 = vrot.slane %v6877, 4
      %v6880 = vrot.slane %v5831, 5
      %v6881 = vsel %vm1558, %v6879, %v6880
      %v6882 = vrot.slane %v6786, 5
      %v6883 = vrot.slane %v6882, 4
      %v6884 = vrot.slane %v5808, 5
      %v6885 = vsel %vm1558, %v6883, %v6884
      %v6886 = vrot.slane %v6884, 4
      %v6887 = vrot.slane %v5832, 5
      %v6888 = vsel %vm1558, %v6886, %v6887
      %v6889 = vrot.slane %v6787, 5
      %v6890 = vrot.slane %v6889, 4
      %v6891 = vrot.slane %v5810, 5
      %v6892 = vsel %vm1558, %v6890, %v6891
      %v6893 = vrot.slane %v6891, 4
      %v6894 = vrot.slane %v5833, 5
      %v6895 = vsel %vm1558, %v6893, %v6894
      %v6896 = vrot.slane %v6788, 5
      %v6897 = vrot.slane %v6896, 4
      %v6898 = vrot.slane %v5812, 5
      %v6899 = vsel %vm1558, %v6897, %v6898
      %v6900 = vrot.slane %v6898, 4
      %v6901 = vrot.slane %v5834, 5
      %v6902 = vsel %vm1558, %v6900, %v6901
      %v6903 = vrot.slane %v6789, 5
      %v6904 = vrot.slane %v6903, 4
      %v6905 = vrot.slane %v5814, 5
      %v6906 = vsel %vm1558, %v6904, %v6905
      %v6907 = vrot.slane %v6905, 4
      %v6908 = vrot.slane %v5835, 5
      %v6909 = vsel %vm1558, %v6907, %v6908
      %v6910 = vrot.slane %v6790, 5
      %v6911 = vrot.slane %v6910, 4
      %v6912 = vrot.slane %v5816, 5
      %v6913 = vsel %vm1558, %v6911, %v6912
      %v6914 = vrot.slane %v6912, 4
      %v6915 = vrot.slane %v5836, 5
      %v6916 = vsel %vm1558, %v6914, %v6915
      %v6917 = vrot.slane %v6791, 5
      %v6918 = vrot.slane %v6917, 4
      %v6919 = vrot.slane %v5818, 5
      %v6920 = vsel %vm1558, %v6918, %v6919
      %v6921 = vrot.slane %v6919, 4
      %v6922 = vrot.slane %v5837, 5
      %v6923 = vsel %vm1558, %v6921, %v6922
      %v6924 = vrot.slane %v6792, 5
      %v6925 = vrot.slane %v6924, 4
      %v6926 = vrot.slane %v5820, 5
      %v6927 = vsel %vm1558, %v6925, %v6926
      %v6928 = vrot.slane %v6926, 4
      %v6929 = vrot.slane %v5838, 5
      %v6930 = vsel %vm1558, %v6928, %v6929
      %v6931 = vrot.slane %v6793, 5
      %v6932 = vrot.slane %v6931, 4
      %v6933 = vrot.slane %v5822, 5
      %v6934 = vsel %vm1558, %v6932, %v6933
      %v6935 = vrot.slane %v6933, 4
      %v6936 = vrot.slane %v5839, 5
      %v6937 = vsel %vm1558, %v6935, %v6936
      %s6938 = scalar_lea.vmem %s2, 4
      %v6939 = vld [vmem:[%s6938] sm:$0x3]
      %v6940 = vunpack.c.l.b16 %v6829
      %v6941 = vunpack.c.l.b16 %v6832
      %v6942 = vunpack.c.l.b16 %v6836
      %v6943 = vunpack.c.l.b16 %v6839
      %v6944 = vunpack.c.l.b16 %v6843
      %v6945 = vunpack.c.l.b16 %v6846
      %v6946 = vunpack.c.l.b16 %v6850
      %v6947 = vunpack.c.l.b16 %v6853
      %v6948 = vunpack.c.l.b16 %v6857
      %v6949 = vunpack.c.l.b16 %v6860
      %v6950 = vunpack.c.l.b16 %v6864
      %v6951 = vunpack.c.l.b16 %v6867
      %v6952 = vunpack.c.l.b16 %v6871
      %v6953 = vunpack.c.l.b16 %v6874
      %v6954 = vunpack.c.l.b16 %v6878
      %v6955 = vunpack.c.l.b16 %v6881
      %v6956 = vunpack.c.l.b16 %v6885
      %v6957 = vunpack.c.l.b16 %v6888
      %v6958 = vunpack.c.l.b16 %v6892
      %v6959 = vunpack.c.l.b16 %v6895
      %v6960 = vunpack.c.l.b16 %v6899
      %v6961 = vunpack.c.l.b16 %v6902
      %v6962 = vunpack.c.l.b16 %v6906
      %v6963 = vunpack.c.l.b16 %v6909
      %v6964 = vunpack.c.l.b16 %v6913
      %v6965 = vunpack.c.l.b16 %v6916
      %v6966 = vunpack.c.l.b16 %v6920
      %v6967 = vunpack.c.l.b16 %v6923
      %v6968 = vunpack.c.l.b16 %v6927
      %v6969 = vunpack.c.l.b16 %v6930
      %v6970 = vunpack.c.l.b16 %v6934
      %v6971 = vunpack.c.l.b16 %v6937
      %v6972 = vpack.c.b16 %v6941, %v6940
      %v6973 = vpack.c.b16 %v6943, %v6942
      %v6974 = vpack.c.b16 %v6945, %v6944
      %v6975 = vpack.c.b16 %v6947, %v6946
      %v6976 = vpack.c.b16 %v6949, %v6948
      %v6977 = vpack.c.b16 %v6951, %v6950
      %v6978 = vpack.c.b16 %v6953, %v6952
      %v6979 = vpack.c.b16 %v6955, %v6954
      %v6980 = vpack.c.b16 %v6957, %v6956
      %v6981 = vpack.c.b16 %v6959, %v6958
      %v6982 = vpack.c.b16 %v6961, %v6960
      %v6983 = vpack.c.b16 %v6963, %v6962
      %v6984 = vpack.c.b16 %v6965, %v6964
      %v6985 = vpack.c.b16 %v6967, %v6966
      %v6986 = vpack.c.b16 %v6969, %v6968
      %v6987 = vpack.c.b16 %v6971, %v6970
      %v6989 = vsel %vm1002, %v6972, 0
      %v6992 = vsel %vm1002, %v6973, 0
      %v6995 = vsel %vm1002, %v6974, 0
      %v6998 = vsel %vm1002, %v6975, 0
      %v7001 = vsel %vm1002, %v6976, 0
      %v7004 = vsel %vm1002, %v6977, 0
      %v7007 = vsel %vm1002, %v6978, 0
      %v7010 = vsel %vm1002, %v6979, 0
      %v7013 = vsel %vm1002, %v6980, 0
      %v7016 = vsel %vm1002, %v6981, 0
      %v7019 = vsel %vm1002, %v6982, 0
      %v7022 = vsel %vm1002, %v6983, 0
      %v7025 = vsel %vm1002, %v6984, 0
      %v7028 = vsel %vm1002, %v6985, 0
      %v7031 = vsel %vm1002, %v6986, 0
      %v7034 = vsel %vm1002, %v6987, 0
      %v7037 = vsel %vm1051, %v6939, 0
      %7039 = vmatprep.subr.bf16.mxu0 0
      %7040 = vmatpush1.bf16.msra.mxu0 %v7037
      %7041 = vmatprep.subr.bf16.mxu0 0
      %7042 = vmatpush1.bf16.msra.mxu0 0
      %7043 = vmatprep.subr.bf16.mxu0 0
      %7044 = vmatpush1.bf16.msra.mxu0 0
      %7045 = vmatprep.subr.bf16.mxu0 0
      %7046 = vmatpush1.bf16.msra.mxu0 0
      %7047 = vmatprep.subr.bf16.mxu0 0
      %7048 = vmatpush1.bf16.msra.mxu0 0
      %7049 = vmatprep.subr.bf16.mxu0 0
      %7050 = vmatpush1.bf16.msra.mxu0 0
      %7051 = vmatprep.subr.bf16.mxu0 0
      %7052 = vmatpush1.bf16.msra.mxu0 0
      %7053 = vmatprep.subr.bf16.mxu0 0
      %7054 = vmatpush1.bf16.msra.mxu0 0
      %7055 = vmatprep.subr.bf16.mxu0 0
      %7056 = vmatpush1.bf16.msra.mxu0 0
      %7057 = vmatprep.subr.bf16.mxu0 0
      %7058 = vmatpush1.bf16.msra.mxu0 0
      %7059 = vmatprep.subr.bf16.mxu0 0
      %7060 = vmatpush1.bf16.msra.mxu0 0
      %7061 = vmatprep.subr.bf16.mxu0 0
      %7062 = vmatpush1.bf16.msra.mxu0 0
      %7063 = vmatprep.subr.bf16.mxu0 0
      %7064 = vmatpush1.bf16.msra.mxu0 0
      %7065 = vmatprep.subr.bf16.mxu0 0
      %7066 = vmatpush1.bf16.msra.mxu0 0
      %7067 = vmatprep.subr.bf16.mxu0 0
      %7068 = vmatpush1.bf16.msra.mxu0 0
      %7069 = vmatprep.subr.bf16.mxu0 0
      %7070 = vmatpush1.bf16.msra.mxu0 0
      %7071 = vmatprep.mubr.bf16.mxu0 0
      %7072 = vmatmul.mubr.bf16.gmra.mrb[0].mxu0 %v6989
      %v7073 = vpop.f32.mrb[0].mxu0
      %v7074 = vadd.f32 0.0, %v7073
      %v7075 = vpop.f32.mrb[0].mxu0
      %v7076 = vpop.f32.mrb[0].mxu0
      %v7077 = vadd.f32 0.0, %v7076
      %v7078 = vpop.f32.mrb[0].mxu0
      %7079 = vmatprep.mubr.bf16.mxu0 0
      %7080 = vmatmul.mubr.bf16.gmra.mrb[0].mxu0 %v6992
      %v7081 = vpop.f32.mrb[0].mxu0
      %v7082 = vadd.f32 0.0, %v7081
      %v7083 = vpop.f32.mrb[0].mxu0
      %v7084 = vpop.f32.mrb[0].mxu0
      %v7085 = vadd.f32 0.0, %v7084
      %v7086 = vpop.f32.mrb[0].mxu0
      %7087 = vmatprep.mubr.bf16.mxu0 0
      %7088 = vmatmul.mubr.bf16.gmra.mrb[0].mxu0 %v6995
      %v7089 = vpop.f32.mrb[0].mxu0
      %v7090 = vadd.f32 0.0, %v7089
      %v7091 = vpop.f32.mrb[0].mxu0
      %v7092 = vpop.f32.mrb[0].mxu0
      %v7093 = vadd.f32 0.0, %v7092
      %v7094 = vpop.f32.mrb[0].mxu0
      %7095 = vmatprep.mubr.bf16.mxu0 0
      %7096 = vmatmul.mubr.bf16.gmra.mrb[0].mxu0 %v6998
      %v7097 = vpop.f32.mrb[0].mxu0
      %v7098 = vadd.f32 0.0, %v7097
      %v7099 = vpop.f32.mrb[0].mxu0
      %v7100 = vpop.f32.mrb[0].mxu0
      %v7101 = vadd.f32 0.0, %v7100
      %v7102 = vpop.f32.mrb[0].mxu0
      %7103 = vmatprep.mubr.bf16.mxu0 0
      %7104 = vmatmul.mubr.bf16.gmra.mrb[0].mxu0 %v7001
      %v7105 = vpop.f32.mrb[0].mxu0
      %v7106 = vadd.f32 0.0, %v7105
      %v7107 = vpop.f32.mrb[0].mxu0
      %v7108 = vpop.f32.mrb[0].mxu0
      %v7109 = vadd.f32 0.0, %v7108
      %v7110 = vpop.f32.mrb[0].mxu0
      %7111 = vmatprep.mubr.bf16.mxu0 0
      %7112 = vmatmul.mubr.bf16.gmra.mrb[0].mxu0 %v7004
      %v7113 = vpop.f32.mrb[0].mxu0
      %v7114 = vadd.f32 0.0, %v7113
      %v7115 = vpop.f32.mrb[0].mxu0
      %v7116 = vpop.f32.mrb[0].mxu0
      %v7117 = vadd.f32 0.0, %v7116
      %v7118 = vpop.f32.mrb[0].mxu0
      %7119 = vmatprep.mubr.bf16.mxu0 0
      %7120 = vmatmul.mubr.bf16.gmra.mrb[0].mxu0 %v7007
      %v7121 = vpop.f32.mrb[0].mxu0
      %v7122 = vadd.f32 0.0, %v7121
      %v7123 = vpop.f32.mrb[0].mxu0
      %v7124 = vpop.f32.mrb[0].mxu0
      %v7125 = vadd.f32 0.0, %v7124
      %v7126 = vpop.f32.mrb[0].mxu0
      %7127 = vmatprep.mubr.bf16.mxu0 0
      %7128 = vmatmul.mubr.bf16.gmra.mrb[0].mxu0 %v7010
      %v7129 = vpop.f32.mrb[0].mxu0
      %v7130 = vadd.f32 0.0, %v7129
      %v7131 = vpop.f32.mrb[0].mxu0
      %v7132 = vpop.f32.mrb[0].mxu0
      %v7133 = vadd.f32 0.0, %v7132
      %v7134 = vpop.f32.mrb[0].mxu0
      %7135 = vmatprep.mubr.bf16.mxu0 0
      %7136 = vmatmul.mubr.bf16.gmra.mrb[0].mxu0 %v7013
      %v7137 = vpop.f32.mrb[0].mxu0
      %v7138 = vadd.f32 0.0, %v7137
      %v7139 = vpop.f32.mrb[0].mxu0
      %v7140 = vpop.f32.mrb[0].mxu0
      %v7141 = vadd.f32 0.0, %v7140
      %v7142 = vpop.f32.mrb[0].mxu0
      %7143 = vmatprep.mubr.bf16.mxu0 0
      %7144 = vmatmul.mubr.bf16.gmra.mrb[0].mxu0 %v7016
      %v7145 = vpop.f32.mrb[0].mxu0
      %v7146 = vadd.f32 0.0, %v7145
      %v7147 = vpop.f32.mrb[0].mxu0
      %v7148 = vpop.f32.mrb[0].mxu0
      %v7149 = vadd.f32 0.0, %v7148
      %v7150 = vpop.f32.mrb[0].mxu0
      %7151 = vmatprep.mubr.bf16.mxu0 0
      %7152 = vmatmul.mubr.bf16.gmra.mrb[0].mxu0 %v7019
      %v7153 = vpop.f32.mrb[0].mxu0
      %v7154 = vadd.f32 0.0, %v7153
      %v7155 = vpop.f32.mrb[0].mxu0
      %v7156 = vpop.f32.mrb[0].mxu0
      %v7157 = vadd.f32 0.0, %v7156
      %v7158 = vpop.f32.mrb[0].mxu0
      %7159 = vmatprep.mubr.bf16.mxu0 0
      %7160 = vmatmul.mubr.bf16.gmra.mrb[0].mxu0 %v7022
      %v7161 = vpop.f32.mrb[0].mxu0
      %v7162 = vadd.f32 0.0, %v7161
      %v7163 = vpop.f32.mrb[0].mxu0
      %v7164 = vpop.f32.mrb[0].mxu0
      %v7165 = vadd.f32 0.0, %v7164
      %v7166 = vpop.f32.mrb[0].mxu0
      %7167 = vmatprep.mubr.bf16.mxu0 0
      %7168 = vmatmul.mubr.bf16.gmra.mrb[0].mxu0 %v7025
      %v7169 = vpop.f32.mrb[0].mxu0
      %v7170 = vadd.f32 0.0, %v7169
      %v7171 = vpop.f32.mrb[0].mxu0
      %v7172 = vpop.f32.mrb[0].mxu0
      %v7173 = vadd.f32 0.0, %v7172
      %v7174 = vpop.f32.mrb[0].mxu0
      %7175 = vmatprep.mubr.bf16.mxu0 0
      %7176 = vmatmul.mubr.bf16.gmra.mrb[0].mxu0 %v7028
      %v7177 = vpop.f32.mrb[0].mxu0
      %v7178 = vadd.f32 0.0, %v7177
      %v7179 = vpop.f32.mrb[0].mxu0
      %v7180 = vpop.f32.mrb[0].mxu0
      %v7181 = vadd.f32 0.0, %v7180
      %v7182 = vpop.f32.mrb[0].mxu0
      %7183 = vmatprep.mubr.bf16.mxu0 0
      %7184 = vmatmul.mubr.bf16.gmra.mrb[0].mxu0 %v7031
      %v7185 = vpop.f32.mrb[0].mxu0
      %v7186 = vadd.f32 0.0, %v7185
      %v7187 = vpop.f32.mrb[0].mxu0
      %v7188 = vpop.f32.mrb[0].mxu0
      %v7189 = vadd.f32 0.0, %v7188
      %v7190 = vpop.f32.mrb[0].mxu0
      %7191 = vmatprep.mubr.bf16.mxu0 0
      %7192 = vmatmul.mubr.bf16.gmra.mrb[0].mxu0 %v7034
      %v7193 = vpop.f32.mrb[0].mxu0
      %v7194 = vadd.f32 0.0, %v7193
      %v7195 = vpop.f32.mrb[0].mxu0
      %v7196 = vpop.f32.mrb[0].mxu0
      %v7197 = vadd.f32 0.0, %v7196
      %v7198 = vpop.f32.mrb[0].mxu0
      %7199 = vdwg.mxu0
      %v7200 = vadd.f32 %v6652, %v7074
      %v7201 = vadd.f32 %v6655, %v7077
      %v7202 = vadd.f32 %v6660, %v7082
      %v7203 = vadd.f32 %v6663, %v7085
      %v7204 = vadd.f32 %v6668, %v7090
      %v7205 = vadd.f32 %v6671, %v7093
      %v7206 = vadd.f32 %v6676, %v7098
      %v7207 = vadd.f32 %v6679, %v7101
      %v7208 = vadd.f32 %v6684, %v7106
      %v7209 = vadd.f32 %v6687, %v7109
      %v7210 = vadd.f32 %v6692, %v7114
      %v7211 = vadd.f32 %v6695, %v7117
      %v7212 = vadd.f32 %v6700, %v7122
      %v7213 = vadd.f32 %v6703, %v7125
      %v7214 = vadd.f32 %v6708, %v7130
      %v7215 = vadd.f32 %v6711, %v7133
      %v7216 = vadd.f32 %v6716, %v7138
      %v7217 = vadd.f32 %v6719, %v7141
      %v7218 = vadd.f32 %v6724, %v7146
      %v7219 = vadd.f32 %v6727, %v7149
      %v7220 = vadd.f32 %v6732, %v7154
      %v7221 = vadd.f32 %v6735, %v7157
      %v7222 = vadd.f32 %v6740, %v7162
      %v7223 = vadd.f32 %v6743, %v7165
      %v7224 = vadd.f32 %v6748, %v7170
      %v7225 = vadd.f32 %v6751, %v7173
      %v7226 = vadd.f32 %v6756, %v7178
      %v7227 = vadd.f32 %v6759, %v7181
      %v7228 = vadd.f32 %v6764, %v7186
      %v7229 = vadd.f32 %v6767, %v7189
      %v7230 = vadd.f32 %v6772, %v7194
      %v7231 = vadd.f32 %v6775, %v7197
      %v7232 = vld [vmem:[%s1965] sm:$0xf]
      %v7233 = vld [vmem:[%s1965 + $0x4] sm:$0xf]
      %v7234 = vld [vmem:[%s1965 + $0xc] sm:$0xf]
      %v7235 = vld [vmem:[%s1965 + $0x10] sm:$0xf]
      %v7236 = vld [vmem:[%s1965 + $0x18] sm:$0xf]
      %v7237 = vld [vmem:[%s1965 + $0x1c] sm:$0xf]
      %v7238 = vld [vmem:[%s1965 + $0x24] sm:$0xf]
      %v7239 = vld [vmem:[%s1965 + $0x28] sm:$0xf]
      %v7240 = vld [vmem:[%s1965 + $0x30] sm:$0xf]
      %v7241 = vld [vmem:[%s1965 + $0x34] sm:$0xf]
      %v7242 = vld [vmem:[%s1965 + $0x3c] sm:$0xf]
      %v7243 = vld [vmem:[%s1965 + $0x40] sm:$0xf]
      %v7244 = vld [vmem:[%s1965 + $0x48] sm:$0xf]
      %v7245 = vld [vmem:[%s1965 + $0x4c] sm:$0xf]
      %v7246 = vld [vmem:[%s1965 + $0x54] sm:$0xf]
      %v7247 = vld [vmem:[%s1965 + $0x58] sm:$0xf]
      %v7248 = vld [vmem:[%s1965 + $0x60] sm:$0xf]
      %v7249 = vld [vmem:[%s1965 + $0x64] sm:$0xf]
      %v7250 = vld [vmem:[%s1965 + $0x6c] sm:$0xf]
      %v7251 = vld [vmem:[%s1965 + $0x70] sm:$0xf]
      %v7252 = vld [vmem:[%s1965 + $0x78] sm:$0xf]
      %v7253 = vld [vmem:[%s1965 + $0x7c] sm:$0xf]
      %v7254 = vld [vmem:[%s1965 + $0x84] sm:$0xf]
      %v7255 = vld [vmem:[%s1965 + $0x88] sm:$0xf]
      %v7256 = vld [vmem:[%s1965 + $0x90] sm:$0xf]
      %v7257 = vld [vmem:[%s1965 + $0x94] sm:$0xf]
      %v7258 = vld [vmem:[%s1965 + $0x9c] sm:$0xf]
      %v7259 = vld [vmem:[%s1965 + $0xa0] sm:$0xf]
      %v7260 = vld [vmem:[%s1965 + $0xa8] sm:$0xf]
      %v7261 = vld [vmem:[%s1965 + $0xac] sm:$0xf]
      %v7262 = vld [vmem:[%s1965 + $0xb4] sm:$0xf]
      %v7263 = vld [vmem:[%s1965 + $0xb8] sm:$0xf]
      %s7264 = scalar_lea.vmem %s2, 6
      %v7265 = vld [vmem:[%s7264] sm:$0x3]
      %v7298 = vunpack.c.l.b16 %v7232
      %v7299 = vunpack.c.l.b16 %v7233
      %v7300 = vunpack.c.l.b16 %v7234
      %v7301 = vunpack.c.l.b16 %v7235
      %v7302 = vunpack.c.l.b16 %v7236
      %v7303 = vunpack.c.l.b16 %v7237
      %v7304 = vunpack.c.l.b16 %v7238
      %v7305 = vunpack.c.l.b16 %v7239
      %v7306 = vunpack.c.l.b16 %v7240
      %v7307 = vunpack.c.l.b16 %v7241
      %v7308 = vunpack.c.l.b16 %v7242
      %v7309 = vunpack.c.l.b16 %v7243
      %v7310 = vunpack.c.l.b16 %v7244
      %v7311 = vunpack.c.l.b16 %v7245
      %v7312 = vunpack.c.l.b16 %v7246
      %v7313 = vunpack.c.l.b16 %v7247
      %v7314 = vunpack.c.l.b16 %v7248
      %v7315 = vunpack.c.l.b16 %v7249
      %v7316 = vunpack.c.l.b16 %v7250
      %v7317 = vunpack.c.l.b16 %v7251
      %v7318 = vunpack.c.l.b16 %v7252
      %v7319 = vunpack.c.l.b16 %v7253
      %v7320 = vunpack.c.l.b16 %v7254
      %v7321 = vunpack.c.l.b16 %v7255
      %v7322 = vunpack.c.l.b16 %v7256
      %v7323 = vunpack.c.l.b16 %v7257
      %v7324 = vunpack.c.l.b16 %v7258
      %v7325 = vunpack.c.l.b16 %v7259
      %v7326 = vunpack.c.l.b16 %v7260
      %v7327 = vunpack.c.l.b16 %v7261
      %v7328 = vunpack.c.l.b16 %v7262
      %v7329 = vunpack.c.l.b16 %v7263
      %v7330 = vpack.c.b16 %v7299, %v7298
      %v7331 = vpack.c.b16 %v7301, %v7300
      %v7332 = vpack.c.b16 %v7303, %v7302
      %v7333 = vpack.c.b16 %v7305, %v7304
      %v7334 = vpack.c.b16 %v7307, %v7306
      %v7335 = vpack.c.b16 %v7309, %v7308
      %v7336 = vpack.c.b16 %v7311, %v7310
      %v7337 = vpack.c.b16 %v7313, %v7312
      %v7338 = vpack.c.b16 %v7315, %v7314
      %v7339 = vpack.c.b16 %v7317, %v7316
      %v7340 = vpack.c.b16 %v7319, %v7318
      %v7341 = vpack.c.b16 %v7321, %v7320
      %v7342 = vpack.c.b16 %v7323, %v7322
      %v7343 = vpack.c.b16 %v7325, %v7324
      %v7344 = vpack.c.b16 %v7327, %v7326
      %v7345 = vpack.c.b16 %v7329, %v7328
      %v7347 = vsel %vm1002, %v7330, 0
      %v7350 = vsel %vm1002, %v7331, 0
      %v7353 = vsel %vm1002, %v7332, 0
      %v7356 = vsel %vm1002, %v7333, 0
      %v7359 = vsel %vm1002, %v7334, 0
      %v7362 = vsel %vm1002, %v7335, 0
      %v7365 = vsel %vm1002, %v7336, 0
      %v7368 = vsel %vm1002, %v7337, 0
      %v7371 = vsel %vm1002, %v7338, 0
      %v7374 = vsel %vm1002, %v7339, 0
      %v7377 = vsel %vm1002, %v7340, 0
      %v7380 = vsel %vm1002, %v7341, 0
      %v7383 = vsel %vm1002, %v7342, 0
      %v7386 = vsel %vm1002, %v7343, 0
      %v7389 = vsel %vm1002, %v7344, 0
      %v7392 = vsel %vm1002, %v7345, 0
      %v7395 = vsel %vm1051, %v7265, 0
      %7397 = vmatprep.subr.bf16.mxu0 0
      %7398 = vmatpush1.bf16.msra.mxu0 %v7395
      %7399 = vmatprep.subr.bf16.mxu0 0
      %7400 = vmatpush1.bf16.msra.mxu0 0
      %7401 = vmatprep.subr.bf16.mxu0 0
      %7402 = vmatpush1.bf16.msra.mxu0 0
      %7403 = vmatprep.subr.bf16.mxu0 0
      %7404 = vmatpush1.bf16.msra.mxu0 0
      %7405 = vmatprep.subr.bf16.mxu0 0
      %7406 = vmatpush1.bf16.msra.mxu0 0
      %7407 = vmatprep.subr.bf16.mxu0 0
      %7408 = vmatpush1.bf16.msra.mxu0 0
      %7409 = vmatprep.subr.bf16.mxu0 0
      %7410 = vmatpush1.bf16.msra.mxu0 0
      %7411 = vmatprep.subr.bf16.mxu0 0
      %7412 = vmatpush1.bf16.msra.mxu0 0
      %7413 = vmatprep.subr.bf16.mxu0 0
      %7414 = vmatpush1.bf16.msra.mxu0 0
      %7415 = vmatprep.subr.bf16.mxu0 0
      %7416 = vmatpush1.bf16.msra.mxu0 0
      %7417 = vmatprep.subr.bf16.mxu0 0
      %7418 = vmatpush1.bf16.msra.mxu0 0
      %7419 = vmatprep.subr.bf16.mxu0 0
      %7420 = vmatpush1.bf16.msra.mxu0 0
      %7421 = vmatprep.subr.bf16.mxu0 0
      %7422 = vmatpush1.bf16.msra.mxu0 0
      %7423 = vmatprep.subr.bf16.mxu0 0
      %7424 = vmatpush1.bf16.msra.mxu0 0
      %7425 = vmatprep.subr.bf16.mxu0 0
      %7426 = vmatpush1.bf16.msra.mxu0 0
      %7427 = vmatprep.subr.bf16.mxu0 0
      %7428 = vmatpush1.bf16.msra.mxu0 0
      %7429 = vmatprep.mubr.bf16.mxu0 0
      %7430 = vmatmul.mubr.bf16.gmra.mrb[0].mxu0 %v7347
      %v7431 = vpop.f32.mrb[0].mxu0
      %v7432 = vadd.f32 0.0, %v7431
      %v7433 = vpop.f32.mrb[0].mxu0
      %v7434 = vpop.f32.mrb[0].mxu0
      %v7435 = vadd.f32 0.0, %v7434
      %v7436 = vpop.f32.mrb[0].mxu0
      %7437 = vmatprep.mubr.bf16.mxu0 0
      %7438 = vmatmul.mubr.bf16.gmra.mrb[0].mxu0 %v7350
      %v7439 = vpop.f32.mrb[0].mxu0
      %v7440 = vadd.f32 0.0, %v7439
      %v7441 = vpop.f32.mrb[0].mxu0
      %v7442 = vpop.f32.mrb[0].mxu0
      %v7443 = vadd.f32 0.0, %v7442
      %v7444 = vpop.f32.mrb[0].mxu0
      %7445 = vmatprep.mubr.bf16.mxu0 0
      %7446 = vmatmul.mubr.bf16.gmra.mrb[0].mxu0 %v7353
      %v7447 = vpop.f32.mrb[0].mxu0
      %v7448 = vadd.f32 0.0, %v7447
      %v7449 = vpop.f32.mrb[0].mxu0
      %v7450 = vpop.f32.mrb[0].mxu0
      %v7451 = vadd.f32 0.0, %v7450
      %v7452 = vpop.f32.mrb[0].mxu0
      %7453 = vmatprep.mubr.bf16.mxu0 0
      %7454 = vmatmul.mubr.bf16.gmra.mrb[0].mxu0 %v7356
      %v7455 = vpop.f32.mrb[0].mxu0
      %v7456 = vadd.f32 0.0, %v7455
      %v7457 = vpop.f32.mrb[0].mxu0
      %v7458 = vpop.f32.mrb[0].mxu0
      %v7459 = vadd.f32 0.0, %v7458
      %v7460 = vpop.f32.mrb[0].mxu0
      %7461 = vmatprep.mubr.bf16.mxu0 0
      %7462 = vmatmul.mubr.bf16.gmra.mrb[0].mxu0 %v7359
      %v7463 = vpop.f32.mrb[0].mxu0
      %v7464 = vadd.f32 0.0, %v7463
      %v7465 = vpop.f32.mrb[0].mxu0
      %v7466 = vpop.f32.mrb[0].mxu0
      %v7467 = vadd.f32 0.0, %v7466
      %v7468 = vpop.f32.mrb[0].mxu0
      %7469 = vmatprep.mubr.bf16.mxu0 0
      %7470 = vmatmul.mubr.bf16.gmra.mrb[0].mxu0 %v7362
      %v7471 = vpop.f32.mrb[0].mxu0
      %v7472 = vadd.f32 0.0, %v7471
      %v7473 = vpop.f32.mrb[0].mxu0
      %v7474 = vpop.f32.mrb[0].mxu0
      %v7475 = vadd.f32 0.0, %v7474
      %v7476 = vpop.f32.mrb[0].mxu0
      %7477 = vmatprep.mubr.bf16.mxu0 0
      %7478 = vmatmul.mubr.bf16.gmra.mrb[0].mxu0 %v7365
      %v7479 = vpop.f32.mrb[0].mxu0
      %v7480 = vadd.f32 0.0, %v7479
      %v7481 = vpop.f32.mrb[0].mxu0
      %v7482 = vpop.f32.mrb[0].mxu0
      %v7483 = vadd.f32 0.0, %v7482
      %v7484 = vpop.f32.mrb[0].mxu0
      %7485 = vmatprep.mubr.bf16.mxu0 0
      %7486 = vmatmul.mubr.bf16.gmra.mrb[0].mxu0 %v7368
      %v7487 = vpop.f32.mrb[0].mxu0
      %v7488 = vadd.f32 0.0, %v7487
      %v7489 = vpop.f32.mrb[0].mxu0
      %v7490 = vpop.f32.mrb[0].mxu0
      %v7491 = vadd.f32 0.0, %v7490
      %v7492 = vpop.f32.mrb[0].mxu0
      %7493 = vmatprep.mubr.bf16.mxu0 0
      %7494 = vmatmul.mubr.bf16.gmra.mrb[0].mxu0 %v7371
      %v7495 = vpop.f32.mrb[0].mxu0
      %v7496 = vadd.f32 0.0, %v7495
      %v7497 = vpop.f32.mrb[0].mxu0
      %v7498 = vpop.f32.mrb[0].mxu0
      %v7499 = vadd.f32 0.0, %v7498
      %v7500 = vpop.f32.mrb[0].mxu0
      %7501 = vmatprep.mubr.bf16.mxu0 0
      %7502 = vmatmul.mubr.bf16.gmra.mrb[0].mxu0 %v7374
      %v7503 = vpop.f32.mrb[0].mxu0
      %v7504 = vadd.f32 0.0, %v7503
      %v7505 = vpop.f32.mrb[0].mxu0
      %v7506 = vpop.f32.mrb[0].mxu0
      %v7507 = vadd.f32 0.0, %v7506
      %v7508 = vpop.f32.mrb[0].mxu0
      %7509 = vmatprep.mubr.bf16.mxu0 0
      %7510 = vmatmul.mubr.bf16.gmra.mrb[0].mxu0 %v7377
      %v7511 = vpop.f32.mrb[0].mxu0
      %v7512 = vadd.f32 0.0, %v7511
      %v7513 = vpop.f32.mrb[0].mxu0
      %v7514 = vpop.f32.mrb[0].mxu0
      %v7515 = vadd.f32 0.0, %v7514
      %v7516 = vpop.f32.mrb[0].mxu0
      %7517 = vmatprep.mubr.bf16.mxu0 0
      %7518 = vmatmul.mubr.bf16.gmra.mrb[0].mxu0 %v7380
      %v7519 = vpop.f32.mrb[0].mxu0
      %v7520 = vadd.f32 0.0, %v7519
      %v7521 = vpop.f32.mrb[0].mxu0
      %v7522 = vpop.f32.mrb[0].mxu0
      %v7523 = vadd.f32 0.0, %v7522
      %v7524 = vpop.f32.mrb[0].mxu0
      %7525 = vmatprep.mubr.bf16.mxu0 0
      %7526 = vmatmul.mubr.bf16.gmra.mrb[0].mxu0 %v7383
      %v7527 = vpop.f32.mrb[0].mxu0
      %v7528 = vadd.f32 0.0, %v7527
      %v7529 = vpop.f32.mrb[0].mxu0
      %v7530 = vpop.f32.mrb[0].mxu0
      %v7531 = vadd.f32 0.0, %v7530
      %v7532 = vpop.f32.mrb[0].mxu0
      %7533 = vmatprep.mubr.bf16.mxu0 0
      %7534 = vmatmul.mubr.bf16.gmra.mrb[0].mxu0 %v7386
      %v7535 = vpop.f32.mrb[0].mxu0
      %v7536 = vadd.f32 0.0, %v7535
      %v7537 = vpop.f32.mrb[0].mxu0
      %v7538 = vpop.f32.mrb[0].mxu0
      %v7539 = vadd.f32 0.0, %v7538
      %v7540 = vpop.f32.mrb[0].mxu0
      %7541 = vmatprep.mubr.bf16.mxu0 0
      %7542 = vmatmul.mubr.bf16.gmra.mrb[0].mxu0 %v7389
      %v7543 = vpop.f32.mrb[0].mxu0
      %v7544 = vadd.f32 0.0, %v7543
      %v7545 = vpop.f32.mrb[0].mxu0
      %v7546 = vpop.f32.mrb[0].mxu0
      %v7547 = vadd.f32 0.0, %v7546
      %v7548 = vpop.f32.mrb[0].mxu0
      %7549 = vmatprep.mubr.bf16.mxu0 0
      %7550 = vmatmul.mubr.bf16.gmra.mrb[0].mxu0 %v7392
      %v7551 = vpop.f32.mrb[0].mxu0
      %v7552 = vadd.f32 0.0, %v7551
      %v7553 = vpop.f32.mrb[0].mxu0
      %v7554 = vpop.f32.mrb[0].mxu0
      %v7555 = vadd.f32 0.0, %v7554
      %v7556 = vpop.f32.mrb[0].mxu0
      %7557 = vdwg.mxu0
      %v7558 = vadd.f32 %v7200, %v7432
      %v7559 = vadd.f32 %v7201, %v7435
      %v7560 = vadd.f32 %v7202, %v7440
      %v7561 = vadd.f32 %v7203, %v7443
      %v7562 = vadd.f32 %v7204, %v7448
      %v7563 = vadd.f32 %v7205, %v7451
      %v7564 = vadd.f32 %v7206, %v7456
      %v7565 = vadd.f32 %v7207, %v7459
      %v7566 = vadd.f32 %v7208, %v7464
      %v7567 = vadd.f32 %v7209, %v7467
      %v7568 = vadd.f32 %v7210, %v7472
      %v7569 = vadd.f32 %v7211, %v7475
      %v7570 = vadd.f32 %v7212, %v7480
      %v7571 = vadd.f32 %v7213, %v7483
      %v7572 = vadd.f32 %v7214, %v7488
      %v7573 = vadd.f32 %v7215, %v7491
      %v7574 = vadd.f32 %v7216, %v7496
      %v7575 = vadd.f32 %v7217, %v7499
      %v7576 = vadd.f32 %v7218, %v7504
      %v7577 = vadd.f32 %v7219, %v7507
      %v7578 = vadd.f32 %v7220, %v7512
      %v7579 = vadd.f32 %v7221, %v7515
      %v7580 = vadd.f32 %v7222, %v7520
      %v7581 = vadd.f32 %v7223, %v7523
      %v7582 = vadd.f32 %v7224, %v7528
      %v7583 = vadd.f32 %v7225, %v7531
      %v7584 = vadd.f32 %v7226, %v7536
      %v7585 = vadd.f32 %v7227, %v7539
      %v7586 = vadd.f32 %v7228, %v7544
      %v7587 = vadd.f32 %v7229, %v7547
      %v7588 = vadd.f32 %v7230, %v7552
      %v7589 = vadd.f32 %v7231, %v7555
      %v7590 = vld [vmem:[%s1965] sm:$0xf]
      %v7591 = vld [vmem:[%s1965 + $0x4] sm:$0xf]
      %v7592 = vld [vmem:[%s1965 + $0x8] sm:$0x1]
      %v7593 = vld [vmem:[%s1965 + $0xc] sm:$0xf]
      %v7594 = vld [vmem:[%s1965 + $0x10] sm:$0xf]
      %v7595 = vld [vmem:[%s1965 + $0x14] sm:$0x1]
      %v7596 = vld [vmem:[%s1965 + $0x18] sm:$0xf]
      %v7597 = vld [vmem:[%s1965 + $0x1c] sm:$0xf]
      %v7598 = vld [vmem:[%s1965 + $0x20] sm:$0x1]
      %v7599 = vld [vmem:[%s1965 + $0x24] sm:$0xf]
      %v7600 = vld [vmem:[%s1965 + $0x28] sm:$0xf]
      %v7601 = vld [vmem:[%s1965 + $0x2c] sm:$0x1]
      %v7602 = vld [vmem:[%s1965 + $0x30] sm:$0xf]
      %v7603 = vld [vmem:[%s1965 + $0x34] sm:$0xf]
      %v7604 = vld [vmem:[%s1965 + $0x38] sm:$0x1]
      %v7605 = vld [vmem:[%s1965 + $0x3c] sm:$0xf]
      %v7606 = vld [vmem:[%s1965 + $0x40] sm:$0xf]
      %v7607 = vld [vmem:[%s1965 + $0x44] sm:$0x1]
      %v7608 = vld [vmem:[%s1965 + $0x48] sm:$0xf]
      %v7609 = vld [vmem:[%s1965 + $0x4c] sm:$0xf]
      %v7610 = vld [vmem:[%s1965 + $0x50] sm:$0x1]
      %v7611 = vld [vmem:[%s1965 + $0x54] sm:$0xf]
      %v7612 = vld [vmem:[%s1965 + $0x58] sm:$0xf]
      %v7613 = vld [vmem:[%s1965 + $0x5c] sm:$0x1]
      %v7614 = vld [vmem:[%s1965 + $0x60] sm:$0xf]
      %v7615 = vld [vmem:[%s1965 + $0x64] sm:$0xf]
      %v7616 = vld [vmem:[%s1965 + $0x68] sm:$0x1]
      %v7617 = vld [vmem:[%s1965 + $0x6c] sm:$0xf]
      %v7618 = vld [vmem:[%s1965 + $0x70] sm:$0xf]
      %v7619 = vld [vmem:[%s1965 + $0x74] sm:$0x1]
      %v7620 = vld [vmem:[%s1965 + $0x78] sm:$0xf]
      %v7621 = vld [vmem:[%s1965 + $0x7c] sm:$0xf]
      %v7622 = vld [vmem:[%s1965 + $0x80] sm:$0x1]
      %v7623 = vld [vmem:[%s1965 + $0x84] sm:$0xf]
      %v7624 = vld [vmem:[%s1965 + $0x88] sm:$0xf]
      %v7625 = vld [vmem:[%s1965 + $0x8c] sm:$0x1]
      %v7626 = vld [vmem:[%s1965 + $0x90] sm:$0xf]
      %v7627 = vld [vmem:[%s1965 + $0x94] sm:$0xf]
      %v7628 = vld [vmem:[%s1965 + $0x98] sm:$0x1]
      %v7629 = vld [vmem:[%s1965 + $0x9c] sm:$0xf]
      %v7630 = vld [vmem:[%s1965 + $0xa0] sm:$0xf]
      %v7631 = vld [vmem:[%s1965 + $0xa4] sm:$0x1]
      %v7632 = vld [vmem:[%s1965 + $0xa8] sm:$0xf]
      %v7633 = vld [vmem:[%s1965 + $0xac] sm:$0xf]
      %v7634 = vld [vmem:[%s1965 + $0xb0] sm:$0x1]
      %v7635 = vld [vmem:[%s1965 + $0xb4] sm:$0xf]
      %v7636 = vld [vmem:[%s1965 + $0xb8] sm:$0xf]
      %v7637 = vld [vmem:[%s1965 + $0xbc] sm:$0x1]
      %v7639 = vshrl.u32 %v7590, 16
      %v7641 = vrot.slane %v7639, 4
      %v7642 = vshll.u32 %v7590, 16
      %v7644 = vrot.slane %v7642, 5
      %v7645 = vor.u32 %v7641, %v7644
      %v7646 = vrot.slane %v7645, 4
      %v7648 = vshll.u32 %v7591, 16
      %v7650 = vrot.slane %v7648, 5
      %v7651 = vsel %vm567, %v7646, %v7650
      %v7652 = vshrl.u32 %v7591, 16
      %v7654 = vrot.slane %v7652, 4
      %v7655 = vor.u32 %v7654, %v7650
      %v7656 = vrot.slane %v7655, 4
      %v7658 = vshll.u32 %v7592, 16
      %v7660 = vrot.slane %v7658, 5
      %v7661 = vsel %vm567, %v7656, %v7660
      %v7663 = vshrl.u32 %v7593, 16
      %v7665 = vrot.slane %v7663, 4
      %v7666 = vshll.u32 %v7593, 16
      %v7668 = vrot.slane %v7666, 5
      %v7669 = vor.u32 %v7665, %v7668
      %v7670 = vrot.slane %v7669, 4
      %v7672 = vshll.u32 %v7594, 16
      %v7674 = vrot.slane %v7672, 5
      %v7675 = vsel %vm567, %v7670, %v7674
      %v7676 = vshrl.u32 %v7594, 16
      %v7678 = vrot.slane %v7676, 4
      %v7679 = vor.u32 %v7678, %v7674
      %v7680 = vrot.slane %v7679, 4
      %v7682 = vshll.u32 %v7595, 16
      %v7684 = vrot.slane %v7682, 5
      %v7685 = vsel %vm567, %v7680, %v7684
      %v7687 = vshrl.u32 %v7596, 16
      %v7689 = vrot.slane %v7687, 4
      %v7690 = vshll.u32 %v7596, 16
      %v7692 = vrot.slane %v7690, 5
      %v7693 = vor.u32 %v7689, %v7692
      %v7694 = vrot.slane %v7693, 4
      %v7696 = vshll.u32 %v7597, 16
      %v7698 = vrot.slane %v7696, 5
      %v7699 = vsel %vm567, %v7694, %v7698
      %v7700 = vshrl.u32 %v7597, 16
      %v7702 = vrot.slane %v7700, 4
      %v7703 = vor.u32 %v7702, %v7698
      %v7704 = vrot.slane %v7703, 4
      %v7706 = vshll.u32 %v7598, 16
      %v7708 = vrot.slane %v7706, 5
      %v7709 = vsel %vm567, %v7704, %v7708
      %v7711 = vshrl.u32 %v7599, 16
      %v7713 = vrot.slane %v7711, 4
      %v7714 = vshll.u32 %v7599, 16
      %v7716 = vrot.slane %v7714, 5
      %v7717 = vor.u32 %v7713, %v7716
      %v7718 = vrot.slane %v7717, 4
      %v7720 = vshll.u32 %v7600, 16
      %v7722 = vrot.slane %v7720, 5
      %v7723 = vsel %vm567, %v7718, %v7722
      %v7724 = vshrl.u32 %v7600, 16
      %v7726 = vrot.slane %v7724, 4
      %v7727 = vor.u32 %v7726, %v7722
      %v7728 = vrot.slane %v7727, 4
      %v7730 = vshll.u32 %v7601, 16
      %v7732 = vrot.slane %v7730, 5
      %v7733 = vsel %vm567, %v7728, %v7732
      %v7735 = vshrl.u32 %v7602, 16
      %v7737 = vrot.slane %v7735, 4
      %v7738 = vshll.u32 %v7602, 16
      %v7740 = vrot.slane %v7738, 5
      %v7741 = vor.u32 %v7737, %v7740
      %v7742 = vrot.slane %v7741, 4
      %v7744 = vshll.u32 %v7603, 16
      %v7746 = vrot.slane %v7744, 5
      %v7747 = vsel %vm567, %v7742, %v7746
      %v7748 = vshrl.u32 %v7603, 16
      %v7750 = vrot.slane %v7748, 4
      %v7751 = vor.u32 %v7750, %v7746
      %v7752 = vrot.slane %v7751, 4
      %v7754 = vshll.u32 %v7604, 16
      %v7756 = vrot.slane %v7754, 5
      %v7757 = vsel %vm567, %v7752, %v7756
      %v7759 = vshrl.u32 %v7605, 16
      %v7761 = vrot.slane %v7759, 4
      %v7762 = vshll.u32 %v7605, 16
      %v7764 = vrot.slane %v7762, 5
      %v7765 = vor.u32 %v7761, %v7764
      %v7766 = vrot.slane %v7765, 4
      %v7768 = vshll.u32 %v7606, 16
      %v7770 = vrot.slane %v7768, 5
      %v7771 = vsel %vm567, %v7766, %v7770
      %v7772 = vshrl.u32 %v7606, 16
      %v7774 = vrot.slane %v7772, 4
      %v7775 = vor.u32 %v7774, %v7770
      %v7776 = vrot.slane %v7775, 4
      %v7778 = vshll.u32 %v7607, 16
      %v7780 = vrot.slane %v7778, 5
      %v7781 = vsel %vm567, %v7776, %v7780
      %v7783 = vshrl.u32 %v7608, 16
      %v7785 = vrot.slane %v7783, 4
      %v7786 = vshll.u32 %v7608, 16
      %v7788 = vrot.slane %v7786, 5
      %v7789 = vor.u32 %v7785, %v7788
      %v7790 = vrot.slane %v7789, 4
      %v7792 = vshll.u32 %v7609, 16
      %v7794 = vrot.slane %v7792, 5
      %v7795 = vsel %vm567, %v7790, %v7794
      %v7796 = vshrl.u32 %v7609, 16
      %v7798 = vrot.slane %v7796, 4
      %v7799 = vor.u32 %v7798, %v7794
      %v7800 = vrot.slane %v7799, 4
      %v7802 = vshll.u32 %v7610, 16
      %v7804 = vrot.slane %v7802, 5
      %v7805 = vsel %vm567, %v7800, %v7804
      %v7807 = vshrl.u32 %v7611, 16
      %v7809 = vrot.slane %v7807, 4
      %v7810 = vshll.u32 %v7611, 16
      %v7812 = vrot.slane %v7810, 5
      %v7813 = vor.u32 %v7809, %v7812
      %v7814 = vrot.slane %v7813, 4
      %v7816 = vshll.u32 %v7612, 16
      %v7818 = vrot.slane %v7816, 5
      %v7819 = vsel %vm567, %v7814, %v7818
      %v7820 = vshrl.u32 %v7612, 16
      %v7822 = vrot.slane %v7820, 4
      %v7823 = vor.u32 %v7822, %v7818
      %v7824 = vrot.slane %v7823, 4
      %v7826 = vshll.u32 %v7613, 16
      %v7828 = vrot.slane %v7826, 5
      %v7829 = vsel %vm567, %v7824, %v7828
      %v7831 = vshrl.u32 %v7614, 16
      %v7833 = vrot.slane %v7831, 4
      %v7834 = vshll.u32 %v7614, 16
      %v7836 = vrot.slane %v7834, 5
      %v7837 = vor.u32 %v7833, %v7836
      %v7838 = vrot.slane %v7837, 4
      %v7840 = vshll.u32 %v7615, 16
      %v7842 = vrot.slane %v7840, 5
      %v7843 = vsel %vm567, %v7838, %v7842
      %v7844 = vshrl.u32 %v7615, 16
      %v7846 = vrot.slane %v7844, 4
      %v7847 = vor.u32 %v7846, %v7842
      %v7848 = vrot.slane %v7847, 4
      %v7850 = vshll.u32 %v7616, 16
      %v7852 = vrot.slane %v7850, 5
      %v7853 = vsel %vm567, %v7848, %v7852
      %v7855 = vshrl.u32 %v7617, 16
      %v7857 = vrot.slane %v7855, 4
      %v7858 = vshll.u32 %v7617, 16
      %v7860 = vrot.slane %v7858, 5
      %v7861 = vor.u32 %v7857, %v7860
      %v7862 = vrot.slane %v7861, 4
      %v7864 = vshll.u32 %v7618, 16
      %v7866 = vrot.slane %v7864, 5
      %v7867 = vsel %vm567, %v7862, %v7866
      %v7868 = vshrl.u32 %v7618, 16
      %v7870 = vrot.slane %v7868, 4
      %v7871 = vor.u32 %v7870, %v7866
      %v7872 = vrot.slane %v7871, 4
      %v7874 = vshll.u32 %v7619, 16
      %v7876 = vrot.slane %v7874, 5
      %v7877 = vsel %vm567, %v7872, %v7876
      %v7879 = vshrl.u32 %v7620, 16
      %v7881 = vrot.slane %v7879, 4
      %v7882 = vshll.u32 %v7620, 16
      %v7884 = vrot.slane %v7882, 5
      %v7885 = vor.u32 %v7881, %v7884
      %v7886 = vrot.slane %v7885, 4
      %v7888 = vshll.u32 %v7621, 16
      %v7890 = vrot.slane %v7888, 5
      %v7891 = vsel %vm567, %v7886, %v7890
      %v7892 = vshrl.u32 %v7621, 16
      %v7894 = vrot.slane %v7892, 4
      %v7895 = vor.u32 %v7894, %v7890
      %v7896 = vrot.slane %v7895, 4
      %v7898 = vshll.u32 %v7622, 16
      %v7900 = vrot.slane %v7898, 5
      %v7901 = vsel %vm567, %v7896, %v7900
      %v7903 = vshrl.u32 %v7623, 16
      %v7905 = vrot.slane %v7903, 4
      %v7906 = vshll.u32 %v7623, 16
      %v7908 = vrot.slane %v7906, 5
      %v7909 = vor.u32 %v7905, %v7908
      %v7910 = vrot.slane %v7909, 4
      %v7912 = vshll.u32 %v7624, 16
      %v7914 = vrot.slane %v7912, 5
      %v7915 = vsel %vm567, %v7910, %v7914
      %v7916 = vshrl.u32 %v7624, 16
      %v7918 = vrot.slane %v7916, 4
      %v7919 = vor.u32 %v7918, %v7914
      %v7920 = vrot.slane %v7919, 4
      %v7922 = vshll.u32 %v7625, 16
      %v7924 = vrot.slane %v7922, 5
      %v7925 = vsel %vm567, %v7920, %v7924
      %v7927 = vshrl.u32 %v7626, 16
      %v7929 = vrot.slane %v7927, 4
      %v7930 = vshll.u32 %v7626, 16
      %v7932 = vrot.slane %v7930, 5
      %v7933 = vor.u32 %v7929, %v7932
      %v7934 = vrot.slane %v7933, 4
      %v7936 = vshll.u32 %v7627, 16
      %v7938 = vrot.slane %v7936, 5
      %v7939 = vsel %vm567, %v7934, %v7938
      %v7940 = vshrl.u32 %v7627, 16
      %v7942 = vrot.slane %v7940, 4
      %v7943 = vor.u32 %v7942, %v7938
      %v7944 = vrot.slane %v7943, 4
      %v7946 = vshll.u32 %v7628, 16
      %v7948 = vrot.slane %v7946, 5
      %v7949 = vsel %vm567, %v7944, %v7948
      %v7951 = vshrl.u32 %v7629, 16
      %v7953 = vrot.slane %v7951, 4
      %v7954 = vshll.u32 %v7629, 16
      %v7956 = vrot.slane %v7954, 5
      %v7957 = vor.u32 %v7953, %v7956
      %v7958 = vrot.slane %v7957, 4
      %v7960 = vshll.u32 %v7630, 16
      %v7962 = vrot.slane %v7960, 5
      %v7963 = vsel %vm567, %v7958, %v7962
      %v7964 = vshrl.u32 %v7630, 16
      %v7966 = vrot.slane %v7964, 4
      %v7967 = vor.u32 %v7966, %v7962
      %v7968 = vrot.slane %v7967, 4
      %v7970 = vshll.u32 %v7631, 16
      %v7972 = vrot.slane %v7970, 5
      %v7973 = vsel %vm567, %v7968, %v7972
      %v7975 = vshrl.u32 %v7632, 16
      %v7977 = vrot.slane %v7975, 4
      %v7978 = vshll.u32 %v7632, 16
      %v7980 = vrot.slane %v7978, 5
      %v7981 = vor.u32 %v7977, %v7980
      %v7982 = vrot.slane %v7981, 4
      %v7984 = vshll.u32 %v7633, 16
      %v7986 = vrot.slane %v7984, 5
      %v7987 = vsel %vm567, %v7982, %v7986
      %v7988 = vshrl.u32 %v7633, 16
      %v7990 = vrot.slane %v7988, 4
      %v7991 = vor.u32 %v7990, %v7986
      %v7992 = vrot.slane %v7991, 4
      %v7994 = vshll.u32 %v7634, 16
      %v7996 = vrot.slane %v7994, 5
      %v7997 = vsel %vm567, %v7992, %v7996
      %v7999 = vshrl.u32 %v7635, 16
      %v8001 = vrot.slane %v7999, 4
      %v8002 = vshll.u32 %v7635, 16
      %v8004 = vrot.slane %v8002, 5
      %v8005 = vor.u32 %v8001, %v8004
      %v8006 = vrot.slane %v8005, 4
      %v8008 = vshll.u32 %v7636, 16
      %v8010 = vrot.slane %v8008, 5
      %v8011 = vsel %vm567, %v8006, %v8010
      %v8012 = vshrl.u32 %v7636, 16
      %v8014 = vrot.slane %v8012, 4
      %v8015 = vor.u32 %v8014, %v8010
      %v8016 = vrot.slane %v8015, 4
      %v8018 = vshll.u32 %v7637, 16
      %v8020 = vrot.slane %v8018, 5
      %v8021 = vsel %vm567, %v8016, %v8020
      %s8022 = scalar_lea.vmem %s2, 8
      %v8023 = vld [vmem:[%s8022] sm:$0x3]
      %v8024 = vunpack.c.l.b16 %v7651
      %v8025 = vunpack.c.l.b16 %v7661
      %v8026 = vunpack.c.l.b16 %v7675
      %v8027 = vunpack.c.l.b16 %v7685
      %v8028 = vunpack.c.l.b16 %v7699
      %v8029 = vunpack.c.l.b16 %v7709
      %v8030 = vunpack.c.l.b16 %v7723
      %v8031 = vunpack.c.l.b16 %v7733
      %v8032 = vunpack.c.l.b16 %v7747
      %v8033 = vunpack.c.l.b16 %v7757
      %v8034 = vunpack.c.l.b16 %v7771
      %v8035 = vunpack.c.l.b16 %v7781
      %v8036 = vunpack.c.l.b16 %v7795
      %v8037 = vunpack.c.l.b16 %v7805
      %v8038 = vunpack.c.l.b16 %v7819
      %v8039 = vunpack.c.l.b16 %v7829
      %v8040 = vunpack.c.l.b16 %v7843
      %v8041 = vunpack.c.l.b16 %v7853
      %v8042 = vunpack.c.l.b16 %v7867
      %v8043 = vunpack.c.l.b16 %v7877
      %v8044 = vunpack.c.l.b16 %v7891
      %v8045 = vunpack.c.l.b16 %v7901
      %v8046 = vunpack.c.l.b16 %v7915
      %v8047 = vunpack.c.l.b16 %v7925
      %v8048 = vunpack.c.l.b16 %v7939
      %v8049 = vunpack.c.l.b16 %v7949
      %v8050 = vunpack.c.l.b16 %v7963
      %v8051 = vunpack.c.l.b16 %v7973
      %v8052 = vunpack.c.l.b16 %v7987
      %v8053 = vunpack.c.l.b16 %v7997
      %v8054 = vunpack.c.l.b16 %v8011
      %v8055 = vunpack.c.l.b16 %v8021
      %v8056 = vpack.c.b16 %v8025, %v8024
      %v8057 = vpack.c.b16 %v8027, %v8026
      %v8058 = vpack.c.b16 %v8029, %v8028
      %v8059 = vpack.c.b16 %v8031, %v8030
      %v8060 = vpack.c.b16 %v8033, %v8032
      %v8061 = vpack.c.b16 %v8035, %v8034
      %v8062 = vpack.c.b16 %v8037, %v8036
      %v8063 = vpack.c.b16 %v8039, %v8038
      %v8064 = vpack.c.b16 %v8041, %v8040
      %v8065 = vpack.c.b16 %v8043, %v8042
      %v8066 = vpack.c.b16 %v8045, %v8044
      %v8067 = vpack.c.b16 %v8047, %v8046
      %v8068 = vpack.c.b16 %v8049, %v8048
      %v8069 = vpack.c.b16 %v8051, %v8050
      %v8070 = vpack.c.b16 %v8053, %v8052
      %v8071 = vpack.c.b16 %v8055, %v8054
      %v8073 = vsel %vm1002, %v8056, 0
      %v8076 = vsel %vm1002, %v8057, 0
      %v8079 = vsel %vm1002, %v8058, 0
      %v8082 = vsel %vm1002, %v8059, 0
      %v8085 = vsel %vm1002, %v8060, 0
      %v8088 = vsel %vm1002, %v8061, 0
      %v8091 = vsel %vm1002, %v8062, 0
      %v8094 = vsel %vm1002, %v8063, 0
      %v8097 = vsel %vm1002, %v8064, 0
      %v8100 = vsel %vm1002, %v8065, 0
      %v8103 = vsel %vm1002, %v8066, 0
      %v8106 = vsel %vm1002, %v8067, 0
      %v8109 = vsel %vm1002, %v8068, 0
      %v8112 = vsel %vm1002, %v8069, 0
      %v8115 = vsel %vm1002, %v8070, 0
      %v8118 = vsel %vm1002, %v8071, 0
      %v8121 = vsel %vm1051, %v8023, 0
      %8123 = vmatprep.subr.bf16.mxu0 0
      %8124 = vmatpush1.bf16.msra.mxu0 %v8121
      %8125 = vmatprep.subr.bf16.mxu0 0
      %8126 = vmatpush1.bf16.msra.mxu0 0
      %8127 = vmatprep.subr.bf16.mxu0 0
      %8128 = vmatpush1.bf16.msra.mxu0 0
      %8129 = vmatprep.subr.bf16.mxu0 0
      %8130 = vmatpush1.bf16.msra.mxu0 0
      %8131 = vmatprep.subr.bf16.mxu0 0
      %8132 = vmatpush1.bf16.msra.mxu0 0
      %8133 = vmatprep.subr.bf16.mxu0 0
      %8134 = vmatpush1.bf16.msra.mxu0 0
      %8135 = vmatprep.subr.bf16.mxu0 0
      %8136 = vmatpush1.bf16.msra.mxu0 0
      %8137 = vmatprep.subr.bf16.mxu0 0
      %8138 = vmatpush1.bf16.msra.mxu0 0
      %8139 = vmatprep.subr.bf16.mxu0 0
      %8140 = vmatpush1.bf16.msra.mxu0 0
      %8141 = vmatprep.subr.bf16.mxu0 0
      %8142 = vmatpush1.bf16.msra.mxu0 0
      %8143 = vmatprep.subr.bf16.mxu0 0
      %8144 = vmatpush1.bf16.msra.mxu0 0
      %8145 = vmatprep.subr.bf16.mxu0 0
      %8146 = vmatpush1.bf16.msra.mxu0 0
      %8147 = vmatprep.subr.bf16.mxu0 0
      %8148 = vmatpush1.bf16.msra.mxu0 0
      %8149 = vmatprep.subr.bf16.mxu0 0
      %8150 = vmatpush1.bf16.msra.mxu0 0
      %8151 = vmatprep.subr.bf16.mxu0 0
      %8152 = vmatpush1.bf16.msra.mxu0 0
      %8153 = vmatprep.subr.bf16.mxu0 0
      %8154 = vmatpush1.bf16.msra.mxu0 0
      %8155 = vmatprep.mubr.bf16.mxu0 0
      %8156 = vmatmul.mubr.bf16.gmra.mrb[0].mxu0 %v8073
      %v8157 = vpop.f32.mrb[0].mxu0
      %v8158 = vadd.f32 0.0, %v8157
      %v8159 = vpop.f32.mrb[0].mxu0
      %v8160 = vpop.f32.mrb[0].mxu0
      %v8161 = vadd.f32 0.0, %v8160
      %v8162 = vpop.f32.mrb[0].mxu0
      %8163 = vmatprep.mubr.bf16.mxu0 0
      %8164 = vmatmul.mubr.bf16.gmra.mrb[0].mxu0 %v8076
      %v8165 = vpop.f32.mrb[0].mxu0
      %v8166 = vadd.f32 0.0, %v8165
      %v8167 = vpop.f32.mrb[0].mxu0
      %v8168 = vpop.f32.mrb[0].mxu0
      %v8169 = vadd.f32 0.0, %v8168
      %v8170 = vpop.f32.mrb[0].mxu0
      %8171 = vmatprep.mubr.bf16.mxu0 0
      %8172 = vmatmul.mubr.bf16.gmra.mrb[0].mxu0 %v8079
      %v8173 = vpop.f32.mrb[0].mxu0
      %v8174 = vadd.f32 0.0, %v8173
      %v8175 = vpop.f32.mrb[0].mxu0
      %v8176 = vpop.f32.mrb[0].mxu0
      %v8177 = vadd.f32 0.0, %v8176
      %v8178 = vpop.f32.mrb[0].mxu0
      %8179 = vmatprep.mubr.bf16.mxu0 0
      %8180 = vmatmul.mubr.bf16.gmra.mrb[0].mxu0 %v8082
      %v8181 = vpop.f32.mrb[0].mxu0
      %v8182 = vadd.f32 0.0, %v8181
      %v8183 = vpop.f32.mrb[0].mxu0
      %v8184 = vpop.f32.mrb[0].mxu0
      %v8185 = vadd.f32 0.0, %v8184
      %v8186 = vpop.f32.mrb[0].mxu0
      %8187 = vmatprep.mubr.bf16.mxu0 0
      %8188 = vmatmul.mubr.bf16.gmra.mrb[0].mxu0 %v8085
      %v8189 = vpop.f32.mrb[0].mxu0
      %v8190 = vadd.f32 0.0, %v8189
      %v8191 = vpop.f32.mrb[0].mxu0
      %v8192 = vpop.f32.mrb[0].mxu0
      %v8193 = vadd.f32 0.0, %v8192
      %v8194 = vpop.f32.mrb[0].mxu0
      %8195 = vmatprep.mubr.bf16.mxu0 0
      %8196 = vmatmul.mubr.bf16.gmra.mrb[0].mxu0 %v8088
      %v8197 = vpop.f32.mrb[0].mxu0
      %v8198 = vadd.f32 0.0, %v8197
      %v8199 = vpop.f32.mrb[0].mxu0
      %v8200 = vpop.f32.mrb[0].mxu0
      %v8201 = vadd.f32 0.0, %v8200
      %v8202 = vpop.f32.mrb[0].mxu0
      %8203 = vmatprep.mubr.bf16.mxu0 0
      %8204 = vmatmul.mubr.bf16.gmra.mrb[0].mxu0 %v8091
      %v8205 = vpop.f32.mrb[0].mxu0
      %v8206 = vadd.f32 0.0, %v8205
      %v8207 = vpop.f32.mrb[0].mxu0
      %v8208 = vpop.f32.mrb[0].mxu0
      %v8209 = vadd.f32 0.0, %v8208
      %v8210 = vpop.f32.mrb[0].mxu0
      %8211 = vmatprep.mubr.bf16.mxu0 0
      %8212 = vmatmul.mubr.bf16.gmra.mrb[0].mxu0 %v8094
      %v8213 = vpop.f32.mrb[0].mxu0
      %v8214 = vadd.f32 0.0, %v8213
      %v8215 = vpop.f32.mrb[0].mxu0
      %v8216 = vpop.f32.mrb[0].mxu0
      %v8217 = vadd.f32 0.0, %v8216
      %v8218 = vpop.f32.mrb[0].mxu0
      %8219 = vmatprep.mubr.bf16.mxu0 0
      %8220 = vmatmul.mubr.bf16.gmra.mrb[0].mxu0 %v8097
      %v8221 = vpop.f32.mrb[0].mxu0
      %v8222 = vadd.f32 0.0, %v8221
      %v8223 = vpop.f32.mrb[0].mxu0
      %v8224 = vpop.f32.mrb[0].mxu0
      %v8225 = vadd.f32 0.0, %v8224
      %v8226 = vpop.f32.mrb[0].mxu0
      %8227 = vmatprep.mubr.bf16.mxu0 0
      %8228 = vmatmul.mubr.bf16.gmra.mrb[0].mxu0 %v8100
      %v8229 = vpop.f32.mrb[0].mxu0
      %v8230 = vadd.f32 0.0, %v8229
      %v8231 = vpop.f32.mrb[0].mxu0
      %v8232 = vpop.f32.mrb[0].mxu0
      %v8233 = vadd.f32 0.0, %v8232
      %v8234 = vpop.f32.mrb[0].mxu0
      %8235 = vmatprep.mubr.bf16.mxu0 0
      %8236 = vmatmul.mubr.bf16.gmra.mrb[0].mxu0 %v8103
      %v8237 = vpop.f32.mrb[0].mxu0
      %v8238 = vadd.f32 0.0, %v8237
      %v8239 = vpop.f32.mrb[0].mxu0
      %v8240 = vpop.f32.mrb[0].mxu0
      %v8241 = vadd.f32 0.0, %v8240
      %v8242 = vpop.f32.mrb[0].mxu0
      %8243 = vmatprep.mubr.bf16.mxu0 0
      %8244 = vmatmul.mubr.bf16.gmra.mrb[0].mxu0 %v8106
      %v8245 = vpop.f32.mrb[0].mxu0
      %v8246 = vadd.f32 0.0, %v8245
      %v8247 = vpop.f32.mrb[0].mxu0
      %v8248 = vpop.f32.mrb[0].mxu0
      %v8249 = vadd.f32 0.0, %v8248
      %v8250 = vpop.f32.mrb[0].mxu0
      %8251 = vmatprep.mubr.bf16.mxu0 0
      %8252 = vmatmul.mubr.bf16.gmra.mrb[0].mxu0 %v8109
      %v8253 = vpop.f32.mrb[0].mxu0
      %v8254 = vadd.f32 0.0, %v8253
      %v8255 = vpop.f32.mrb[0].mxu0
      %v8256 = vpop.f32.mrb[0].mxu0
      %v8257 = vadd.f32 0.0, %v8256
      %v8258 = vpop.f32.mrb[0].mxu0
      %8259 = vmatprep.mubr.bf16.mxu0 0
      %8260 = vmatmul.mubr.bf16.gmra.mrb[0].mxu0 %v8112
      %v8261 = vpop.f32.mrb[0].mxu0
      %v8262 = vadd.f32 0.0, %v8261
      %v8263 = vpop.f32.mrb[0].mxu0
      %v8264 = vpop.f32.mrb[0].mxu0
      %v8265 = vadd.f32 0.0, %v8264
      %v8266 = vpop.f32.mrb[0].mxu0
      %8267 = vmatprep.mubr.bf16.mxu0 0
      %8268 = vmatmul.mubr.bf16.gmra.mrb[0].mxu0 %v8115
      %v8269 = vpop.f32.mrb[0].mxu0
      %v8270 = vadd.f32 0.0, %v8269
      %v8271 = vpop.f32.mrb[0].mxu0
      %v8272 = vpop.f32.mrb[0].mxu0
      %v8273 = vadd.f32 0.0, %v8272
      %v8274 = vpop.f32.mrb[0].mxu0
      %8275 = vmatprep.mubr.bf16.mxu0 0
      %8276 = vmatmul.mubr.bf16.gmra.mrb[0].mxu0 %v8118
      %v8277 = vpop.f32.mrb[0].mxu0
      %v8278 = vadd.f32 0.0, %v8277
      %v8279 = vpop.f32.mrb[0].mxu0
      %v8280 = vpop.f32.mrb[0].mxu0
      %v8281 = vadd.f32 0.0, %v8280
      %v8282 = vpop.f32.mrb[0].mxu0
      %8283 = vdwg.mxu0
      %v8284 = vadd.f32 %v7558, %v8158
      %v8285 = vadd.f32 %v7559, %v8161
      %v8286 = vadd.f32 %v7560, %v8166
      %v8287 = vadd.f32 %v7561, %v8169
      %v8288 = vadd.f32 %v7562, %v8174
      %v8289 = vadd.f32 %v7563, %v8177
      %v8290 = vadd.f32 %v7564, %v8182
      %v8291 = vadd.f32 %v7565, %v8185
      %v8292 = vadd.f32 %v7566, %v8190
      %v8293 = vadd.f32 %v7567, %v8193
      %v8294 = vadd.f32 %v7568, %v8198
      %v8295 = vadd.f32 %v7569, %v8201
      %v8296 = vadd.f32 %v7570, %v8206
      %v8297 = vadd.f32 %v7571, %v8209
      %v8298 = vadd.f32 %v7572, %v8214
      %v8299 = vadd.f32 %v7573, %v8217
      %v8300 = vadd.f32 %v7574, %v8222
      %v8301 = vadd.f32 %v7575, %v8225
      %v8302 = vadd.f32 %v7576, %v8230
      %v8303 = vadd.f32 %v7577, %v8233
      %v8304 = vadd.f32 %v7578, %v8238
      %v8305 = vadd.f32 %v7579, %v8241
      %v8306 = vadd.f32 %v7580, %v8246
      %v8307 = vadd.f32 %v7581, %v8249
      %v8308 = vadd.f32 %v7582, %v8254
      %v8309 = vadd.f32 %v7583, %v8257
      %v8310 = vadd.f32 %v7584, %v8262
      %v8311 = vadd.f32 %v7585, %v8265
      %v8312 = vadd.f32 %v7586, %v8270
      %v8313 = vadd.f32 %v7587, %v8273
      %v8314 = vadd.f32 %v7588, %v8278
      %v8315 = vadd.f32 %v7589, %v8281
      %v8316 = vld [vmem:[%s1965] sm:$0xe]
      %v8317 = vld [vmem:[%s1965 + $0xc] sm:$0xe]
      %v8318 = vld [vmem:[%s1965 + $0x18] sm:$0xe]
      %v8319 = vld [vmem:[%s1965 + $0x24] sm:$0xe]
      %v8320 = vld [vmem:[%s1965 + $0x30] sm:$0xe]
      %v8321 = vld [vmem:[%s1965 + $0x3c] sm:$0xe]
      %v8322 = vld [vmem:[%s1965 + $0x48] sm:$0xe]
      %v8323 = vld [vmem:[%s1965 + $0x54] sm:$0xe]
      %v8324 = vld [vmem:[%s1965 + $0x60] sm:$0xe]
      %v8325 = vld [vmem:[%s1965 + $0x6c] sm:$0xe]
      %v8326 = vld [vmem:[%s1965 + $0x78] sm:$0xe]
      %v8327 = vld [vmem:[%s1965 + $0x84] sm:$0xe]
      %v8328 = vld [vmem:[%s1965 + $0x90] sm:$0xe]
      %v8329 = vld [vmem:[%s1965 + $0x9c] sm:$0xe]
      %v8330 = vld [vmem:[%s1965 + $0xa8] sm:$0xe]
      %v8331 = vld [vmem:[%s1965 + $0xb4] sm:$0xe]
      %v8380 = vrot.slane %v8316, 5
      %v8381 = vrot.slane %v8380, 4
      %v8382 = vrot.slane %v7591, 5
      %v8383 = vsel %vm1558, %v8381, %v8382
      %v8384 = vrot.slane %v8382, 4
      %v8385 = vrot.slane %v7592, 5
      %v8386 = vsel %vm1558, %v8384, %v8385
      %v8387 = vrot.slane %v8317, 5
      %v8388 = vrot.slane %v8387, 4
      %v8389 = vrot.slane %v7594, 5
      %v8390 = vsel %vm1558, %v8388, %v8389
      %v8391 = vrot.slane %v8389, 4
      %v8392 = vrot.slane %v7595, 5
      %v8393 = vsel %vm1558, %v8391, %v8392
      %v8394 = vrot.slane %v8318, 5
      %v8395 = vrot.slane %v8394, 4
      %v8396 = vrot.slane %v7597, 5
      %v8397 = vsel %vm1558, %v8395, %v8396
      %v8398 = vrot.slane %v8396, 4
      %v8399 = vrot.slane %v7598, 5
      %v8400 = vsel %vm1558, %v8398, %v8399
      %v8401 = vrot.slane %v8319, 5
      %v8402 = vrot.slane %v8401, 4
      %v8403 = vrot.slane %v7600, 5
      %v8404 = vsel %vm1558, %v8402, %v8403
      %v8405 = vrot.slane %v8403, 4
      %v8406 = vrot.slane %v7601, 5
      %v8407 = vsel %vm1558, %v8405, %v8406
      %v8408 = vrot.slane %v8320, 5
      %v8409 = vrot.slane %v8408, 4
      %v8410 = vrot.slane %v7603, 5
      %v8411 = vsel %vm1558, %v8409, %v8410
      %v8412 = vrot.slane %v8410, 4
      %v8413 = vrot.slane %v7604, 5
      %v8414 = vsel %vm1558, %v8412, %v8413
      %v8415 = vrot.slane %v8321, 5
      %v8416 = vrot.slane %v8415, 4
      %v8417 = vrot.slane %v7606, 5
      %v8418 = vsel %vm1558, %v8416, %v8417
      %v8419 = vrot.slane %v8417, 4
      %v8420 = vrot.slane %v7607, 5
      %v8421 = vsel %vm1558, %v8419, %v8420
      %v8422 = vrot.slane %v8322, 5
      %v8423 = vrot.slane %v8422, 4
      %v8424 = vrot.slane %v7609, 5
      %v8425 = vsel %vm1558, %v8423, %v8424
      %v8426 = vrot.slane %v8424, 4
      %v8427 = vrot.slane %v7610, 5
      %v8428 = vsel %vm1558, %v8426, %v8427
      %v8429 = vrot.slane %v8323, 5
      %v8430 = vrot.slane %v8429, 4
      %v8431 = vrot.slane %v7612, 5
      %v8432 = vsel %vm1558, %v8430, %v8431
      %v8433 = vrot.slane %v8431, 4
      %v8434 = vrot.slane %v7613, 5
      %v8435 = vsel %vm1558, %v8433, %v8434
      %v8436 = vrot.slane %v8324, 5
      %v8437 = vrot.slane %v8436, 4
      %v8438 = vrot.slane %v7615, 5
      %v8439 = vsel %vm1558, %v8437, %v8438
      %v8440 = vrot.slane %v8438, 4
      %v8441 = vrot.slane %v7616, 5
      %v8442 = vsel %vm1558, %v8440, %v8441
      %v8443 = vrot.slane %v8325, 5
      %v8444 = vrot.slane %v8443, 4
      %v8445 = vrot.slane %v7618, 5
      %v8446 = vsel %vm1558, %v8444, %v8445
      %v8447 = vrot.slane %v8445, 4
      %v8448 = vrot.slane %v7619, 5
      %v8449 = vsel %vm1558, %v8447, %v8448
      %v8450 = vrot.slane %v8326, 5
      %v8451 = vrot.slane %v8450, 4
      %v8452 = vrot.slane %v7621, 5
      %v8453 = vsel %vm1558, %v8451, %v8452
      %v8454 = vrot.slane %v8452, 4
      %v8455 = vrot.slane %v7622, 5
      %v8456 = vsel %vm1558, %v8454, %v8455
      %v8457 = vrot.slane %v8327, 5
      %v8458 = vrot.slane %v8457, 4
      %v8459 = vrot.slane %v7624, 5
      %v8460 = vsel %vm1558, %v8458, %v8459
      %v8461 = vrot.slane %v8459, 4
      %v8462 = vrot.slane %v7625, 5
      %v8463 = vsel %vm1558, %v8461, %v8462
      %v8464 = vrot.slane %v8328, 5
      %v8465 = vrot.slane %v8464, 4
      %v8466 = vrot.slane %v7627, 5
      %v8467 = vsel %vm1558, %v8465, %v8466
      %v8468 = vrot.slane %v8466, 4
      %v8469 = vrot.slane %v7628, 5
      %v8470 = vsel %vm1558, %v8468, %v8469
      %v8471 = vrot.slane %v8329, 5
      %v8472 = vrot.slane %v8471, 4
      %v8473 = vrot.slane %v7630, 5
      %v8474 = vsel %vm1558, %v8472, %v8473
      %v8475 = vrot.slane %v8473, 4
      %v8476 = vrot.slane %v7631, 5
      %v8477 = vsel %vm1558, %v8475, %v8476
      %v8478 = vrot.slane %v8330, 5
      %v8479 = vrot.slane %v8478, 4
      %v8480 = vrot.slane %v7633, 5
      %v8481 = vsel %vm1558, %v8479, %v8480
      %v8482 = vrot.slane %v8480, 4
      %v8483 = vrot.slane %v7634, 5
      %v8484 = vsel %vm1558, %v8482, %v8483
      %v8485 = vrot.slane %v8331, 5
      %v8486 = vrot.slane %v8485, 4
      %v8487 = vrot.slane %v7636, 5
      %v8488 = vsel %vm1558, %v8486, %v8487
      %v8489 = vrot.slane %v8487, 4
      %v8490 = vrot.slane %v7637, 5
      %v8491 = vsel %vm1558, %v8489, %v8490
      %s8492 = scalar_lea.vmem %s2, 10
      %v8493 = vld [vmem:[%s8492] sm:$0x3]
      %v8494 = vunpack.c.l.b16 %v8383
      %v8495 = vunpack.c.l.b16 %v8386
      %v8496 = vunpack.c.l.b16 %v8390
      %v8497 = vunpack.c.l.b16 %v8393
      %v8498 = vunpack.c.l.b16 %v8397
      %v8499 = vunpack.c.l.b16 %v8400
      %v8500 = vunpack.c.l.b16 %v8404
      %v8501 = vunpack.c.l.b16 %v8407
      %v8502 = vunpack.c.l.b16 %v8411
      %v8503 = vunpack.c.l.b16 %v8414
      %v8504 = vunpack.c.l.b16 %v8418
      %v8505 = vunpack.c.l.b16 %v8421
      %v8506 = vunpack.c.l.b16 %v8425
      %v8507 = vunpack.c.l.b16 %v8428
      %v8508 = vunpack.c.l.b16 %v8432
      %v8509 = vunpack.c.l.b16 %v8435
      %v8510 = vunpack.c.l.b16 %v8439
      %v8511 = vunpack.c.l.b16 %v8442
      %v8512 = vunpack.c.l.b16 %v8446
      %v8513 = vunpack.c.l.b16 %v8449
      %v8514 = vunpack.c.l.b16 %v8453
      %v8515 = vunpack.c.l.b16 %v8456
      %v8516 = vunpack.c.l.b16 %v8460
      %v8517 = vunpack.c.l.b16 %v8463
      %v8518 = vunpack.c.l.b16 %v8467
      %v8519 = vunpack.c.l.b16 %v8470
      %v8520 = vunpack.c.l.b16 %v8474
      %v8521 = vunpack.c.l.b16 %v8477
      %v8522 = vunpack.c.l.b16 %v8481
      %v8523 = vunpack.c.l.b16 %v8484
      %v8524 = vunpack.c.l.b16 %v8488
      %v8525 = vunpack.c.l.b16 %v8491
      %v8526 = vpack.c.b16 %v8495, %v8494
      %v8527 = vpack.c.b16 %v8497, %v8496
      %v8528 = vpack.c.b16 %v8499, %v8498
      %v8529 = vpack.c.b16 %v8501, %v8500
      %v8530 = vpack.c.b16 %v8503, %v8502
      %v8531 = vpack.c.b16 %v8505, %v8504
      %v8532 = vpack.c.b16 %v8507, %v8506
      %v8533 = vpack.c.b16 %v8509, %v8508
      %v8534 = vpack.c.b16 %v8511, %v8510
      %v8535 = vpack.c.b16 %v8513, %v8512
      %v8536 = vpack.c.b16 %v8515, %v8514
      %v8537 = vpack.c.b16 %v8517, %v8516
      %v8538 = vpack.c.b16 %v8519, %v8518
      %v8539 = vpack.c.b16 %v8521, %v8520
      %v8540 = vpack.c.b16 %v8523, %v8522
      %v8541 = vpack.c.b16 %v8525, %v8524
      %v8543 = vsel %vm1002, %v8526, 0
      %v8546 = vsel %vm1002, %v8527, 0
      %v8549 = vsel %vm1002, %v8528, 0
      %v8552 = vsel %vm1002, %v8529, 0
      %v8555 = vsel %vm1002, %v8530, 0
      %v8558 = vsel %vm1002, %v8531, 0
      %v8561 = vsel %vm1002, %v8532, 0
      %v8564 = vsel %vm1002, %v8533, 0
      %v8567 = vsel %vm1002, %v8534, 0
      %v8570 = vsel %vm1002, %v8535, 0
      %v8573 = vsel %vm1002, %v8536, 0
      %v8576 = vsel %vm1002, %v8537, 0
      %v8579 = vsel %vm1002, %v8538, 0
      %v8582 = vsel %vm1002, %v8539, 0
      %v8585 = vsel %vm1002, %v8540, 0
      %v8588 = vsel %vm1002, %v8541, 0
      %v8591 = vsel %vm1051, %v8493, 0
      %8593 = vmatprep.subr.bf16.mxu0 0
      %8594 = vmatpush1.bf16.msra.mxu0 %v8591
      %8595 = vmatprep.subr.bf16.mxu0 0
      %8596 = vmatpush1.bf16.msra.mxu0 0
      %8597 = vmatprep.subr.bf16.mxu0 0
      %8598 = vmatpush1.bf16.msra.mxu0 0
      %8599 = vmatprep.subr.bf16.mxu0 0
      %8600 = vmatpush1.bf16.msra.mxu0 0
      %8601 = vmatprep.subr.bf16.mxu0 0
      %8602 = vmatpush1.bf16.msra.mxu0 0
      %8603 = vmatprep.subr.bf16.mxu0 0
      %8604 = vmatpush1.bf16.msra.mxu0 0
      %8605 = vmatprep.subr.bf16.mxu0 0
      %8606 = vmatpush1.bf16.msra.mxu0 0
      %8607 = vmatprep.subr.bf16.mxu0 0
      %8608 = vmatpush1.bf16.msra.mxu0 0
      %8609 = vmatprep.subr.bf16.mxu0 0
      %8610 = vmatpush1.bf16.msra.mxu0 0
      %8611 = vmatprep.subr.bf16.mxu0 0
      %8612 = vmatpush1.bf16.msra.mxu0 0
      %8613 = vmatprep.subr.bf16.mxu0 0
      %8614 = vmatpush1.bf16.msra.mxu0 0
      %8615 = vmatprep.subr.bf16.mxu0 0
      %8616 = vmatpush1.bf16.msra.mxu0 0
      %8617 = vmatprep.subr.bf16.mxu0 0
      %8618 = vmatpush1.bf16.msra.mxu0 0
      %8619 = vmatprep.subr.bf16.mxu0 0
      %8620 = vmatpush1.bf16.msra.mxu0 0
      %8621 = vmatprep.subr.bf16.mxu0 0
      %8622 = vmatpush1.bf16.msra.mxu0 0
      %8623 = vmatprep.subr.bf16.mxu0 0
      %8624 = vmatpush1.bf16.msra.mxu0 0
      %8625 = vmatprep.mubr.bf16.mxu0 0
      %8626 = vmatmul.mubr.bf16.gmra.mrb[0].mxu0 %v8543
      %v8627 = vpop.f32.mrb[0].mxu0
      %v8628 = vadd.f32 0.0, %v8627
      %v8629 = vpop.f32.mrb[0].mxu0
      %v8630 = vpop.f32.mrb[0].mxu0
      %v8631 = vadd.f32 0.0, %v8630
      %v8632 = vpop.f32.mrb[0].mxu0
      %8633 = vmatprep.mubr.bf16.mxu0 0
      %8634 = vmatmul.mubr.bf16.gmra.mrb[0].mxu0 %v8546
      %v8635 = vpop.f32.mrb[0].mxu0
      %v8636 = vadd.f32 0.0, %v8635
      %v8637 = vpop.f32.mrb[0].mxu0
      %v8638 = vpop.f32.mrb[0].mxu0
      %v8639 = vadd.f32 0.0, %v8638
      %v8640 = vpop.f32.mrb[0].mxu0
      %8641 = vmatprep.mubr.bf16.mxu0 0
      %8642 = vmatmul.mubr.bf16.gmra.mrb[0].mxu0 %v8549
      %v8643 = vpop.f32.mrb[0].mxu0
      %v8644 = vadd.f32 0.0, %v8643
      %v8645 = vpop.f32.mrb[0].mxu0
      %v8646 = vpop.f32.mrb[0].mxu0
      %v8647 = vadd.f32 0.0, %v8646
      %v8648 = vpop.f32.mrb[0].mxu0
      %8649 = vmatprep.mubr.bf16.mxu0 0
      %8650 = vmatmul.mubr.bf16.gmra.mrb[0].mxu0 %v8552
      %v8651 = vpop.f32.mrb[0].mxu0
      %v8652 = vadd.f32 0.0, %v8651
      %v8653 = vpop.f32.mrb[0].mxu0
      %v8654 = vpop.f32.mrb[0].mxu0
      %v8655 = vadd.f32 0.0, %v8654
      %v8656 = vpop.f32.mrb[0].mxu0
      %8657 = vmatprep.mubr.bf16.mxu0 0
      %8658 = vmatmul.mubr.bf16.gmra.mrb[0].mxu0 %v8555
      %v8659 = vpop.f32.mrb[0].mxu0
      %v8660 = vadd.f32 0.0, %v8659
      %v8661 = vpop.f32.mrb[0].mxu0
      %v8662 = vpop.f32.mrb[0].mxu0
      %v8663 = vadd.f32 0.0, %v8662
      %v8664 = vpop.f32.mrb[0].mxu0
      %8665 = vmatprep.mubr.bf16.mxu0 0
      %8666 = vmatmul.mubr.bf16.gmra.mrb[0].mxu0 %v8558
      %v8667 = vpop.f32.mrb[0].mxu0
      %v8668 = vadd.f32 0.0, %v8667
      %v8669 = vpop.f32.mrb[0].mxu0
      %v8670 = vpop.f32.mrb[0].mxu0
      %v8671 = vadd.f32 0.0, %v8670
      %v8672 = vpop.f32.mrb[0].mxu0
      %8673 = vmatprep.mubr.bf16.mxu0 0
      %8674 = vmatmul.mubr.bf16.gmra.mrb[0].mxu0 %v8561
      %v8675 = vpop.f32.mrb[0].mxu0
      %v8676 = vadd.f32 0.0, %v8675
      %v8677 = vpop.f32.mrb[0].mxu0
      %v8678 = vpop.f32.mrb[0].mxu0
      %v8679 = vadd.f32 0.0, %v8678
      %v8680 = vpop.f32.mrb[0].mxu0
      %8681 = vmatprep.mubr.bf16.mxu0 0
      %8682 = vmatmul.mubr.bf16.gmra.mrb[0].mxu0 %v8564
      %v8683 = vpop.f32.mrb[0].mxu0
      %v8684 = vadd.f32 0.0, %v8683
      %v8685 = vpop.f32.mrb[0].mxu0
      %v8686 = vpop.f32.mrb[0].mxu0
      %v8687 = vadd.f32 0.0, %v8686
      %v8688 = vpop.f32.mrb[0].mxu0
      %8689 = vmatprep.mubr.bf16.mxu0 0
      %8690 = vmatmul.mubr.bf16.gmra.mrb[0].mxu0 %v8567
      %v8691 = vpop.f32.mrb[0].mxu0
      %v8692 = vadd.f32 0.0, %v8691
      %v8693 = vpop.f32.mrb[0].mxu0
      %v8694 = vpop.f32.mrb[0].mxu0
      %v8695 = vadd.f32 0.0, %v8694
      %v8696 = vpop.f32.mrb[0].mxu0
      %8697 = vmatprep.mubr.bf16.mxu0 0
      %8698 = vmatmul.mubr.bf16.gmra.mrb[0].mxu0 %v8570
      %v8699 = vpop.f32.mrb[0].mxu0
      %v8700 = vadd.f32 0.0, %v8699
      %v8701 = vpop.f32.mrb[0].mxu0
      %v8702 = vpop.f32.mrb[0].mxu0
      %v8703 = vadd.f32 0.0, %v8702
      %v8704 = vpop.f32.mrb[0].mxu0
      %8705 = vmatprep.mubr.bf16.mxu0 0
      %8706 = vmatmul.mubr.bf16.gmra.mrb[0].mxu0 %v8573
      %v8707 = vpop.f32.mrb[0].mxu0
      %v8708 = vadd.f32 0.0, %v8707
      %v8709 = vpop.f32.mrb[0].mxu0
      %v8710 = vpop.f32.mrb[0].mxu0
      %v8711 = vadd.f32 0.0, %v8710
      %v8712 = vpop.f32.mrb[0].mxu0
      %8713 = vmatprep.mubr.bf16.mxu0 0
      %8714 = vmatmul.mubr.bf16.gmra.mrb[0].mxu0 %v8576
      %v8715 = vpop.f32.mrb[0].mxu0
      %v8716 = vadd.f32 0.0, %v8715
      %v8717 = vpop.f32.mrb[0].mxu0
      %v8718 = vpop.f32.mrb[0].mxu0
      %v8719 = vadd.f32 0.0, %v8718
      %v8720 = vpop.f32.mrb[0].mxu0
      %8721 = vmatprep.mubr.bf16.mxu0 0
      %8722 = vmatmul.mubr.bf16.gmra.mrb[0].mxu0 %v8579
      %v8723 = vpop.f32.mrb[0].mxu0
      %v8724 = vadd.f32 0.0, %v8723
      %v8725 = vpop.f32.mrb[0].mxu0
      %v8726 = vpop.f32.mrb[0].mxu0
      %v8727 = vadd.f32 0.0, %v8726
      %v8728 = vpop.f32.mrb[0].mxu0
      %8729 = vmatprep.mubr.bf16.mxu0 0
      %8730 = vmatmul.mubr.bf16.gmra.mrb[0].mxu0 %v8582
      %v8731 = vpop.f32.mrb[0].mxu0
      %v8732 = vadd.f32 0.0, %v8731
      %v8733 = vpop.f32.mrb[0].mxu0
      %v8734 = vpop.f32.mrb[0].mxu0
      %v8735 = vadd.f32 0.0, %v8734
      %v8736 = vpop.f32.mrb[0].mxu0
      %8737 = vmatprep.mubr.bf16.mxu0 0
      %8738 = vmatmul.mubr.bf16.gmra.mrb[0].mxu0 %v8585
      %v8739 = vpop.f32.mrb[0].mxu0
      %v8740 = vadd.f32 0.0, %v8739
      %v8741 = vpop.f32.mrb[0].mxu0
      %v8742 = vpop.f32.mrb[0].mxu0
      %v8743 = vadd.f32 0.0, %v8742
      %v8744 = vpop.f32.mrb[0].mxu0
      %8745 = vmatprep.mubr.bf16.mxu0 0
      %8746 = vmatmul.mubr.bf16.gmra.mrb[0].mxu0 %v8588
      %v8747 = vpop.f32.mrb[0].mxu0
      %v8748 = vadd.f32 0.0, %v8747
      %v8749 = vpop.f32.mrb[0].mxu0
      %v8750 = vpop.f32.mrb[0].mxu0
      %v8751 = vadd.f32 0.0, %v8750
      %v8752 = vpop.f32.mrb[0].mxu0
      %8753 = vdwg.mxu0
      %v8754 = vadd.f32 %v8284, %v8628
      %v8755 = vadd.f32 %v8285, %v8631
      %v8756 = vadd.f32 %v8286, %v8636
      %v8757 = vadd.f32 %v8287, %v8639
      %v8758 = vadd.f32 %v8288, %v8644
      %v8759 = vadd.f32 %v8289, %v8647
      %v8760 = vadd.f32 %v8290, %v8652
      %v8761 = vadd.f32 %v8291, %v8655
      %v8762 = vadd.f32 %v8292, %v8660
      %v8763 = vadd.f32 %v8293, %v8663
      %v8764 = vadd.f32 %v8294, %v8668
      %v8765 = vadd.f32 %v8295, %v8671
      %v8766 = vadd.f32 %v8296, %v8676
      %v8767 = vadd.f32 %v8297, %v8679
      %v8768 = vadd.f32 %v8298, %v8684
      %v8769 = vadd.f32 %v8299, %v8687
      %v8770 = vadd.f32 %v8300, %v8692
      %v8771 = vadd.f32 %v8301, %v8695
      %v8772 = vadd.f32 %v8302, %v8700
      %v8773 = vadd.f32 %v8303, %v8703
      %v8774 = vadd.f32 %v8304, %v8708
      %v8775 = vadd.f32 %v8305, %v8711
      %v8776 = vadd.f32 %v8306, %v8716
      %v8777 = vadd.f32 %v8307, %v8719
      %v8778 = vadd.f32 %v8308, %v8724
      %v8779 = vadd.f32 %v8309, %v8727
      %v8780 = vadd.f32 %v8310, %v8732
      %v8781 = vadd.f32 %v8311, %v8735
      %v8782 = vadd.f32 %v8312, %v8740
      %v8783 = vadd.f32 %v8313, %v8743
      %v8784 = vadd.f32 %v8314, %v8748
      %v8785 = vadd.f32 %v8315, %v8751
      %v8786 = vld [vmem:[%s3520] sm:$0xf]
      %v8787 = vld [vmem:[%s3520 + $0x4] sm:$0xf]
      %v8788 = vld [vmem:[%s3520 + $0xc] sm:$0xf]
      %v8789 = vld [vmem:[%s3520 + $0x10] sm:$0xf]
      %v8790 = vld [vmem:[%s3520 + $0x18] sm:$0xf]
      %v8791 = vld [vmem:[%s3520 + $0x1c] sm:$0xf]
      %v8792 = vld [vmem:[%s3520 + $0x24] sm:$0xf]
      %v8793 = vld [vmem:[%s3520 + $0x28] sm:$0xf]
      %v8794 = vld [vmem:[%s3520 + $0x30] sm:$0xf]
      %v8795 = vld [vmem:[%s3520 + $0x34] sm:$0xf]
      %v8796 = vld [vmem:[%s3520 + $0x3c] sm:$0xf]
      %v8797 = vld [vmem:[%s3520 + $0x40] sm:$0xf]
      %v8798 = vld [vmem:[%s3520 + $0x48] sm:$0xf]
      %v8799 = vld [vmem:[%s3520 + $0x4c] sm:$0xf]
      %v8800 = vld [vmem:[%s3520 + $0x54] sm:$0xf]
      %v8801 = vld [vmem:[%s3520 + $0x58] sm:$0xf]
      %v8802 = vld [vmem:[%s3520 + $0x60] sm:$0xf]
      %v8803 = vld [vmem:[%s3520 + $0x64] sm:$0xf]
      %v8804 = vld [vmem:[%s3520 + $0x6c] sm:$0xf]
      %v8805 = vld [vmem:[%s3520 + $0x70] sm:$0xf]
      %v8806 = vld [vmem:[%s3520 + $0x78] sm:$0xf]
      %v8807 = vld [vmem:[%s3520 + $0x7c] sm:$0xf]
      %v8808 = vld [vmem:[%s3520 + $0x84] sm:$0xf]
      %v8809 = vld [vmem:[%s3520 + $0x88] sm:$0xf]
      %v8810 = vld [vmem:[%s3520 + $0x90] sm:$0xf]
      %v8811 = vld [vmem:[%s3520 + $0x94] sm:$0xf]
      %v8812 = vld [vmem:[%s3520 + $0x9c] sm:$0xf]
      %v8813 = vld [vmem:[%s3520 + $0xa0] sm:$0xf]
      %v8814 = vld [vmem:[%s3520 + $0xa8] sm:$0xf]
      %v8815 = vld [vmem:[%s3520 + $0xac] sm:$0xf]
      %v8816 = vld [vmem:[%s3520 + $0xb4] sm:$0xf]
      %v8817 = vld [vmem:[%s3520 + $0xb8] sm:$0xf]
      %s8818 = scalar_lea.vmem %s2, 12
      %v8819 = vld [vmem:[%s8818] sm:$0x3]
      %v8852 = vunpack.c.l.b16 %v8786
      %v8853 = vunpack.c.l.b16 %v8787
      %v8854 = vunpack.c.l.b16 %v8788
      %v8855 = vunpack.c.l.b16 %v8789
      %v8856 = vunpack.c.l.b16 %v8790
      %v8857 = vunpack.c.l.b16 %v8791
      %v8858 = vunpack.c.l.b16 %v8792
      %v8859 = vunpack.c.l.b16 %v8793
      %v8860 = vunpack.c.l.b16 %v8794
      %v8861 = vunpack.c.l.b16 %v8795
      %v8862 = vunpack.c.l.b16 %v8796
      %v8863 = vunpack.c.l.b16 %v8797
      %v8864 = vunpack.c.l.b16 %v8798
      %v8865 = vunpack.c.l.b16 %v8799
      %v8866 = vunpack.c.l.b16 %v8800
      %v8867 = vunpack.c.l.b16 %v8801
      %v8868 = vunpack.c.l.b16 %v8802
      %v8869 = vunpack.c.l.b16 %v8803
      %v8870 = vunpack.c.l.b16 %v8804
      %v8871 = vunpack.c.l.b16 %v8805
      %v8872 = vunpack.c.l.b16 %v8806
      %v8873 = vunpack.c.l.b16 %v8807
      %v8874 = vunpack.c.l.b16 %v8808
      %v8875 = vunpack.c.l.b16 %v8809
      %v8876 = vunpack.c.l.b16 %v8810
      %v8877 = vunpack.c.l.b16 %v8811
      %v8878 = vunpack.c.l.b16 %v8812
      %v8879 = vunpack.c.l.b16 %v8813
      %v8880 = vunpack.c.l.b16 %v8814
      %v8881 = vunpack.c.l.b16 %v8815
      %v8882 = vunpack.c.l.b16 %v8816
      %v8883 = vunpack.c.l.b16 %v8817
      %v8884 = vpack.c.b16 %v8853, %v8852
      %v8885 = vpack.c.b16 %v8855, %v8854
      %v8886 = vpack.c.b16 %v8857, %v8856
      %v8887 = vpack.c.b16 %v8859, %v8858
      %v8888 = vpack.c.b16 %v8861, %v8860
      %v8889 = vpack.c.b16 %v8863, %v8862
      %v8890 = vpack.c.b16 %v8865, %v8864
      %v8891 = vpack.c.b16 %v8867, %v8866
      %v8892 = vpack.c.b16 %v8869, %v8868
      %v8893 = vpack.c.b16 %v8871, %v8870
      %v8894 = vpack.c.b16 %v8873, %v8872
      %v8895 = vpack.c.b16 %v8875, %v8874
      %v8896 = vpack.c.b16 %v8877, %v8876
      %v8897 = vpack.c.b16 %v8879, %v8878
      %v8898 = vpack.c.b16 %v8881, %v8880
      %v8899 = vpack.c.b16 %v8883, %v8882
      %v8901 = vsel %vm1002, %v8884, 0
      %v8904 = vsel %vm1002, %v8885, 0
      %v8907 = vsel %vm1002, %v8886, 0
      %v8910 = vsel %vm1002, %v8887, 0
      %v8913 = vsel %vm1002, %v8888, 0
      %v8916 = vsel %vm1002, %v8889, 0
      %v8919 = vsel %vm1002, %v8890, 0
      %v8922 = vsel %vm1002, %v8891, 0
      %v8925 = vsel %vm1002, %v8892, 0
      %v8928 = vsel %vm1002, %v8893, 0
      %v8931 = vsel %vm1002, %v8894, 0
      %v8934 = vsel %vm1002, %v8895, 0
      %v8937 = vsel %vm1002, %v8896, 0
      %v8940 = vsel %vm1002, %v8897, 0
      %v8943 = vsel %vm1002, %v8898, 0
      %v8946 = vsel %vm1002, %v8899, 0
      %v8949 = vsel %vm1051, %v8819, 0
      %8951 = vmatprep.subr.bf16.mxu0 0
      %8952 = vmatpush1.bf16.msra.mxu0 %v8949
      %8953 = vmatprep.subr.bf16.mxu0 0
      %8954 = vmatpush1.bf16.msra.mxu0 0
      %8955 = vmatprep.subr.bf16.mxu0 0
      %8956 = vmatpush1.bf16.msra.mxu0 0
      %8957 = vmatprep.subr.bf16.mxu0 0
      %8958 = vmatpush1.bf16.msra.mxu0 0
      %8959 = vmatprep.subr.bf16.mxu0 0
      %8960 = vmatpush1.bf16.msra.mxu0 0
      %8961 = vmatprep.subr.bf16.mxu0 0
      %8962 = vmatpush1.bf16.msra.mxu0 0
      %8963 = vmatprep.subr.bf16.mxu0 0
      %8964 = vmatpush1.bf16.msra.mxu0 0
      %8965 = vmatprep.subr.bf16.mxu0 0
      %8966 = vmatpush1.bf16.msra.mxu0 0
      %8967 = vmatprep.subr.bf16.mxu0 0
      %8968 = vmatpush1.bf16.msra.mxu0 0
      %8969 = vmatprep.subr.bf16.mxu0 0
      %8970 = vmatpush1.bf16.msra.mxu0 0
      %8971 = vmatprep.subr.bf16.mxu0 0
      %8972 = vmatpush1.bf16.msra.mxu0 0
      %8973 = vmatprep.subr.bf16.mxu0 0
      %8974 = vmatpush1.bf16.msra.mxu0 0
      %8975 = vmatprep.subr.bf16.mxu0 0
      %8976 = vmatpush1.bf16.msra.mxu0 0
      %8977 = vmatprep.subr.bf16.mxu0 0
      %8978 = vmatpush1.bf16.msra.mxu0 0
      %8979 = vmatprep.subr.bf16.mxu0 0
      %8980 = vmatpush1.bf16.msra.mxu0 0
      %8981 = vmatprep.subr.bf16.mxu0 0
      %8982 = vmatpush1.bf16.msra.mxu0 0
      %8983 = vmatprep.mubr.bf16.mxu0 0
      %8984 = vmatmul.mubr.bf16.gmra.mrb[0].mxu0 %v8901
      %v8985 = vpop.f32.mrb[0].mxu0
      %v8986 = vadd.f32 0.0, %v8985
      %v8987 = vpop.f32.mrb[0].mxu0
      %v8988 = vpop.f32.mrb[0].mxu0
      %v8989 = vadd.f32 0.0, %v8988
      %v8990 = vpop.f32.mrb[0].mxu0
      %8991 = vmatprep.mubr.bf16.mxu0 0
      %8992 = vmatmul.mubr.bf16.gmra.mrb[0].mxu0 %v8904
      %v8993 = vpop.f32.mrb[0].mxu0
      %v8994 = vadd.f32 0.0, %v8993
      %v8995 = vpop.f32.mrb[0].mxu0
      %v8996 = vpop.f32.mrb[0].mxu0
      %v8997 = vadd.f32 0.0, %v8996
      %v8998 = vpop.f32.mrb[0].mxu0
      %8999 = vmatprep.mubr.bf16.mxu0 0
      %9000 = vmatmul.mubr.bf16.gmra.mrb[0].mxu0 %v8907
      %v9001 = vpop.f32.mrb[0].mxu0
      %v9002 = vadd.f32 0.0, %v9001
      %v9003 = vpop.f32.mrb[0].mxu0
      %v9004 = vpop.f32.mrb[0].mxu0
      %v9005 = vadd.f32 0.0, %v9004
      %v9006 = vpop.f32.mrb[0].mxu0
      %9007 = vmatprep.mubr.bf16.mxu0 0
      %9008 = vmatmul.mubr.bf16.gmra.mrb[0].mxu0 %v8910
      %v9009 = vpop.f32.mrb[0].mxu0
      %v9010 = vadd.f32 0.0, %v9009
      %v9011 = vpop.f32.mrb[0].mxu0
      %v9012 = vpop.f32.mrb[0].mxu0
      %v9013 = vadd.f32 0.0, %v9012
      %v9014 = vpop.f32.mrb[0].mxu0
      %9015 = vmatprep.mubr.bf16.mxu0 0
      %9016 = vmatmul.mubr.bf16.gmra.mrb[0].mxu0 %v8913
      %v9017 = vpop.f32.mrb[0].mxu0
      %v9018 = vadd.f32 0.0, %v9017
      %v9019 = vpop.f32.mrb[0].mxu0
      %v9020 = vpop.f32.mrb[0].mxu0
      %v9021 = vadd.f32 0.0, %v9020
      %v9022 = vpop.f32.mrb[0].mxu0
      %9023 = vmatprep.mubr.bf16.mxu0 0
      %9024 = vmatmul.mubr.bf16.gmra.mrb[0].mxu0 %v8916
      %v9025 = vpop.f32.mrb[0].mxu0
      %v9026 = vadd.f32 0.0, %v9025
      %v9027 = vpop.f32.mrb[0].mxu0
      %v9028 = vpop.f32.mrb[0].mxu0
      %v9029 = vadd.f32 0.0, %v9028
      %v9030 = vpop.f32.mrb[0].mxu0
      %9031 = vmatprep.mubr.bf16.mxu0 0
      %9032 = vmatmul.mubr.bf16.gmra.mrb[0].mxu0 %v8919
      %v9033 = vpop.f32.mrb[0].mxu0
      %v9034 = vadd.f32 0.0, %v9033
      %v9035 = vpop.f32.mrb[0].mxu0
      %v9036 = vpop.f32.mrb[0].mxu0
      %v9037 = vadd.f32 0.0, %v9036
      %v9038 = vpop.f32.mrb[0].mxu0
      %9039 = vmatprep.mubr.bf16.mxu0 0
      %9040 = vmatmul.mubr.bf16.gmra.mrb[0].mxu0 %v8922
      %v9041 = vpop.f32.mrb[0].mxu0
      %v9042 = vadd.f32 0.0, %v9041
      %v9043 = vpop.f32.mrb[0].mxu0
      %v9044 = vpop.f32.mrb[0].mxu0
      %v9045 = vadd.f32 0.0, %v9044
      %v9046 = vpop.f32.mrb[0].mxu0
      %9047 = vmatprep.mubr.bf16.mxu0 0
      %9048 = vmatmul.mubr.bf16.gmra.mrb[0].mxu0 %v8925
      %v9049 = vpop.f32.mrb[0].mxu0
      %v9050 = vadd.f32 0.0, %v9049
      %v9051 = vpop.f32.mrb[0].mxu0
      %v9052 = vpop.f32.mrb[0].mxu0
      %v9053 = vadd.f32 0.0, %v9052
      %v9054 = vpop.f32.mrb[0].mxu0
      %9055 = vmatprep.mubr.bf16.mxu0 0
      %9056 = vmatmul.mubr.bf16.gmra.mrb[0].mxu0 %v8928
      %v9057 = vpop.f32.mrb[0].mxu0
      %v9058 = vadd.f32 0.0, %v9057
      %v9059 = vpop.f32.mrb[0].mxu0
      %v9060 = vpop.f32.mrb[0].mxu0
      %v9061 = vadd.f32 0.0, %v9060
      %v9062 = vpop.f32.mrb[0].mxu0
      %9063 = vmatprep.mubr.bf16.mxu0 0
      %9064 = vmatmul.mubr.bf16.gmra.mrb[0].mxu0 %v8931
      %v9065 = vpop.f32.mrb[0].mxu0
      %v9066 = vadd.f32 0.0, %v9065
      %v9067 = vpop.f32.mrb[0].mxu0
      %v9068 = vpop.f32.mrb[0].mxu0
      %v9069 = vadd.f32 0.0, %v9068
      %v9070 = vpop.f32.mrb[0].mxu0
      %9071 = vmatprep.mubr.bf16.mxu0 0
      %9072 = vmatmul.mubr.bf16.gmra.mrb[0].mxu0 %v8934
      %v9073 = vpop.f32.mrb[0].mxu0
      %v9074 = vadd.f32 0.0, %v9073
      %v9075 = vpop.f32.mrb[0].mxu0
      %v9076 = vpop.f32.mrb[0].mxu0
      %v9077 = vadd.f32 0.0, %v9076
      %v9078 = vpop.f32.mrb[0].mxu0
      %9079 = vmatprep.mubr.bf16.mxu0 0
      %9080 = vmatmul.mubr.bf16.gmra.mrb[0].mxu0 %v8937
      %v9081 = vpop.f32.mrb[0].mxu0
      %v9082 = vadd.f32 0.0, %v9081
      %v9083 = vpop.f32.mrb[0].mxu0
      %v9084 = vpop.f32.mrb[0].mxu0
      %v9085 = vadd.f32 0.0, %v9084
      %v9086 = vpop.f32.mrb[0].mxu0
      %9087 = vmatprep.mubr.bf16.mxu0 0
      %9088 = vmatmul.mubr.bf16.gmra.mrb[0].mxu0 %v8940
      %v9089 = vpop.f32.mrb[0].mxu0
      %v9090 = vadd.f32 0.0, %v9089
      %v9091 = vpop.f32.mrb[0].mxu0
      %v9092 = vpop.f32.mrb[0].mxu0
      %v9093 = vadd.f32 0.0, %v9092
      %v9094 = vpop.f32.mrb[0].mxu0
      %9095 = vmatprep.mubr.bf16.mxu0 0
      %9096 = vmatmul.mubr.bf16.gmra.mrb[0].mxu0 %v8943
      %v9097 = vpop.f32.mrb[0].mxu0
      %v9098 = vadd.f32 0.0, %v9097
      %v9099 = vpop.f32.mrb[0].mxu0
      %v9100 = vpop.f32.mrb[0].mxu0
      %v9101 = vadd.f32 0.0, %v9100
      %v9102 = vpop.f32.mrb[0].mxu0
      %9103 = vmatprep.mubr.bf16.mxu0 0
      %9104 = vmatmul.mubr.bf16.gmra.mrb[0].mxu0 %v8946
      %v9105 = vpop.f32.mrb[0].mxu0
      %v9106 = vadd.f32 0.0, %v9105
      %v9107 = vpop.f32.mrb[0].mxu0
      %v9108 = vpop.f32.mrb[0].mxu0
      %v9109 = vadd.f32 0.0, %v9108
      %v9110 = vpop.f32.mrb[0].mxu0
      %9111 = vdwg.mxu0
      %v9112 = vadd.f32 %v8754, %v8986
      %v9113 = vadd.f32 %v8755, %v8989
      %v9114 = vadd.f32 %v8756, %v8994
      %v9115 = vadd.f32 %v8757, %v8997
      %v9116 = vadd.f32 %v8758, %v9002
      %v9117 = vadd.f32 %v8759, %v9005
      %v9118 = vadd.f32 %v8760, %v9010
      %v9119 = vadd.f32 %v8761, %v9013
      %v9120 = vadd.f32 %v8762, %v9018
      %v9121 = vadd.f32 %v8763, %v9021
      %v9122 = vadd.f32 %v8764, %v9026
      %v9123 = vadd.f32 %v8765, %v9029
      %v9124 = vadd.f32 %v8766, %v9034
      %v9125 = vadd.f32 %v8767, %v9037
      %v9126 = vadd.f32 %v8768, %v9042
      %v9127 = vadd.f32 %v8769, %v9045
      %v9128 = vadd.f32 %v8770, %v9050
      %v9129 = vadd.f32 %v8771, %v9053
      %v9130 = vadd.f32 %v8772, %v9058
      %v9131 = vadd.f32 %v8773, %v9061
      %v9132 = vadd.f32 %v8774, %v9066
      %v9133 = vadd.f32 %v8775, %v9069
      %v9134 = vadd.f32 %v8776, %v9074
      %v9135 = vadd.f32 %v8777, %v9077
      %v9136 = vadd.f32 %v8778, %v9082
      %v9137 = vadd.f32 %v8779, %v9085
      %v9138 = vadd.f32 %v8780, %v9090
      %v9139 = vadd.f32 %v8781, %v9093
      %v9140 = vadd.f32 %v8782, %v9098
      %v9141 = vadd.f32 %v8783, %v9101
      %v9142 = vadd.f32 %v8784, %v9106
      %v9143 = vadd.f32 %v8785, %v9109
      %v9144 = vld [vmem:[%s3520] sm:$0xf]
      %v9145 = vld [vmem:[%s3520 + $0x4] sm:$0xf]
      %v9146 = vld [vmem:[%s3520 + $0x8] sm:$0x1]
      %v9147 = vld [vmem:[%s3520 + $0xc] sm:$0xf]
      %v9148 = vld [vmem:[%s3520 + $0x10] sm:$0xf]
      %v9149 = vld [vmem:[%s3520 + $0x14] sm:$0x1]
      %v9150 = vld [vmem:[%s3520 + $0x18] sm:$0xf]
      %v9151 = vld [vmem:[%s3520 + $0x1c] sm:$0xf]
      %v9152 = vld [vmem:[%s3520 + $0x20] sm:$0x1]
      %v9153 = vld [vmem:[%s3520 + $0x24] sm:$0xf]
      %v9154 = vld [vmem:[%s3520 + $0x28] sm:$0xf]
      %v9155 = vld [vmem:[%s3520 + $0x2c] sm:$0x1]
      %v9156 = vld [vmem:[%s3520 + $0x30] sm:$0xf]
      %v9157 = vld [vmem:[%s3520 + $0x34] sm:$0xf]
      %v9158 = vld [vmem:[%s3520 + $0x38] sm:$0x1]
      %v9159 = vld [vmem:[%s3520 + $0x3c] sm:$0xf]
      %v9160 = vld [vmem:[%s3520 + $0x40] sm:$0xf]
      %v9161 = vld [vmem:[%s3520 + $0x44] sm:$0x1]
      %v9162 = vld [vmem:[%s3520 + $0x48] sm:$0xf]
      %v9163 = vld [vmem:[%s3520 + $0x4c] sm:$0xf]
      %v9164 = vld [vmem:[%s3520 + $0x50] sm:$0x1]
      %v9165 = vld [vmem:[%s3520 + $0x54] sm:$0xf]
      %v9166 = vld [vmem:[%s3520 + $0x58] sm:$0xf]
      %v9167 = vld [vmem:[%s3520 + $0x5c] sm:$0x1]
      %v9168 = vld [vmem:[%s3520 + $0x60] sm:$0xf]
      %v9169 = vld [vmem:[%s3520 + $0x64] sm:$0xf]
      %v9170 = vld [vmem:[%s3520 + $0x68] sm:$0x1]
      %v9171 = vld [vmem:[%s3520 + $0x6c] sm:$0xf]
      %v9172 = vld [vmem:[%s3520 + $0x70] sm:$0xf]
      %v9173 = vld [vmem:[%s3520 + $0x74] sm:$0x1]
      %v9174 = vld [vmem:[%s3520 + $0x78] sm:$0xf]
      %v9175 = vld [vmem:[%s3520 + $0x7c] sm:$0xf]
      %v9176 = vld [vmem:[%s3520 + $0x80] sm:$0x1]
      %v9177 = vld [vmem:[%s3520 + $0x84] sm:$0xf]
      %v9178 = vld [vmem:[%s3520 + $0x88] sm:$0xf]
      %v9179 = vld [vmem:[%s3520 + $0x8c] sm:$0x1]
      %v9180 = vld [vmem:[%s3520 + $0x90] sm:$0xf]
      %v9181 = vld [vmem:[%s3520 + $0x94] sm:$0xf]
      %v9182 = vld [vmem:[%s3520 + $0x98] sm:$0x1]
      %v9183 = vld [vmem:[%s3520 + $0x9c] sm:$0xf]
      %v9184 = vld [vmem:[%s3520 + $0xa0] sm:$0xf]
      %v9185 = vld [vmem:[%s3520 + $0xa4] sm:$0x1]
      %v9186 = vld [vmem:[%s3520 + $0xa8] sm:$0xf]
      %v9187 = vld [vmem:[%s3520 + $0xac] sm:$0xf]
      %v9188 = vld [vmem:[%s3520 + $0xb0] sm:$0x1]
      %v9189 = vld [vmem:[%s3520 + $0xb4] sm:$0xf]
      %v9190 = vld [vmem:[%s3520 + $0xb8] sm:$0xf]
      %v9191 = vld [vmem:[%s3520 + $0xbc] sm:$0x1]
      %v9193 = vshrl.u32 %v9144, 16
      %v9195 = vrot.slane %v9193, 4
      %v9196 = vshll.u32 %v9144, 16
      %v9198 = vrot.slane %v9196, 5
      %v9199 = vor.u32 %v9195, %v9198
      %v9200 = vrot.slane %v9199, 4
      %v9202 = vshll.u32 %v9145, 16
      %v9204 = vrot.slane %v9202, 5
      %v9205 = vsel %vm567, %v9200, %v9204
      %v9206 = vshrl.u32 %v9145, 16
      %v9208 = vrot.slane %v9206, 4
      %v9209 = vor.u32 %v9208, %v9204
      %v9210 = vrot.slane %v9209, 4
      %v9212 = vshll.u32 %v9146, 16
      %v9214 = vrot.slane %v9212, 5
      %v9215 = vsel %vm567, %v9210, %v9214
      %v9217 = vshrl.u32 %v9147, 16
      %v9219 = vrot.slane %v9217, 4
      %v9220 = vshll.u32 %v9147, 16
      %v9222 = vrot.slane %v9220, 5
      %v9223 = vor.u32 %v9219, %v9222
      %v9224 = vrot.slane %v9223, 4
      %v9226 = vshll.u32 %v9148, 16
      %v9228 = vrot.slane %v9226, 5
      %v9229 = vsel %vm567, %v9224, %v9228
      %v9230 = vshrl.u32 %v9148, 16
      %v9232 = vrot.slane %v9230, 4
      %v9233 = vor.u32 %v9232, %v9228
      %v9234 = vrot.slane %v9233, 4
      %v9236 = vshll.u32 %v9149, 16
      %v9238 = vrot.slane %v9236, 5
      %v9239 = vsel %vm567, %v9234, %v9238
      %v9241 = vshrl.u32 %v9150, 16
      %v9243 = vrot.slane %v9241, 4
      %v9244 = vshll.u32 %v9150, 16
      %v9246 = vrot.slane %v9244, 5
      %v9247 = vor.u32 %v9243, %v9246
      %v9248 = vrot.slane %v9247, 4
      %v9250 = vshll.u32 %v9151, 16
      %v9252 = vrot.slane %v9250, 5
      %v9253 = vsel %vm567, %v9248, %v9252
      %v9254 = vshrl.u32 %v9151, 16
      %v9256 = vrot.slane %v9254, 4
      %v9257 = vor.u32 %v9256, %v9252
      %v9258 = vrot.slane %v9257, 4
      %v9260 = vshll.u32 %v9152, 16
      %v9262 = vrot.slane %v9260, 5
      %v9263 = vsel %vm567, %v9258, %v9262
      %v9265 = vshrl.u32 %v9153, 16
      %v9267 = vrot.slane %v9265, 4
      %v9268 = vshll.u32 %v9153, 16
      %v9270 = vrot.slane %v9268, 5
      %v9271 = vor.u32 %v9267, %v9270
      %v9272 = vrot.slane %v9271, 4
      %v9274 = vshll.u32 %v9154, 16
      %v9276 = vrot.slane %v9274, 5
      %v9277 = vsel %vm567, %v9272, %v9276
      %v9278 = vshrl.u32 %v9154, 16
      %v9280 = vrot.slane %v9278, 4
      %v9281 = vor.u32 %v9280, %v9276
      %v9282 = vrot.slane %v9281, 4
      %v9284 = vshll.u32 %v9155, 16
      %v9286 = vrot.slane %v9284, 5
      %v9287 = vsel %vm567, %v9282, %v9286
      %v9289 = vshrl.u32 %v9156, 16
      %v9291 = vrot.slane %v9289, 4
      %v9292 = vshll.u32 %v9156, 16
      %v9294 = vrot.slane %v9292, 5
      %v9295 = vor.u32 %v9291, %v9294
      %v9296 = vrot.slane %v9295, 4
      %v9298 = vshll.u32 %v9157, 16
      %v9300 = vrot.slane %v9298, 5
      %v9301 = vsel %vm567, %v9296, %v9300
      %v9302 = vshrl.u32 %v9157, 16
      %v9304 = vrot.slane %v9302, 4
      %v9305 = vor.u32 %v9304, %v9300
      %v9306 = vrot.slane %v9305, 4
      %v9308 = vshll.u32 %v9158, 16
      %v9310 = vrot.slane %v9308, 5
      %v9311 = vsel %vm567, %v9306, %v9310
      %v9313 = vshrl.u32 %v9159, 16
      %v9315 = vrot.slane %v9313, 4
      %v9316 = vshll.u32 %v9159, 16
      %v9318 = vrot.slane %v9316, 5
      %v9319 = vor.u32 %v9315, %v9318
      %v9320 = vrot.slane %v9319, 4
      %v9322 = vshll.u32 %v9160, 16
      %v9324 = vrot.slane %v9322, 5
      %v9325 = vsel %vm567, %v9320, %v9324
      %v9326 = vshrl.u32 %v9160, 16
      %v9328 = vrot.slane %v9326, 4
      %v9329 = vor.u32 %v9328, %v9324
      %v9330 = vrot.slane %v9329, 4
      %v9332 = vshll.u32 %v9161, 16
      %v9334 = vrot.slane %v9332, 5
      %v9335 = vsel %vm567, %v9330, %v9334
      %v9337 = vshrl.u32 %v9162, 16
      %v9339 = vrot.slane %v9337, 4
      %v9340 = vshll.u32 %v9162, 16
      %v9342 = vrot.slane %v9340, 5
      %v9343 = vor.u32 %v9339, %v9342
      %v9344 = vrot.slane %v9343, 4
      %v9346 = vshll.u32 %v9163, 16
      %v9348 = vrot.slane %v9346, 5
      %v9349 = vsel %vm567, %v9344, %v9348
      %v9350 = vshrl.u32 %v9163, 16
      %v9352 = vrot.slane %v9350, 4
      %v9353 = vor.u32 %v9352, %v9348
      %v9354 = vrot.slane %v9353, 4
      %v9356 = vshll.u32 %v9164, 16
      %v9358 = vrot.slane %v9356, 5
      %v9359 = vsel %vm567, %v9354, %v9358
      %v9361 = vshrl.u32 %v9165, 16
      %v9363 = vrot.slane %v9361, 4
      %v9364 = vshll.u32 %v9165, 16
      %v9366 = vrot.slane %v9364, 5
      %v9367 = vor.u32 %v9363, %v9366
      %v9368 = vrot.slane %v9367, 4
      %v9370 = vshll.u32 %v9166, 16
      %v9372 = vrot.slane %v9370, 5
      %v9373 = vsel %vm567, %v9368, %v9372
      %v9374 = vshrl.u32 %v9166, 16
      %v9376 = vrot.slane %v9374, 4
      %v9377 = vor.u32 %v9376, %v9372
      %v9378 = vrot.slane %v9377, 4
      %v9380 = vshll.u32 %v9167, 16
      %v9382 = vrot.slane %v9380, 5
      %v9383 = vsel %vm567, %v9378, %v9382
      %v9385 = vshrl.u32 %v9168, 16
      %v9387 = vrot.slane %v9385, 4
      %v9388 = vshll.u32 %v9168, 16
      %v9390 = vrot.slane %v9388, 5
      %v9391 = vor.u32 %v9387, %v9390
      %v9392 = vrot.slane %v9391, 4
      %v9394 = vshll.u32 %v9169, 16
      %v9396 = vrot.slane %v9394, 5
      %v9397 = vsel %vm567, %v9392, %v9396
      %v9398 = vshrl.u32 %v9169, 16
      %v9400 = vrot.slane %v9398, 4
      %v9401 = vor.u32 %v9400, %v9396
      %v9402 = vrot.slane %v9401, 4
      %v9404 = vshll.u32 %v9170, 16
      %v9406 = vrot.slane %v9404, 5
      %v9407 = vsel %vm567, %v9402, %v9406
      %v9409 = vshrl.u32 %v9171, 16
      %v9411 = vrot.slane %v9409, 4
      %v9412 = vshll.u32 %v9171, 16
      %v9414 = vrot.slane %v9412, 5
      %v9415 = vor.u32 %v9411, %v9414
      %v9416 = vrot.slane %v9415, 4
      %v9418 = vshll.u32 %v9172, 16
      %v9420 = vrot.slane %v9418, 5
      %v9421 = vsel %vm567, %v9416, %v9420
      %v9422 = vshrl.u32 %v9172, 16
      %v9424 = vrot.slane %v9422, 4
      %v9425 = vor.u32 %v9424, %v9420
      %v9426 = vrot.slane %v9425, 4
      %v9428 = vshll.u32 %v9173, 16
      %v9430 = vrot.slane %v9428, 5
      %v9431 = vsel %vm567, %v9426, %v9430
      %v9433 = vshrl.u32 %v9174, 16
      %v9435 = vrot.slane %v9433, 4
      %v9436 = vshll.u32 %v9174, 16
      %v9438 = vrot.slane %v9436, 5
      %v9439 = vor.u32 %v9435, %v9438
      %v9440 = vrot.slane %v9439, 4
      %v9442 = vshll.u32 %v9175, 16
      %v9444 = vrot.slane %v9442, 5
      %v9445 = vsel %vm567, %v9440, %v9444
      %v9446 = vshrl.u32 %v9175, 16
      %v9448 = vrot.slane %v9446, 4
      %v9449 = vor.u32 %v9448, %v9444
      %v9450 = vrot.slane %v9449, 4
      %v9452 = vshll.u32 %v9176, 16
      %v9454 = vrot.slane %v9452, 5
      %v9455 = vsel %vm567, %v9450, %v9454
      %v9457 = vshrl.u32 %v9177, 16
      %v9459 = vrot.slane %v9457, 4
      %v9460 = vshll.u32 %v9177, 16
      %v9462 = vrot.slane %v9460, 5
      %v9463 = vor.u32 %v9459, %v9462
      %v9464 = vrot.slane %v9463, 4
      %v9466 = vshll.u32 %v9178, 16
      %v9468 = vrot.slane %v9466, 5
      %v9469 = vsel %vm567, %v9464, %v9468
      %v9470 = vshrl.u32 %v9178, 16
      %v9472 = vrot.slane %v9470, 4
      %v9473 = vor.u32 %v9472, %v9468
      %v9474 = vrot.slane %v9473, 4
      %v9476 = vshll.u32 %v9179, 16
      %v9478 = vrot.slane %v9476, 5
      %v9479 = vsel %vm567, %v9474, %v9478
      %v9481 = vshrl.u32 %v9180, 16
      %v9483 = vrot.slane %v9481, 4
      %v9484 = vshll.u32 %v9180, 16
      %v9486 = vrot.slane %v9484, 5
      %v9487 = vor.u32 %v9483, %v9486
      %v9488 = vrot.slane %v9487, 4
      %v9490 = vshll.u32 %v9181, 16
      %v9492 = vrot.slane %v9490, 5
      %v9493 = vsel %vm567, %v9488, %v9492
      %v9494 = vshrl.u32 %v9181, 16
      %v9496 = vrot.slane %v9494, 4
      %v9497 = vor.u32 %v9496, %v9492
      %v9498 = vrot.slane %v9497, 4
      %v9500 = vshll.u32 %v9182, 16
      %v9502 = vrot.slane %v9500, 5
      %v9503 = vsel %vm567, %v9498, %v9502
      %v9505 = vshrl.u32 %v9183, 16
      %v9507 = vrot.slane %v9505, 4
      %v9508 = vshll.u32 %v9183, 16
      %v9510 = vrot.slane %v9508, 5
      %v9511 = vor.u32 %v9507, %v9510
      %v9512 = vrot.slane %v9511, 4
      %v9514 = vshll.u32 %v9184, 16
      %v9516 = vrot.slane %v9514, 5
      %v9517 = vsel %vm567, %v9512, %v9516
      %v9518 = vshrl.u32 %v9184, 16
      %v9520 = vrot.slane %v9518, 4
      %v9521 = vor.u32 %v9520, %v9516
      %v9522 = vrot.slane %v9521, 4
      %v9524 = vshll.u32 %v9185, 16
      %v9526 = vrot.slane %v9524, 5
      %v9527 = vsel %vm567, %v9522, %v9526
      %v9529 = vshrl.u32 %v9186, 16
      %v9531 = vrot.slane %v9529, 4
      %v9532 = vshll.u32 %v9186, 16
      %v9534 = vrot.slane %v9532, 5
      %v9535 = vor.u32 %v9531, %v9534
      %v9536 = vrot.slane %v9535, 4
      %v9538 = vshll.u32 %v9187, 16
      %v9540 = vrot.slane %v9538, 5
      %v9541 = vsel %vm567, %v9536, %v9540
      %v9542 = vshrl.u32 %v9187, 16
      %v9544 = vrot.slane %v9542, 4
      %v9545 = vor.u32 %v9544, %v9540
      %v9546 = vrot.slane %v9545, 4
      %v9548 = vshll.u32 %v9188, 16
      %v9550 = vrot.slane %v9548, 5
      %v9551 = vsel %vm567, %v9546, %v9550
      %v9553 = vshrl.u32 %v9189, 16
      %v9555 = vrot.slane %v9553, 4
      %v9556 = vshll.u32 %v9189, 16
      %v9558 = vrot.slane %v9556, 5
      %v9559 = vor.u32 %v9555, %v9558
      %v9560 = vrot.slane %v9559, 4
      %v9562 = vshll.u32 %v9190, 16
      %v9564 = vrot.slane %v9562, 5
      %v9565 = vsel %vm567, %v9560, %v9564
      %v9566 = vshrl.u32 %v9190, 16
      %v9568 = vrot.slane %v9566, 4
      %v9569 = vor.u32 %v9568, %v9564
      %v9570 = vrot.slane %v9569, 4
      %v9572 = vshll.u32 %v9191, 16
      %v9574 = vrot.slane %v9572, 5
      %v9575 = vsel %vm567, %v9570, %v9574
      %s9576 = scalar_lea.vmem %s2, 14
      %v9577 = vld [vmem:[%s9576] sm:$0x3]
      %v9578 = vunpack.c.l.b16 %v9205
      %v9579 = vunpack.c.l.b16 %v9215
      %v9580 = vunpack.c.l.b16 %v9229
      %v9581 = vunpack.c.l.b16 %v9239
      %v9582 = vunpack.c.l.b16 %v9253
      %v9583 = vunpack.c.l.b16 %v9263
      %v9584 = vunpack.c.l.b16 %v9277
      %v9585 = vunpack.c.l.b16 %v9287
      %v9586 = vunpack.c.l.b16 %v9301
      %v9587 = vunpack.c.l.b16 %v9311
      %v9588 = vunpack.c.l.b16 %v9325
      %v9589 = vunpack.c.l.b16 %v9335
      %v9590 = vunpack.c.l.b16 %v9349
      %v9591 = vunpack.c.l.b16 %v9359
      %v9592 = vunpack.c.l.b16 %v9373
      %v9593 = vunpack.c.l.b16 %v9383
      %v9594 = vunpack.c.l.b16 %v9397
      %v9595 = vunpack.c.l.b16 %v9407
      %v9596 = vunpack.c.l.b16 %v9421
      %v9597 = vunpack.c.l.b16 %v9431
      %v9598 = vunpack.c.l.b16 %v9445
      %v9599 = vunpack.c.l.b16 %v9455
      %v9600 = vunpack.c.l.b16 %v9469
      %v9601 = vunpack.c.l.b16 %v9479
      %v9602 = vunpack.c.l.b16 %v9493
      %v9603 = vunpack.c.l.b16 %v9503
      %v9604 = vunpack.c.l.b16 %v9517
      %v9605 = vunpack.c.l.b16 %v9527
      %v9606 = vunpack.c.l.b16 %v9541
      %v9607 = vunpack.c.l.b16 %v9551
      %v9608 = vunpack.c.l.b16 %v9565
      %v9609 = vunpack.c.l.b16 %v9575
      %v9610 = vpack.c.b16 %v9579, %v9578
      %v9611 = vpack.c.b16 %v9581, %v9580
      %v9612 = vpack.c.b16 %v9583, %v9582
      %v9613 = vpack.c.b16 %v9585, %v9584
      %v9614 = vpack.c.b16 %v9587, %v9586
      %v9615 = vpack.c.b16 %v9589, %v9588
      %v9616 = vpack.c.b16 %v9591, %v9590
      %v9617 = vpack.c.b16 %v9593, %v9592
      %v9618 = vpack.c.b16 %v9595, %v9594
      %v9619 = vpack.c.b16 %v9597, %v9596
      %v9620 = vpack.c.b16 %v9599, %v9598
      %v9621 = vpack.c.b16 %v9601, %v9600
      %v9622 = vpack.c.b16 %v9603, %v9602
      %v9623 = vpack.c.b16 %v9605, %v9604
      %v9624 = vpack.c.b16 %v9607, %v9606
      %v9625 = vpack.c.b16 %v9609, %v9608
      %v9627 = vsel %vm1002, %v9610, 0
      %v9630 = vsel %vm1002, %v9611, 0
      %v9633 = vsel %vm1002, %v9612, 0
      %v9636 = vsel %vm1002, %v9613, 0
      %v9639 = vsel %vm1002, %v9614, 0
      %v9642 = vsel %vm1002, %v9615, 0
      %v9645 = vsel %vm1002, %v9616, 0
      %v9648 = vsel %vm1002, %v9617, 0
      %v9651 = vsel %vm1002, %v9618, 0
      %v9654 = vsel %vm1002, %v9619, 0
      %v9657 = vsel %vm1002, %v9620, 0
      %v9660 = vsel %vm1002, %v9621, 0
      %v9663 = vsel %vm1002, %v9622, 0
      %v9666 = vsel %vm1002, %v9623, 0
      %v9669 = vsel %vm1002, %v9624, 0
      %v9672 = vsel %vm1002, %v9625, 0
      %v9675 = vsel %vm1051, %v9577, 0
      %9677 = vmatprep.subr.bf16.mxu0 0
      %9678 = vmatpush1.bf16.msra.mxu0 %v9675
      %9679 = vmatprep.subr.bf16.mxu0 0
      %9680 = vmatpush1.bf16.msra.mxu0 0
      %9681 = vmatprep.subr.bf16.mxu0 0
      %9682 = vmatpush1.bf16.msra.mxu0 0
      %9683 = vmatprep.subr.bf16.mxu0 0
      %9684 = vmatpush1.bf16.msra.mxu0 0
      %9685 = vmatprep.subr.bf16.mxu0 0
      %9686 = vmatpush1.bf16.msra.mxu0 0
      %9687 = vmatprep.subr.bf16.mxu0 0
      %9688 = vmatpush1.bf16.msra.mxu0 0
      %9689 = vmatprep.subr.bf16.mxu0 0
      %9690 = vmatpush1.bf16.msra.mxu0 0
      %9691 = vmatprep.subr.bf16.mxu0 0
      %9692 = vmatpush1.bf16.msra.mxu0 0
      %9693 = vmatprep.subr.bf16.mxu0 0
      %9694 = vmatpush1.bf16.msra.mxu0 0
      %9695 = vmatprep.subr.bf16.mxu0 0
      %9696 = vmatpush1.bf16.msra.mxu0 0
      %9697 = vmatprep.subr.bf16.mxu0 0
      %9698 = vmatpush1.bf16.msra.mxu0 0
      %9699 = vmatprep.subr.bf16.mxu0 0
      %9700 = vmatpush1.bf16.msra.mxu0 0
      %9701 = vmatprep.subr.bf16.mxu0 0
      %9702 = vmatpush1.bf16.msra.mxu0 0
      %9703 = vmatprep.subr.bf16.mxu0 0
      %9704 = vmatpush1.bf16.msra.mxu0 0
      %9705 = vmatprep.subr.bf16.mxu0 0
      %9706 = vmatpush1.bf16.msra.mxu0 0
      %9707 = vmatprep.subr.bf16.mxu0 0
      %9708 = vmatpush1.bf16.msra.mxu0 0
      %9709 = vmatprep.mubr.bf16.mxu0 0
      %9710 = vmatmul.mubr.bf16.gmra.mrb[0].mxu0 %v9627
      %v9711 = vpop.f32.mrb[0].mxu0
      %v9712 = vadd.f32 0.0, %v9711
      %v9713 = vpop.f32.mrb[0].mxu0
      %v9714 = vpop.f32.mrb[0].mxu0
      %v9715 = vadd.f32 0.0, %v9714
      %v9716 = vpop.f32.mrb[0].mxu0
      %9717 = vmatprep.mubr.bf16.mxu0 0
      %9718 = vmatmul.mubr.bf16.gmra.mrb[0].mxu0 %v9630
      %v9719 = vpop.f32.mrb[0].mxu0
      %v9720 = vadd.f32 0.0, %v9719
      %v9721 = vpop.f32.mrb[0].mxu0
      %v9722 = vpop.f32.mrb[0].mxu0
      %v9723 = vadd.f32 0.0, %v9722
      %v9724 = vpop.f32.mrb[0].mxu0
      %9725 = vmatprep.mubr.bf16.mxu0 0
      %9726 = vmatmul.mubr.bf16.gmra.mrb[0].mxu0 %v9633
      %v9727 = vpop.f32.mrb[0].mxu0
      %v9728 = vadd.f32 0.0, %v9727
      %v9729 = vpop.f32.mrb[0].mxu0
      %v9730 = vpop.f32.mrb[0].mxu0
      %v9731 = vadd.f32 0.0, %v9730
      %v9732 = vpop.f32.mrb[0].mxu0
      %9733 = vmatprep.mubr.bf16.mxu0 0
      %9734 = vmatmul.mubr.bf16.gmra.mrb[0].mxu0 %v9636
      %v9735 = vpop.f32.mrb[0].mxu0
      %v9736 = vadd.f32 0.0, %v9735
      %v9737 = vpop.f32.mrb[0].mxu0
      %v9738 = vpop.f32.mrb[0].mxu0
      %v9739 = vadd.f32 0.0, %v9738
      %v9740 = vpop.f32.mrb[0].mxu0
      %9741 = vmatprep.mubr.bf16.mxu0 0
      %9742 = vmatmul.mubr.bf16.gmra.mrb[0].mxu0 %v9639
      %v9743 = vpop.f32.mrb[0].mxu0
      %v9744 = vadd.f32 0.0, %v9743
      %v9745 = vpop.f32.mrb[0].mxu0
      %v9746 = vpop.f32.mrb[0].mxu0
      %v9747 = vadd.f32 0.0, %v9746
      %v9748 = vpop.f32.mrb[0].mxu0
      %9749 = vmatprep.mubr.bf16.mxu0 0
      %9750 = vmatmul.mubr.bf16.gmra.mrb[0].mxu0 %v9642
      %v9751 = vpop.f32.mrb[0].mxu0
      %v9752 = vadd.f32 0.0, %v9751
      %v9753 = vpop.f32.mrb[0].mxu0
      %v9754 = vpop.f32.mrb[0].mxu0
      %v9755 = vadd.f32 0.0, %v9754
      %v9756 = vpop.f32.mrb[0].mxu0
      %9757 = vmatprep.mubr.bf16.mxu0 0
      %9758 = vmatmul.mubr.bf16.gmra.mrb[0].mxu0 %v9645
      %v9759 = vpop.f32.mrb[0].mxu0
      %v9760 = vadd.f32 0.0, %v9759
      %v9761 = vpop.f32.mrb[0].mxu0
      %v9762 = vpop.f32.mrb[0].mxu0
      %v9763 = vadd.f32 0.0, %v9762
      %v9764 = vpop.f32.mrb[0].mxu0
      %9765 = vmatprep.mubr.bf16.mxu0 0
      %9766 = vmatmul.mubr.bf16.gmra.mrb[0].mxu0 %v9648
      %v9767 = vpop.f32.mrb[0].mxu0
      %v9768 = vadd.f32 0.0, %v9767
      %v9769 = vpop.f32.mrb[0].mxu0
      %v9770 = vpop.f32.mrb[0].mxu0
      %v9771 = vadd.f32 0.0, %v9770
      %v9772 = vpop.f32.mrb[0].mxu0
      %9773 = vmatprep.mubr.bf16.mxu0 0
      %9774 = vmatmul.mubr.bf16.gmra.mrb[0].mxu0 %v9651
      %v9775 = vpop.f32.mrb[0].mxu0
      %v9776 = vadd.f32 0.0, %v9775
      %v9777 = vpop.f32.mrb[0].mxu0
      %v9778 = vpop.f32.mrb[0].mxu0
      %v9779 = vadd.f32 0.0, %v9778
      %v9780 = vpop.f32.mrb[0].mxu0
      %9781 = vmatprep.mubr.bf16.mxu0 0
      %9782 = vmatmul.mubr.bf16.gmra.mrb[0].mxu0 %v9654
      %v9783 = vpop.f32.mrb[0].mxu0
      %v9784 = vadd.f32 0.0, %v9783
      %v9785 = vpop.f32.mrb[0].mxu0
      %v9786 = vpop.f32.mrb[0].mxu0
      %v9787 = vadd.f32 0.0, %v9786
      %v9788 = vpop.f32.mrb[0].mxu0
      %9789 = vmatprep.mubr.bf16.mxu0 0
      %9790 = vmatmul.mubr.bf16.gmra.mrb[0].mxu0 %v9657
      %v9791 = vpop.f32.mrb[0].mxu0
      %v9792 = vadd.f32 0.0, %v9791
      %v9793 = vpop.f32.mrb[0].mxu0
      %v9794 = vpop.f32.mrb[0].mxu0
      %v9795 = vadd.f32 0.0, %v9794
      %v9796 = vpop.f32.mrb[0].mxu0
      %9797 = vmatprep.mubr.bf16.mxu0 0
      %9798 = vmatmul.mubr.bf16.gmra.mrb[0].mxu0 %v9660
      %v9799 = vpop.f32.mrb[0].mxu0
      %v9800 = vadd.f32 0.0, %v9799
      %v9801 = vpop.f32.mrb[0].mxu0
      %v9802 = vpop.f32.mrb[0].mxu0
      %v9803 = vadd.f32 0.0, %v9802
      %v9804 = vpop.f32.mrb[0].mxu0
      %9805 = vmatprep.mubr.bf16.mxu0 0
      %9806 = vmatmul.mubr.bf16.gmra.mrb[0].mxu0 %v9663
      %v9807 = vpop.f32.mrb[0].mxu0
      %v9808 = vadd.f32 0.0, %v9807
      %v9809 = vpop.f32.mrb[0].mxu0
      %v9810 = vpop.f32.mrb[0].mxu0
      %v9811 = vadd.f32 0.0, %v9810
      %v9812 = vpop.f32.mrb[0].mxu0
      %9813 = vmatprep.mubr.bf16.mxu0 0
      %9814 = vmatmul.mubr.bf16.gmra.mrb[0].mxu0 %v9666
      %v9815 = vpop.f32.mrb[0].mxu0
      %v9816 = vadd.f32 0.0, %v9815
      %v9817 = vpop.f32.mrb[0].mxu0
      %v9818 = vpop.f32.mrb[0].mxu0
      %v9819 = vadd.f32 0.0, %v9818
      %v9820 = vpop.f32.mrb[0].mxu0
      %9821 = vmatprep.mubr.bf16.mxu0 0
      %9822 = vmatmul.mubr.bf16.gmra.mrb[0].mxu0 %v9669
      %v9823 = vpop.f32.mrb[0].mxu0
      %v9824 = vadd.f32 0.0, %v9823
      %v9825 = vpop.f32.mrb[0].mxu0
      %v9826 = vpop.f32.mrb[0].mxu0
      %v9827 = vadd.f32 0.0, %v9826
      %v9828 = vpop.f32.mrb[0].mxu0
      %9829 = vmatprep.mubr.bf16.mxu0 0
      %9830 = vmatmul.mubr.bf16.gmra.mrb[0].mxu0 %v9672
      %v9831 = vpop.f32.mrb[0].mxu0
      %v9832 = vadd.f32 0.0, %v9831
      %v9833 = vpop.f32.mrb[0].mxu0
      %v9834 = vpop.f32.mrb[0].mxu0
      %v9835 = vadd.f32 0.0, %v9834
      %v9836 = vpop.f32.mrb[0].mxu0
      %9837 = vdwg.mxu0
      %v9838 = vadd.f32 %v9112, %v9712
      %v9839 = vadd.f32 %v9113, %v9715
      %v9840 = vadd.f32 %v9114, %v9720
      %v9841 = vadd.f32 %v9115, %v9723
      %v9842 = vadd.f32 %v9116, %v9728
      %v9843 = vadd.f32 %v9117, %v9731
      %v9844 = vadd.f32 %v9118, %v9736
      %v9845 = vadd.f32 %v9119, %v9739
      %v9846 = vadd.f32 %v9120, %v9744
      %v9847 = vadd.f32 %v9121, %v9747
      %v9848 = vadd.f32 %v9122, %v9752
      %v9849 = vadd.f32 %v9123, %v9755
      %v9850 = vadd.f32 %v9124, %v9760
      %v9851 = vadd.f32 %v9125, %v9763
      %v9852 = vadd.f32 %v9126, %v9768
      %v9853 = vadd.f32 %v9127, %v9771
      %v9854 = vadd.f32 %v9128, %v9776
      %v9855 = vadd.f32 %v9129, %v9779
      %v9856 = vadd.f32 %v9130, %v9784
      %v9857 = vadd.f32 %v9131, %v9787
      %v9858 = vadd.f32 %v9132, %v9792
      %v9859 = vadd.f32 %v9133, %v9795
      %v9860 = vadd.f32 %v9134, %v9800
      %v9861 = vadd.f32 %v9135, %v9803
      %v9862 = vadd.f32 %v9136, %v9808
      %v9863 = vadd.f32 %v9137, %v9811
      %v9864 = vadd.f32 %v9138, %v9816
      %v9865 = vadd.f32 %v9139, %v9819
      %v9866 = vadd.f32 %v9140, %v9824
      %v9867 = vadd.f32 %v9141, %v9827
      %v9868 = vadd.f32 %v9142, %v9832
      %v9869 = vadd.f32 %v9143, %v9835
      %v9870 = vld [vmem:[%s3520] sm:$0xe]
      %v9871 = vld [vmem:[%s3520 + $0xc] sm:$0xe]
      %v9872 = vld [vmem:[%s3520 + $0x18] sm:$0xe]
      %v9873 = vld [vmem:[%s3520 + $0x24] sm:$0xe]
      %v9874 = vld [vmem:[%s3520 + $0x30] sm:$0xe]
      %v9875 = vld [vmem:[%s3520 + $0x3c] sm:$0xe]
      %v9876 = vld [vmem:[%s3520 + $0x48] sm:$0xe]
      %v9877 = vld [vmem:[%s3520 + $0x54] sm:$0xe]
      %v9878 = vld [vmem:[%s3520 + $0x60] sm:$0xe]
      %v9879 = vld [vmem:[%s3520 + $0x6c] sm:$0xe]
      %v9880 = vld [vmem:[%s3520 + $0x78] sm:$0xe]
      %v9881 = vld [vmem:[%s3520 + $0x84] sm:$0xe]
      %v9882 = vld [vmem:[%s3520 + $0x90] sm:$0xe]
      %v9883 = vld [vmem:[%s3520 + $0x9c] sm:$0xe]
      %v9884 = vld [vmem:[%s3520 + $0xa8] sm:$0xe]
      %v9885 = vld [vmem:[%s3520 + $0xb4] sm:$0xe]
      %v9934 = vrot.slane %v9870, 5
      %v9935 = vrot.slane %v9934, 4
      %v9936 = vrot.slane %v9145, 5
      %v9937 = vsel %vm1558, %v9935, %v9936
      %v9938 = vrot.slane %v9936, 4
      %v9939 = vrot.slane %v9146, 5
      %v9940 = vsel %vm1558, %v9938, %v9939
      %v9941 = vrot.slane %v9871, 5
      %v9942 = vrot.slane %v9941, 4
      %v9943 = vrot.slane %v9148, 5
      %v9944 = vsel %vm1558, %v9942, %v9943
      %v9945 = vrot.slane %v9943, 4
      %v9946 = vrot.slane %v9149, 5
      %v9947 = vsel %vm1558, %v9945, %v9946
      %v9948 = vrot.slane %v9872, 5
      %v9949 = vrot.slane %v9948, 4
      %v9950 = vrot.slane %v9151, 5
      %v9951 = vsel %vm1558, %v9949, %v9950
      %v9952 = vrot.slane %v9950, 4
      %v9953 = vrot.slane %v9152, 5
      %v9954 = vsel %vm1558, %v9952, %v9953
      %v9955 = vrot.slane %v9873, 5
      %v9956 = vrot.slane %v9955, 4
      %v9957 = vrot.slane %v9154, 5
      %v9958 = vsel %vm1558, %v9956, %v9957
      %v9959 = vrot.slane %v9957, 4
      %v9960 = vrot.slane %v9155, 5
      %v9961 = vsel %vm1558, %v9959, %v9960
      %v9962 = vrot.slane %v9874, 5
      %v9963 = vrot.slane %v9962, 4
      %v9964 = vrot.slane %v9157, 5
      %v9965 = vsel %vm1558, %v9963, %v9964
      %v9966 = vrot.slane %v9964, 4
      %v9967 = vrot.slane %v9158, 5
      %v9968 = vsel %vm1558, %v9966, %v9967
      %v9969 = vrot.slane %v9875, 5
      %v9970 = vrot.slane %v9969, 4
      %v9971 = vrot.slane %v9160, 5
      %v9972 = vsel %vm1558, %v9970, %v9971
      %v9973 = vrot.slane %v9971, 4
      %v9974 = vrot.slane %v9161, 5
      %v9975 = vsel %vm1558, %v9973, %v9974
      %v9976 = vrot.slane %v9876, 5
      %v9977 = vrot.slane %v9976, 4
      %v9978 = vrot.slane %v9163, 5
      %v9979 = vsel %vm1558, %v9977, %v9978
      %v9980 = vrot.slane %v9978, 4
      %v9981 = vrot.slane %v9164, 5
      %v9982 = vsel %vm1558, %v9980, %v9981
      %v9983 = vrot.slane %v9877, 5
      %v9984 = vrot.slane %v9983, 4
      %v9985 = vrot.slane %v9166, 5
      %v9986 = vsel %vm1558, %v9984, %v9985
      %v9987 = vrot.slane %v9985, 4
      %v9988 = vrot.slane %v9167, 5
      %v9989 = vsel %vm1558, %v9987, %v9988
      %v9990 = vrot.slane %v9878, 5
      %v9991 = vrot.slane %v9990, 4
      %v9992 = vrot.slane %v9169, 5
      %v9993 = vsel %vm1558, %v9991, %v9992
      %v9994 = vrot.slane %v9992, 4
      %v9995 = vrot.slane %v9170, 5
      %v9996 = vsel %vm1558, %v9994, %v9995
      %v9997 = vrot.slane %v9879, 5
      %v9998 = vrot.slane %v9997, 4
      %v9999 = vrot.slane %v9172, 5
      %v10000 = vsel %vm1558, %v9998, %v9999
      %v10001 = vrot.slane %v9999, 4
      %v10002 = vrot.slane %v9173, 5
      %v10003 = vsel %vm1558, %v10001, %v10002
      %v10004 = vrot.slane %v9880, 5
      %v10005 = vrot.slane %v10004, 4
      %v10006 = vrot.slane %v9175, 5
      %v10007 = vsel %vm1558, %v10005, %v10006
      %v10008 = vrot.slane %v10006, 4
      %v10009 = vrot.slane %v9176, 5
      %v10010 = vsel %vm1558, %v10008, %v10009
      %v10011 = vrot.slane %v9881, 5
      %v10012 = vrot.slane %v10011, 4
      %v10013 = vrot.slane %v9178, 5
      %v10014 = vsel %vm1558, %v10012, %v10013
      %v10015 = vrot.slane %v10013, 4
      %v10016 = vrot.slane %v9179, 5
      %v10017 = vsel %vm1558, %v10015, %v10016
      %v10018 = vrot.slane %v9882, 5
      %v10019 = vrot.slane %v10018, 4
      %v10020 = vrot.slane %v9181, 5
      %v10021 = vsel %vm1558, %v10019, %v10020
      %v10022 = vrot.slane %v10020, 4
      %v10023 = vrot.slane %v9182, 5
      %v10024 = vsel %vm1558, %v10022, %v10023
      %v10025 = vrot.slane %v9883, 5
      %v10026 = vrot.slane %v10025, 4
      %v10027 = vrot.slane %v9184, 5
      %v10028 = vsel %vm1558, %v10026, %v10027
      %v10029 = vrot.slane %v10027, 4
      %v10030 = vrot.slane %v9185, 5
      %v10031 = vsel %vm1558, %v10029, %v10030
      %v10032 = vrot.slane %v9884, 5
      %v10033 = vrot.slane %v10032, 4
      %v10034 = vrot.slane %v9187, 5
      %v10035 = vsel %vm1558, %v10033, %v10034
      %v10036 = vrot.slane %v10034, 4
      %v10037 = vrot.slane %v9188, 5
      %v10038 = vsel %vm1558, %v10036, %v10037
      %v10039 = vrot.slane %v9885, 5
      %v10040 = vrot.slane %v10039, 4
      %v10041 = vrot.slane %v9190, 5
      %v10042 = vsel %vm1558, %v10040, %v10041
      %v10043 = vrot.slane %v10041, 4
      %v10044 = vrot.slane %v9191, 5
      %v10045 = vsel %vm1558, %v10043, %v10044
      %s10046 = scalar_lea.vmem %s2, 16
      %v10047 = vld [vmem:[%s10046] sm:$0x3]
      %v10048 = vunpack.c.l.b16 %v9937
      %v10049 = vunpack.c.l.b16 %v9940
      %v10050 = vunpack.c.l.b16 %v9944
      %v10051 = vunpack.c.l.b16 %v9947
      %v10052 = vunpack.c.l.b16 %v9951
      %v10053 = vunpack.c.l.b16 %v9954
      %v10054 = vunpack.c.l.b16 %v9958
      %v10055 = vunpack.c.l.b16 %v9961
      %v10056 = vunpack.c.l.b16 %v9965
      %v10057 = vunpack.c.l.b16 %v9968
      %v10058 = vunpack.c.l.b16 %v9972
      %v10059 = vunpack.c.l.b16 %v9975
      %v10060 = vunpack.c.l.b16 %v9979
      %v10061 = vunpack.c.l.b16 %v9982
      %v10062 = vunpack.c.l.b16 %v9986
      %v10063 = vunpack.c.l.b16 %v9989
      %v10064 = vunpack.c.l.b16 %v9993
      %v10065 = vunpack.c.l.b16 %v9996
      %v10066 = vunpack.c.l.b16 %v10000
      %v10067 = vunpack.c.l.b16 %v10003
      %v10068 = vunpack.c.l.b16 %v10007
      %v10069 = vunpack.c.l.b16 %v10010
      %v10070 = vunpack.c.l.b16 %v10014
      %v10071 = vunpack.c.l.b16 %v10017
      %v10072 = vunpack.c.l.b16 %v10021
      %v10073 = vunpack.c.l.b16 %v10024
      %v10074 = vunpack.c.l.b16 %v10028
      %v10075 = vunpack.c.l.b16 %v10031
      %v10076 = vunpack.c.l.b16 %v10035
      %v10077 = vunpack.c.l.b16 %v10038
      %v10078 = vunpack.c.l.b16 %v10042
      %v10079 = vunpack.c.l.b16 %v10045
      %v10080 = vpack.c.b16 %v10049, %v10048
      %v10081 = vpack.c.b16 %v10051, %v10050
      %v10082 = vpack.c.b16 %v10053, %v10052
      %v10083 = vpack.c.b16 %v10055, %v10054
      %v10084 = vpack.c.b16 %v10057, %v10056
      %v10085 = vpack.c.b16 %v10059, %v10058
      %v10086 = vpack.c.b16 %v10061, %v10060
      %v10087 = vpack.c.b16 %v10063, %v10062
      %v10088 = vpack.c.b16 %v10065, %v10064
      %v10089 = vpack.c.b16 %v10067, %v10066
      %v10090 = vpack.c.b16 %v10069, %v10068
      %v10091 = vpack.c.b16 %v10071, %v10070
      %v10092 = vpack.c.b16 %v10073, %v10072
      %v10093 = vpack.c.b16 %v10075, %v10074
      %v10094 = vpack.c.b16 %v10077, %v10076
      %v10095 = vpack.c.b16 %v10079, %v10078
      %v10097 = vsel %vm1002, %v10080, 0
      %v10100 = vsel %vm1002, %v10081, 0
      %v10103 = vsel %vm1002, %v10082, 0
      %v10106 = vsel %vm1002, %v10083, 0
      %v10109 = vsel %vm1002, %v10084, 0
      %v10112 = vsel %vm1002, %v10085, 0
      %v10115 = vsel %vm1002, %v10086, 0
      %v10118 = vsel %vm1002, %v10087, 0
      %v10121 = vsel %vm1002, %v10088, 0
      %v10124 = vsel %vm1002, %v10089, 0
      %v10127 = vsel %vm1002, %v10090, 0
      %v10130 = vsel %vm1002, %v10091, 0
      %v10133 = vsel %vm1002, %v10092, 0
      %v10136 = vsel %vm1002, %v10093, 0
      %v10139 = vsel %vm1002, %v10094, 0
      %v10142 = vsel %vm1002, %v10095, 0
      %v10145 = vsel %vm1051, %v10047, 0
      %10147 = vmatprep.subr.bf16.mxu0 0
      %10148 = vmatpush1.bf16.msra.mxu0 %v10145
      %10149 = vmatprep.subr.bf16.mxu0 0
      %10150 = vmatpush1.bf16.msra.mxu0 0
      %10151 = vmatprep.subr.bf16.mxu0 0
      %10152 = vmatpush1.bf16.msra.mxu0 0
      %10153 = vmatprep.subr.bf16.mxu0 0
      %10154 = vmatpush1.bf16.msra.mxu0 0
      %10155 = vmatprep.subr.bf16.mxu0 0
      %10156 = vmatpush1.bf16.msra.mxu0 0
      %10157 = vmatprep.subr.bf16.mxu0 0
      %10158 = vmatpush1.bf16.msra.mxu0 0
      %10159 = vmatprep.subr.bf16.mxu0 0
      %10160 = vmatpush1.bf16.msra.mxu0 0
      %10161 = vmatprep.subr.bf16.mxu0 0
      %10162 = vmatpush1.bf16.msra.mxu0 0
      %10163 = vmatprep.subr.bf16.mxu0 0
      %10164 = vmatpush1.bf16.msra.mxu0 0
      %10165 = vmatprep.subr.bf16.mxu0 0
      %10166 = vmatpush1.bf16.msra.mxu0 0
      %10167 = vmatprep.subr.bf16.mxu0 0
      %10168 = vmatpush1.bf16.msra.mxu0 0
      %10169 = vmatprep.subr.bf16.mxu0 0
      %10170 = vmatpush1.bf16.msra.mxu0 0
      %10171 = vmatprep.subr.bf16.mxu0 0
      %10172 = vmatpush1.bf16.msra.mxu0 0
      %10173 = vmatprep.subr.bf16.mxu0 0
      %10174 = vmatpush1.bf16.msra.mxu0 0
      %10175 = vmatprep.subr.bf16.mxu0 0
      %10176 = vmatpush1.bf16.msra.mxu0 0
      %10177 = vmatprep.subr.bf16.mxu0 0
      %10178 = vmatpush1.bf16.msra.mxu0 0
      %10179 = vmatprep.mubr.bf16.mxu0 0
      %10180 = vmatmul.mubr.bf16.gmra.mrb[0].mxu0 %v10097
      %v10181 = vpop.f32.mrb[0].mxu0
      %v10182 = vadd.f32 0.0, %v10181
      %v10183 = vpop.f32.mrb[0].mxu0
      %v10184 = vpop.f32.mrb[0].mxu0
      %v10185 = vadd.f32 0.0, %v10184
      %v10186 = vpop.f32.mrb[0].mxu0
      %10187 = vmatprep.mubr.bf16.mxu0 0
      %10188 = vmatmul.mubr.bf16.gmra.mrb[0].mxu0 %v10100
      %v10189 = vpop.f32.mrb[0].mxu0
      %v10190 = vadd.f32 0.0, %v10189
      %v10191 = vpop.f32.mrb[0].mxu0
      %v10192 = vpop.f32.mrb[0].mxu0
      %v10193 = vadd.f32 0.0, %v10192
      %v10194 = vpop.f32.mrb[0].mxu0
      %10195 = vmatprep.mubr.bf16.mxu0 0
      %10196 = vmatmul.mubr.bf16.gmra.mrb[0].mxu0 %v10103
      %v10197 = vpop.f32.mrb[0].mxu0
      %v10198 = vadd.f32 0.0, %v10197
      %v10199 = vpop.f32.mrb[0].mxu0
      %v10200 = vpop.f32.mrb[0].mxu0
      %v10201 = vadd.f32 0.0, %v10200
      %v10202 = vpop.f32.mrb[0].mxu0
      %10203 = vmatprep.mubr.bf16.mxu0 0
      %10204 = vmatmul.mubr.bf16.gmra.mrb[0].mxu0 %v10106
      %v10205 = vpop.f32.mrb[0].mxu0
      %v10206 = vadd.f32 0.0, %v10205
      %v10207 = vpop.f32.mrb[0].mxu0
      %v10208 = vpop.f32.mrb[0].mxu0
      %v10209 = vadd.f32 0.0, %v10208
      %v10210 = vpop.f32.mrb[0].mxu0
      %10211 = vmatprep.mubr.bf16.mxu0 0
      %10212 = vmatmul.mubr.bf16.gmra.mrb[0].mxu0 %v10109
      %v10213 = vpop.f32.mrb[0].mxu0
      %v10214 = vadd.f32 0.0, %v10213
      %v10215 = vpop.f32.mrb[0].mxu0
      %v10216 = vpop.f32.mrb[0].mxu0
      %v10217 = vadd.f32 0.0, %v10216
      %v10218 = vpop.f32.mrb[0].mxu0
      %10219 = vmatprep.mubr.bf16.mxu0 0
      %10220 = vmatmul.mubr.bf16.gmra.mrb[0].mxu0 %v10112
      %v10221 = vpop.f32.mrb[0].mxu0
      %v10222 = vadd.f32 0.0, %v10221
      %v10223 = vpop.f32.mrb[0].mxu0
      %v10224 = vpop.f32.mrb[0].mxu0
      %v10225 = vadd.f32 0.0, %v10224
      %v10226 = vpop.f32.mrb[0].mxu0
      %10227 = vmatprep.mubr.bf16.mxu0 0
      %10228 = vmatmul.mubr.bf16.gmra.mrb[0].mxu0 %v10115
      %v10229 = vpop.f32.mrb[0].mxu0
      %v10230 = vadd.f32 0.0, %v10229
      %v10231 = vpop.f32.mrb[0].mxu0
      %v10232 = vpop.f32.mrb[0].mxu0
      %v10233 = vadd.f32 0.0, %v10232
      %v10234 = vpop.f32.mrb[0].mxu0
      %10235 = vmatprep.mubr.bf16.mxu0 0
      %10236 = vmatmul.mubr.bf16.gmra.mrb[0].mxu0 %v10118
      %v10237 = vpop.f32.mrb[0].mxu0
      %v10238 = vadd.f32 0.0, %v10237
      %v10239 = vpop.f32.mrb[0].mxu0
      %v10240 = vpop.f32.mrb[0].mxu0
      %v10241 = vadd.f32 0.0, %v10240
      %v10242 = vpop.f32.mrb[0].mxu0
      %10243 = vmatprep.mubr.bf16.mxu0 0
      %10244 = vmatmul.mubr.bf16.gmra.mrb[0].mxu0 %v10121
      %v10245 = vpop.f32.mrb[0].mxu0
      %v10246 = vadd.f32 0.0, %v10245
      %v10247 = vpop.f32.mrb[0].mxu0
      %v10248 = vpop.f32.mrb[0].mxu0
      %v10249 = vadd.f32 0.0, %v10248
      %v10250 = vpop.f32.mrb[0].mxu0
      %10251 = vmatprep.mubr.bf16.mxu0 0
      %10252 = vmatmul.mubr.bf16.gmra.mrb[0].mxu0 %v10124
      %v10253 = vpop.f32.mrb[0].mxu0
      %v10254 = vadd.f32 0.0, %v10253
      %v10255 = vpop.f32.mrb[0].mxu0
      %v10256 = vpop.f32.mrb[0].mxu0
      %v10257 = vadd.f32 0.0, %v10256
      %v10258 = vpop.f32.mrb[0].mxu0
      %10259 = vmatprep.mubr.bf16.mxu0 0
      %10260 = vmatmul.mubr.bf16.gmra.mrb[0].mxu0 %v10127
      %v10261 = vpop.f32.mrb[0].mxu0
      %v10262 = vadd.f32 0.0, %v10261
      %v10263 = vpop.f32.mrb[0].mxu0
      %v10264 = vpop.f32.mrb[0].mxu0
      %v10265 = vadd.f32 0.0, %v10264
      %v10266 = vpop.f32.mrb[0].mxu0
      %10267 = vmatprep.mubr.bf16.mxu0 0
      %10268 = vmatmul.mubr.bf16.gmra.mrb[0].mxu0 %v10130
      %v10269 = vpop.f32.mrb[0].mxu0
      %v10270 = vadd.f32 0.0, %v10269
      %v10271 = vpop.f32.mrb[0].mxu0
      %v10272 = vpop.f32.mrb[0].mxu0
      %v10273 = vadd.f32 0.0, %v10272
      %v10274 = vpop.f32.mrb[0].mxu0
      %10275 = vmatprep.mubr.bf16.mxu0 0
      %10276 = vmatmul.mubr.bf16.gmra.mrb[0].mxu0 %v10133
      %v10277 = vpop.f32.mrb[0].mxu0
      %v10278 = vadd.f32 0.0, %v10277
      %v10279 = vpop.f32.mrb[0].mxu0
      %v10280 = vpop.f32.mrb[0].mxu0
      %v10281 = vadd.f32 0.0, %v10280
      %v10282 = vpop.f32.mrb[0].mxu0
      %10283 = vmatprep.mubr.bf16.mxu0 0
      %10284 = vmatmul.mubr.bf16.gmra.mrb[0].mxu0 %v10136
      %v10285 = vpop.f32.mrb[0].mxu0
      %v10286 = vadd.f32 0.0, %v10285
      %v10287 = vpop.f32.mrb[0].mxu0
      %v10288 = vpop.f32.mrb[0].mxu0
      %v10289 = vadd.f32 0.0, %v10288
      %v10290 = vpop.f32.mrb[0].mxu0
      %10291 = vmatprep.mubr.bf16.mxu0 0
      %10292 = vmatmul.mubr.bf16.gmra.mrb[0].mxu0 %v10139
      %v10293 = vpop.f32.mrb[0].mxu0
      %v10294 = vadd.f32 0.0, %v10293
      %v10295 = vpop.f32.mrb[0].mxu0
      %v10296 = vpop.f32.mrb[0].mxu0
      %v10297 = vadd.f32 0.0, %v10296
      %v10298 = vpop.f32.mrb[0].mxu0
      %10299 = vmatprep.mubr.bf16.mxu0 0
      %10300 = vmatmul.mubr.bf16.gmra.mrb[0].mxu0 %v10142
      %v10301 = vpop.f32.mrb[0].mxu0
      %v10302 = vadd.f32 0.0, %v10301
      %v10303 = vpop.f32.mrb[0].mxu0
      %v10304 = vpop.f32.mrb[0].mxu0
      %v10305 = vadd.f32 0.0, %v10304
      %v10306 = vpop.f32.mrb[0].mxu0
      %10307 = vdwg.mxu0
      %v10308 = vadd.f32 %v9838, %v10182
      %v10309 = vadd.f32 %v9839, %v10185
      %v10310 = vadd.f32 %v9840, %v10190
      %v10311 = vadd.f32 %v9841, %v10193
      %v10312 = vadd.f32 %v9842, %v10198
      %v10313 = vadd.f32 %v9843, %v10201
      %v10314 = vadd.f32 %v9844, %v10206
      %v10315 = vadd.f32 %v9845, %v10209
      %v10316 = vadd.f32 %v9846, %v10214
      %v10317 = vadd.f32 %v9847, %v10217
      %v10318 = vadd.f32 %v9848, %v10222
      %v10319 = vadd.f32 %v9849, %v10225
      %v10320 = vadd.f32 %v9850, %v10230
      %v10321 = vadd.f32 %v9851, %v10233
      %v10322 = vadd.f32 %v9852, %v10238
      %v10323 = vadd.f32 %v9853, %v10241
      %v10324 = vadd.f32 %v9854, %v10246
      %v10325 = vadd.f32 %v9855, %v10249
      %v10326 = vadd.f32 %v9856, %v10254
      %v10327 = vadd.f32 %v9857, %v10257
      %v10328 = vadd.f32 %v9858, %v10262
      %v10329 = vadd.f32 %v9859, %v10265
      %v10330 = vadd.f32 %v9860, %v10270
      %v10331 = vadd.f32 %v9861, %v10273
      %v10332 = vadd.f32 %v9862, %v10278
      %v10333 = vadd.f32 %v9863, %v10281
      %v10334 = vadd.f32 %v9864, %v10286
      %v10335 = vadd.f32 %v9865, %v10289
      %v10336 = vadd.f32 %v9866, %v10294
      %v10337 = vadd.f32 %v9867, %v10297
      %v10338 = vadd.f32 %v9868, %v10302
      %v10339 = vadd.f32 %v9869, %v10305
      %v10340 = vsel %vm1002, %v10308, 0.0
      %v10341 = vsel %vm1002, %v10309, 0.0
      %v10342 = vadd.f32 %v10340, %v10341
      %v10343 = vsel %vm1002, %v10310, 0.0
      %v10344 = vadd.f32 %v10342, %v10343
      %v10345 = vsel %vm1002, %v10311, 0.0
      %v10346 = vadd.f32 %v10344, %v10345
      %v10347 = vsel %vm1002, %v10312, 0.0
      %v10348 = vadd.f32 %v10346, %v10347
      %v10349 = vsel %vm1002, %v10313, 0.0
      %v10350 = vadd.f32 %v10348, %v10349
      %v10351 = vsel %vm1002, %v10314, 0.0
      %v10352 = vadd.f32 %v10350, %v10351
      %v10353 = vsel %vm1002, %v10315, 0.0
      %v10354 = vadd.f32 %v10352, %v10353
      %v10355 = vsel %vm1002, %v10316, 0.0
      %v10356 = vadd.f32 %v10354, %v10355
      %v10357 = vsel %vm1002, %v10317, 0.0
      %v10358 = vadd.f32 %v10356, %v10357
      %v10359 = vsel %vm1002, %v10318, 0.0
      %v10360 = vadd.f32 %v10358, %v10359
      %v10361 = vsel %vm1002, %v10319, 0.0
      %v10362 = vadd.f32 %v10360, %v10361
      %v10363 = vsel %vm1002, %v10320, 0.0
      %v10364 = vadd.f32 %v10362, %v10363
      %v10365 = vsel %vm1002, %v10321, 0.0
      %v10366 = vadd.f32 %v10364, %v10365
      %v10367 = vsel %vm1002, %v10322, 0.0
      %v10368 = vadd.f32 %v10366, %v10367
      %v10369 = vsel %vm1002, %v10323, 0.0
      %v10370 = vadd.f32 %v10368, %v10369
      %v10371 = vsel %vm1002, %v10324, 0.0
      %v10372 = vadd.f32 %v10370, %v10371
      %v10373 = vsel %vm1002, %v10325, 0.0
      %v10374 = vadd.f32 %v10372, %v10373
      %v10375 = vsel %vm1002, %v10326, 0.0
      %v10376 = vadd.f32 %v10374, %v10375
      %v10377 = vsel %vm1002, %v10327, 0.0
      %v10378 = vadd.f32 %v10376, %v10377
      %v10379 = vsel %vm1002, %v10328, 0.0
      %v10380 = vadd.f32 %v10378, %v10379
      %v10381 = vsel %vm1002, %v10329, 0.0
      %v10382 = vadd.f32 %v10380, %v10381
      %v10383 = vsel %vm1002, %v10330, 0.0
      %v10384 = vadd.f32 %v10382, %v10383
      %v10385 = vsel %vm1002, %v10331, 0.0
      %v10386 = vadd.f32 %v10384, %v10385
      %v10387 = vsel %vm1002, %v10332, 0.0
      %v10388 = vadd.f32 %v10386, %v10387
      %v10389 = vsel %vm1002, %v10333, 0.0
      %v10390 = vadd.f32 %v10388, %v10389
      %v10391 = vsel %vm1002, %v10334, 0.0
      %v10392 = vadd.f32 %v10390, %v10391
      %v10393 = vsel %vm1002, %v10335, 0.0
      %v10394 = vadd.f32 %v10392, %v10393
      %v10395 = vsel %vm1002, %v10336, 0.0
      %v10396 = vadd.f32 %v10394, %v10395
      %v10397 = vsel %vm1002, %v10337, 0.0
      %v10398 = vadd.f32 %v10396, %v10397
      %v10399 = vsel %vm1002, %v10338, 0.0
      %v10400 = vadd.f32 %v10398, %v10399
      %v10401 = vsel %vm1002, %v10339, 0.0
      %v10402 = vadd.f32 %v10400, %v10401
      %v10403 = vrot.slane %v10402, 4
      %v10404 = vadd.f32 %v10402, %v10403
      %v10405 = vrot.slane %v10404, 2
      %v10406 = vadd.f32 %v10404, %v10405
      %v10407 = vrot.slane %v10406, 1
      %v10408 = vadd.f32 %v10406, %v10407
      %v10409 = vmul.f32 %v10308, %v10308
      %v10410 = vmul.f32 %v10309, %v10309
      %v10411 = vmul.f32 %v10310, %v10310
      %v10412 = vmul.f32 %v10311, %v10311
      %v10413 = vmul.f32 %v10312, %v10312
      %v10414 = vmul.f32 %v10313, %v10313
      %v10415 = vmul.f32 %v10314, %v10314
      %v10416 = vmul.f32 %v10315, %v10315
      %v10417 = vmul.f32 %v10316, %v10316
      %v10418 = vmul.f32 %v10317, %v10317
      %v10419 = vmul.f32 %v10318, %v10318
      %v10420 = vmul.f32 %v10319, %v10319
      %v10421 = vmul.f32 %v10320, %v10320
      %v10422 = vmul.f32 %v10321, %v10321
      %v10423 = vmul.f32 %v10322, %v10322
      %v10424 = vmul.f32 %v10323, %v10323
      %v10425 = vmul.f32 %v10324, %v10324
      %v10426 = vmul.f32 %v10325, %v10325
      %v10427 = vmul.f32 %v10326, %v10326
      %v10428 = vmul.f32 %v10327, %v10327
      %v10429 = vmul.f32 %v10328, %v10328
      %v10430 = vmul.f32 %v10329, %v10329
      %v10431 = vmul.f32 %v10330, %v10330
      %v10432 = vmul.f32 %v10331, %v10331
      %v10433 = vmul.f32 %v10332, %v10332
      %v10434 = vmul.f32 %v10333, %v10333
      %v10435 = vmul.f32 %v10334, %v10334
      %v10436 = vmul.f32 %v10335, %v10335
      %v10437 = vmul.f32 %v10336, %v10336
      %v10438 = vmul.f32 %v10337, %v10337
      %v10439 = vmul.f32 %v10338, %v10338
      %v10440 = vmul.f32 %v10339, %v10339
      %v10441 = vsel %vm1002, %v10409, 0.0
      %v10442 = vsel %vm1002, %v10410, 0.0
      %v10443 = vadd.f32 %v10441, %v10442
      %v10444 = vsel %vm1002, %v10411, 0.0
      %v10445 = vadd.f32 %v10443, %v10444
      %v10446 = vsel %vm1002, %v10412, 0.0
      %v10447 = vadd.f32 %v10445, %v10446
      %v10448 = vsel %vm1002, %v10413, 0.0
      %v10449 = vadd.f32 %v10447, %v10448
      %v10450 = vsel %vm1002, %v10414, 0.0
      %v10451 = vadd.f32 %v10449, %v10450
      %v10452 = vsel %vm1002, %v10415, 0.0
      %v10453 = vadd.f32 %v10451, %v10452
      %v10454 = vsel %vm1002, %v10416, 0.0
      %v10455 = vadd.f32 %v10453, %v10454
      %v10456 = vsel %vm1002, %v10417, 0.0
      %v10457 = vadd.f32 %v10455, %v10456
      %v10458 = vsel %vm1002, %v10418, 0.0
      %v10459 = vadd.f32 %v10457, %v10458
      %v10460 = vsel %vm1002, %v10419, 0.0
      %v10461 = vadd.f32 %v10459, %v10460
      %v10462 = vsel %vm1002, %v10420, 0.0
      %v10463 = vadd.f32 %v10461, %v10462
      %v10464 = vsel %vm1002, %v10421, 0.0
      %v10465 = vadd.f32 %v10463, %v10464
      %v10466 = vsel %vm1002, %v10422, 0.0
      %v10467 = vadd.f32 %v10465, %v10466
      %v10468 = vsel %vm1002, %v10423, 0.0
      %v10469 = vadd.f32 %v10467, %v10468
      %v10470 = vsel %vm1002, %v10424, 0.0
      %v10471 = vadd.f32 %v10469, %v10470
      %v10472 = vsel %vm1002, %v10425, 0.0
      %v10473 = vadd.f32 %v10471, %v10472
      %v10474 = vsel %vm1002, %v10426, 0.0
      %v10475 = vadd.f32 %v10473, %v10474
      %v10476 = vsel %vm1002, %v10427, 0.0
      %v10477 = vadd.f32 %v10475, %v10476
      %v10478 = vsel %vm1002, %v10428, 0.0
      %v10479 = vadd.f32 %v10477, %v10478
      %v10480 = vsel %vm1002, %v10429, 0.0
      %v10481 = vadd.f32 %v10479, %v10480
      %v10482 = vsel %vm1002, %v10430, 0.0
      %v10483 = vadd.f32 %v10481, %v10482
      %v10484 = vsel %vm1002, %v10431, 0.0
      %v10485 = vadd.f32 %v10483, %v10484
      %v10486 = vsel %vm1002, %v10432, 0.0
      %v10487 = vadd.f32 %v10485, %v10486
      %v10488 = vsel %vm1002, %v10433, 0.0
      %v10489 = vadd.f32 %v10487, %v10488
      %v10490 = vsel %vm1002, %v10434, 0.0
      %v10491 = vadd.f32 %v10489, %v10490
      %v10492 = vsel %vm1002, %v10435, 0.0
      %v10493 = vadd.f32 %v10491, %v10492
      %v10494 = vsel %vm1002, %v10436, 0.0
      %v10495 = vadd.f32 %v10493, %v10494
      %v10496 = vsel %vm1002, %v10437, 0.0
      %v10497 = vadd.f32 %v10495, %v10496
      %v10498 = vsel %vm1002, %v10438, 0.0
      %v10499 = vadd.f32 %v10497, %v10498
      %v10500 = vsel %vm1002, %v10439, 0.0
      %v10501 = vadd.f32 %v10499, %v10500
      %v10502 = vsel %vm1002, %v10440, 0.0
      %v10503 = vadd.f32 %v10501, %v10502
      %v10504 = vrot.slane %v10503, 4
      %v10505 = vadd.f32 %v10503, %v10504
      %v10506 = vrot.slane %v10505, 2
      %v10507 = vadd.f32 %v10505, %v10506
      %v10508 = vrot.slane %v10507, 1
      %v10509 = vadd.f32 %v10507, %v10508
      %v10510 = vmul.f32 %v10408, 0.00390625
      %v10511 = vmul.f32 %v10509, 0.00390625
      %v10512 = vmul.f32 %v10510, %v10510
      %v10513 = vsub.f32 %v10511, %v10512
      %v10514 = vmax.f32 %v10513, 0.0
      %v10515 = vadd.f32 %v10514, 1e-05
      %v10516 = vrsqrt.pop %v10515
      %v10517 = vsub.f32 %v10308, %v10510
      %v10518 = vsub.f32 %v10309, %v10510
      %v10519 = vsub.f32 %v10310, %v10510
      %v10520 = vsub.f32 %v10311, %v10510
      %v10521 = vsub.f32 %v10312, %v10510
      %v10522 = vsub.f32 %v10313, %v10510
      %v10523 = vsub.f32 %v10314, %v10510
      %v10524 = vsub.f32 %v10315, %v10510
      %v10525 = vsub.f32 %v10316, %v10510
      %v10526 = vsub.f32 %v10317, %v10510
      %v10527 = vsub.f32 %v10318, %v10510
      %v10528 = vsub.f32 %v10319, %v10510
      %v10529 = vsub.f32 %v10320, %v10510
      %v10530 = vsub.f32 %v10321, %v10510
      %v10531 = vsub.f32 %v10322, %v10510
      %v10532 = vsub.f32 %v10323, %v10510
      %v10533 = vsub.f32 %v10324, %v10510
      %v10534 = vsub.f32 %v10325, %v10510
      %v10535 = vsub.f32 %v10326, %v10510
      %v10536 = vsub.f32 %v10327, %v10510
      %v10537 = vsub.f32 %v10328, %v10510
      %v10538 = vsub.f32 %v10329, %v10510
      %v10539 = vsub.f32 %v10330, %v10510
      %v10540 = vsub.f32 %v10331, %v10510
      %v10541 = vsub.f32 %v10332, %v10510
      %v10542 = vsub.f32 %v10333, %v10510
      %v10543 = vsub.f32 %v10334, %v10510
      %v10544 = vsub.f32 %v10335, %v10510
      %v10545 = vsub.f32 %v10336, %v10510
      %v10546 = vsub.f32 %v10337, %v10510
      %v10547 = vsub.f32 %v10338, %v10510
      %v10548 = vsub.f32 %v10339, %v10510
      %v10549 = vmul.f32 %v10517, %v10516
      %v10550 = vmul.f32 %v10518, %v10516
      %v10551 = vmul.f32 %v10519, %v10516
      %v10552 = vmul.f32 %v10520, %v10516
      %v10553 = vmul.f32 %v10521, %v10516
      %v10554 = vmul.f32 %v10522, %v10516
      %v10555 = vmul.f32 %v10523, %v10516
      %v10556 = vmul.f32 %v10524, %v10516
      %v10557 = vmul.f32 %v10525, %v10516
      %v10558 = vmul.f32 %v10526, %v10516
      %v10559 = vmul.f32 %v10527, %v10516
      %v10560 = vmul.f32 %v10528, %v10516
      %v10561 = vmul.f32 %v10529, %v10516
      %v10562 = vmul.f32 %v10530, %v10516
      %v10563 = vmul.f32 %v10531, %v10516
      %v10564 = vmul.f32 %v10532, %v10516
      %v10565 = vmul.f32 %v10533, %v10516
      %v10566 = vmul.f32 %v10534, %v10516
      %v10567 = vmul.f32 %v10535, %v10516
      %v10568 = vmul.f32 %v10536, %v10516
      %v10569 = vmul.f32 %v10537, %v10516
      %v10570 = vmul.f32 %v10538, %v10516
      %v10571 = vmul.f32 %v10539, %v10516
      %v10572 = vmul.f32 %v10540, %v10516
      %v10573 = vmul.f32 %v10541, %v10516
      %v10574 = vmul.f32 %v10542, %v10516
      %v10575 = vmul.f32 %v10543, %v10516
      %v10576 = vmul.f32 %v10544, %v10516
      %v10577 = vmul.f32 %v10545, %v10516
      %v10578 = vmul.f32 %v10546, %v10516
      %v10579 = vmul.f32 %v10547, %v10516
      %v10580 = vmul.f32 %v10548, %v10516
      %v10581 = vmax.f32 %v10549, 0.0
      %v10582 = vmax.f32 %v10550, 0.0
      %v10583 = vmax.f32 %v10551, 0.0
      %v10584 = vmax.f32 %v10552, 0.0
      %v10585 = vmax.f32 %v10553, 0.0
      %v10586 = vmax.f32 %v10554, 0.0
      %v10587 = vmax.f32 %v10555, 0.0
      %v10588 = vmax.f32 %v10556, 0.0
      %v10589 = vmax.f32 %v10557, 0.0
      %v10590 = vmax.f32 %v10558, 0.0
      %v10591 = vmax.f32 %v10559, 0.0
      %v10592 = vmax.f32 %v10560, 0.0
      %v10593 = vmax.f32 %v10561, 0.0
      %v10594 = vmax.f32 %v10562, 0.0
      %v10595 = vmax.f32 %v10563, 0.0
      %v10596 = vmax.f32 %v10564, 0.0
      %v10597 = vmax.f32 %v10565, 0.0
      %v10598 = vmax.f32 %v10566, 0.0
      %v10599 = vmax.f32 %v10567, 0.0
      %v10600 = vmax.f32 %v10568, 0.0
      %v10601 = vmax.f32 %v10569, 0.0
      %v10602 = vmax.f32 %v10570, 0.0
      %v10603 = vmax.f32 %v10571, 0.0
      %v10604 = vmax.f32 %v10572, 0.0
      %v10605 = vmax.f32 %v10573, 0.0
      %v10606 = vmax.f32 %v10574, 0.0
      %v10607 = vmax.f32 %v10575, 0.0
      %v10608 = vmax.f32 %v10576, 0.0
      %v10609 = vmax.f32 %v10577, 0.0
      %v10610 = vmax.f32 %v10578, 0.0
      %v10611 = vmax.f32 %v10579, 0.0
      %v10612 = vmax.f32 %v10580, 0.0
      %s10613 = scalar_lea.vmem %s165, 24
      %v10614 = vld [vmem:[%s10613 + $0x1] sm:$0xff]
      %v10615 = vld [vmem:[%s10613 + $0x9] sm:$0xff]
      %v10616 = vld [vmem:[%s10613 + $0x19] sm:$0xff]
      %v10617 = vld [vmem:[%s10613 + $0x21] sm:$0xff]
      %v10618 = vld [vmem:[%s10613 + $0x31] sm:$0xff]
      %v10619 = vld [vmem:[%s10613 + $0x39] sm:$0xff]
      %v10620 = vld [vmem:[%s10613 + $0x49] sm:$0xff]
      %v10621 = vld [vmem:[%s10613 + $0x51] sm:$0xff]
      %v10622 = vld [vmem:[%s10613 + $0x61] sm:$0xff]
      %v10623 = vld [vmem:[%s10613 + $0x69] sm:$0xff]
      %v10624 = vld [vmem:[%s10613 + $0x79] sm:$0xff]
      %v10625 = vld [vmem:[%s10613 + $0x81] sm:$0xff]
      %v10626 = vld [vmem:[%s10613 + $0x91] sm:$0xff]
      %v10627 = vld [vmem:[%s10613 + $0x99] sm:$0xff]
      %v10628 = vld [vmem:[%s10613 + $0xa9] sm:$0xff]
      %v10629 = vld [vmem:[%s10613 + $0xb1] sm:$0xff]
      %v10630 = vld [vmem:[%s10613 + $0xc1] sm:$0xff]
      %v10631 = vld [vmem:[%s10613 + $0xc9] sm:$0xff]
      %v10632 = vld [vmem:[%s10613 + $0xd9] sm:$0xff]
      %v10633 = vld [vmem:[%s10613 + $0xe1] sm:$0xff]
      %v10634 = vld [vmem:[%s10613 + $0xf1] sm:$0xff]
      %v10635 = vld [vmem:[%s10613 + $0xf9] sm:$0xff]
      %v10636 = vld [vmem:[%s10613 + $0x109] sm:$0xff]
      %v10637 = vld [vmem:[%s10613 + $0x111] sm:$0xff]
      %v10638 = vld [vmem:[%s10613 + $0x121] sm:$0xff]
      %v10639 = vld [vmem:[%s10613 + $0x129] sm:$0xff]
      %v10640 = vld [vmem:[%s10613 + $0x139] sm:$0xff]
      %v10641 = vld [vmem:[%s10613 + $0x141] sm:$0xff]
      %v10642 = vld [vmem:[%s10613 + $0x151] sm:$0xff]
      %v10643 = vld [vmem:[%s10613 + $0x159] sm:$0xff]
      %v10644 = vld [vmem:[%s10613 + $0x169] sm:$0xff]
      %v10645 = vld [vmem:[%s10613 + $0x171] sm:$0xff]
      %v10646 = vadd.f32 %v10581, %v10614
      %v10647 = vadd.f32 %v10582, %v10615
      %v10648 = vadd.f32 %v10583, %v10616
      %v10649 = vadd.f32 %v10584, %v10617
      %v10650 = vadd.f32 %v10585, %v10618
      %v10651 = vadd.f32 %v10586, %v10619
      %v10652 = vadd.f32 %v10587, %v10620
      %v10653 = vadd.f32 %v10588, %v10621
      %v10654 = vadd.f32 %v10589, %v10622
      %v10655 = vadd.f32 %v10590, %v10623
      %v10656 = vadd.f32 %v10591, %v10624
      %v10657 = vadd.f32 %v10592, %v10625
      %v10658 = vadd.f32 %v10593, %v10626
      %v10659 = vadd.f32 %v10594, %v10627
      %v10660 = vadd.f32 %v10595, %v10628
      %v10661 = vadd.f32 %v10596, %v10629
      %v10662 = vadd.f32 %v10597, %v10630
      %v10663 = vadd.f32 %v10598, %v10631
      %v10664 = vadd.f32 %v10599, %v10632
      %v10665 = vadd.f32 %v10600, %v10633
      %v10666 = vadd.f32 %v10601, %v10634
      %v10667 = vadd.f32 %v10602, %v10635
      %v10668 = vadd.f32 %v10603, %v10636
      %v10669 = vadd.f32 %v10604, %v10637
      %v10670 = vadd.f32 %v10605, %v10638
      %v10671 = vadd.f32 %v10606, %v10639
      %v10672 = vadd.f32 %v10607, %v10640
      %v10673 = vadd.f32 %v10608, %v10641
      %v10674 = vadd.f32 %v10609, %v10642
      %v10675 = vadd.f32 %v10610, %v10643
      %v10676 = vadd.f32 %v10611, %v10644
      %v10677 = vadd.f32 %v10612, %v10645
      %10678 = vst.msk [vmem:[%s170] sm:$0xff] %vm1002, %v10646
      %10679 = vst.msk [vmem:[%s170 + $0x8] sm:$0xff] %vm1002, %v10647
      %10680 = vst.msk [vmem:[%s170 + $0x10] sm:$0xff] %vm1002, %v10648
      %10681 = vst.msk [vmem:[%s170 + $0x18] sm:$0xff] %vm1002, %v10649
      %10682 = vst.msk [vmem:[%s170 + $0x20] sm:$0xff] %vm1002, %v10650
      %10683 = vst.msk [vmem:[%s170 + $0x28] sm:$0xff] %vm1002, %v10651
      %10684 = vst.msk [vmem:[%s170 + $0x30] sm:$0xff] %vm1002, %v10652
      %10685 = vst.msk [vmem:[%s170 + $0x38] sm:$0xff] %vm1002, %v10653
      %10686 = vst.msk [vmem:[%s170 + $0x40] sm:$0xff] %vm1002, %v10654
      %10687 = vst.msk [vmem:[%s170 + $0x48] sm:$0xff] %vm1002, %v10655
      %10688 = vst.msk [vmem:[%s170 + $0x50] sm:$0xff] %vm1002, %v10656
      %10689 = vst.msk [vmem:[%s170 + $0x58] sm:$0xff] %vm1002, %v10657
      %10690 = vst.msk [vmem:[%s170 + $0x60] sm:$0xff] %vm1002, %v10658
      %10691 = vst.msk [vmem:[%s170 + $0x68] sm:$0xff] %vm1002, %v10659
      %10692 = vst.msk [vmem:[%s170 + $0x70] sm:$0xff] %vm1002, %v10660
      %10693 = vst.msk [vmem:[%s170 + $0x78] sm:$0xff] %vm1002, %v10661
      %10694 = vst.msk [vmem:[%s170 + $0x80] sm:$0xff] %vm1002, %v10662
      %10695 = vst.msk [vmem:[%s170 + $0x88] sm:$0xff] %vm1002, %v10663
      %10696 = vst.msk [vmem:[%s170 + $0x90] sm:$0xff] %vm1002, %v10664
      %10697 = vst.msk [vmem:[%s170 + $0x98] sm:$0xff] %vm1002, %v10665
      %10698 = vst.msk [vmem:[%s170 + $0xa0] sm:$0xff] %vm1002, %v10666
      %10699 = vst.msk [vmem:[%s170 + $0xa8] sm:$0xff] %vm1002, %v10667
      %10700 = vst.msk [vmem:[%s170 + $0xb0] sm:$0xff] %vm1002, %v10668
      %10701 = vst.msk [vmem:[%s170 + $0xb8] sm:$0xff] %vm1002, %v10669
      %10702 = vst.msk [vmem:[%s170 + $0xc0] sm:$0xff] %vm1002, %v10670
      %10703 = vst.msk [vmem:[%s170 + $0xc8] sm:$0xff] %vm1002, %v10671
      %10704 = vst.msk [vmem:[%s170 + $0xd0] sm:$0xff] %vm1002, %v10672
      %10705 = vst.msk [vmem:[%s170 + $0xd8] sm:$0xff] %vm1002, %v10673
      %10706 = vst.msk [vmem:[%s170 + $0xe0] sm:$0xff] %vm1002, %v10674
      %10707 = vst.msk [vmem:[%s170 + $0xe8] sm:$0xff] %vm1002, %v10675
      %10708 = vst.msk [vmem:[%s170 + $0xf0] sm:$0xff] %vm1002, %v10676
      %10709 = vst.msk [vmem:[%s170 + $0xf8] sm:$0xff] %vm1002, %v10677
      %p10710 = scmp.lt.s32.totalorder %s14, 1
      %s10711 = scalar_select %p10710, %s14, 1
      %s10712 = smul.addr %s10711, 32
      %s10713 = smul.addr %s10712, 8
      %s10714 = scalar_lea.vmem %s3, %s10713
      // Predicated region
      $region33: #{resnet_block.1} parent=31 // pred_check
        %p10715 = pneg %p100
      $region34: #{resnet_block.1} parent=31 // pred_check_branch
        %10717 = sbr.rel (%p10715) target = $region36
      $region35: #{resnet_block.1} parent=31 // pred_region
        _
      $region36: #{resnet_block.1} parent=31 // pred_fallthru
        _
    $region32: #{resnet_block.1} parent=5 // pred_fallthru
      _
    %p10718 = scmp.le.s32.totalorder 2, %s9
    // Predicated region
    $region37: #{resnet_block.1} parent=5 // pred_check
      %p10719 = pneg %p10718
    $region38: #{resnet_block.1} parent=5 // pred_check_branch
      %10721 = sbr.rel (%p10719) target = $region40
    $region39: #{resnet_block.1} parent=5 // pred_region
      %s10722 = ssub.s32 %s9, 2
      // Predicated region
      $region41: #{resnet_block.1} parent=39 // pred_check
        %p10723 = pneg %p106
      $region42: #{resnet_block.1} parent=39 // pred_check_branch
        %10725 = sbr.rel (%p10723) target = $region44
      $region43: #{resnet_block.1} parent=39 // pred_region
        %p10726 = scmp.lt.s32.totalorder %s15, 1
        %s10727 = scalar_select %p10726, %s15, 1
        %s10728 = smul.addr %s10727, 32
        %s10729 = smul.addr %s10728, 8
        %s10730 = scalar_lea.vmem %s3, %s10729
      $region44: #{resnet_block.1} parent=39 // pred_fallthru
        _
    $region40: #{resnet_block.1} parent=5 // pred_fallthru
      _
  $region6: #{resnet_block.1} parent=0 // loop_footer
    %s13 = sadd.s32 1, %s9
  $region7: #{resnet_block.1} parent=0 // loop_footer_branch
    %8 = sbr.rel target = $region3
  $region8: #{resnet_block.1} parent=0 // loop_exit
    _

</llo_original>
